<compile_context>
chip_gen: v6e
topology: v6e:2x2x1
jax: 0.10.0
libtpu: 0.0.40
codegen_flags: <defaults>
</compile_context>

<pallas_src>
import functools

import jax
import jax.numpy as jnp
import numpy as np
from jax.experimental import pallas as pl
from jax.experimental.pallas import tpu as pltpu

INPUT_SIZE = 34        # 17 keypoints * (x, y)
OUTPUT_SIZE = 9        # LocoModel: (output_size - 1) = 8 outputs + 1 aux
LINEAR_SIZE = 1024     # Loco default linear_size
OUT_LANES = 128        # lane-dense output slab width
AUX_LANES = 128        # lane padding appended to w3 to carry the aux column
BN_EPS = 1e-5
_TM_TARGET = 512       # max batch tile (rows)


# ---------------------------------------------------------------------------
# Pallas kernel: full LocoModel MLP for one batch tile
# ---------------------------------------------------------------------------
def _loco_mlp_kernel(x_ref,
                     w1_ref, b1_ref,
                     sw1_ref, sb1_ref,
                     sw2_ref, sb2_ref,
                     w3a_ref, b3a_ref,
                     wfin_ref, bfin_ref,
                     out_ref):
    # w1 -> (folded) BatchNorm1 -> ReLU           (dropout = identity in eval)
    y = jnp.dot(x_ref[...].astype(w1_ref.dtype), w1_ref[...],
                preferred_element_type=jnp.float32) + b1_ref[...]
    y = jnp.maximum(y, 0.0)

    # MyLinearSimple residual stage (num_stage = 1), BN folded into weights
    r = jnp.dot(y.astype(sw1_ref.dtype), sw1_ref[...],
                preferred_element_type=jnp.float32) + sb1_ref[...]
    r = jnp.maximum(r, 0.0)
    r = jnp.dot(r.astype(sw2_ref.dtype), sw2_ref[...],
                preferred_element_type=jnp.float32) + sb2_ref[...]
    r = jnp.maximum(r, 0.0)
    y = y + r

    # Fused [w3*bn3_scale | w_aux | 0-pad] matmul: one MXU pass produces both
    # the final-trunk pre-activation (lanes 0..1023) and aux (lane 1024).
    za = jnp.dot(y.astype(w3a_ref.dtype), w3a_ref[...],
                 preferred_element_type=jnp.float32) + b3a_ref[...]
    z = jnp.maximum(za[:, :LINEAR_SIZE], 0.0)
    aux = za[:, LINEAR_SIZE:LINEAR_SIZE + 1]      # (tm, 1)

    # Final head on a lane-dense (tm, 128) slab; real outputs in lanes 0..7.
    fin = jnp.dot(z.astype(wfin_ref.dtype), wfin_ref[...],
                  preferred_element_type=jnp.float32) + bfin_ref[...]

    # torch.cat((fin, aux), dim=1): drop aux into lane 8, single dense store.
    lane = jax.lax.broadcasted_iota(jnp.int32, fin.shape, 1)
    out_ref[...] = jnp.where(lane == OUTPUT_SIZE - 1, aux, fin)


_FUSED_ORDER = ('w1', 'b1', 's_w1', 's_b1', 's_w2', 's_b2',
                'w3a', 'b3a', 'w_fin', 'b_fin')


# ---------------------------------------------------------------------------
# One-time cached capability check for single-buffered weight operands
# ---------------------------------------------------------------------------
_CAPS = {}


def _probe_single_buffer():
    try:
        wspec = pl.BlockSpec((8, 128), lambda i: (0, 0),
                             pipeline_mode=pl.Buffered(1))

        def _probe(w_ref, o_ref):
            o_ref[...] = w_ref[...] + 1.0

        call = pl.pallas_call(
            _probe,
            out_shape=jax.ShapeDtypeStruct((8, 128), jnp.float32),
            grid_spec=pltpu.PrefetchScalarGridSpec(
                num_scalar_prefetch=0,
                grid=(2,),
                in_specs=[wspec],
                out_specs=pl.BlockSpec((8, 128), lambda i: (0, 0)),
            ),
        )
        jax.jit(call).lower(jax.ShapeDtypeStruct((8, 128), jnp.float32)).compile()
        return True
    except Exception:
        return False


def _weights_single_buffered():
    """One-time cached check; never probed / blocked in the hot path."""
    flag = _CAPS.get('single_buffer')
    if flag is None:
        flag = _probe_single_buffer()
        _CAPS['single_buffer'] = flag
    return flag


# ---------------------------------------------------------------------------
# Tile selection and the pallas_call builder
# ---------------------------------------------------------------------------
def _round_up(v, q):
    return -(-v // q) * q


def _choose_tm(m):
    """Batch tile: up to 512 rows, multiple of 8, and (for non-trivial batches)
    at least 2 grid steps so ("parallel",) shards across v7x's 2 TensorCores."""
    m8 = _round_up(max(int(m), 1), 8)
    if m8 <= 64:                    # tiny batch: single small tile
        return m8
    if m8 <= 2 * _TM_TARGET:        # split into two tiles -> both TCs busy
        return _round_up(-(-m8 // 2), 8)
    return _TM_TARGET


def _mlp_call(x, params, *, tm, single_buffer):
    """x: (m, 34) -> (m, 128) slab (fin in lanes 0..7, aux in lane 8)."""
    m = x.shape[0]
    assert x.shape[1] == INPUT_SIZE
    assert tm % 8 == 0 and tm > 0

    def const_spec(p):
        shape = p.shape
        idx = lambda i, _shape=shape: (0,) * len(_shape)
        if single_buffer:
            # Constant index_map across the grid -> Pallas revisit detection
            # copies these once; Buffered(1) additionally halves resident VMEM.
            return pl.BlockSpec(shape, idx, pipeline_mode=pl.Buffered(1))
        return pl.BlockSpec(shape, idx)

    in_specs = [pl.BlockSpec((tm, INPUT_SIZE), lambda i: (i, 0))]
    in_specs += [const_spec(p) for p in params]

    return pl.pallas_call(
        _loco_mlp_kernel,
        out_shape=jax.ShapeDtypeStruct((m, OUT_LANES), jnp.float32),
        grid_spec=pltpu.PrefetchScalarGridSpec(
            num_scalar_prefetch=0,
            grid=(pl.cdiv(m, tm),),          # ragged last tile: no host-side pad
            in_specs=in_specs,
            out_specs=pl.BlockSpec((tm, OUT_LANES), lambda i: (i, 0)),
        ),
        compiler_params=pltpu.CompilerParams(
            dimension_semantics=("parallel",),
            vmem_limit_bytes=48 << 20,       # fits v7x's 64 MiB per-TC VMEM
        ),
    )(x, *params)


@functools.partial(jax.jit, static_argnames=("tm", "single_buffer"))
def _loco_mlp_jit(x, params, *, tm, single_buffer):
    return _mlp_call(x, params, tm=tm, single_buffer=single_buffer)


def loco_model_forward_slab(x, fused, *, tm=None):
    """LocoModel forward -> (m, 128) lane-dense slab (cols 0..8 are the output)."""
    m = x.shape[0]
    if tm is None:
        tm = _choose_tm(m)
    params = tuple(fused[k] for k in _FUSED_ORDER)
    return _loco_mlp_jit(x, params, tm=int(tm),
                         single_buffer=_weights_single_buffered())


def loco_model_forward(x, fused, *, tm=None):
    """LocoModel forward on TPU via Pallas.  x: (m, 34) f32 -> (m, 9) f32."""
    return loco_model_forward_slab(x, fused, tm=tm)[:, :OUTPUT_SIZE]


# ---------------------------------------------------------------------------
# Parameter prep: raw (torch-like) params  ->  fused kernel params
# ---------------------------------------------------------------------------
def fuse_loco_params(raw, trunk_dtype=jnp.bfloat16, head_dtype=jnp.float32):
    """Fold eval-mode BatchNorm into the preceding Linear, merge w_aux into w3,
    pad w_fin to a lane-dense 128-wide output, and cast MXU operands.

    trunk_dtype: dtype of the four 1024-deep trunk matmul weights (bf16 default:
                 f32 MXU operands are emulated ~3x slower on v5e/v6e/v7x).
    head_dtype:  dtype of the final w_fin head (f32 default protects the
                 distance/angle outputs fed into sqrt/arctan2 downstream).
    Biases always stay f32 (added after f32 accumulation)."""
    def bn_fold(w, b, bn):
        scale = bn['gamma'] / jnp.sqrt(bn['var'] + BN_EPS)     # (1, n)
        bias = bn['beta'] - bn['mean'] * scale
        return w * scale, b * scale + bias

    w1, b1 = bn_fold(raw['w1'], raw['b1'], raw['bn1'])
    sw1, sb1 = bn_fold(raw['s_w1'], raw['s_b1'], raw['s_bn1'])
    sw2, sb2 = bn_fold(raw['s_w2'], raw['s_b2'], raw['s_bn2'])
    w3, b3 = bn_fold(raw['w3'], raw['b3'], raw['bn3'])

    # [w3 | w_aux | 0]  -> (1024, 1024 + 128)
    w3a = jnp.zeros((LINEAR_SIZE, LINEAR_SIZE + AUX_LANES), jnp.float32)
    w3a = w3a.at[:, :LINEAR_SIZE].set(w3)
    w3a = w3a.at[:, LINEAR_SIZE:LINEAR_SIZE + 1].set(raw['w_aux'])
    b3a = jnp.zeros((1, LINEAR_SIZE + AUX_LANES), jnp.float32)
    b3a = b3a.at[:, :LINEAR_SIZE].set(b3)
    b3a = b3a.at[:, LINEAR_SIZE:LINEAR_SIZE + 1].set(raw['b_aux'])

    # w_fin padded to 128 output lanes (lanes 8..127 are zero / discarded)
    wfin = jnp.zeros((LINEAR_SIZE, OUT_LANES), jnp.float32)
    wfin = wfin.at[:, :OUTPUT_SIZE - 1].set(raw['w_fin'])
    bfin = jnp.zeros((1, OUT_LANES), jnp.float32)
    bfin = bfin.at[:, :OUTPUT_SIZE - 1].set(raw['b_fin'])

    fused = {'w1': w1.astype(trunk_dtype), 'b1': b1,
             's_w1': sw1.astype(trunk_dtype), 's_b1': sb1,
             's_w2': sw2.astype(trunk_dtype), 's_b2': sb2,
             'w3a': w3a.astype(trunk_dtype), 'b3a': b3a,
             'w_fin': wfin.astype(head_dtype), 'b_fin': bfin}
    return fused


# ---------------------------------------------------------------------------
# Deterministic parameter initialization (LocoModel.__init__ shapes)
# ---------------------------------------------------------------------------
def init_loco_raw_params(key, linear_size=LINEAR_SIZE, input_size=INPUT_SIZE):
    keys = list(jax.random.split(key, 32))
    it = iter(keys)

    def linear(kin, kout):
        bound = 1.0 / np.sqrt(kin)
        w = jax.random.uniform(next(it), (kin, kout), jnp.float32, -bound, bound)
        b = jax.random.uniform(next(it), (1, kout), jnp.float32, -bound, bound)
        return w, b

    def batchnorm(kout):
        return {
            'gamma': 1.0 + 0.1 * jax.random.normal(next(it), (1, kout), jnp.float32),
            'beta': 0.1 * jax.random.normal(next(it), (1, kout), jnp.float32),
            'mean': 0.1 * jax.random.normal(next(it), (1, kout), jnp.float32),
            'var': jnp.abs(1.0 + 0.1 * jax.random.normal(next(it), (1, kout), jnp.float32)),
        }

    raw = {}
    raw['w1'], raw['b1'] = linear(input_size, linear_size)
    raw['bn1'] = batchnorm(linear_size)
    raw['s_w1'], raw['s_b1'] = linear(linear_size, linear_size)
    raw['s_bn1'] = batchnorm(linear_size)
    raw['s_w2'], raw['s_b2'] = linear(linear_size, linear_size)
    raw['s_bn2'] = batchnorm(linear_size)
    raw['w_aux'], raw['b_aux'] = linear(linear_size, 1)
    raw['w3'], raw['b3'] = linear(linear_size, linear_size)
    raw['bn3'] = batchnorm(linear_size)
    raw['w_fin'], raw['b_fin'] = linear(linear_size, OUTPUT_SIZE - 1)
    # note: LocoModel also defines self.w2 but never uses it in forward()
    return raw


# ---------------------------------------------------------------------------
# Plain-JAX glue: preprocessing, reference MLP, postprocessing
# ---------------------------------------------------------------------------
def preprocess_monoloco_jax(keypoints, kk):
    """keypoints (m, 3, 17), kk (3, 3) -> (m, 34); matches preprocess_monoloco
    with zero_center=False (the default used by Loco.forward)."""
    uv = jnp.transpose(keypoints[:, 0:2, :], (0, 2, 1))            # (m, 17, 2)
    ones = jnp.ones(uv.shape[:-1] + (1,), uv.dtype)
    uv_pad = jnp.concatenate([uv, ones], axis=-1)                  # (m, 17, 3)
    kk_inv = jnp.linalg.inv(kk)
    xyz = (uv_pad @ kk_inv.T) * 10.0                               # z_met = 10
    return xyz[:, :, 0:2].reshape(keypoints.shape[0], -1)          # (m, 34)


def loco_model_ref(x, raw):
    """Pure-JAX reference mirroring LocoModel.forward in eval mode (f32)."""
    def bn(v, p):
        return (v - p['mean']) / jnp.sqrt(p['var'] + BN_EPS) * p['gamma'] + p['beta']
    y = jnp.maximum(bn(x @ raw['w1'] + raw['b1'], raw['bn1']), 0.0)
    r = jnp.maximum(bn(y @ raw['s_w1'] + raw['s_b1'], raw['s_bn1']), 0.0)
    r = jnp.maximum(bn(r @ raw['s_w2'] + raw['s_b2'], raw['s_bn2']), 0.0)
    y = y + r
    aux = y @ raw['w_aux'] + raw['b_aux']
    z = jnp.maximum(bn(y @ raw['w3'] + raw['b3'], raw['bn3']), 0.0)
    fin = z @ raw['w_fin'] + raw['b_fin']
    return jnp.concatenate([fin, aux], axis=1)


def extract_outputs_jax(outputs):
    """Elementwise postprocessing, mirrors extract_outputs()."""
    d2 = outputs[:, 2:4]
    bi = jnp.exp(d2[:, 1:2]) * d2[:, 0:1]                          # unnormalize_bi
    r = outputs[:, 2]
    t = outputs[:, 0]
    p = outputs[:, 1]
    x = (r * jnp.sin(p) * jnp.cos(t)).reshape(-1, 1)               # to_cartesian 'x'
    y = (r * jnp.cos(p)).reshape(-1, 1)                            # to_cartesian 'y'
    d = d2[:, 0:1]
    z = jnp.sqrt(d ** 2 - x ** 2 - y ** 2)
    xyzd = jnp.concatenate([x, y, z, d], axis=1)
    ori = outputs[:, 7:9]
    yaw_pred = jnp.arctan2(ori[:, 0:1], ori[:, 1:2])
    corrections = jnp.arctan2(xyzd[:, 0], xyzd[:, 2]).reshape(-1, 1)
    yaw_orig = yaw_pred + corrections
    yaw_orig = jnp.where(yaw_orig > np.pi, yaw_orig - 2 * np.pi, yaw_orig)
    yaw_orig = jnp.where(yaw_orig < -np.pi, yaw_orig + 2 * np.pi, yaw_orig)
    return {
        'h': outputs[:, 4:5], 'w': outputs[:, 5:6], 'l': outputs[:, 6:7],
        'ori': ori, 'bi': bi, 'xyzd': xyzd, 'd': d,
        'yaw': (yaw_pred, yaw_orig),
    }


@functools.partial(jax.jit, static_argnames=("tm", "single_buffer"))
def _loco_pipeline_jit(keypoints, kk, params, *, tm, single_buffer):
    inputs = preprocess_monoloco_jax(keypoints, kk)                # (m, 34)
    slab = _mlp_call(inputs, params, tm=tm, single_buffer=single_buffer)
    outputs = slab[:, :OUTPUT_SIZE]                                # (m, 9)
    return outputs, extract_outputs_jax(outputs)


def loco_forward(keypoints, kk, fused_params):
    m = keypoints.shape[0]
    params = tuple(fused_params[k] for k in _FUSED_ORDER)
    outputs, dic_out = _loco_pipeline_jit(
        keypoints, kk, params,
        tm=_choose_tm(m), single_buffer=_weights_single_buffered())
    dic_out['epi'] = [0.0] * m                                     # n_dropout == 0 branch
    # TODO(synk): Loco.post_process (IoU matching, reordering, Python dict/list
    # bookkeeping over boxes) and epistemic_uncertainty/laplace_sampling are
    # host-side control flow with no Pallas/JAX equivalent; omitted.
    return outputs, dic_out


# ---------------------------------------------------------------------------
if __name__ == "__main__":
    key = jax.random.PRNGKey(0)
    k_params, k_kps, k_extra = jax.random.split(key, 3)
    raw = init_loco_raw_params(k_params)

    # synthetic keypoints: (m, 3, 17) rows = (u_pixel, v_pixel, confidence)
    m = 6
    ku, kv, kc = jax.random.split(k_kps, 3)
    u = jax.random.uniform(ku, (m, 1, 17), jnp.float32, 100.0, 1100.0)
    v = jax.random.uniform(kv, (m, 1, 17), jnp.float32, 50.0, 350.0)
    c = jax.random.uniform(kc, (m, 1, 17), jnp.float32, 0.3, 1.0)
    keypoints = jnp.concatenate([u, v, c], axis=1)
    kk = jnp.array([[721.54, 0.0, 609.56],
                    [0.0, 721.54, 172.85],
                    [0.0, 0.0, 1.0]], jnp.float32)

    inputs = preprocess_monoloco_jax(keypoints, kk)
    ref = jax.block_until_ready(loco_model_ref(inputs, raw))

    # 1) f32 weights: exact module semantics, tight tolerance
    fused_f32 = fuse_loco_params(raw, trunk_dtype=jnp.float32, head_dtype=jnp.float32)
    out_f32 = jax.block_until_ready(loco_model_forward(inputs, fused_f32))
    np.testing.assert_allclose(np.asarray(out_f32), np.asarray(ref),
                               rtol=2e-3, atol=2e-3)

    # 2) ragged multi-tile path (grid=3, last tile partially valid), f32 weights
    x2 = 4.0 * jax.random.normal(k_extra, (20, INPUT_SIZE), jnp.float32)
    ref2 = jax.block_until_ready(loco_model_ref(x2, raw))
    out2 = jax.block_until_ready(loco_model_forward(x2, fused_f32, tm=8))
    np.testing.assert_allclose(np.asarray(out2), np.asarray(ref2),
                               rtol=2e-3, atol=2e-3)

    # 3) default params: bf16 trunk on the MXU (f32 accumulate, f32 w_fin head)
    fused_def = fuse_loco_params(raw)
    out_bf16 = jax.block_until_ready(loco_model_forward(inputs, fused_def))
    np.testing.assert_allclose(np.asarray(out_bf16), np.asarray(ref),
                               rtol=1e-1, atol=1e-1)

    # 4) full pipeline (preprocess -> Pallas MLP -> extract_outputs), jitted
    outputs, dic_out = loco_forward(keypoints, kk, fused_def)
    jax.block_until_ready(outputs)
    jax.block_until_ready(dic_out['xyzd'])
    print("KERNEL_OK")
</pallas_src>

<mosaic_0001>
module attributes {stable_mosaic.version = 11 : i64} {
  func.func @_loco_mlp_kernel(%arg0: i32, %arg1: memref<8x34xf32, #tpu.memory_space<vmem>>, %arg2: memref<34x1024xf32, #tpu.memory_space<vmem>>, %arg3: memref<1x1024xf32, #tpu.memory_space<vmem>>, %arg4: memref<1024x1024xf32, #tpu.memory_space<vmem>>, %arg5: memref<1x1024xf32, #tpu.memory_space<vmem>>, %arg6: memref<1024x1024xf32, #tpu.memory_space<vmem>>, %arg7: memref<1x1024xf32, #tpu.memory_space<vmem>>, %arg8: memref<1024x1152xf32, #tpu.memory_space<vmem>>, %arg9: memref<1x1152xf32, #tpu.memory_space<vmem>>, %arg10: memref<1024x128xf32, #tpu.memory_space<vmem>>, %arg11: memref<1x128xf32, #tpu.memory_space<vmem>>, %arg12: memref<8x128xf32, #tpu.memory_space<vmem>>) attributes {dimension_semantics = [#tpu.dimension_semantics<parallel>], iteration_bounds = array<i64: 1>, scalar_prefetch = 0 : i64, scratch_operands = 0 : i64, tpu.core_type = #tpu.core_type<tc>, window_params = [{transform_indices = @transform_0, window_bounds = array<i64: 8, 34>}, {pipeline_mode = #tpu.pipeline_mode<synchronous>, transform_indices = @transform_1, window_bounds = array<i64: 34, 1024>}, {pipeline_mode = #tpu.pipeline_mode<synchronous>, transform_indices = @transform_2, window_bounds = array<i64: 1, 1024>}, {pipeline_mode = #tpu.pipeline_mode<synchronous>, transform_indices = @transform_3, window_bounds = array<i64: 1024, 1024>}, {pipeline_mode = #tpu.pipeline_mode<synchronous>, transform_indices = @transform_4, window_bounds = array<i64: 1, 1024>}, {pipeline_mode = #tpu.pipeline_mode<synchronous>, transform_indices = @transform_5, window_bounds = array<i64: 1024, 1024>}, {pipeline_mode = #tpu.pipeline_mode<synchronous>, transform_indices = @transform_6, window_bounds = array<i64: 1, 1024>}, {pipeline_mode = #tpu.pipeline_mode<synchronous>, transform_indices = @transform_7, window_bounds = array<i64: 1024, 1152>}, {pipeline_mode = #tpu.pipeline_mode<synchronous>, transform_indices = @transform_8, window_bounds = array<i64: 1, 1152>}, {pipeline_mode = #tpu.pipeline_mode<synchronous>, transform_indices = @transform_9, window_bounds = array<i64: 1024, 128>}, {pipeline_mode = #tpu.pipeline_mode<synchronous>, transform_indices = @transform_10, window_bounds = array<i64: 1, 128>}, {transform_indices = @transform_11, window_bounds = array<i64: 8, 128>}]} {
    %c0 = arith.constant 0 : index
    %c0_0 = arith.constant 0 : index
    %0 = vector.load %arg1[%c0, %c0_0] : memref<8x34xf32, #tpu.memory_space<vmem>>, vector<8x34xf32>
    %c0_1 = arith.constant 0 : index
    %c0_2 = arith.constant 0 : index
    %1 = vector.load %arg2[%c0_1, %c0_2] : memref<34x1024xf32, #tpu.memory_space<vmem>>, vector<34x1024xf32>
    %cst = arith.constant dense<0.000000e+00> : vector<8x1024xf32>
    %2 = tpu.matmul %0, %1, %cst {dimension_numbers = #tpu.dot_dimension_numbers<[1], [0], [0], [1], [0, 0, 1, 1], [], []>} : vector<8x34xf32>, vector<34x1024xf32>, vector<8x1024xf32> -> vector<8x1024xf32>
    %c0_3 = arith.constant 0 : index
    %c0_4 = arith.constant 0 : index
    %3 = vector.load %arg3[%c0_3, %c0_4] : memref<1x1024xf32, #tpu.memory_space<vmem>>, vector<1x1024xf32>
    %4 = vector.broadcast %3 : vector<1x1024xf32> to vector<8x1024xf32>
    %5 = arith.addf %2, %4 : vector<8x1024xf32>
    %cst_5 = arith.constant 0.000000e+00 : f32
    %6 = vector.broadcast %cst_5 : f32 to vector<8x1024xf32>
    %7 = arith.maximumf %5, %6 : vector<8x1024xf32>
    %c0_6 = arith.constant 0 : index
    %c0_7 = arith.constant 0 : index
    %8 = vector.load %arg4[%c0_6, %c0_7] : memref<1024x1024xf32, #tpu.memory_space<vmem>>, vector<1024x1024xf32>
    %cst_8 = arith.constant dense<0.000000e+00> : vector<8x1024xf32>
    %9 = tpu.matmul %7, %8, %cst_8 {dimension_numbers = #tpu.dot_dimension_numbers<[1], [0], [0], [1], [0, 0, 1, 1], [], []>} : vector<8x1024xf32>, vector<1024x1024xf32>, vector<8x1024xf32> -> vector<8x1024xf32>
    %c0_9 = arith.constant 0 : index
    %c0_10 = arith.constant 0 : index
    %10 = vector.load %arg5[%c0_9, %c0_10] : memref<1x1024xf32, #tpu.memory_space<vmem>>, vector<1x1024xf32>
    %11 = vector.broadcast %10 : vector<1x1024xf32> to vector<8x1024xf32>
    %12 = arith.addf %9, %11 : vector<8x1024xf32>
    %cst_11 = arith.constant 0.000000e+00 : f32
    %13 = vector.broadcast %cst_11 : f32 to vector<8x1024xf32>
    %14 = arith.maximumf %12, %13 : vector<8x1024xf32>
    %c0_12 = arith.constant 0 : index
    %c0_13 = arith.constant 0 : index
    %15 = vector.load %arg6[%c0_12, %c0_13] : memref<1024x1024xf32, #tpu.memory_space<vmem>>, vector<1024x1024xf32>
    %cst_14 = arith.constant dense<0.000000e+00> : vector<8x1024xf32>
    %16 = tpu.matmul %14, %15, %cst_14 {dimension_numbers = #tpu.dot_dimension_numbers<[1], [0], [0], [1], [0, 0, 1, 1], [], []>} : vector<8x1024xf32>, vector<1024x1024xf32>, vector<8x1024xf32> -> vector<8x1024xf32>
    %c0_15 = arith.constant 0 : index
    %c0_16 = arith.constant 0 : index
    %17 = vector.load %arg7[%c0_15, %c0_16] : memref<1x1024xf32, #tpu.memory_space<vmem>>, vector<1x1024xf32>
    %18 = vector.broadcast %17 : vector<1x1024xf32> to vector<8x1024xf32>
    %19 = arith.addf %16, %18 : vector<8x1024xf32>
    %cst_17 = arith.constant 0.000000e+00 : f32
    %20 = vector.broadcast %cst_17 : f32 to vector<8x1024xf32>
    %21 = arith.maximumf %19, %20 : vector<8x1024xf32>
    %22 = arith.addf %7, %21 : vector<8x1024xf32>
    %c0_18 = arith.constant 0 : index
    %c0_19 = arith.constant 0 : index
    %23 = vector.load %arg8[%c0_18, %c0_19] : memref<1024x1152xf32, #tpu.memory_space<vmem>>, vector<1024x1152xf32>
    %cst_20 = arith.constant dense<0.000000e+00> : vector<8x1152xf32>
    %24 = tpu.matmul %22, %23, %cst_20 {dimension_numbers = #tpu.dot_dimension_numbers<[1], [0], [0], [1], [0, 0, 1, 1], [], []>} : vector<8x1024xf32>, vector<1024x1152xf32>, vector<8x1152xf32> -> vector<8x1152xf32>
    %c0_21 = arith.constant 0 : index
    %c0_22 = arith.constant 0 : index
    %25 = vector.load %arg9[%c0_21, %c0_22] : memref<1x1152xf32, #tpu.memory_space<vmem>>, vector<1x1152xf32>
    %26 = vector.broadcast %25 : vector<1x1152xf32> to vector<8x1152xf32>
    %27 = arith.addf %24, %26 : vector<8x1152xf32>
    %28 = vector.extract_strided_slice %27 {offsets = [0, 0], sizes = [8, 1024], strides = [1, 1]} : vector<8x1152xf32> to vector<8x1024xf32>
    %cst_23 = arith.constant 0.000000e+00 : f32
    %29 = vector.broadcast %cst_23 : f32 to vector<8x1024xf32>
    %30 = arith.maximumf %28, %29 : vector<8x1024xf32>
    %31 = vector.extract_strided_slice %27 {offsets = [0, 1024], sizes = [8, 1], strides = [1, 1]} : vector<8x1152xf32> to vector<8x1xf32>
    %c0_24 = arith.constant 0 : index
    %c0_25 = arith.constant 0 : index
    %32 = vector.load %arg10[%c0_24, %c0_25] : memref<1024x128xf32, #tpu.memory_space<vmem>>, vector<1024x128xf32>
    %cst_26 = arith.constant dense<0.000000e+00> : vector<8x128xf32>
    %33 = tpu.matmul %30, %32, %cst_26 {dimension_numbers = #tpu.dot_dimension_numbers<[1], [0], [0], [1], [0, 0, 1, 1], [], []>} : vector<8x1024xf32>, vector<1024x128xf32>, vector<8x128xf32> -> vector<8x128xf32>
    %c0_27 = arith.constant 0 : index
    %c0_28 = arith.constant 0 : index
    %34 = vector.load %arg11[%c0_27, %c0_28] : memref<1x128xf32, #tpu.memory_space<vmem>>, vector<1x128xf32>
    %35 = vector.broadcast %34 : vector<1x128xf32> to vector<8x128xf32>
    %36 = arith.addf %33, %35 : vector<8x128xf32>
    %37 = tpu.iota {dimensions = array<i32: 1>} : vector<8x128xi32>
    %c8_i32 = arith.constant 8 : i32
    %38 = vector.broadcast %c8_i32 : i32 to vector<8x128xi32>
    %39 = arith.cmpi eq, %37, %38 : vector<8x128xi32>
    %40 = vector.shape_cast %31 : vector<8x1xf32> to vector<8x1xf32>
    %41 = vector.broadcast %40 : vector<8x1xf32> to vector<8x128xf32>
    %42 = arith.select %39, %41, %36 : vector<8x128xi1>, vector<8x128xf32>
    %c0_29 = arith.constant 0 : index
    %c0_30 = arith.constant 0 : index
    %43 = vector.load %arg12[%c0_29, %c0_30] : memref<8x128xf32, #tpu.memory_space<vmem>>, vector<8x128xf32>
    tpu.vector_store %arg12[%c0_29, %c0_30], %42 {strides = array<i32>} : memref<8x128xf32, #tpu.memory_space<vmem>>, vector<8x128xf32>,
    return
  }
  func.func @transform_0(%arg0: i32) -> (i32, i32) {
    %c0_i32 = arith.constant 0 : i32
    %c0_i32_0 = arith.constant 0 : i32
    return %arg0, %c0_i32 : i32, i32
  }
  func.func @transform_1(%arg0: i32) -> (i32, i32) {
    %c0_i32 = arith.constant 0 : i32
    %c0_i32_0 = arith.constant 0 : i32
    %c0_i32_1 = arith.constant 0 : i32
    return %c0_i32, %c0_i32_0 : i32, i32
  }
  func.func @transform_2(%arg0: i32) -> (i32, i32) {
    %c0_i32 = arith.constant 0 : i32
    %c0_i32_0 = arith.constant 0 : i32
    %c0_i32_1 = arith.constant 0 : i32
    return %c0_i32, %c0_i32_0 : i32, i32
  }
  func.func @transform_3(%arg0: i32) -> (i32, i32) {
    %c0_i32 = arith.constant 0 : i32
    %c0_i32_0 = arith.constant 0 : i32
    %c0_i32_1 = arith.constant 0 : i32
    return %c0_i32, %c0_i32_0 : i32, i32
  }
  func.func @transform_4(%arg0: i32) -> (i32, i32) {
    %c0_i32 = arith.constant 0 : i32
    %c0_i32_0 = arith.constant 0 : i32
    %c0_i32_1 = arith.constant 0 : i32
    return %c0_i32, %c0_i32_0 : i32, i32
  }
  func.func @transform_5(%arg0: i32) -> (i32, i32) {
    %c0_i32 = arith.constant 0 : i32
    %c0_i32_0 = arith.constant 0 : i32
    %c0_i32_1 = arith.constant 0 : i32
    return %c0_i32, %c0_i32_0 : i32, i32
  }
  func.func @transform_6(%arg0: i32) -> (i32, i32) {
    %c0_i32 = arith.constant 0 : i32
    %c0_i32_0 = arith.constant 0 : i32
    %c0_i32_1 = arith.constant 0 : i32
    return %c0_i32, %c0_i32_0 : i32, i32
  }
  func.func @transform_7(%arg0: i32) -> (i32, i32) {
    %c0_i32 = arith.constant 0 : i32
    %c0_i32_0 = arith.constant 0 : i32
    %c0_i32_1 = arith.constant 0 : i32
    return %c0_i32, %c0_i32_0 : i32, i32
  }
  func.func @transform_8(%arg0: i32) -> (i32, i32) {
    %c0_i32 = arith.constant 0 : i32
    %c0_i32_0 = arith.constant 0 : i32
    %c0_i32_1 = arith.constant 0 : i32
    return %c0_i32, %c0_i32_0 : i32, i32
  }
  func.func @transform_9(%arg0: i32) -> (i32, i32) {
    %c0_i32 = arith.constant 0 : i32
    %c0_i32_0 = arith.constant 0 : i32
    %c0_i32_1 = arith.constant 0 : i32
    return %c0_i32, %c0_i32_0 : i32, i32
  }
  func.func @transform_10(%arg0: i32) -> (i32, i32) {
    %c0_i32 = arith.constant 0 : i32
    %c0_i32_0 = arith.constant 0 : i32
    %c0_i32_1 = arith.constant 0 : i32
    return %c0_i32, %c0_i32_0 : i32, i32
  }
  func.func @transform_11(%arg0: i32) -> (i32, i32) {
    %c0_i32 = arith.constant 0 : i32
    %c0_i32_0 = arith.constant 0 : i32
    return %arg0, %c0_i32 : i32, i32
  }
}

</mosaic_0001>

<llo_original>
// kernel: _loco_mlp_jit.1
$region0: #{_loco_mlp_jit.1}
  #allocation0 [shape = 'u32[]', space=smem, size = 0x4, offset = 0x4, fixed_abs, tag = 'smem constant byte address 0x4 - core index']
  #allocation1 [shape = 'u32[144,128]{1,0:T(1,128)}', space=vmem, size = 0x12000, scoped, tag = 'internal scratch']
  %s0 = inlined_call_operand.hbm [shape: f32[6,34], index: 0, kind: input, shape index: {}]
  %s1 = inlined_call_operand.hbm [shape: f32[34,1024], index: 1, kind: input, shape index: {}]
  %s2 = inlined_call_operand.hbm [shape: f32[1,1024], index: 2, kind: input, shape index: {}]
  %s3 = inlined_call_operand.hbm [shape: f32[1024,1024], index: 3, kind: input, shape index: {}]
  %s4 = inlined_call_operand.hbm [shape: f32[1,1024], index: 4, kind: input, shape index: {}]
  %s5 = inlined_call_operand.hbm [shape: f32[1024,1024], index: 5, kind: input, shape index: {}]
  %s6 = inlined_call_operand.hbm [shape: f32[1,1024], index: 6, kind: input, shape index: {}]
  %s7 = inlined_call_operand.hbm [shape: f32[1024,1152], index: 7, kind: input, shape index: {}]
  %s8 = inlined_call_operand.hbm [shape: f32[1,1152], index: 8, kind: input, shape index: {}]
  %s9 = inlined_call_operand.hbm [shape: f32[1024,128], index: 9, kind: input, shape index: {}]
  %s10 = inlined_call_operand.hbm [shape: f32[1,128], index: 10, kind: input, shape index: {}]
  %s11 = inlined_call_operand.hbm [shape: f32[6,128], index: 11, kind: output, shape index: {}]
  %s12 = sld [smem:[#allocation0]]
  $region98: #{_loco_mlp_jit.1} parent=0
    _
  %s14 = ssub.s32 1, %s12
  %s15 = scalar_select 0, %s14, %s12
  $region1: #{_loco_mlp_jit.1} parent=0
    #allocation2 [shape = 'u8[4096]{0}', space=vmem, size = 0x1000, scoped, tag = 'input window, operand 0, single buffered']
    #allocation3 [shape = 's32[1]{0}', space=sflag, size = 0x4, scoped, tag = 'scoped memory for _loco_mlp_jit.1']
    #allocation4 [shape = 's32[1]{0}', space=sflag, size = 0x4, scoped, tag = 'scoped memory for _loco_mlp_jit.1']
    #allocation5 [shape = 'u8[163840]{0}', space=vmem, size = 0x28000, scoped, tag = 'input window, operand 1, single buffered']
    #allocation6 [shape = 's32[1]{0}', space=sflag, size = 0x4, scoped, tag = 'scoped memory for _loco_mlp_jit.1']
    #allocation7 [shape = 'u8[4096]{0}', space=vmem, size = 0x1000, scoped, tag = 'input window, operand 2, single buffered']
    #allocation8 [shape = 'u8[4194304]{0}', space=vmem, size = 0x400000, scoped, tag = 'input window, operand 3, single buffered']
    #allocation9 [shape = 's32[1]{0}', space=sflag, size = 0x4, scoped, tag = 'scoped memory for _loco_mlp_jit.1']
    #allocation10 [shape = 'u8[4096]{0}', space=vmem, size = 0x1000, scoped, tag = 'input window, operand 4, single buffered']
    #allocation11 [shape = 'u8[4194304]{0}', space=vmem, size = 0x400000, scoped, tag = 'input window, operand 5, single buffered']
    #allocation12 [shape = 's32[1]{0}', space=sflag, size = 0x4, scoped, tag = 'scoped memory for _loco_mlp_jit.1']
    #allocation13 [shape = 'u8[4096]{0}', space=vmem, size = 0x1000, scoped, tag = 'input window, operand 6, single buffered']
    #allocation14 [shape = 'u8[4718592]{0}', space=vmem, size = 0x480000, scoped, tag = 'input window, operand 7, single buffered']
    #allocation15 [shape = 's32[1]{0}', space=sflag, size = 0x4, scoped, tag = 'scoped memory for _loco_mlp_jit.1']
    #allocation16 [shape = 'u8[4608]{0}', space=vmem, size = 0x1400, scoped, tag = 'input window, operand 8, single buffered']
    #allocation17 [shape = 'u8[524288]{0}', space=vmem, size = 0x80000, scoped, tag = 'input window, operand 9, single buffered']
    #allocation18 [shape = 's32[1]{0}', space=sflag, size = 0x4, scoped, tag = 'scoped memory for _loco_mlp_jit.1']
    #allocation19 [shape = 'u8[512]{0}', space=vmem, size = 0x400, scoped, tag = 'input window, operand 10, single buffered']
    #allocation20 [shape = 'u8[4096]{0}', space=vmem, size = 0x1000, scoped, tag = 'output window, operand 0, single buffered']
    %16 = vsyncpa [#allocation3], 0
    %17 = vsyncpa [#allocation6], 0
    %18 = vsyncpa [#allocation9], 0
    %19 = vsyncpa [#allocation12], 0
    %20 = vsyncpa [#allocation15], 0
    %21 = vsyncpa [#allocation18], 0
    %22 = vsyncpa [#allocation4], 0
    // Predicated region
    $region2: #{_loco_mlp_jit.1} parent=1 // pred_check
      _
    $region3: #{_loco_mlp_jit.1} parent=1 // pred_check_branch
      %24 = sbr.rel (0) target = $region5
    $region4: #{_loco_mlp_jit.1} parent=1 // pred_region
      %s26 = ssub.s32 128, 128
      %27 = vsyncadd [#allocation3], %s26
      %s29 = sshll.u32 [#allocation2], 4
      %s30 = int_to_ptr.vmem [resolvable:$true] %s29
      %32 = dma.hbm_to_vmem [thread:$0]  %s0, 128, %s30, [#allocation3]
    $region5: #{_loco_mlp_jit.1} parent=1 // pred_fallthru
      _
    // Predicated region
    $region6: #{_loco_mlp_jit.1} parent=1 // pred_check
      _
    $region7: #{_loco_mlp_jit.1} parent=1 // pred_check_branch
      %34 = sbr.rel (0) target = $region9
    $region8: #{_loco_mlp_jit.1} parent=1 // pred_region
      %s36 = ssub.s32 5120, 5120
      %37 = vsyncadd [#allocation6], %s36
      %s38 = sshll.u32 [#allocation5], 4
      %s39 = int_to_ptr.vmem [resolvable:$true] %s38
      %44 = dma.hbm_to_vmem [thread:$0]  %s1, 5120, %s39, [#allocation6], 1024, 1024, 64
    $region9: #{_loco_mlp_jit.1} parent=1 // pred_fallthru
      _
    // Predicated region
    $region10: #{_loco_mlp_jit.1} parent=1 // pred_check
      _
    $region11: #{_loco_mlp_jit.1} parent=1 // pred_check_branch
      %46 = sbr.rel (0) target = $region13
    $region12: #{_loco_mlp_jit.1} parent=1 // pred_region
      %s48 = ssub.s32 128, 128
      %49 = vsyncadd [#allocation6], %s48
      %s51 = sshll.u32 [#allocation7], 4
      %s52 = int_to_ptr.vmem [resolvable:$true] %s51
      %54 = dma.hbm_to_vmem [thread:$0]  %s2, 128, %s52, [#allocation6]
    $region13: #{_loco_mlp_jit.1} parent=1 // pred_fallthru
      _
    // Predicated region
    $region14: #{_loco_mlp_jit.1} parent=1 // pred_check
      _
    $region15: #{_loco_mlp_jit.1} parent=1 // pred_check_branch
      %56 = sbr.rel (0) target = $region17
    $region16: #{_loco_mlp_jit.1} parent=1 // pred_region
      %s58 = ssub.s32 131072, 131072
      %59 = vsyncadd [#allocation9], %s58
      %s60 = sshll.u32 [#allocation8], 4
      %s61 = int_to_ptr.vmem [resolvable:$true] %s60
      %66 = dma.hbm_to_vmem [thread:$0]  %s3, 131072, %s61, [#allocation9], 1024, 1024, 64
    $region17: #{_loco_mlp_jit.1} parent=1 // pred_fallthru
      _
    // Predicated region
    $region18: #{_loco_mlp_jit.1} parent=1 // pred_check
      _
    $region19: #{_loco_mlp_jit.1} parent=1 // pred_check_branch
      %68 = sbr.rel (0) target = $region21
    $region20: #{_loco_mlp_jit.1} parent=1 // pred_region
      %s70 = ssub.s32 128, 128
      %71 = vsyncadd [#allocation9], %s70
      %s73 = sshll.u32 [#allocation10], 4
      %s74 = int_to_ptr.vmem [resolvable:$true] %s73
      %76 = dma.hbm_to_vmem [thread:$0]  %s4, 128, %s74, [#allocation9]
    $region21: #{_loco_mlp_jit.1} parent=1 // pred_fallthru
      _
    // Predicated region
    $region22: #{_loco_mlp_jit.1} parent=1 // pred_check
      _
    $region23: #{_loco_mlp_jit.1} parent=1 // pred_check_branch
      %78 = sbr.rel (0) target = $region25
    $region24: #{_loco_mlp_jit.1} parent=1 // pred_region
      %s80 = ssub.s32 131072, 131072
      %81 = vsyncadd [#allocation12], %s80
      %s82 = sshll.u32 [#allocation11], 4
      %s83 = int_to_ptr.vmem [resolvable:$true] %s82
      %88 = dma.hbm_to_vmem [thread:$0]  %s5, 131072, %s83, [#allocation12], 1024, 1024, 64
    $region25: #{_loco_mlp_jit.1} parent=1 // pred_fallthru
      _
    // Predicated region
    $region26: #{_loco_mlp_jit.1} parent=1 // pred_check
      _
    $region27: #{_loco_mlp_jit.1} parent=1 // pred_check_branch
      %90 = sbr.rel (0) target = $region29
    $region28: #{_loco_mlp_jit.1} parent=1 // pred_region
      %s92 = ssub.s32 128, 128
      %93 = vsyncadd [#allocation12], %s92
      %s95 = sshll.u32 [#allocation13], 4
      %s96 = int_to_ptr.vmem [resolvable:$true] %s95
      %98 = dma.hbm_to_vmem [thread:$0]  %s6, 128, %s96, [#allocation12]
    $region29: #{_loco_mlp_jit.1} parent=1 // pred_fallthru
      _
    // Predicated region
    $region30: #{_loco_mlp_jit.1} parent=1 // pred_check
      _
    $region31: #{_loco_mlp_jit.1} parent=1 // pred_check_branch
      %100 = sbr.rel (0) target = $region33
    $region32: #{_loco_mlp_jit.1} parent=1 // pred_region
      %s102 = ssub.s32 147456, 147456
      %103 = vsyncadd [#allocation15], %s102
      %s104 = sshll.u32 [#allocation14], 4
      %s105 = int_to_ptr.vmem [resolvable:$true] %s104
      %110 = dma.hbm_to_vmem [thread:$0]  %s7, 147456, %s105, [#allocation15], 1152, 1152, 72
    $region33: #{_loco_mlp_jit.1} parent=1 // pred_fallthru
      _
    // Predicated region
    $region34: #{_loco_mlp_jit.1} parent=1 // pred_check
      _
    $region35: #{_loco_mlp_jit.1} parent=1 // pred_check_branch
      %112 = sbr.rel (0) target = $region37
    $region36: #{_loco_mlp_jit.1} parent=1 // pred_region
      %s114 = ssub.s32 144, 144
      %115 = vsyncadd [#allocation15], %s114
      %s117 = sshll.u32 [#allocation16], 4
      %s118 = int_to_ptr.vmem [resolvable:$true] %s117
      %120 = dma.hbm_to_vmem [thread:$0]  %s8, 144, %s118, [#allocation15]
    $region37: #{_loco_mlp_jit.1} parent=1 // pred_fallthru
      _
    // Predicated region
    $region38: #{_loco_mlp_jit.1} parent=1 // pred_check
      _
    $region39: #{_loco_mlp_jit.1} parent=1 // pred_check_branch
      %122 = sbr.rel (0) target = $region41
    $region40: #{_loco_mlp_jit.1} parent=1 // pred_region
      %s124 = ssub.s32 16384, 16384
      %125 = vsyncadd [#allocation18], %s124
      %s126 = sshll.u32 [#allocation17], 4
      %s127 = int_to_ptr.vmem [resolvable:$true] %s126
      %132 = dma.hbm_to_vmem [thread:$0]  %s9, 16384, %s127, [#allocation18], 128, 128, 8
    $region41: #{_loco_mlp_jit.1} parent=1 // pred_fallthru
      _
    // Predicated region
    $region42: #{_loco_mlp_jit.1} parent=1 // pred_check
      _
    $region43: #{_loco_mlp_jit.1} parent=1 // pred_check_branch
      %134 = sbr.rel (0) target = $region45
    $region44: #{_loco_mlp_jit.1} parent=1 // pred_region
      %s136 = ssub.s32 16, 16
      %137 = vsyncadd [#allocation18], %s136
      %s139 = sshll.u32 [#allocation19], 4
      %s140 = int_to_ptr.vmem [resolvable:$true] %s139
      %142 = dma.hbm_to_vmem [thread:$0]  %s10, 16, %s140, [#allocation18]
    $region45: #{_loco_mlp_jit.1} parent=1 // pred_fallthru
      _
    // Predicated region
    $region46: #{_loco_mlp_jit.1} parent=1 // pred_check
      _
    $region47: #{_loco_mlp_jit.1} parent=1 // pred_check_branch
      %144 = sbr.rel (0) target = $region49
    $region48: #{_loco_mlp_jit.1} parent=1 // pred_region
      %145 = dma.done [#allocation3], 128
    $region49: #{_loco_mlp_jit.1} parent=1 // pred_fallthru
      _
    // Predicated region
    $region50: #{_loco_mlp_jit.1} parent=1 // pred_check
      _
    $region51: #{_loco_mlp_jit.1} parent=1 // pred_check_branch
      %147 = sbr.rel (0) target = $region53
    $region52: #{_loco_mlp_jit.1} parent=1 // pred_region
      %148 = dma.done [#allocation6], 5120
    $region53: #{_loco_mlp_jit.1} parent=1 // pred_fallthru
      _
    // Predicated region
    $region54: #{_loco_mlp_jit.1} parent=1 // pred_check
      _
    $region55: #{_loco_mlp_jit.1} parent=1 // pred_check_branch
      %150 = sbr.rel (0) target = $region57
    $region56: #{_loco_mlp_jit.1} parent=1 // pred_region
      %151 = dma.done [#allocation6], 128
    $region57: #{_loco_mlp_jit.1} parent=1 // pred_fallthru
      _
    // Predicated region
    $region58: #{_loco_mlp_jit.1} parent=1 // pred_check
      _
    $region59: #{_loco_mlp_jit.1} parent=1 // pred_check_branch
      %153 = sbr.rel (0) target = $region61
    $region60: #{_loco_mlp_jit.1} parent=1 // pred_region
      %154 = dma.done [#allocation9], 131072
    $region61: #{_loco_mlp_jit.1} parent=1 // pred_fallthru
      _
    // Predicated region
    $region62: #{_loco_mlp_jit.1} parent=1 // pred_check
      _
    $region63: #{_loco_mlp_jit.1} parent=1 // pred_check_branch
      %156 = sbr.rel (0) target = $region65
    $region64: #{_loco_mlp_jit.1} parent=1 // pred_region
      %157 = dma.done [#allocation9], 128
    $region65: #{_loco_mlp_jit.1} parent=1 // pred_fallthru
      _
    // Predicated region
    $region66: #{_loco_mlp_jit.1} parent=1 // pred_check
      _
    $region67: #{_loco_mlp_jit.1} parent=1 // pred_check_branch
      %159 = sbr.rel (0) target = $region69
    $region68: #{_loco_mlp_jit.1} parent=1 // pred_region
      %160 = dma.done [#allocation12], 131072
    $region69: #{_loco_mlp_jit.1} parent=1 // pred_fallthru
      _
    // Predicated region
    $region70: #{_loco_mlp_jit.1} parent=1 // pred_check
      _
    $region71: #{_loco_mlp_jit.1} parent=1 // pred_check_branch
      %162 = sbr.rel (0) target = $region73
    $region72: #{_loco_mlp_jit.1} parent=1 // pred_region
      %163 = dma.done [#allocation12], 128
    $region73: #{_loco_mlp_jit.1} parent=1 // pred_fallthru
      _
    // Predicated region
    $region74: #{_loco_mlp_jit.1} parent=1 // pred_check
      _
    $region75: #{_loco_mlp_jit.1} parent=1 // pred_check_branch
      %165 = sbr.rel (0) target = $region77
    $region76: #{_loco_mlp_jit.1} parent=1 // pred_region
      %166 = dma.done [#allocation15], 147456
    $region77: #{_loco_mlp_jit.1} parent=1 // pred_fallthru
      _
    // Predicated region
    $region78: #{_loco_mlp_jit.1} parent=1 // pred_check
      _
    $region79: #{_loco_mlp_jit.1} parent=1 // pred_check_branch
      %168 = sbr.rel (0) target = $region81
    $region80: #{_loco_mlp_jit.1} parent=1 // pred_region
      %169 = dma.done [#allocation15], 144
    $region81: #{_loco_mlp_jit.1} parent=1 // pred_fallthru
      _
    // Predicated region
    $region82: #{_loco_mlp_jit.1} parent=1 // pred_check
      _
    $region83: #{_loco_mlp_jit.1} parent=1 // pred_check_branch
      %171 = sbr.rel (0) target = $region85
    $region84: #{_loco_mlp_jit.1} parent=1 // pred_region
      %172 = dma.done [#allocation18], 16384
    $region85: #{_loco_mlp_jit.1} parent=1 // pred_fallthru
      _
    // Predicated region
    $region86: #{_loco_mlp_jit.1} parent=1 // pred_check
      _
    $region87: #{_loco_mlp_jit.1} parent=1 // pred_check_branch
      %174 = sbr.rel (0) target = $region89
    $region88: #{_loco_mlp_jit.1} parent=1 // pred_region
      %175 = dma.done [#allocation18], 16
    $region89: #{_loco_mlp_jit.1} parent=1 // pred_fallthru
      _
    %v176 = vld [vmem:[#allocation2] sm:$0xff]
    %v177 = vld [vmem:[#allocation5] sm:$0xff]
    %v178 = vld [vmem:[#allocation5 + $0x8] sm:$0xff]
    %v179 = vld [vmem:[#allocation5 + $0x10] sm:$0xff]
    %v180 = vld [vmem:[#allocation5 + $0x18] sm:$0xff]
    %v181 = vld [vmem:[#allocation5 + $0x20] sm:$0xff]
    %v182 = vld [vmem:[#allocation5 + $0x28] sm:$0xff]
    %v183 = vld [vmem:[#allocation5 + $0x30] sm:$0xff]
    %v184 = vld [vmem:[#allocation5 + $0x38] sm:$0xff]
    %v185 = vld [vmem:[#allocation5 + $0x40] sm:$0xff]
    %v186 = vld [vmem:[#allocation5 + $0x48] sm:$0xff]
    %v187 = vld [vmem:[#allocation5 + $0x50] sm:$0xff]
    %v188 = vld [vmem:[#allocation5 + $0x58] sm:$0xff]
    %v189 = vld [vmem:[#allocation5 + $0x60] sm:$0xff]
    %v190 = vld [vmem:[#allocation5 + $0x68] sm:$0xff]
    %v191 = vld [vmem:[#allocation5 + $0x70] sm:$0xff]
    %v192 = vld [vmem:[#allocation5 + $0x78] sm:$0xff]
    %v193 = vld [vmem:[#allocation5 + $0x80] sm:$0xff]
    %v194 = vld [vmem:[#allocation5 + $0x88] sm:$0xff]
    %v195 = vld [vmem:[#allocation5 + $0x90] sm:$0xff]
    %v196 = vld [vmem:[#allocation5 + $0x98] sm:$0xff]
    %v197 = vld [vmem:[#allocation5 + $0xa0] sm:$0xff]
    %v198 = vld [vmem:[#allocation5 + $0xa8] sm:$0xff]
    %v199 = vld [vmem:[#allocation5 + $0xb0] sm:$0xff]
    %v200 = vld [vmem:[#allocation5 + $0xb8] sm:$0xff]
    %v201 = vld [vmem:[#allocation5 + $0xc0] sm:$0xff]
    %v202 = vld [vmem:[#allocation5 + $0xc8] sm:$0xff]
    %v203 = vld [vmem:[#allocation5 + $0xd0] sm:$0xff]
    %v204 = vld [vmem:[#allocation5 + $0xd8] sm:$0xff]
    %v205 = vld [vmem:[#allocation5 + $0xe0] sm:$0xff]
    %v206 = vld [vmem:[#allocation5 + $0xe8] sm:$0xff]
    %v207 = vld [vmem:[#allocation5 + $0xf0] sm:$0xff]
    %v208 = vld [vmem:[#allocation5 + $0xf8] sm:$0xff]
    %v209 = vld [vmem:[#allocation5 + $0x100] sm:$0x3]
    %v210 = vld [vmem:[#allocation5 + $0x108] sm:$0x3]
    %v211 = vld [vmem:[#allocation5 + $0x110] sm:$0x3]
    %v212 = vld [vmem:[#allocation5 + $0x118] sm:$0x3]
    %v213 = vld [vmem:[#allocation5 + $0x120] sm:$0x3]
    %v214 = vld [vmem:[#allocation5 + $0x128] sm:$0x3]
    %v215 = vld [vmem:[#allocation5 + $0x130] sm:$0x3]
    %v216 = vld [vmem:[#allocation5 + $0x138] sm:$0x3]
    %v217 = vld [vmem:[#allocation7] sm:$0xff]
    %v219 = vlaneseq
    %v220 = vshrl.u32 %v219, 7
    %v221 = vsub.s32 0, %v220
    %v222 = vrot.slane %v217, %v221
    %v223 = vlaneseq
    %v224 = vshrl.u32 %v223, 7
    %v225 = vsub.s32 1, %v224
    %v226 = vrot.slane %v217, %v225
    %v227 = vlaneseq
    %v228 = vshrl.u32 %v227, 7
    %v229 = vsub.s32 2, %v228
    %v230 = vrot.slane %v217, %v229
    %v231 = vlaneseq
    %v232 = vshrl.u32 %v231, 7
    %v233 = vsub.s32 3, %v232
    %v234 = vrot.slane %v217, %v233
    %v235 = vlaneseq
    %v236 = vshrl.u32 %v235, 7
    %v237 = vsub.s32 4, %v236
    %v238 = vrot.slane %v217, %v237
    %v239 = vlaneseq
    %v240 = vshrl.u32 %v239, 7
    %v241 = vsub.s32 5, %v240
    %v242 = vrot.slane %v217, %v241
    %v243 = vlaneseq
    %v244 = vshrl.u32 %v243, 7
    %v245 = vsub.s32 6, %v244
    %v246 = vrot.slane %v217, %v245
    %v247 = vlaneseq
    %v248 = vshrl.u32 %v247, 7
    %v249 = vsub.s32 7, %v248
    %v250 = vrot.slane %v217, %v249
    %vm259 = vcmask 277504
    %v261 = vsel %vm259, %v176, 0
    %vm263 = vcmask 1041408
    %v265 = vsel %vm263, %v209, 0
    %v268 = vsel %vm263, %v210, 0
    %v271 = vsel %vm263, %v211, 0
    %v274 = vsel %vm263, %v212, 0
    %v277 = vsel %vm263, %v213, 0
    %v280 = vsel %vm263, %v214, 0
    %v283 = vsel %vm263, %v215, 0
    %v286 = vsel %vm263, %v216, 0
    %288 = vmatprep.subr.mxu0 0.0
    %289 = vmatpush1.msra.mxu0 0.0
    %290 = vmatprep.subr.mxu0 0.0
    %291 = vmatpush1.msra.mxu0 0.0
    %292 = vmatprep.subr.mxu0 0.0
    %293 = vmatpush1.msra.mxu0 0.0
    %294 = vmatprep.subr.mxu0 0.0
    %295 = vmatpush1.msra.mxu0 0.0
    %296 = vmatprep.subr.mxu0 0.0
    %297 = vmatpush1.msra.mxu0 0.0
    %298 = vmatprep.subr.mxu0 0.0
    %299 = vmatpush1.msra.mxu0 0.0
    %300 = vmatprep.subr.mxu0 0.0
    %301 = vmatpush1.msra.mxu0 0.0
    %302 = vmatprep.subr.mxu0 0.0
    %303 = vmatpush1.msra.mxu0 0.0
    %304 = vmatprep.subr.mxu0 0.0
    %305 = vmatpush1.msra.mxu0 0.0
    %306 = vmatprep.subr.mxu0 0.0
    %307 = vmatpush1.msra.mxu0 0.0
    %308 = vmatprep.subr.mxu0 0.0
    %309 = vmatpush1.msra.mxu0 0.0
    %310 = vmatprep.subr.mxu0 %v268
    %311 = vmatpush1.msra.mxu0 %v265
    %312 = vmatprep.subr.mxu0 %v202
    %313 = vmatpush1.msra.mxu0 %v201
    %314 = vmatprep.subr.mxu0 %v194
    %315 = vmatpush1.msra.mxu0 %v193
    %316 = vmatprep.subr.mxu0 %v186
    %317 = vmatpush1.msra.mxu0 %v185
    %318 = vmatprep.subr.mxu0 %v178
    %319 = vmatpush1.msra.mxu0 %v177
    %320 = vmatprep.subr.mxu0 0.0
    %321 = vmatpush2.msra.mxu0 0.0
    %322 = vmatprep.subr.mxu0 0.0
    %323 = vmatpush2.msra.mxu0 0.0
    %324 = vmatprep.subr.mxu0 0.0
    %325 = vmatpush2.msra.mxu0 0.0
    %326 = vmatprep.subr.mxu0 0.0
    %327 = vmatpush2.msra.mxu0 0.0
    %328 = vmatprep.subr.mxu0 0.0
    %329 = vmatpush2.msra.mxu0 0.0
    %330 = vmatprep.subr.mxu0 0.0
    %331 = vmatpush2.msra.mxu0 0.0
    %332 = vmatprep.subr.mxu0 0.0
    %333 = vmatpush2.msra.mxu0 0.0
    %334 = vmatprep.subr.mxu0 0.0
    %335 = vmatpush2.msra.mxu0 0.0
    %336 = vmatprep.subr.mxu0 0.0
    %337 = vmatpush2.msra.mxu0 0.0
    %338 = vmatprep.subr.mxu0 0.0
    %339 = vmatpush2.msra.mxu0 0.0
    %340 = vmatprep.subr.mxu0 0.0
    %341 = vmatpush2.msra.mxu0 0.0
    %342 = vmatprep.subr.mxu0 0.0
    %343 = vmatpush2.msra.mxu0 0.0
    %344 = vmatprep.subr.mxu0 0.0
    %345 = vmatpush2.msra.mxu0 0.0
    %346 = vmatprep.subr.mxu0 0.0
    %347 = vmatpush2.msra.mxu0 0.0
    %348 = vmatprep.subr.mxu0 0.0
    %349 = vmatpush2.msra.mxu0 0.0
    %350 = vmatprep.subr.mxu0 0.0
    %351 = vmatpush2.msra.mxu0 0.0
    %352 = vmatprep.mubr.f32.mxu0 0.0
    %353 = vmatmul.mubr.f32.gmra.mxu0 %v261
    %v354 = vpop.f32.mrf.mxu0
    %v355 = vadd.f32 %v222, %v354
    %v356 = vpop.f32.mrf.mxu0
    %v357 = vadd.f32 %v226, %v356
    %358 = vdwg.mxu0
    %359 = vmatprep.subr.mxu0 0.0
    %360 = vmatpush1.msra.mxu0 0.0
    %361 = vmatprep.subr.mxu0 0.0
    %362 = vmatpush1.msra.mxu0 0.0
    %363 = vmatprep.subr.mxu0 0.0
    %364 = vmatpush1.msra.mxu0 0.0
    %365 = vmatprep.subr.mxu0 0.0
    %366 = vmatpush1.msra.mxu0 0.0
    %367 = vmatprep.subr.mxu0 0.0
    %368 = vmatpush1.msra.mxu0 0.0
    %369 = vmatprep.subr.mxu0 0.0
    %370 = vmatpush1.msra.mxu0 0.0
    %371 = vmatprep.subr.mxu0 0.0
    %372 = vmatpush1.msra.mxu0 0.0
    %373 = vmatprep.subr.mxu0 0.0
    %374 = vmatpush1.msra.mxu0 0.0
    %375 = vmatprep.subr.mxu0 0.0
    %376 = vmatpush1.msra.mxu0 0.0
    %377 = vmatprep.subr.mxu0 0.0
    %378 = vmatpush1.msra.mxu0 0.0
    %379 = vmatprep.subr.mxu0 0.0
    %380 = vmatpush1.msra.mxu0 0.0
    %381 = vmatprep.subr.mxu0 %v274
    %382 = vmatpush1.msra.mxu0 %v271
    %383 = vmatprep.subr.mxu0 %v204
    %384 = vmatpush1.msra.mxu0 %v203
    %385 = vmatprep.subr.mxu0 %v196
    %386 = vmatpush1.msra.mxu0 %v195
    %387 = vmatprep.subr.mxu0 %v188
    %388 = vmatpush1.msra.mxu0 %v187
    %389 = vmatprep.subr.mxu0 %v180
    %390 = vmatpush1.msra.mxu0 %v179
    %391 = vmatprep.subr.mxu0 0.0
    %392 = vmatpush2.msra.mxu0 0.0
    %393 = vmatprep.subr.mxu0 0.0
    %394 = vmatpush2.msra.mxu0 0.0
    %395 = vmatprep.subr.mxu0 0.0
    %396 = vmatpush2.msra.mxu0 0.0
    %397 = vmatprep.subr.mxu0 0.0
    %398 = vmatpush2.msra.mxu0 0.0
    %399 = vmatprep.subr.mxu0 0.0
    %400 = vmatpush2.msra.mxu0 0.0
    %401 = vmatprep.subr.mxu0 0.0
    %402 = vmatpush2.msra.mxu0 0.0
    %403 = vmatprep.subr.mxu0 0.0
    %404 = vmatpush2.msra.mxu0 0.0
    %405 = vmatprep.subr.mxu0 0.0
    %406 = vmatpush2.msra.mxu0 0.0
    %407 = vmatprep.subr.mxu0 0.0
    %408 = vmatpush2.msra.mxu0 0.0
    %409 = vmatprep.subr.mxu0 0.0
    %410 = vmatpush2.msra.mxu0 0.0
    %411 = vmatprep.subr.mxu0 0.0
    %412 = vmatpush2.msra.mxu0 0.0
    %413 = vmatprep.subr.mxu0 0.0
    %414 = vmatpush2.msra.mxu0 0.0
    %415 = vmatprep.subr.mxu0 0.0
    %416 = vmatpush2.msra.mxu0 0.0
    %417 = vmatprep.subr.mxu0 0.0
    %418 = vmatpush2.msra.mxu0 0.0
    %419 = vmatprep.subr.mxu0 0.0
    %420 = vmatpush2.msra.mxu0 0.0
    %421 = vmatprep.subr.mxu0 0.0
    %422 = vmatpush2.msra.mxu0 0.0
    %423 = vmatprep.mubr.f32.mxu0 0.0
    %424 = vmatmul.mubr.f32.gmra.mxu0 %v261
    %v425 = vpop.f32.mrf.mxu0
    %v426 = vadd.f32 %v230, %v425
    %v427 = vpop.f32.mrf.mxu0
    %v428 = vadd.f32 %v234, %v427
    %429 = vdwg.mxu0
    %430 = vmatprep.subr.mxu0 0.0
    %431 = vmatpush1.msra.mxu0 0.0
    %432 = vmatprep.subr.mxu0 0.0
    %433 = vmatpush1.msra.mxu0 0.0
    %434 = vmatprep.subr.mxu0 0.0
    %435 = vmatpush1.msra.mxu0 0.0
    %436 = vmatprep.subr.mxu0 0.0
    %437 = vmatpush1.msra.mxu0 0.0
    %438 = vmatprep.subr.mxu0 0.0
    %439 = vmatpush1.msra.mxu0 0.0
    %440 = vmatprep.subr.mxu0 0.0
    %441 = vmatpush1.msra.mxu0 0.0
    %442 = vmatprep.subr.mxu0 0.0
    %443 = vmatpush1.msra.mxu0 0.0
    %444 = vmatprep.subr.mxu0 0.0
    %445 = vmatpush1.msra.mxu0 0.0
    %446 = vmatprep.subr.mxu0 0.0
    %447 = vmatpush1.msra.mxu0 0.0
    %448 = vmatprep.subr.mxu0 0.0
    %449 = vmatpush1.msra.mxu0 0.0
    %450 = vmatprep.subr.mxu0 0.0
    %451 = vmatpush1.msra.mxu0 0.0
    %452 = vmatprep.subr.mxu0 %v280
    %453 = vmatpush1.msra.mxu0 %v277
    %454 = vmatprep.subr.mxu0 %v206
    %455 = vmatpush1.msra.mxu0 %v205
    %456 = vmatprep.subr.mxu0 %v198
    %457 = vmatpush1.msra.mxu0 %v197
    %458 = vmatprep.subr.mxu0 %v190
    %459 = vmatpush1.msra.mxu0 %v189
    %460 = vmatprep.subr.mxu0 %v182
    %461 = vmatpush1.msra.mxu0 %v181
    %462 = vmatprep.subr.mxu0 0.0
    %463 = vmatpush2.msra.mxu0 0.0
    %464 = vmatprep.subr.mxu0 0.0
    %465 = vmatpush2.msra.mxu0 0.0
    %466 = vmatprep.subr.mxu0 0.0
    %467 = vmatpush2.msra.mxu0 0.0
    %468 = vmatprep.subr.mxu0 0.0
    %469 = vmatpush2.msra.mxu0 0.0
    %470 = vmatprep.subr.mxu0 0.0
    %471 = vmatpush2.msra.mxu0 0.0
    %472 = vmatprep.subr.mxu0 0.0
    %473 = vmatpush2.msra.mxu0 0.0
    %474 = vmatprep.subr.mxu0 0.0
    %475 = vmatpush2.msra.mxu0 0.0
    %476 = vmatprep.subr.mxu0 0.0
    %477 = vmatpush2.msra.mxu0 0.0
    %478 = vmatprep.subr.mxu0 0.0
    %479 = vmatpush2.msra.mxu0 0.0
    %480 = vmatprep.subr.mxu0 0.0
    %481 = vmatpush2.msra.mxu0 0.0
    %482 = vmatprep.subr.mxu0 0.0
    %483 = vmatpush2.msra.mxu0 0.0
    %484 = vmatprep.subr.mxu0 0.0
    %485 = vmatpush2.msra.mxu0 0.0
    %486 = vmatprep.subr.mxu0 0.0
    %487 = vmatpush2.msra.mxu0 0.0
    %488 = vmatprep.subr.mxu0 0.0
    %489 = vmatpush2.msra.mxu0 0.0
    %490 = vmatprep.subr.mxu0 0.0
    %491 = vmatpush2.msra.mxu0 0.0
    %492 = vmatprep.subr.mxu0 0.0
    %493 = vmatpush2.msra.mxu0 0.0
    %494 = vmatprep.mubr.f32.mxu0 0.0
    %495 = vmatmul.mubr.f32.gmra.mxu0 %v261
    %v496 = vpop.f32.mrf.mxu0
    %v497 = vadd.f32 %v238, %v496
    %v498 = vpop.f32.mrf.mxu0
    %v499 = vadd.f32 %v242, %v498
    %500 = vdwg.mxu0
    %501 = vmatprep.subr.mxu0 0.0
    %502 = vmatpush1.msra.mxu0 0.0
    %503 = vmatprep.subr.mxu0 0.0
    %504 = vmatpush1.msra.mxu0 0.0
    %505 = vmatprep.subr.mxu0 0.0
    %506 = vmatpush1.msra.mxu0 0.0
    %507 = vmatprep.subr.mxu0 0.0
    %508 = vmatpush1.msra.mxu0 0.0
    %509 = vmatprep.subr.mxu0 0.0
    %510 = vmatpush1.msra.mxu0 0.0
    %511 = vmatprep.subr.mxu0 0.0
    %512 = vmatpush1.msra.mxu0 0.0
    %513 = vmatprep.subr.mxu0 0.0
    %514 = vmatpush1.msra.mxu0 0.0
    %515 = vmatprep.subr.mxu0 0.0
    %516 = vmatpush1.msra.mxu0 0.0
    %517 = vmatprep.subr.mxu0 0.0
    %518 = vmatpush1.msra.mxu0 0.0
    %519 = vmatprep.subr.mxu0 0.0
    %520 = vmatpush1.msra.mxu0 0.0
    %521 = vmatprep.subr.mxu0 0.0
    %522 = vmatpush1.msra.mxu0 0.0
    %523 = vmatprep.subr.mxu0 %v286
    %524 = vmatpush1.msra.mxu0 %v283
    %525 = vmatprep.subr.mxu0 %v208
    %526 = vmatpush1.msra.mxu0 %v207
    %527 = vmatprep.subr.mxu0 %v200
    %528 = vmatpush1.msra.mxu0 %v199
    %529 = vmatprep.subr.mxu0 %v192
    %530 = vmatpush1.msra.mxu0 %v191
    %531 = vmatprep.subr.mxu0 %v184
    %532 = vmatpush1.msra.mxu0 %v183
    %533 = vmatprep.subr.mxu0 0.0
    %534 = vmatpush2.msra.mxu0 0.0
    %535 = vmatprep.subr.mxu0 0.0
    %536 = vmatpush2.msra.mxu0 0.0
    %537 = vmatprep.subr.mxu0 0.0
    %538 = vmatpush2.msra.mxu0 0.0
    %539 = vmatprep.subr.mxu0 0.0
    %540 = vmatpush2.msra.mxu0 0.0
    %541 = vmatprep.subr.mxu0 0.0
    %542 = vmatpush2.msra.mxu0 0.0
    %543 = vmatprep.subr.mxu0 0.0
    %544 = vmatpush2.msra.mxu0 0.0
    %545 = vmatprep.subr.mxu0 0.0
    %546 = vmatpush2.msra.mxu0 0.0
    %547 = vmatprep.subr.mxu0 0.0
    %548 = vmatpush2.msra.mxu0 0.0
    %549 = vmatprep.subr.mxu0 0.0
    %550 = vmatpush2.msra.mxu0 0.0
    %551 = vmatprep.subr.mxu0 0.0
    %552 = vmatpush2.msra.mxu0 0.0
    %553 = vmatprep.subr.mxu0 0.0
    %554 = vmatpush2.msra.mxu0 0.0
    %555 = vmatprep.subr.mxu0 0.0
    %556 = vmatpush2.msra.mxu0 0.0
    %557 = vmatprep.subr.mxu0 0.0
    %558 = vmatpush2.msra.mxu0 0.0
    %559 = vmatprep.subr.mxu0 0.0
    %560 = vmatpush2.msra.mxu0 0.0
    %561 = vmatprep.subr.mxu0 0.0
    %562 = vmatpush2.msra.mxu0 0.0
    %563 = vmatprep.subr.mxu0 0.0
    %564 = vmatpush2.msra.mxu0 0.0
    %565 = vmatprep.mubr.f32.mxu0 0.0
    %566 = vmatmul.mubr.f32.gmra.mxu0 %v261
    %v567 = vpop.f32.mrf.mxu0
    %v568 = vadd.f32 %v246, %v567
    %v569 = vpop.f32.mrf.mxu0
    %v570 = vadd.f32 %v250, %v569
    %571 = vdwg.mxu0
    %v572 = vmax.f32 %v355, 0.0
    %v573 = vmax.f32 %v357, 0.0
    %v574 = vmax.f32 %v426, 0.0
    %v575 = vmax.f32 %v428, 0.0
    %v576 = vmax.f32 %v497, 0.0
    %v577 = vmax.f32 %v499, 0.0
    %v578 = vmax.f32 %v568, 0.0
    %v579 = vmax.f32 %v570, 0.0
    %v580 = vld [vmem:[#allocation8] sm:$0xff]
    %v581 = vld [vmem:[#allocation8 + $0x8] sm:$0xff]
    %v582 = vld [vmem:[#allocation8 + $0x10] sm:$0xff]
    %v583 = vld [vmem:[#allocation8 + $0x18] sm:$0xff]
    %v584 = vld [vmem:[#allocation8 + $0x20] sm:$0xff]
    %v585 = vld [vmem:[#allocation8 + $0x28] sm:$0xff]
    %v586 = vld [vmem:[#allocation8 + $0x30] sm:$0xff]
    %v587 = vld [vmem:[#allocation8 + $0x38] sm:$0xff]
    %v588 = vld [vmem:[#allocation8 + $0x40] sm:$0xff]
    %v589 = vld [vmem:[#allocation8 + $0x48] sm:$0xff]
    %v590 = vld [vmem:[#allocation8 + $0x50] sm:$0xff]
    %v591 = vld [vmem:[#allocation8 + $0x58] sm:$0xff]
    %v592 = vld [vmem:[#allocation8 + $0x60] sm:$0xff]
    %v593 = vld [vmem:[#allocation8 + $0x68] sm:$0xff]
    %v594 = vld [vmem:[#allocation8 + $0x70] sm:$0xff]
    %v595 = vld [vmem:[#allocation8 + $0x78] sm:$0xff]
    %v596 = vld [vmem:[#allocation8 + $0x80] sm:$0xff]
    %v597 = vld [vmem:[#allocation8 + $0x88] sm:$0xff]
    %v598 = vld [vmem:[#allocation8 + $0x90] sm:$0xff]
    %v599 = vld [vmem:[#allocation8 + $0x98] sm:$0xff]
    %v600 = vld [vmem:[#allocation8 + $0xa0] sm:$0xff]
    %v601 = vld [vmem:[#allocation8 + $0xa8] sm:$0xff]
    %v602 = vld [vmem:[#allocation8 + $0xb0] sm:$0xff]
    %v603 = vld [vmem:[#allocation8 + $0xb8] sm:$0xff]
    %v604 = vld [vmem:[#allocation8 + $0xc0] sm:$0xff]
    %v605 = vld [vmem:[#allocation8 + $0xc8] sm:$0xff]
    %v606 = vld [vmem:[#allocation8 + $0xd0] sm:$0xff]
    %v607 = vld [vmem:[#allocation8 + $0xd8] sm:$0xff]
    %v608 = vld [vmem:[#allocation8 + $0xe0] sm:$0xff]
    %v609 = vld [vmem:[#allocation8 + $0xe8] sm:$0xff]
    %v610 = vld [vmem:[#allocation8 + $0xf0] sm:$0xff]
    %v611 = vld [vmem:[#allocation8 + $0xf8] sm:$0xff]
    %v612 = vld [vmem:[#allocation8 + $0x100] sm:$0xff]
    %v613 = vld [vmem:[#allocation8 + $0x108] sm:$0xff]
    %v614 = vld [vmem:[#allocation8 + $0x110] sm:$0xff]
    %v615 = vld [vmem:[#allocation8 + $0x118] sm:$0xff]
    %v616 = vld [vmem:[#allocation8 + $0x120] sm:$0xff]
    %v617 = vld [vmem:[#allocation8 + $0x128] sm:$0xff]
    %v618 = vld [vmem:[#allocation8 + $0x130] sm:$0xff]
    %v619 = vld [vmem:[#allocation8 + $0x138] sm:$0xff]
    %v620 = vld [vmem:[#allocation8 + $0x140] sm:$0xff]
    %v621 = vld [vmem:[#allocation8 + $0x148] sm:$0xff]
    %v622 = vld [vmem:[#allocation8 + $0x150] sm:$0xff]
    %v623 = vld [vmem:[#allocation8 + $0x158] sm:$0xff]
    %v624 = vld [vmem:[#allocation8 + $0x160] sm:$0xff]
    %v625 = vld [vmem:[#allocation8 + $0x168] sm:$0xff]
    %v626 = vld [vmem:[#allocation8 + $0x170] sm:$0xff]
    %v627 = vld [vmem:[#allocation8 + $0x178] sm:$0xff]
    %v628 = vld [vmem:[#allocation8 + $0x180] sm:$0xff]
    %v629 = vld [vmem:[#allocation8 + $0x188] sm:$0xff]
    %v630 = vld [vmem:[#allocation8 + $0x190] sm:$0xff]
    %v631 = vld [vmem:[#allocation8 + $0x198] sm:$0xff]
    %v632 = vld [vmem:[#allocation8 + $0x1a0] sm:$0xff]
    %v633 = vld [vmem:[#allocation8 + $0x1a8] sm:$0xff]
    %v634 = vld [vmem:[#allocation8 + $0x1b0] sm:$0xff]
    %v635 = vld [vmem:[#allocation8 + $0x1b8] sm:$0xff]
    %v636 = vld [vmem:[#allocation8 + $0x1c0] sm:$0xff]
    %v637 = vld [vmem:[#allocation8 + $0x1c8] sm:$0xff]
    %v638 = vld [vmem:[#allocation8 + $0x1d0] sm:$0xff]
    %v639 = vld [vmem:[#allocation8 + $0x1d8] sm:$0xff]
    %v640 = vld [vmem:[#allocation8 + $0x1e0] sm:$0xff]
    %v641 = vld [vmem:[#allocation8 + $0x1e8] sm:$0xff]
    %v642 = vld [vmem:[#allocation8 + $0x1f0] sm:$0xff]
    %v643 = vld [vmem:[#allocation8 + $0x1f8] sm:$0xff]
    %v644 = vld [vmem:[#allocation8 + $0x200] sm:$0xff]
    %v645 = vld [vmem:[#allocation8 + $0x208] sm:$0xff]
    %v646 = vld [vmem:[#allocation8 + $0x210] sm:$0xff]
    %v647 = vld [vmem:[#allocation8 + $0x218] sm:$0xff]
    %v648 = vld [vmem:[#allocation8 + $0x220] sm:$0xff]
    %v649 = vld [vmem:[#allocation8 + $0x228] sm:$0xff]
    %v650 = vld [vmem:[#allocation8 + $0x230] sm:$0xff]
    %v651 = vld [vmem:[#allocation8 + $0x238] sm:$0xff]
    %v652 = vld [vmem:[#allocation8 + $0x240] sm:$0xff]
    %v653 = vld [vmem:[#allocation8 + $0x248] sm:$0xff]
    %v654 = vld [vmem:[#allocation8 + $0x250] sm:$0xff]
    %v655 = vld [vmem:[#allocation8 + $0x258] sm:$0xff]
    %v656 = vld [vmem:[#allocation8 + $0x260] sm:$0xff]
    %v657 = vld [vmem:[#allocation8 + $0x268] sm:$0xff]
    %v658 = vld [vmem:[#allocation8 + $0x270] sm:$0xff]
    %v659 = vld [vmem:[#allocation8 + $0x278] sm:$0xff]
    %v660 = vld [vmem:[#allocation8 + $0x280] sm:$0xff]
    %v661 = vld [vmem:[#allocation8 + $0x288] sm:$0xff]
    %v662 = vld [vmem:[#allocation8 + $0x290] sm:$0xff]
    %v663 = vld [vmem:[#allocation8 + $0x298] sm:$0xff]
    %v664 = vld [vmem:[#allocation8 + $0x2a0] sm:$0xff]
    %v665 = vld [vmem:[#allocation8 + $0x2a8] sm:$0xff]
    %v666 = vld [vmem:[#allocation8 + $0x2b0] sm:$0xff]
    %v667 = vld [vmem:[#allocation8 + $0x2b8] sm:$0xff]
    %v668 = vld [vmem:[#allocation8 + $0x2c0] sm:$0xff]
    %v669 = vld [vmem:[#allocation8 + $0x2c8] sm:$0xff]
    %v670 = vld [vmem:[#allocation8 + $0x2d0] sm:$0xff]
    %v671 = vld [vmem:[#allocation8 + $0x2d8] sm:$0xff]
    %v672 = vld [vmem:[#allocation8 + $0x2e0] sm:$0xff]
    %v673 = vld [vmem:[#allocation8 + $0x2e8] sm:$0xff]
    %v674 = vld [vmem:[#allocation8 + $0x2f0] sm:$0xff]
    %v675 = vld [vmem:[#allocation8 + $0x2f8] sm:$0xff]
    %v676 = vld [vmem:[#allocation8 + $0x300] sm:$0xff]
    %v677 = vld [vmem:[#allocation8 + $0x308] sm:$0xff]
    %v678 = vld [vmem:[#allocation8 + $0x310] sm:$0xff]
    %v679 = vld [vmem:[#allocation8 + $0x318] sm:$0xff]
    %v680 = vld [vmem:[#allocation8 + $0x320] sm:$0xff]
    %v681 = vld [vmem:[#allocation8 + $0x328] sm:$0xff]
    %v682 = vld [vmem:[#allocation8 + $0x330] sm:$0xff]
    %v683 = vld [vmem:[#allocation8 + $0x338] sm:$0xff]
    %v684 = vld [vmem:[#allocation8 + $0x340] sm:$0xff]
    %v685 = vld [vmem:[#allocation8 + $0x348] sm:$0xff]
    %v686 = vld [vmem:[#allocation8 + $0x350] sm:$0xff]
    %v687 = vld [vmem:[#allocation8 + $0x358] sm:$0xff]
    %v688 = vld [vmem:[#allocation8 + $0x360] sm:$0xff]
    %v689 = vld [vmem:[#allocation8 + $0x368] sm:$0xff]
    %v690 = vld [vmem:[#allocation8 + $0x370] sm:$0xff]
    %v691 = vld [vmem:[#allocation8 + $0x378] sm:$0xff]
    %v692 = vld [vmem:[#allocation8 + $0x380] sm:$0xff]
    %v693 = vld [vmem:[#allocation8 + $0x388] sm:$0xff]
    %v694 = vld [vmem:[#allocation8 + $0x390] sm:$0xff]
    %v695 = vld [vmem:[#allocation8 + $0x398] sm:$0xff]
    %v696 = vld [vmem:[#allocation8 + $0x3a0] sm:$0xff]
    %v697 = vld [vmem:[#allocation8 + $0x3a8] sm:$0xff]
    %v698 = vld [vmem:[#allocation8 + $0x3b0] sm:$0xff]
    %v699 = vld [vmem:[#allocation8 + $0x3b8] sm:$0xff]
    %v700 = vld [vmem:[#allocation8 + $0x3c0] sm:$0xff]
    %v701 = vld [vmem:[#allocation8 + $0x3c8] sm:$0xff]
    %v702 = vld [vmem:[#allocation8 + $0x3d0] sm:$0xff]
    %v703 = vld [vmem:[#allocation8 + $0x3d8] sm:$0xff]
    %v704 = vld [vmem:[#allocation8 + $0x3e0] sm:$0xff]
    %v705 = vld [vmem:[#allocation8 + $0x3e8] sm:$0xff]
    %v706 = vld [vmem:[#allocation8 + $0x3f0] sm:$0xff]
    %v707 = vld [vmem:[#allocation8 + $0x3f8] sm:$0xff]
    %v708 = vld [vmem:[#allocation8 + $0x400] sm:$0xff]
    %v709 = vld [vmem:[#allocation8 + $0x408] sm:$0xff]
    %v710 = vld [vmem:[#allocation8 + $0x410] sm:$0xff]
    %v711 = vld [vmem:[#allocation8 + $0x418] sm:$0xff]
    %v712 = vld [vmem:[#allocation8 + $0x420] sm:$0xff]
    %v713 = vld [vmem:[#allocation8 + $0x428] sm:$0xff]
    %v714 = vld [vmem:[#allocation8 + $0x430] sm:$0xff]
    %v715 = vld [vmem:[#allocation8 + $0x438] sm:$0xff]
    %v716 = vld [vmem:[#allocation8 + $0x440] sm:$0xff]
    %v717 = vld [vmem:[#allocation8 + $0x448] sm:$0xff]
    %v718 = vld [vmem:[#allocation8 + $0x450] sm:$0xff]
    %v719 = vld [vmem:[#allocation8 + $0x458] sm:$0xff]
    %v720 = vld [vmem:[#allocation8 + $0x460] sm:$0xff]
    %v721 = vld [vmem:[#allocation8 + $0x468] sm:$0xff]
    %v722 = vld [vmem:[#allocation8 + $0x470] sm:$0xff]
    %v723 = vld [vmem:[#allocation8 + $0x478] sm:$0xff]
    %v724 = vld [vmem:[#allocation8 + $0x480] sm:$0xff]
    %v725 = vld [vmem:[#allocation8 + $0x488] sm:$0xff]
    %v726 = vld [vmem:[#allocation8 + $0x490] sm:$0xff]
    %v727 = vld [vmem:[#allocation8 + $0x498] sm:$0xff]
    %v728 = vld [vmem:[#allocation8 + $0x4a0] sm:$0xff]
    %v729 = vld [vmem:[#allocation8 + $0x4a8] sm:$0xff]
    %v730 = vld [vmem:[#allocation8 + $0x4b0] sm:$0xff]
    %v731 = vld [vmem:[#allocation8 + $0x4b8] sm:$0xff]
    %v732 = vld [vmem:[#allocation8 + $0x4c0] sm:$0xff]
    %v733 = vld [vmem:[#allocation8 + $0x4c8] sm:$0xff]
    %v734 = vld [vmem:[#allocation8 + $0x4d0] sm:$0xff]
    %v735 = vld [vmem:[#allocation8 + $0x4d8] sm:$0xff]
    %v736 = vld [vmem:[#allocation8 + $0x4e0] sm:$0xff]
    %v737 = vld [vmem:[#allocation8 + $0x4e8] sm:$0xff]
    %v738 = vld [vmem:[#allocation8 + $0x4f0] sm:$0xff]
    %v739 = vld [vmem:[#allocation8 + $0x4f8] sm:$0xff]
    %v740 = vld [vmem:[#allocation8 + $0x500] sm:$0xff]
    %v741 = vld [vmem:[#allocation8 + $0x508] sm:$0xff]
    %v742 = vld [vmem:[#allocation8 + $0x510] sm:$0xff]
    %v743 = vld [vmem:[#allocation8 + $0x518] sm:$0xff]
    %v744 = vld [vmem:[#allocation8 + $0x520] sm:$0xff]
    %v745 = vld [vmem:[#allocation8 + $0x528] sm:$0xff]
    %v746 = vld [vmem:[#allocation8 + $0x530] sm:$0xff]
    %v747 = vld [vmem:[#allocation8 + $0x538] sm:$0xff]
    %v748 = vld [vmem:[#allocation8 + $0x540] sm:$0xff]
    %v749 = vld [vmem:[#allocation8 + $0x548] sm:$0xff]
    %v750 = vld [vmem:[#allocation8 + $0x550] sm:$0xff]
    %v751 = vld [vmem:[#allocation8 + $0x558] sm:$0xff]
    %v752 = vld [vmem:[#allocation8 + $0x560] sm:$0xff]
    %v753 = vld [vmem:[#allocation8 + $0x568] sm:$0xff]
    %v754 = vld [vmem:[#allocation8 + $0x570] sm:$0xff]
    %v755 = vld [vmem:[#allocation8 + $0x578] sm:$0xff]
    %v756 = vld [vmem:[#allocation8 + $0x580] sm:$0xff]
    %v757 = vld [vmem:[#allocation8 + $0x588] sm:$0xff]
    %v758 = vld [vmem:[#allocation8 + $0x590] sm:$0xff]
    %v759 = vld [vmem:[#allocation8 + $0x598] sm:$0xff]
    %v760 = vld [vmem:[#allocation8 + $0x5a0] sm:$0xff]
    %v761 = vld [vmem:[#allocation8 + $0x5a8] sm:$0xff]
    %v762 = vld [vmem:[#allocation8 + $0x5b0] sm:$0xff]
    %v763 = vld [vmem:[#allocation8 + $0x5b8] sm:$0xff]
    %v764 = vld [vmem:[#allocation8 + $0x5c0] sm:$0xff]
    %v765 = vld [vmem:[#allocation8 + $0x5c8] sm:$0xff]
    %v766 = vld [vmem:[#allocation8 + $0x5d0] sm:$0xff]
    %v767 = vld [vmem:[#allocation8 + $0x5d8] sm:$0xff]
    %v768 = vld [vmem:[#allocation8 + $0x5e0] sm:$0xff]
    %v769 = vld [vmem:[#allocation8 + $0x5e8] sm:$0xff]
    %v770 = vld [vmem:[#allocation8 + $0x5f0] sm:$0xff]
    %v771 = vld [vmem:[#allocation8 + $0x5f8] sm:$0xff]
    %v772 = vld [vmem:[#allocation8 + $0x600] sm:$0xff]
    %v773 = vld [vmem:[#allocation8 + $0x608] sm:$0xff]
    %v774 = vld [vmem:[#allocation8 + $0x610] sm:$0xff]
    %v775 = vld [vmem:[#allocation8 + $0x618] sm:$0xff]
    %v776 = vld [vmem:[#allocation8 + $0x620] sm:$0xff]
    %v777 = vld [vmem:[#allocation8 + $0x628] sm:$0xff]
    %v778 = vld [vmem:[#allocation8 + $0x630] sm:$0xff]
    %v779 = vld [vmem:[#allocation8 + $0x638] sm:$0xff]
    %v780 = vld [vmem:[#allocation8 + $0x640] sm:$0xff]
    %v781 = vld [vmem:[#allocation8 + $0x648] sm:$0xff]
    %v782 = vld [vmem:[#allocation8 + $0x650] sm:$0xff]
    %v783 = vld [vmem:[#allocation8 + $0x658] sm:$0xff]
    %v784 = vld [vmem:[#allocation8 + $0x660] sm:$0xff]
    %v785 = vld [vmem:[#allocation8 + $0x668] sm:$0xff]
    %v786 = vld [vmem:[#allocation8 + $0x670] sm:$0xff]
    %v787 = vld [vmem:[#allocation8 + $0x678] sm:$0xff]
    %v788 = vld [vmem:[#allocation8 + $0x680] sm:$0xff]
    %v789 = vld [vmem:[#allocation8 + $0x688] sm:$0xff]
    %v790 = vld [vmem:[#allocation8 + $0x690] sm:$0xff]
    %v791 = vld [vmem:[#allocation8 + $0x698] sm:$0xff]
    %v792 = vld [vmem:[#allocation8 + $0x6a0] sm:$0xff]
    %v793 = vld [vmem:[#allocation8 + $0x6a8] sm:$0xff]
    %v794 = vld [vmem:[#allocation8 + $0x6b0] sm:$0xff]
    %v795 = vld [vmem:[#allocation8 + $0x6b8] sm:$0xff]
    %v796 = vld [vmem:[#allocation8 + $0x6c0] sm:$0xff]
    %v797 = vld [vmem:[#allocation8 + $0x6c8] sm:$0xff]
    %v798 = vld [vmem:[#allocation8 + $0x6d0] sm:$0xff]
    %v799 = vld [vmem:[#allocation8 + $0x6d8] sm:$0xff]
    %v800 = vld [vmem:[#allocation8 + $0x6e0] sm:$0xff]
    %v801 = vld [vmem:[#allocation8 + $0x6e8] sm:$0xff]
    %v802 = vld [vmem:[#allocation8 + $0x6f0] sm:$0xff]
    %v803 = vld [vmem:[#allocation8 + $0x6f8] sm:$0xff]
    %v804 = vld [vmem:[#allocation8 + $0x700] sm:$0xff]
    %v805 = vld [vmem:[#allocation8 + $0x708] sm:$0xff]
    %v806 = vld [vmem:[#allocation8 + $0x710] sm:$0xff]
    %v807 = vld [vmem:[#allocation8 + $0x718] sm:$0xff]
    %v808 = vld [vmem:[#allocation8 + $0x720] sm:$0xff]
    %v809 = vld [vmem:[#allocation8 + $0x728] sm:$0xff]
    %v810 = vld [vmem:[#allocation8 + $0x730] sm:$0xff]
    %v811 = vld [vmem:[#allocation8 + $0x738] sm:$0xff]
    %v812 = vld [vmem:[#allocation8 + $0x740] sm:$0xff]
    %v813 = vld [vmem:[#allocation8 + $0x748] sm:$0xff]
    %v814 = vld [vmem:[#allocation8 + $0x750] sm:$0xff]
    %v815 = vld [vmem:[#allocation8 + $0x758] sm:$0xff]
    %v816 = vld [vmem:[#allocation8 + $0x760] sm:$0xff]
    %v817 = vld [vmem:[#allocation8 + $0x768] sm:$0xff]
    %v818 = vld [vmem:[#allocation8 + $0x770] sm:$0xff]
    %v819 = vld [vmem:[#allocation8 + $0x778] sm:$0xff]
    %v820 = vld [vmem:[#allocation8 + $0x780] sm:$0xff]
    %v821 = vld [vmem:[#allocation8 + $0x788] sm:$0xff]
    %v822 = vld [vmem:[#allocation8 + $0x790] sm:$0xff]
    %v823 = vld [vmem:[#allocation8 + $0x798] sm:$0xff]
    %v824 = vld [vmem:[#allocation8 + $0x7a0] sm:$0xff]
    %v825 = vld [vmem:[#allocation8 + $0x7a8] sm:$0xff]
    %v826 = vld [vmem:[#allocation8 + $0x7b0] sm:$0xff]
    %v827 = vld [vmem:[#allocation8 + $0x7b8] sm:$0xff]
    %v828 = vld [vmem:[#allocation8 + $0x7c0] sm:$0xff]
    %v829 = vld [vmem:[#allocation8 + $0x7c8] sm:$0xff]
    %v830 = vld [vmem:[#allocation8 + $0x7d0] sm:$0xff]
    %v831 = vld [vmem:[#allocation8 + $0x7d8] sm:$0xff]
    %v832 = vld [vmem:[#allocation8 + $0x7e0] sm:$0xff]
    %v833 = vld [vmem:[#allocation8 + $0x7e8] sm:$0xff]
    %v834 = vld [vmem:[#allocation8 + $0x7f0] sm:$0xff]
    %v835 = vld [vmem:[#allocation8 + $0x7f8] sm:$0xff]
    %v836 = vld [vmem:[#allocation8 + $0x800] sm:$0xff]
    %v837 = vld [vmem:[#allocation8 + $0x808] sm:$0xff]
    %v838 = vld [vmem:[#allocation8 + $0x810] sm:$0xff]
    %v839 = vld [vmem:[#allocation8 + $0x818] sm:$0xff]
    %v840 = vld [vmem:[#allocation8 + $0x820] sm:$0xff]
    %v841 = vld [vmem:[#allocation8 + $0x828] sm:$0xff]
    %v842 = vld [vmem:[#allocation8 + $0x830] sm:$0xff]
    %v843 = vld [vmem:[#allocation8 + $0x838] sm:$0xff]
    %v844 = vld [vmem:[#allocation8 + $0x840] sm:$0xff]
    %v845 = vld [vmem:[#allocation8 + $0x848] sm:$0xff]
    %v846 = vld [vmem:[#allocation8 + $0x850] sm:$0xff]
    %v847 = vld [vmem:[#allocation8 + $0x858] sm:$0xff]
    %v848 = vld [vmem:[#allocation8 + $0x860] sm:$0xff]
    %v849 = vld [vmem:[#allocation8 + $0x868] sm:$0xff]
    %v850 = vld [vmem:[#allocation8 + $0x870] sm:$0xff]
    %v851 = vld [vmem:[#allocation8 + $0x878] sm:$0xff]
    %v852 = vld [vmem:[#allocation8 + $0x880] sm:$0xff]
    %v853 = vld [vmem:[#allocation8 + $0x888] sm:$0xff]
    %v854 = vld [vmem:[#allocation8 + $0x890] sm:$0xff]
    %v855 = vld [vmem:[#allocation8 + $0x898] sm:$0xff]
    %v856 = vld [vmem:[#allocation8 + $0x8a0] sm:$0xff]
    %v857 = vld [vmem:[#allocation8 + $0x8a8] sm:$0xff]
    %v858 = vld [vmem:[#allocation8 + $0x8b0] sm:$0xff]
    %v859 = vld [vmem:[#allocation8 + $0x8b8] sm:$0xff]
    %v860 = vld [vmem:[#allocation8 + $0x8c0] sm:$0xff]
    %v861 = vld [vmem:[#allocation8 + $0x8c8] sm:$0xff]
    %v862 = vld [vmem:[#allocation8 + $0x8d0] sm:$0xff]
    %v863 = vld [vmem:[#allocation8 + $0x8d8] sm:$0xff]
    %v864 = vld [vmem:[#allocation8 + $0x8e0] sm:$0xff]
    %v865 = vld [vmem:[#allocation8 + $0x8e8] sm:$0xff]
    %v866 = vld [vmem:[#allocation8 + $0x8f0] sm:$0xff]
    %v867 = vld [vmem:[#allocation8 + $0x8f8] sm:$0xff]
    %v868 = vld [vmem:[#allocation8 + $0x900] sm:$0xff]
    %v869 = vld [vmem:[#allocation8 + $0x908] sm:$0xff]
    %v870 = vld [vmem:[#allocation8 + $0x910] sm:$0xff]
    %v871 = vld [vmem:[#allocation8 + $0x918] sm:$0xff]
    %v872 = vld [vmem:[#allocation8 + $0x920] sm:$0xff]
    %v873 = vld [vmem:[#allocation8 + $0x928] sm:$0xff]
    %v874 = vld [vmem:[#allocation8 + $0x930] sm:$0xff]
    %v875 = vld [vmem:[#allocation8 + $0x938] sm:$0xff]
    %v876 = vld [vmem:[#allocation8 + $0x940] sm:$0xff]
    %v877 = vld [vmem:[#allocation8 + $0x948] sm:$0xff]
    %v878 = vld [vmem:[#allocation8 + $0x950] sm:$0xff]
    %v879 = vld [vmem:[#allocation8 + $0x958] sm:$0xff]
    %v880 = vld [vmem:[#allocation8 + $0x960] sm:$0xff]
    %v881 = vld [vmem:[#allocation8 + $0x968] sm:$0xff]
    %v882 = vld [vmem:[#allocation8 + $0x970] sm:$0xff]
    %v883 = vld [vmem:[#allocation8 + $0x978] sm:$0xff]
    %v884 = vld [vmem:[#allocation8 + $0x980] sm:$0xff]
    %v885 = vld [vmem:[#allocation8 + $0x988] sm:$0xff]
    %v886 = vld [vmem:[#allocation8 + $0x990] sm:$0xff]
    %v887 = vld [vmem:[#allocation8 + $0x998] sm:$0xff]
    %v888 = vld [vmem:[#allocation8 + $0x9a0] sm:$0xff]
    %v889 = vld [vmem:[#allocation8 + $0x9a8] sm:$0xff]
    %v890 = vld [vmem:[#allocation8 + $0x9b0] sm:$0xff]
    %v891 = vld [vmem:[#allocation8 + $0x9b8] sm:$0xff]
    %v892 = vld [vmem:[#allocation8 + $0x9c0] sm:$0xff]
    %v893 = vld [vmem:[#allocation8 + $0x9c8] sm:$0xff]
    %v894 = vld [vmem:[#allocation8 + $0x9d0] sm:$0xff]
    %v895 = vld [vmem:[#allocation8 + $0x9d8] sm:$0xff]
    %v896 = vld [vmem:[#allocation8 + $0x9e0] sm:$0xff]
    %v897 = vld [vmem:[#allocation8 + $0x9e8] sm:$0xff]
    %v898 = vld [vmem:[#allocation8 + $0x9f0] sm:$0xff]
    %v899 = vld [vmem:[#allocation8 + $0x9f8] sm:$0xff]
    %v900 = vld [vmem:[#allocation8 + $0xa00] sm:$0xff]
    %v901 = vld [vmem:[#allocation8 + $0xa08] sm:$0xff]
    %v902 = vld [vmem:[#allocation8 + $0xa10] sm:$0xff]
    %v903 = vld [vmem:[#allocation8 + $0xa18] sm:$0xff]
    %v904 = vld [vmem:[#allocation8 + $0xa20] sm:$0xff]
    %v905 = vld [vmem:[#allocation8 + $0xa28] sm:$0xff]
    %v906 = vld [vmem:[#allocation8 + $0xa30] sm:$0xff]
    %v907 = vld [vmem:[#allocation8 + $0xa38] sm:$0xff]
    %v908 = vld [vmem:[#allocation8 + $0xa40] sm:$0xff]
    %v909 = vld [vmem:[#allocation8 + $0xa48] sm:$0xff]
    %v910 = vld [vmem:[#allocation8 + $0xa50] sm:$0xff]
    %v911 = vld [vmem:[#allocation8 + $0xa58] sm:$0xff]
    %v912 = vld [vmem:[#allocation8 + $0xa60] sm:$0xff]
    %v913 = vld [vmem:[#allocation8 + $0xa68] sm:$0xff]
    %v914 = vld [vmem:[#allocation8 + $0xa70] sm:$0xff]
    %v915 = vld [vmem:[#allocation8 + $0xa78] sm:$0xff]
    %v916 = vld [vmem:[#allocation8 + $0xa80] sm:$0xff]
    %v917 = vld [vmem:[#allocation8 + $0xa88] sm:$0xff]
    %v918 = vld [vmem:[#allocation8 + $0xa90] sm:$0xff]
    %v919 = vld [vmem:[#allocation8 + $0xa98] sm:$0xff]
    %v920 = vld [vmem:[#allocation8 + $0xaa0] sm:$0xff]
    %v921 = vld [vmem:[#allocation8 + $0xaa8] sm:$0xff]
    %v922 = vld [vmem:[#allocation8 + $0xab0] sm:$0xff]
    %v923 = vld [vmem:[#allocation8 + $0xab8] sm:$0xff]
    %v924 = vld [vmem:[#allocation8 + $0xac0] sm:$0xff]
    %v925 = vld [vmem:[#allocation8 + $0xac8] sm:$0xff]
    %v926 = vld [vmem:[#allocation8 + $0xad0] sm:$0xff]
    %v927 = vld [vmem:[#allocation8 + $0xad8] sm:$0xff]
    %v928 = vld [vmem:[#allocation8 + $0xae0] sm:$0xff]
    %v929 = vld [vmem:[#allocation8 + $0xae8] sm:$0xff]
    %v930 = vld [vmem:[#allocation8 + $0xaf0] sm:$0xff]
    %v931 = vld [vmem:[#allocation8 + $0xaf8] sm:$0xff]
    %v932 = vld [vmem:[#allocation8 + $0xb00] sm:$0xff]
    %v933 = vld [vmem:[#allocation8 + $0xb08] sm:$0xff]
    %v934 = vld [vmem:[#allocation8 + $0xb10] sm:$0xff]
    %v935 = vld [vmem:[#allocation8 + $0xb18] sm:$0xff]
    %v936 = vld [vmem:[#allocation8 + $0xb20] sm:$0xff]
    %v937 = vld [vmem:[#allocation8 + $0xb28] sm:$0xff]
    %v938 = vld [vmem:[#allocation8 + $0xb30] sm:$0xff]
    %v939 = vld [vmem:[#allocation8 + $0xb38] sm:$0xff]
    %v940 = vld [vmem:[#allocation8 + $0xb40] sm:$0xff]
    %v941 = vld [vmem:[#allocation8 + $0xb48] sm:$0xff]
    %v942 = vld [vmem:[#allocation8 + $0xb50] sm:$0xff]
    %v943 = vld [vmem:[#allocation8 + $0xb58] sm:$0xff]
    %v944 = vld [vmem:[#allocation8 + $0xb60] sm:$0xff]
    %v945 = vld [vmem:[#allocation8 + $0xb68] sm:$0xff]
    %v946 = vld [vmem:[#allocation8 + $0xb70] sm:$0xff]
    %v947 = vld [vmem:[#allocation8 + $0xb78] sm:$0xff]
    %v948 = vld [vmem:[#allocation8 + $0xb80] sm:$0xff]
    %v949 = vld [vmem:[#allocation8 + $0xb88] sm:$0xff]
    %v950 = vld [vmem:[#allocation8 + $0xb90] sm:$0xff]
    %v951 = vld [vmem:[#allocation8 + $0xb98] sm:$0xff]
    %v952 = vld [vmem:[#allocation8 + $0xba0] sm:$0xff]
    %v953 = vld [vmem:[#allocation8 + $0xba8] sm:$0xff]
    %v954 = vld [vmem:[#allocation8 + $0xbb0] sm:$0xff]
    %v955 = vld [vmem:[#allocation8 + $0xbb8] sm:$0xff]
    %v956 = vld [vmem:[#allocation8 + $0xbc0] sm:$0xff]
    %v957 = vld [vmem:[#allocation8 + $0xbc8] sm:$0xff]
    %v958 = vld [vmem:[#allocation8 + $0xbd0] sm:$0xff]
    %v959 = vld [vmem:[#allocation8 + $0xbd8] sm:$0xff]
    %v960 = vld [vmem:[#allocation8 + $0xbe0] sm:$0xff]
    %v961 = vld [vmem:[#allocation8 + $0xbe8] sm:$0xff]
    %v962 = vld [vmem:[#allocation8 + $0xbf0] sm:$0xff]
    %v963 = vld [vmem:[#allocation8 + $0xbf8] sm:$0xff]
    %v964 = vld [vmem:[#allocation8 + $0xc00] sm:$0xff]
    %v965 = vld [vmem:[#allocation8 + $0xc08] sm:$0xff]
    %v966 = vld [vmem:[#allocation8 + $0xc10] sm:$0xff]
    %v967 = vld [vmem:[#allocation8 + $0xc18] sm:$0xff]
    %v968 = vld [vmem:[#allocation8 + $0xc20] sm:$0xff]
    %v969 = vld [vmem:[#allocation8 + $0xc28] sm:$0xff]
    %v970 = vld [vmem:[#allocation8 + $0xc30] sm:$0xff]
    %v971 = vld [vmem:[#allocation8 + $0xc38] sm:$0xff]
    %v972 = vld [vmem:[#allocation8 + $0xc40] sm:$0xff]
    %v973 = vld [vmem:[#allocation8 + $0xc48] sm:$0xff]
    %v974 = vld [vmem:[#allocation8 + $0xc50] sm:$0xff]
    %v975 = vld [vmem:[#allocation8 + $0xc58] sm:$0xff]
    %v976 = vld [vmem:[#allocation8 + $0xc60] sm:$0xff]
    %v977 = vld [vmem:[#allocation8 + $0xc68] sm:$0xff]
    %v978 = vld [vmem:[#allocation8 + $0xc70] sm:$0xff]
    %v979 = vld [vmem:[#allocation8 + $0xc78] sm:$0xff]
    %v980 = vld [vmem:[#allocation8 + $0xc80] sm:$0xff]
    %v981 = vld [vmem:[#allocation8 + $0xc88] sm:$0xff]
    %v982 = vld [vmem:[#allocation8 + $0xc90] sm:$0xff]
    %v983 = vld [vmem:[#allocation8 + $0xc98] sm:$0xff]
    %v984 = vld [vmem:[#allocation8 + $0xca0] sm:$0xff]
    %v985 = vld [vmem:[#allocation8 + $0xca8] sm:$0xff]
    %v986 = vld [vmem:[#allocation8 + $0xcb0] sm:$0xff]
    %v987 = vld [vmem:[#allocation8 + $0xcb8] sm:$0xff]
    %v988 = vld [vmem:[#allocation8 + $0xcc0] sm:$0xff]
    %v989 = vld [vmem:[#allocation8 + $0xcc8] sm:$0xff]
    %v990 = vld [vmem:[#allocation8 + $0xcd0] sm:$0xff]
    %v991 = vld [vmem:[#allocation8 + $0xcd8] sm:$0xff]
    %v992 = vld [vmem:[#allocation8 + $0xce0] sm:$0xff]
    %v993 = vld [vmem:[#allocation8 + $0xce8] sm:$0xff]
    %v994 = vld [vmem:[#allocation8 + $0xcf0] sm:$0xff]
    %v995 = vld [vmem:[#allocation8 + $0xcf8] sm:$0xff]
    %v996 = vld [vmem:[#allocation8 + $0xd00] sm:$0xff]
    %v997 = vld [vmem:[#allocation8 + $0xd08] sm:$0xff]
    %v998 = vld [vmem:[#allocation8 + $0xd10] sm:$0xff]
    %v999 = vld [vmem:[#allocation8 + $0xd18] sm:$0xff]
    %v1000 = vld [vmem:[#allocation8 + $0xd20] sm:$0xff]
    %v1001 = vld [vmem:[#allocation8 + $0xd28] sm:$0xff]
    %v1002 = vld [vmem:[#allocation8 + $0xd30] sm:$0xff]
    %v1003 = vld [vmem:[#allocation8 + $0xd38] sm:$0xff]
    %v1004 = vld [vmem:[#allocation8 + $0xd40] sm:$0xff]
    %v1005 = vld [vmem:[#allocation8 + $0xd48] sm:$0xff]
    %v1006 = vld [vmem:[#allocation8 + $0xd50] sm:$0xff]
    %v1007 = vld [vmem:[#allocation8 + $0xd58] sm:$0xff]
    %v1008 = vld [vmem:[#allocation8 + $0xd60] sm:$0xff]
    %v1009 = vld [vmem:[#allocation8 + $0xd68] sm:$0xff]
    %v1010 = vld [vmem:[#allocation8 + $0xd70] sm:$0xff]
    %v1011 = vld [vmem:[#allocation8 + $0xd78] sm:$0xff]
    %v1012 = vld [vmem:[#allocation8 + $0xd80] sm:$0xff]
    %v1013 = vld [vmem:[#allocation8 + $0xd88] sm:$0xff]
    %v1014 = vld [vmem:[#allocation8 + $0xd90] sm:$0xff]
    %v1015 = vld [vmem:[#allocation8 + $0xd98] sm:$0xff]
    %v1016 = vld [vmem:[#allocation8 + $0xda0] sm:$0xff]
    %v1017 = vld [vmem:[#allocation8 + $0xda8] sm:$0xff]
    %v1018 = vld [vmem:[#allocation8 + $0xdb0] sm:$0xff]
    %v1019 = vld [vmem:[#allocation8 + $0xdb8] sm:$0xff]
    %v1020 = vld [vmem:[#allocation8 + $0xdc0] sm:$0xff]
    %v1021 = vld [vmem:[#allocation8 + $0xdc8] sm:$0xff]
    %v1022 = vld [vmem:[#allocation8 + $0xdd0] sm:$0xff]
    %v1023 = vld [vmem:[#allocation8 + $0xdd8] sm:$0xff]
    %v1024 = vld [vmem:[#allocation8 + $0xde0] sm:$0xff]
    %v1025 = vld [vmem:[#allocation8 + $0xde8] sm:$0xff]
    %v1026 = vld [vmem:[#allocation8 + $0xdf0] sm:$0xff]
    %v1027 = vld [vmem:[#allocation8 + $0xdf8] sm:$0xff]
    %v1028 = vld [vmem:[#allocation8 + $0xe00] sm:$0xff]
    %v1029 = vld [vmem:[#allocation8 + $0xe08] sm:$0xff]
    %v1030 = vld [vmem:[#allocation8 + $0xe10] sm:$0xff]
    %v1031 = vld [vmem:[#allocation8 + $0xe18] sm:$0xff]
    %v1032 = vld [vmem:[#allocation8 + $0xe20] sm:$0xff]
    %v1033 = vld [vmem:[#allocation8 + $0xe28] sm:$0xff]
    %v1034 = vld [vmem:[#allocation8 + $0xe30] sm:$0xff]
    %v1035 = vld [vmem:[#allocation8 + $0xe38] sm:$0xff]
    %v1036 = vld [vmem:[#allocation8 + $0xe40] sm:$0xff]
    %v1037 = vld [vmem:[#allocation8 + $0xe48] sm:$0xff]
    %v1038 = vld [vmem:[#allocation8 + $0xe50] sm:$0xff]
    %v1039 = vld [vmem:[#allocation8 + $0xe58] sm:$0xff]
    %v1040 = vld [vmem:[#allocation8 + $0xe60] sm:$0xff]
    %v1041 = vld [vmem:[#allocation8 + $0xe68] sm:$0xff]
    %v1042 = vld [vmem:[#allocation8 + $0xe70] sm:$0xff]
    %v1043 = vld [vmem:[#allocation8 + $0xe78] sm:$0xff]
    %v1044 = vld [vmem:[#allocation8 + $0xe80] sm:$0xff]
    %v1045 = vld [vmem:[#allocation8 + $0xe88] sm:$0xff]
    %v1046 = vld [vmem:[#allocation8 + $0xe90] sm:$0xff]
    %v1047 = vld [vmem:[#allocation8 + $0xe98] sm:$0xff]
    %v1048 = vld [vmem:[#allocation8 + $0xea0] sm:$0xff]
    %v1049 = vld [vmem:[#allocation8 + $0xea8] sm:$0xff]
    %v1050 = vld [vmem:[#allocation8 + $0xeb0] sm:$0xff]
    %v1051 = vld [vmem:[#allocation8 + $0xeb8] sm:$0xff]
    %v1052 = vld [vmem:[#allocation8 + $0xec0] sm:$0xff]
    %v1053 = vld [vmem:[#allocation8 + $0xec8] sm:$0xff]
    %v1054 = vld [vmem:[#allocation8 + $0xed0] sm:$0xff]
    %v1055 = vld [vmem:[#allocation8 + $0xed8] sm:$0xff]
    %v1056 = vld [vmem:[#allocation8 + $0xee0] sm:$0xff]
    %v1057 = vld [vmem:[#allocation8 + $0xee8] sm:$0xff]
    %v1058 = vld [vmem:[#allocation8 + $0xef0] sm:$0xff]
    %v1059 = vld [vmem:[#allocation8 + $0xef8] sm:$0xff]
    %v1060 = vld [vmem:[#allocation8 + $0xf00] sm:$0xff]
    %v1061 = vld [vmem:[#allocation8 + $0xf08] sm:$0xff]
    %v1062 = vld [vmem:[#allocation8 + $0xf10] sm:$0xff]
    %v1063 = vld [vmem:[#allocation8 + $0xf18] sm:$0xff]
    %v1064 = vld [vmem:[#allocation8 + $0xf20] sm:$0xff]
    %v1065 = vld [vmem:[#allocation8 + $0xf28] sm:$0xff]
    %v1066 = vld [vmem:[#allocation8 + $0xf30] sm:$0xff]
    %v1067 = vld [vmem:[#allocation8 + $0xf38] sm:$0xff]
    %v1068 = vld [vmem:[#allocation8 + $0xf40] sm:$0xff]
    %v1069 = vld [vmem:[#allocation8 + $0xf48] sm:$0xff]
    %v1070 = vld [vmem:[#allocation8 + $0xf50] sm:$0xff]
    %v1071 = vld [vmem:[#allocation8 + $0xf58] sm:$0xff]
    %v1072 = vld [vmem:[#allocation8 + $0xf60] sm:$0xff]
    %v1073 = vld [vmem:[#allocation8 + $0xf68] sm:$0xff]
    %v1074 = vld [vmem:[#allocation8 + $0xf70] sm:$0xff]
    %v1075 = vld [vmem:[#allocation8 + $0xf78] sm:$0xff]
    %v1076 = vld [vmem:[#allocation8 + $0xf80] sm:$0xff]
    %v1077 = vld [vmem:[#allocation8 + $0xf88] sm:$0xff]
    %v1078 = vld [vmem:[#allocation8 + $0xf90] sm:$0xff]
    %v1079 = vld [vmem:[#allocation8 + $0xf98] sm:$0xff]
    %v1080 = vld [vmem:[#allocation8 + $0xfa0] sm:$0xff]
    %v1081 = vld [vmem:[#allocation8 + $0xfa8] sm:$0xff]
    %v1082 = vld [vmem:[#allocation8 + $0xfb0] sm:$0xff]
    %v1083 = vld [vmem:[#allocation8 + $0xfb8] sm:$0xff]
    %v1084 = vld [vmem:[#allocation8 + $0xfc0] sm:$0xff]
    %v1085 = vld [vmem:[#allocation8 + $0xfc8] sm:$0xff]
    %v1086 = vld [vmem:[#allocation8 + $0xfd0] sm:$0xff]
    %v1087 = vld [vmem:[#allocation8 + $0xfd8] sm:$0xff]
    %v1088 = vld [vmem:[#allocation8 + $0xfe0] sm:$0xff]
    %v1089 = vld [vmem:[#allocation8 + $0xfe8] sm:$0xff]
    %v1090 = vld [vmem:[#allocation8 + $0xff0] sm:$0xff]
    %v1091 = vld [vmem:[#allocation8 + $0xff8] sm:$0xff]
    %v1092 = vld [vmem:[#allocation8 + $0x1000] sm:$0xff]
    %v1093 = vld [vmem:[#allocation8 + $0x1008] sm:$0xff]
    %v1094 = vld [vmem:[#allocation8 + $0x1010] sm:$0xff]
    %v1095 = vld [vmem:[#allocation8 + $0x1018] sm:$0xff]
    %v1096 = vld [vmem:[#allocation8 + $0x1020] sm:$0xff]
    %v1097 = vld [vmem:[#allocation8 + $0x1028] sm:$0xff]
    %v1098 = vld [vmem:[#allocation8 + $0x1030] sm:$0xff]
    %v1099 = vld [vmem:[#allocation8 + $0x1038] sm:$0xff]
    %v1100 = vld [vmem:[#allocation8 + $0x1040] sm:$0xff]
    %v1101 = vld [vmem:[#allocation8 + $0x1048] sm:$0xff]
    %v1102 = vld [vmem:[#allocation8 + $0x1050] sm:$0xff]
    %v1103 = vld [vmem:[#allocation8 + $0x1058] sm:$0xff]
    %v1104 = vld [vmem:[#allocation8 + $0x1060] sm:$0xff]
    %v1105 = vld [vmem:[#allocation8 + $0x1068] sm:$0xff]
    %v1106 = vld [vmem:[#allocation8 + $0x1070] sm:$0xff]
    %v1107 = vld [vmem:[#allocation8 + $0x1078] sm:$0xff]
    %v1108 = vld [vmem:[#allocation8 + $0x1080] sm:$0xff]
    %v1109 = vld [vmem:[#allocation8 + $0x1088] sm:$0xff]
    %v1110 = vld [vmem:[#allocation8 + $0x1090] sm:$0xff]
    %v1111 = vld [vmem:[#allocation8 + $0x1098] sm:$0xff]
    %v1112 = vld [vmem:[#allocation8 + $0x10a0] sm:$0xff]
    %v1113 = vld [vmem:[#allocation8 + $0x10a8] sm:$0xff]
    %v1114 = vld [vmem:[#allocation8 + $0x10b0] sm:$0xff]
    %v1115 = vld [vmem:[#allocation8 + $0x10b8] sm:$0xff]
    %v1116 = vld [vmem:[#allocation8 + $0x10c0] sm:$0xff]
    %v1117 = vld [vmem:[#allocation8 + $0x10c8] sm:$0xff]
    %v1118 = vld [vmem:[#allocation8 + $0x10d0] sm:$0xff]
    %v1119 = vld [vmem:[#allocation8 + $0x10d8] sm:$0xff]
    %v1120 = vld [vmem:[#allocation8 + $0x10e0] sm:$0xff]
    %v1121 = vld [vmem:[#allocation8 + $0x10e8] sm:$0xff]
    %v1122 = vld [vmem:[#allocation8 + $0x10f0] sm:$0xff]
    %v1123 = vld [vmem:[#allocation8 + $0x10f8] sm:$0xff]
    %v1124 = vld [vmem:[#allocation8 + $0x1100] sm:$0xff]
    %v1125 = vld [vmem:[#allocation8 + $0x1108] sm:$0xff]
    %v1126 = vld [vmem:[#allocation8 + $0x1110] sm:$0xff]
    %v1127 = vld [vmem:[#allocation8 + $0x1118] sm:$0xff]
    %v1128 = vld [vmem:[#allocation8 + $0x1120] sm:$0xff]
    %v1129 = vld [vmem:[#allocation8 + $0x1128] sm:$0xff]
    %v1130 = vld [vmem:[#allocation8 + $0x1130] sm:$0xff]
    %v1131 = vld [vmem:[#allocation8 + $0x1138] sm:$0xff]
    %v1132 = vld [vmem:[#allocation8 + $0x1140] sm:$0xff]
    %v1133 = vld [vmem:[#allocation8 + $0x1148] sm:$0xff]
    %v1134 = vld [vmem:[#allocation8 + $0x1150] sm:$0xff]
    %v1135 = vld [vmem:[#allocation8 + $0x1158] sm:$0xff]
    %v1136 = vld [vmem:[#allocation8 + $0x1160] sm:$0xff]
    %v1137 = vld [vmem:[#allocation8 + $0x1168] sm:$0xff]
    %v1138 = vld [vmem:[#allocation8 + $0x1170] sm:$0xff]
    %v1139 = vld [vmem:[#allocation8 + $0x1178] sm:$0xff]
    %v1140 = vld [vmem:[#allocation8 + $0x1180] sm:$0xff]
    %v1141 = vld [vmem:[#allocation8 + $0x1188] sm:$0xff]
    %v1142 = vld [vmem:[#allocation8 + $0x1190] sm:$0xff]
    %v1143 = vld [vmem:[#allocation8 + $0x1198] sm:$0xff]
    %v1144 = vld [vmem:[#allocation8 + $0x11a0] sm:$0xff]
    %v1145 = vld [vmem:[#allocation8 + $0x11a8] sm:$0xff]
    %v1146 = vld [vmem:[#allocation8 + $0x11b0] sm:$0xff]
    %v1147 = vld [vmem:[#allocation8 + $0x11b8] sm:$0xff]
    %v1148 = vld [vmem:[#allocation8 + $0x11c0] sm:$0xff]
    %v1149 = vld [vmem:[#allocation8 + $0x11c8] sm:$0xff]
    %v1150 = vld [vmem:[#allocation8 + $0x11d0] sm:$0xff]
    %v1151 = vld [vmem:[#allocation8 + $0x11d8] sm:$0xff]
    %v1152 = vld [vmem:[#allocation8 + $0x11e0] sm:$0xff]
    %v1153 = vld [vmem:[#allocation8 + $0x11e8] sm:$0xff]
    %v1154 = vld [vmem:[#allocation8 + $0x11f0] sm:$0xff]
    %v1155 = vld [vmem:[#allocation8 + $0x11f8] sm:$0xff]
    %v1156 = vld [vmem:[#allocation8 + $0x1200] sm:$0xff]
    %v1157 = vld [vmem:[#allocation8 + $0x1208] sm:$0xff]
    %v1158 = vld [vmem:[#allocation8 + $0x1210] sm:$0xff]
    %v1159 = vld [vmem:[#allocation8 + $0x1218] sm:$0xff]
    %v1160 = vld [vmem:[#allocation8 + $0x1220] sm:$0xff]
    %v1161 = vld [vmem:[#allocation8 + $0x1228] sm:$0xff]
    %v1162 = vld [vmem:[#allocation8 + $0x1230] sm:$0xff]
    %v1163 = vld [vmem:[#allocation8 + $0x1238] sm:$0xff]
    %v1164 = vld [vmem:[#allocation8 + $0x1240] sm:$0xff]
    %v1165 = vld [vmem:[#allocation8 + $0x1248] sm:$0xff]
    %v1166 = vld [vmem:[#allocation8 + $0x1250] sm:$0xff]
    %v1167 = vld [vmem:[#allocation8 + $0x1258] sm:$0xff]
    %v1168 = vld [vmem:[#allocation8 + $0x1260] sm:$0xff]
    %v1169 = vld [vmem:[#allocation8 + $0x1268] sm:$0xff]
    %v1170 = vld [vmem:[#allocation8 + $0x1270] sm:$0xff]
    %v1171 = vld [vmem:[#allocation8 + $0x1278] sm:$0xff]
    %v1172 = vld [vmem:[#allocation8 + $0x1280] sm:$0xff]
    %v1173 = vld [vmem:[#allocation8 + $0x1288] sm:$0xff]
    %v1174 = vld [vmem:[#allocation8 + $0x1290] sm:$0xff]
    %v1175 = vld [vmem:[#allocation8 + $0x1298] sm:$0xff]
    %v1176 = vld [vmem:[#allocation8 + $0x12a0] sm:$0xff]
    %v1177 = vld [vmem:[#allocation8 + $0x12a8] sm:$0xff]
    %v1178 = vld [vmem:[#allocation8 + $0x12b0] sm:$0xff]
    %v1179 = vld [vmem:[#allocation8 + $0x12b8] sm:$0xff]
    %v1180 = vld [vmem:[#allocation8 + $0x12c0] sm:$0xff]
    %v1181 = vld [vmem:[#allocation8 + $0x12c8] sm:$0xff]
    %v1182 = vld [vmem:[#allocation8 + $0x12d0] sm:$0xff]
    %v1183 = vld [vmem:[#allocation8 + $0x12d8] sm:$0xff]
    %v1184 = vld [vmem:[#allocation8 + $0x12e0] sm:$0xff]
    %v1185 = vld [vmem:[#allocation8 + $0x12e8] sm:$0xff]
    %v1186 = vld [vmem:[#allocation8 + $0x12f0] sm:$0xff]
    %v1187 = vld [vmem:[#allocation8 + $0x12f8] sm:$0xff]
    %v1188 = vld [vmem:[#allocation8 + $0x1300] sm:$0xff]
    %v1189 = vld [vmem:[#allocation8 + $0x1308] sm:$0xff]
    %v1190 = vld [vmem:[#allocation8 + $0x1310] sm:$0xff]
    %v1191 = vld [vmem:[#allocation8 + $0x1318] sm:$0xff]
    %v1192 = vld [vmem:[#allocation8 + $0x1320] sm:$0xff]
    %v1193 = vld [vmem:[#allocation8 + $0x1328] sm:$0xff]
    %v1194 = vld [vmem:[#allocation8 + $0x1330] sm:$0xff]
    %v1195 = vld [vmem:[#allocation8 + $0x1338] sm:$0xff]
    %v1196 = vld [vmem:[#allocation8 + $0x1340] sm:$0xff]
    %v1197 = vld [vmem:[#allocation8 + $0x1348] sm:$0xff]
    %v1198 = vld [vmem:[#allocation8 + $0x1350] sm:$0xff]
    %v1199 = vld [vmem:[#allocation8 + $0x1358] sm:$0xff]
    %v1200 = vld [vmem:[#allocation8 + $0x1360] sm:$0xff]
    %v1201 = vld [vmem:[#allocation8 + $0x1368] sm:$0xff]
    %v1202 = vld [vmem:[#allocation8 + $0x1370] sm:$0xff]
    %v1203 = vld [vmem:[#allocation8 + $0x1378] sm:$0xff]
    %v1204 = vld [vmem:[#allocation8 + $0x1380] sm:$0xff]
    %v1205 = vld [vmem:[#allocation8 + $0x1388] sm:$0xff]
    %v1206 = vld [vmem:[#allocation8 + $0x1390] sm:$0xff]
    %v1207 = vld [vmem:[#allocation8 + $0x1398] sm:$0xff]
    %v1208 = vld [vmem:[#allocation8 + $0x13a0] sm:$0xff]
    %v1209 = vld [vmem:[#allocation8 + $0x13a8] sm:$0xff]
    %v1210 = vld [vmem:[#allocation8 + $0x13b0] sm:$0xff]
    %v1211 = vld [vmem:[#allocation8 + $0x13b8] sm:$0xff]
    %v1212 = vld [vmem:[#allocation8 + $0x13c0] sm:$0xff]
    %v1213 = vld [vmem:[#allocation8 + $0x13c8] sm:$0xff]
    %v1214 = vld [vmem:[#allocation8 + $0x13d0] sm:$0xff]
    %v1215 = vld [vmem:[#allocation8 + $0x13d8] sm:$0xff]
    %v1216 = vld [vmem:[#allocation8 + $0x13e0] sm:$0xff]
    %v1217 = vld [vmem:[#allocation8 + $0x13e8] sm:$0xff]
    %v1218 = vld [vmem:[#allocation8 + $0x13f0] sm:$0xff]
    %v1219 = vld [vmem:[#allocation8 + $0x13f8] sm:$0xff]
    %v1220 = vld [vmem:[#allocation8 + $0x1400] sm:$0xff]
    %v1221 = vld [vmem:[#allocation8 + $0x1408] sm:$0xff]
    %v1222 = vld [vmem:[#allocation8 + $0x1410] sm:$0xff]
    %v1223 = vld [vmem:[#allocation8 + $0x1418] sm:$0xff]
    %v1224 = vld [vmem:[#allocation8 + $0x1420] sm:$0xff]
    %v1225 = vld [vmem:[#allocation8 + $0x1428] sm:$0xff]
    %v1226 = vld [vmem:[#allocation8 + $0x1430] sm:$0xff]
    %v1227 = vld [vmem:[#allocation8 + $0x1438] sm:$0xff]
    %v1228 = vld [vmem:[#allocation8 + $0x1440] sm:$0xff]
    %v1229 = vld [vmem:[#allocation8 + $0x1448] sm:$0xff]
    %v1230 = vld [vmem:[#allocation8 + $0x1450] sm:$0xff]
    %v1231 = vld [vmem:[#allocation8 + $0x1458] sm:$0xff]
    %v1232 = vld [vmem:[#allocation8 + $0x1460] sm:$0xff]
    %v1233 = vld [vmem:[#allocation8 + $0x1468] sm:$0xff]
    %v1234 = vld [vmem:[#allocation8 + $0x1470] sm:$0xff]
    %v1235 = vld [vmem:[#allocation8 + $0x1478] sm:$0xff]
    %v1236 = vld [vmem:[#allocation8 + $0x1480] sm:$0xff]
    %v1237 = vld [vmem:[#allocation8 + $0x1488] sm:$0xff]
    %v1238 = vld [vmem:[#allocation8 + $0x1490] sm:$0xff]
    %v1239 = vld [vmem:[#allocation8 + $0x1498] sm:$0xff]
    %v1240 = vld [vmem:[#allocation8 + $0x14a0] sm:$0xff]
    %v1241 = vld [vmem:[#allocation8 + $0x14a8] sm:$0xff]
    %v1242 = vld [vmem:[#allocation8 + $0x14b0] sm:$0xff]
    %v1243 = vld [vmem:[#allocation8 + $0x14b8] sm:$0xff]
    %v1244 = vld [vmem:[#allocation8 + $0x14c0] sm:$0xff]
    %v1245 = vld [vmem:[#allocation8 + $0x14c8] sm:$0xff]
    %v1246 = vld [vmem:[#allocation8 + $0x14d0] sm:$0xff]
    %v1247 = vld [vmem:[#allocation8 + $0x14d8] sm:$0xff]
    %v1248 = vld [vmem:[#allocation8 + $0x14e0] sm:$0xff]
    %v1249 = vld [vmem:[#allocation8 + $0x14e8] sm:$0xff]
    %v1250 = vld [vmem:[#allocation8 + $0x14f0] sm:$0xff]
    %v1251 = vld [vmem:[#allocation8 + $0x14f8] sm:$0xff]
    %v1252 = vld [vmem:[#allocation8 + $0x1500] sm:$0xff]
    %v1253 = vld [vmem:[#allocation8 + $0x1508] sm:$0xff]
    %v1254 = vld [vmem:[#allocation8 + $0x1510] sm:$0xff]
    %v1255 = vld [vmem:[#allocation8 + $0x1518] sm:$0xff]
    %v1256 = vld [vmem:[#allocation8 + $0x1520] sm:$0xff]
    %v1257 = vld [vmem:[#allocation8 + $0x1528] sm:$0xff]
    %v1258 = vld [vmem:[#allocation8 + $0x1530] sm:$0xff]
    %v1259 = vld [vmem:[#allocation8 + $0x1538] sm:$0xff]
    %v1260 = vld [vmem:[#allocation8 + $0x1540] sm:$0xff]
    %v1261 = vld [vmem:[#allocation8 + $0x1548] sm:$0xff]
    %v1262 = vld [vmem:[#allocation8 + $0x1550] sm:$0xff]
    %v1263 = vld [vmem:[#allocation8 + $0x1558] sm:$0xff]
    %v1264 = vld [vmem:[#allocation8 + $0x1560] sm:$0xff]
    %v1265 = vld [vmem:[#allocation8 + $0x1568] sm:$0xff]
    %v1266 = vld [vmem:[#allocation8 + $0x1570] sm:$0xff]
    %v1267 = vld [vmem:[#allocation8 + $0x1578] sm:$0xff]
    %v1268 = vld [vmem:[#allocation8 + $0x1580] sm:$0xff]
    %v1269 = vld [vmem:[#allocation8 + $0x1588] sm:$0xff]
    %v1270 = vld [vmem:[#allocation8 + $0x1590] sm:$0xff]
    %v1271 = vld [vmem:[#allocation8 + $0x1598] sm:$0xff]
    %v1272 = vld [vmem:[#allocation8 + $0x15a0] sm:$0xff]
    %v1273 = vld [vmem:[#allocation8 + $0x15a8] sm:$0xff]
    %v1274 = vld [vmem:[#allocation8 + $0x15b0] sm:$0xff]
    %v1275 = vld [vmem:[#allocation8 + $0x15b8] sm:$0xff]
    %v1276 = vld [vmem:[#allocation8 + $0x15c0] sm:$0xff]
    %v1277 = vld [vmem:[#allocation8 + $0x15c8] sm:$0xff]
    %v1278 = vld [vmem:[#allocation8 + $0x15d0] sm:$0xff]
    %v1279 = vld [vmem:[#allocation8 + $0x15d8] sm:$0xff]
    %v1280 = vld [vmem:[#allocation8 + $0x15e0] sm:$0xff]
    %v1281 = vld [vmem:[#allocation8 + $0x15e8] sm:$0xff]
    %v1282 = vld [vmem:[#allocation8 + $0x15f0] sm:$0xff]
    %v1283 = vld [vmem:[#allocation8 + $0x15f8] sm:$0xff]
    %v1284 = vld [vmem:[#allocation8 + $0x1600] sm:$0xff]
    %v1285 = vld [vmem:[#allocation8 + $0x1608] sm:$0xff]
    %v1286 = vld [vmem:[#allocation8 + $0x1610] sm:$0xff]
    %v1287 = vld [vmem:[#allocation8 + $0x1618] sm:$0xff]
    %v1288 = vld [vmem:[#allocation8 + $0x1620] sm:$0xff]
    %v1289 = vld [vmem:[#allocation8 + $0x1628] sm:$0xff]
    %v1290 = vld [vmem:[#allocation8 + $0x1630] sm:$0xff]
    %v1291 = vld [vmem:[#allocation8 + $0x1638] sm:$0xff]
    %v1292 = vld [vmem:[#allocation8 + $0x1640] sm:$0xff]
    %v1293 = vld [vmem:[#allocation8 + $0x1648] sm:$0xff]
    %v1294 = vld [vmem:[#allocation8 + $0x1650] sm:$0xff]
    %v1295 = vld [vmem:[#allocation8 + $0x1658] sm:$0xff]
    %v1296 = vld [vmem:[#allocation8 + $0x1660] sm:$0xff]
    %v1297 = vld [vmem:[#allocation8 + $0x1668] sm:$0xff]
    %v1298 = vld [vmem:[#allocation8 + $0x1670] sm:$0xff]
    %v1299 = vld [vmem:[#allocation8 + $0x1678] sm:$0xff]
    %v1300 = vld [vmem:[#allocation8 + $0x1680] sm:$0xff]
    %v1301 = vld [vmem:[#allocation8 + $0x1688] sm:$0xff]
    %v1302 = vld [vmem:[#allocation8 + $0x1690] sm:$0xff]
    %v1303 = vld [vmem:[#allocation8 + $0x1698] sm:$0xff]
    %v1304 = vld [vmem:[#allocation8 + $0x16a0] sm:$0xff]
    %v1305 = vld [vmem:[#allocation8 + $0x16a8] sm:$0xff]
    %v1306 = vld [vmem:[#allocation8 + $0x16b0] sm:$0xff]
    %v1307 = vld [vmem:[#allocation8 + $0x16b8] sm:$0xff]
    %v1308 = vld [vmem:[#allocation8 + $0x16c0] sm:$0xff]
    %v1309 = vld [vmem:[#allocation8 + $0x16c8] sm:$0xff]
    %v1310 = vld [vmem:[#allocation8 + $0x16d0] sm:$0xff]
    %v1311 = vld [vmem:[#allocation8 + $0x16d8] sm:$0xff]
    %v1312 = vld [vmem:[#allocation8 + $0x16e0] sm:$0xff]
    %v1313 = vld [vmem:[#allocation8 + $0x16e8] sm:$0xff]
    %v1314 = vld [vmem:[#allocation8 + $0x16f0] sm:$0xff]
    %v1315 = vld [vmem:[#allocation8 + $0x16f8] sm:$0xff]
    %v1316 = vld [vmem:[#allocation8 + $0x1700] sm:$0xff]
    %v1317 = vld [vmem:[#allocation8 + $0x1708] sm:$0xff]
    %v1318 = vld [vmem:[#allocation8 + $0x1710] sm:$0xff]
    %v1319 = vld [vmem:[#allocation8 + $0x1718] sm:$0xff]
    %v1320 = vld [vmem:[#allocation8 + $0x1720] sm:$0xff]
    %v1321 = vld [vmem:[#allocation8 + $0x1728] sm:$0xff]
    %v1322 = vld [vmem:[#allocation8 + $0x1730] sm:$0xff]
    %v1323 = vld [vmem:[#allocation8 + $0x1738] sm:$0xff]
    %v1324 = vld [vmem:[#allocation8 + $0x1740] sm:$0xff]
    %v1325 = vld [vmem:[#allocation8 + $0x1748] sm:$0xff]
    %v1326 = vld [vmem:[#allocation8 + $0x1750] sm:$0xff]
    %v1327 = vld [vmem:[#allocation8 + $0x1758] sm:$0xff]
    %v1328 = vld [vmem:[#allocation8 + $0x1760] sm:$0xff]
    %v1329 = vld [vmem:[#allocation8 + $0x1768] sm:$0xff]
    %v1330 = vld [vmem:[#allocation8 + $0x1770] sm:$0xff]
    %v1331 = vld [vmem:[#allocation8 + $0x1778] sm:$0xff]
    %v1332 = vld [vmem:[#allocation8 + $0x1780] sm:$0xff]
    %v1333 = vld [vmem:[#allocation8 + $0x1788] sm:$0xff]
    %v1334 = vld [vmem:[#allocation8 + $0x1790] sm:$0xff]
    %v1335 = vld [vmem:[#allocation8 + $0x1798] sm:$0xff]
    %v1336 = vld [vmem:[#allocation8 + $0x17a0] sm:$0xff]
    %v1337 = vld [vmem:[#allocation8 + $0x17a8] sm:$0xff]
    %v1338 = vld [vmem:[#allocation8 + $0x17b0] sm:$0xff]
    %v1339 = vld [vmem:[#allocation8 + $0x17b8] sm:$0xff]
    %v1340 = vld [vmem:[#allocation8 + $0x17c0] sm:$0xff]
    %v1341 = vld [vmem:[#allocation8 + $0x17c8] sm:$0xff]
    %v1342 = vld [vmem:[#allocation8 + $0x17d0] sm:$0xff]
    %v1343 = vld [vmem:[#allocation8 + $0x17d8] sm:$0xff]
    %v1344 = vld [vmem:[#allocation8 + $0x17e0] sm:$0xff]
    %v1345 = vld [vmem:[#allocation8 + $0x17e8] sm:$0xff]
    %v1346 = vld [vmem:[#allocation8 + $0x17f0] sm:$0xff]
    %v1347 = vld [vmem:[#allocation8 + $0x17f8] sm:$0xff]
    %v1348 = vld [vmem:[#allocation8 + $0x1800] sm:$0xff]
    %v1349 = vld [vmem:[#allocation8 + $0x1808] sm:$0xff]
    %v1350 = vld [vmem:[#allocation8 + $0x1810] sm:$0xff]
    %v1351 = vld [vmem:[#allocation8 + $0x1818] sm:$0xff]
    %v1352 = vld [vmem:[#allocation8 + $0x1820] sm:$0xff]
    %v1353 = vld [vmem:[#allocation8 + $0x1828] sm:$0xff]
    %v1354 = vld [vmem:[#allocation8 + $0x1830] sm:$0xff]
    %v1355 = vld [vmem:[#allocation8 + $0x1838] sm:$0xff]
    %v1356 = vld [vmem:[#allocation8 + $0x1840] sm:$0xff]
    %v1357 = vld [vmem:[#allocation8 + $0x1848] sm:$0xff]
    %v1358 = vld [vmem:[#allocation8 + $0x1850] sm:$0xff]
    %v1359 = vld [vmem:[#allocation8 + $0x1858] sm:$0xff]
    %v1360 = vld [vmem:[#allocation8 + $0x1860] sm:$0xff]
    %v1361 = vld [vmem:[#allocation8 + $0x1868] sm:$0xff]
    %v1362 = vld [vmem:[#allocation8 + $0x1870] sm:$0xff]
    %v1363 = vld [vmem:[#allocation8 + $0x1878] sm:$0xff]
    %v1364 = vld [vmem:[#allocation8 + $0x1880] sm:$0xff]
    %v1365 = vld [vmem:[#allocation8 + $0x1888] sm:$0xff]
    %v1366 = vld [vmem:[#allocation8 + $0x1890] sm:$0xff]
    %v1367 = vld [vmem:[#allocation8 + $0x1898] sm:$0xff]
    %v1368 = vld [vmem:[#allocation8 + $0x18a0] sm:$0xff]
    %v1369 = vld [vmem:[#allocation8 + $0x18a8] sm:$0xff]
    %v1370 = vld [vmem:[#allocation8 + $0x18b0] sm:$0xff]
    %v1371 = vld [vmem:[#allocation8 + $0x18b8] sm:$0xff]
    %v1372 = vld [vmem:[#allocation8 + $0x18c0] sm:$0xff]
    %v1373 = vld [vmem:[#allocation8 + $0x18c8] sm:$0xff]
    %v1374 = vld [vmem:[#allocation8 + $0x18d0] sm:$0xff]
    %v1375 = vld [vmem:[#allocation8 + $0x18d8] sm:$0xff]
    %v1376 = vld [vmem:[#allocation8 + $0x18e0] sm:$0xff]
    %v1377 = vld [vmem:[#allocation8 + $0x18e8] sm:$0xff]
    %v1378 = vld [vmem:[#allocation8 + $0x18f0] sm:$0xff]
    %v1379 = vld [vmem:[#allocation8 + $0x18f8] sm:$0xff]
    %v1380 = vld [vmem:[#allocation8 + $0x1900] sm:$0xff]
    %v1381 = vld [vmem:[#allocation8 + $0x1908] sm:$0xff]
    %v1382 = vld [vmem:[#allocation8 + $0x1910] sm:$0xff]
    %v1383 = vld [vmem:[#allocation8 + $0x1918] sm:$0xff]
    %v1384 = vld [vmem:[#allocation8 + $0x1920] sm:$0xff]
    %v1385 = vld [vmem:[#allocation8 + $0x1928] sm:$0xff]
    %v1386 = vld [vmem:[#allocation8 + $0x1930] sm:$0xff]
    %v1387 = vld [vmem:[#allocation8 + $0x1938] sm:$0xff]
    %v1388 = vld [vmem:[#allocation8 + $0x1940] sm:$0xff]
    %v1389 = vld [vmem:[#allocation8 + $0x1948] sm:$0xff]
    %v1390 = vld [vmem:[#allocation8 + $0x1950] sm:$0xff]
    %v1391 = vld [vmem:[#allocation8 + $0x1958] sm:$0xff]
    %v1392 = vld [vmem:[#allocation8 + $0x1960] sm:$0xff]
    %v1393 = vld [vmem:[#allocation8 + $0x1968] sm:$0xff]
    %v1394 = vld [vmem:[#allocation8 + $0x1970] sm:$0xff]
    %v1395 = vld [vmem:[#allocation8 + $0x1978] sm:$0xff]
    %v1396 = vld [vmem:[#allocation8 + $0x1980] sm:$0xff]
    %v1397 = vld [vmem:[#allocation8 + $0x1988] sm:$0xff]
    %v1398 = vld [vmem:[#allocation8 + $0x1990] sm:$0xff]
    %v1399 = vld [vmem:[#allocation8 + $0x1998] sm:$0xff]
    %v1400 = vld [vmem:[#allocation8 + $0x19a0] sm:$0xff]
    %v1401 = vld [vmem:[#allocation8 + $0x19a8] sm:$0xff]
    %v1402 = vld [vmem:[#allocation8 + $0x19b0] sm:$0xff]
    %v1403 = vld [vmem:[#allocation8 + $0x19b8] sm:$0xff]
    %v1404 = vld [vmem:[#allocation8 + $0x19c0] sm:$0xff]
    %v1405 = vld [vmem:[#allocation8 + $0x19c8] sm:$0xff]
    %v1406 = vld [vmem:[#allocation8 + $0x19d0] sm:$0xff]
    %v1407 = vld [vmem:[#allocation8 + $0x19d8] sm:$0xff]
    %v1408 = vld [vmem:[#allocation8 + $0x19e0] sm:$0xff]
    %v1409 = vld [vmem:[#allocation8 + $0x19e8] sm:$0xff]
    %v1410 = vld [vmem:[#allocation8 + $0x19f0] sm:$0xff]
    %v1411 = vld [vmem:[#allocation8 + $0x19f8] sm:$0xff]
    %v1412 = vld [vmem:[#allocation8 + $0x1a00] sm:$0xff]
    %v1413 = vld [vmem:[#allocation8 + $0x1a08] sm:$0xff]
    %v1414 = vld [vmem:[#allocation8 + $0x1a10] sm:$0xff]
    %v1415 = vld [vmem:[#allocation8 + $0x1a18] sm:$0xff]
    %v1416 = vld [vmem:[#allocation8 + $0x1a20] sm:$0xff]
    %v1417 = vld [vmem:[#allocation8 + $0x1a28] sm:$0xff]
    %v1418 = vld [vmem:[#allocation8 + $0x1a30] sm:$0xff]
    %v1419 = vld [vmem:[#allocation8 + $0x1a38] sm:$0xff]
    %v1420 = vld [vmem:[#allocation8 + $0x1a40] sm:$0xff]
    %v1421 = vld [vmem:[#allocation8 + $0x1a48] sm:$0xff]
    %v1422 = vld [vmem:[#allocation8 + $0x1a50] sm:$0xff]
    %v1423 = vld [vmem:[#allocation8 + $0x1a58] sm:$0xff]
    %v1424 = vld [vmem:[#allocation8 + $0x1a60] sm:$0xff]
    %v1425 = vld [vmem:[#allocation8 + $0x1a68] sm:$0xff]
    %v1426 = vld [vmem:[#allocation8 + $0x1a70] sm:$0xff]
    %v1427 = vld [vmem:[#allocation8 + $0x1a78] sm:$0xff]
    %v1428 = vld [vmem:[#allocation8 + $0x1a80] sm:$0xff]
    %v1429 = vld [vmem:[#allocation8 + $0x1a88] sm:$0xff]
    %v1430 = vld [vmem:[#allocation8 + $0x1a90] sm:$0xff]
    %v1431 = vld [vmem:[#allocation8 + $0x1a98] sm:$0xff]
    %v1432 = vld [vmem:[#allocation8 + $0x1aa0] sm:$0xff]
    %v1433 = vld [vmem:[#allocation8 + $0x1aa8] sm:$0xff]
    %v1434 = vld [vmem:[#allocation8 + $0x1ab0] sm:$0xff]
    %v1435 = vld [vmem:[#allocation8 + $0x1ab8] sm:$0xff]
    %v1436 = vld [vmem:[#allocation8 + $0x1ac0] sm:$0xff]
    %v1437 = vld [vmem:[#allocation8 + $0x1ac8] sm:$0xff]
    %v1438 = vld [vmem:[#allocation8 + $0x1ad0] sm:$0xff]
    %v1439 = vld [vmem:[#allocation8 + $0x1ad8] sm:$0xff]
    %v1440 = vld [vmem:[#allocation8 + $0x1ae0] sm:$0xff]
    %v1441 = vld [vmem:[#allocation8 + $0x1ae8] sm:$0xff]
    %v1442 = vld [vmem:[#allocation8 + $0x1af0] sm:$0xff]
    %v1443 = vld [vmem:[#allocation8 + $0x1af8] sm:$0xff]
    %v1444 = vld [vmem:[#allocation8 + $0x1b00] sm:$0xff]
    %v1445 = vld [vmem:[#allocation8 + $0x1b08] sm:$0xff]
    %v1446 = vld [vmem:[#allocation8 + $0x1b10] sm:$0xff]
    %v1447 = vld [vmem:[#allocation8 + $0x1b18] sm:$0xff]
    %v1448 = vld [vmem:[#allocation8 + $0x1b20] sm:$0xff]
    %v1449 = vld [vmem:[#allocation8 + $0x1b28] sm:$0xff]
    %v1450 = vld [vmem:[#allocation8 + $0x1b30] sm:$0xff]
    %v1451 = vld [vmem:[#allocation8 + $0x1b38] sm:$0xff]
    %v1452 = vld [vmem:[#allocation8 + $0x1b40] sm:$0xff]
    %v1453 = vld [vmem:[#allocation8 + $0x1b48] sm:$0xff]
    %v1454 = vld [vmem:[#allocation8 + $0x1b50] sm:$0xff]
    %v1455 = vld [vmem:[#allocation8 + $0x1b58] sm:$0xff]
    %v1456 = vld [vmem:[#allocation8 + $0x1b60] sm:$0xff]
    %v1457 = vld [vmem:[#allocation8 + $0x1b68] sm:$0xff]
    %v1458 = vld [vmem:[#allocation8 + $0x1b70] sm:$0xff]
    %v1459 = vld [vmem:[#allocation8 + $0x1b78] sm:$0xff]
    %v1460 = vld [vmem:[#allocation8 + $0x1b80] sm:$0xff]
    %v1461 = vld [vmem:[#allocation8 + $0x1b88] sm:$0xff]
    %v1462 = vld [vmem:[#allocation8 + $0x1b90] sm:$0xff]
    %v1463 = vld [vmem:[#allocation8 + $0x1b98] sm:$0xff]
    %v1464 = vld [vmem:[#allocation8 + $0x1ba0] sm:$0xff]
    %v1465 = vld [vmem:[#allocation8 + $0x1ba8] sm:$0xff]
    %v1466 = vld [vmem:[#allocation8 + $0x1bb0] sm:$0xff]
    %v1467 = vld [vmem:[#allocation8 + $0x1bb8] sm:$0xff]
    %v1468 = vld [vmem:[#allocation8 + $0x1bc0] sm:$0xff]
    %v1469 = vld [vmem:[#allocation8 + $0x1bc8] sm:$0xff]
    %v1470 = vld [vmem:[#allocation8 + $0x1bd0] sm:$0xff]
    %v1471 = vld [vmem:[#allocation8 + $0x1bd8] sm:$0xff]
    %v1472 = vld [vmem:[#allocation8 + $0x1be0] sm:$0xff]
    %v1473 = vld [vmem:[#allocation8 + $0x1be8] sm:$0xff]
    %v1474 = vld [vmem:[#allocation8 + $0x1bf0] sm:$0xff]
    %v1475 = vld [vmem:[#allocation8 + $0x1bf8] sm:$0xff]
    %v1476 = vld [vmem:[#allocation8 + $0x1c00] sm:$0xff]
    %v1477 = vld [vmem:[#allocation8 + $0x1c08] sm:$0xff]
    %v1478 = vld [vmem:[#allocation8 + $0x1c10] sm:$0xff]
    %v1479 = vld [vmem:[#allocation8 + $0x1c18] sm:$0xff]
    %v1480 = vld [vmem:[#allocation8 + $0x1c20] sm:$0xff]
    %v1481 = vld [vmem:[#allocation8 + $0x1c28] sm:$0xff]
    %v1482 = vld [vmem:[#allocation8 + $0x1c30] sm:$0xff]
    %v1483 = vld [vmem:[#allocation8 + $0x1c38] sm:$0xff]
    %v1484 = vld [vmem:[#allocation8 + $0x1c40] sm:$0xff]
    %v1485 = vld [vmem:[#allocation8 + $0x1c48] sm:$0xff]
    %v1486 = vld [vmem:[#allocation8 + $0x1c50] sm:$0xff]
    %v1487 = vld [vmem:[#allocation8 + $0x1c58] sm:$0xff]
    %v1488 = vld [vmem:[#allocation8 + $0x1c60] sm:$0xff]
    %v1489 = vld [vmem:[#allocation8 + $0x1c68] sm:$0xff]
    %v1490 = vld [vmem:[#allocation8 + $0x1c70] sm:$0xff]
    %v1491 = vld [vmem:[#allocation8 + $0x1c78] sm:$0xff]
    %v1492 = vld [vmem:[#allocation8 + $0x1c80] sm:$0xff]
    %v1493 = vld [vmem:[#allocation8 + $0x1c88] sm:$0xff]
    %v1494 = vld [vmem:[#allocation8 + $0x1c90] sm:$0xff]
    %v1495 = vld [vmem:[#allocation8 + $0x1c98] sm:$0xff]
    %v1496 = vld [vmem:[#allocation8 + $0x1ca0] sm:$0xff]
    %v1497 = vld [vmem:[#allocation8 + $0x1ca8] sm:$0xff]
    %v1498 = vld [vmem:[#allocation8 + $0x1cb0] sm:$0xff]
    %v1499 = vld [vmem:[#allocation8 + $0x1cb8] sm:$0xff]
    %v1500 = vld [vmem:[#allocation8 + $0x1cc0] sm:$0xff]
    %v1501 = vld [vmem:[#allocation8 + $0x1cc8] sm:$0xff]
    %v1502 = vld [vmem:[#allocation8 + $0x1cd0] sm:$0xff]
    %v1503 = vld [vmem:[#allocation8 + $0x1cd8] sm:$0xff]
    %v1504 = vld [vmem:[#allocation8 + $0x1ce0] sm:$0xff]
    %v1505 = vld [vmem:[#allocation8 + $0x1ce8] sm:$0xff]
    %v1506 = vld [vmem:[#allocation8 + $0x1cf0] sm:$0xff]
    %v1507 = vld [vmem:[#allocation8 + $0x1cf8] sm:$0xff]
    %v1508 = vld [vmem:[#allocation8 + $0x1d00] sm:$0xff]
    %v1509 = vld [vmem:[#allocation8 + $0x1d08] sm:$0xff]
    %v1510 = vld [vmem:[#allocation8 + $0x1d10] sm:$0xff]
    %v1511 = vld [vmem:[#allocation8 + $0x1d18] sm:$0xff]
    %v1512 = vld [vmem:[#allocation8 + $0x1d20] sm:$0xff]
    %v1513 = vld [vmem:[#allocation8 + $0x1d28] sm:$0xff]
    %v1514 = vld [vmem:[#allocation8 + $0x1d30] sm:$0xff]
    %v1515 = vld [vmem:[#allocation8 + $0x1d38] sm:$0xff]
    %v1516 = vld [vmem:[#allocation8 + $0x1d40] sm:$0xff]
    %v1517 = vld [vmem:[#allocation8 + $0x1d48] sm:$0xff]
    %v1518 = vld [vmem:[#allocation8 + $0x1d50] sm:$0xff]
    %v1519 = vld [vmem:[#allocation8 + $0x1d58] sm:$0xff]
    %v1520 = vld [vmem:[#allocation8 + $0x1d60] sm:$0xff]
    %v1521 = vld [vmem:[#allocation8 + $0x1d68] sm:$0xff]
    %v1522 = vld [vmem:[#allocation8 + $0x1d70] sm:$0xff]
    %v1523 = vld [vmem:[#allocation8 + $0x1d78] sm:$0xff]
    %v1524 = vld [vmem:[#allocation8 + $0x1d80] sm:$0xff]
    %v1525 = vld [vmem:[#allocation8 + $0x1d88] sm:$0xff]
    %v1526 = vld [vmem:[#allocation8 + $0x1d90] sm:$0xff]
    %v1527 = vld [vmem:[#allocation8 + $0x1d98] sm:$0xff]
    %v1528 = vld [vmem:[#allocation8 + $0x1da0] sm:$0xff]
    %v1529 = vld [vmem:[#allocation8 + $0x1da8] sm:$0xff]
    %v1530 = vld [vmem:[#allocation8 + $0x1db0] sm:$0xff]
    %v1531 = vld [vmem:[#allocation8 + $0x1db8] sm:$0xff]
    %v1532 = vld [vmem:[#allocation8 + $0x1dc0] sm:$0xff]
    %v1533 = vld [vmem:[#allocation8 + $0x1dc8] sm:$0xff]
    %v1534 = vld [vmem:[#allocation8 + $0x1dd0] sm:$0xff]
    %v1535 = vld [vmem:[#allocation8 + $0x1dd8] sm:$0xff]
    %v1536 = vld [vmem:[#allocation8 + $0x1de0] sm:$0xff]
    %v1537 = vld [vmem:[#allocation8 + $0x1de8] sm:$0xff]
    %v1538 = vld [vmem:[#allocation8 + $0x1df0] sm:$0xff]
    %v1539 = vld [vmem:[#allocation8 + $0x1df8] sm:$0xff]
    %v1540 = vld [vmem:[#allocation8 + $0x1e00] sm:$0xff]
    %v1541 = vld [vmem:[#allocation8 + $0x1e08] sm:$0xff]
    %v1542 = vld [vmem:[#allocation8 + $0x1e10] sm:$0xff]
    %v1543 = vld [vmem:[#allocation8 + $0x1e18] sm:$0xff]
    %v1544 = vld [vmem:[#allocation8 + $0x1e20] sm:$0xff]
    %v1545 = vld [vmem:[#allocation8 + $0x1e28] sm:$0xff]
    %v1546 = vld [vmem:[#allocation8 + $0x1e30] sm:$0xff]
    %v1547 = vld [vmem:[#allocation8 + $0x1e38] sm:$0xff]
    %v1548 = vld [vmem:[#allocation8 + $0x1e40] sm:$0xff]
    %v1549 = vld [vmem:[#allocation8 + $0x1e48] sm:$0xff]
    %v1550 = vld [vmem:[#allocation8 + $0x1e50] sm:$0xff]
    %v1551 = vld [vmem:[#allocation8 + $0x1e58] sm:$0xff]
    %v1552 = vld [vmem:[#allocation8 + $0x1e60] sm:$0xff]
    %v1553 = vld [vmem:[#allocation8 + $0x1e68] sm:$0xff]
    %v1554 = vld [vmem:[#allocation8 + $0x1e70] sm:$0xff]
    %v1555 = vld [vmem:[#allocation8 + $0x1e78] sm:$0xff]
    %v1556 = vld [vmem:[#allocation8 + $0x1e80] sm:$0xff]
    %v1557 = vld [vmem:[#allocation8 + $0x1e88] sm:$0xff]
    %v1558 = vld [vmem:[#allocation8 + $0x1e90] sm:$0xff]
    %v1559 = vld [vmem:[#allocation8 + $0x1e98] sm:$0xff]
    %v1560 = vld [vmem:[#allocation8 + $0x1ea0] sm:$0xff]
    %v1561 = vld [vmem:[#allocation8 + $0x1ea8] sm:$0xff]
    %v1562 = vld [vmem:[#allocation8 + $0x1eb0] sm:$0xff]
    %v1563 = vld [vmem:[#allocation8 + $0x1eb8] sm:$0xff]
    %v1564 = vld [vmem:[#allocation8 + $0x1ec0] sm:$0xff]
    %v1565 = vld [vmem:[#allocation8 + $0x1ec8] sm:$0xff]
    %v1566 = vld [vmem:[#allocation8 + $0x1ed0] sm:$0xff]
    %v1567 = vld [vmem:[#allocation8 + $0x1ed8] sm:$0xff]
    %v1568 = vld [vmem:[#allocation8 + $0x1ee0] sm:$0xff]
    %v1569 = vld [vmem:[#allocation8 + $0x1ee8] sm:$0xff]
    %v1570 = vld [vmem:[#allocation8 + $0x1ef0] sm:$0xff]
    %v1571 = vld [vmem:[#allocation8 + $0x1ef8] sm:$0xff]
    %v1572 = vld [vmem:[#allocation8 + $0x1f00] sm:$0xff]
    %v1573 = vld [vmem:[#allocation8 + $0x1f08] sm:$0xff]
    %v1574 = vld [vmem:[#allocation8 + $0x1f10] sm:$0xff]
    %v1575 = vld [vmem:[#allocation8 + $0x1f18] sm:$0xff]
    %v1576 = vld [vmem:[#allocation8 + $0x1f20] sm:$0xff]
    %v1577 = vld [vmem:[#allocation8 + $0x1f28] sm:$0xff]
    %v1578 = vld [vmem:[#allocation8 + $0x1f30] sm:$0xff]
    %v1579 = vld [vmem:[#allocation8 + $0x1f38] sm:$0xff]
    %v1580 = vld [vmem:[#allocation8 + $0x1f40] sm:$0xff]
    %v1581 = vld [vmem:[#allocation8 + $0x1f48] sm:$0xff]
    %v1582 = vld [vmem:[#allocation8 + $0x1f50] sm:$0xff]
    %v1583 = vld [vmem:[#allocation8 + $0x1f58] sm:$0xff]
    %v1584 = vld [vmem:[#allocation8 + $0x1f60] sm:$0xff]
    %v1585 = vld [vmem:[#allocation8 + $0x1f68] sm:$0xff]
    %v1586 = vld [vmem:[#allocation8 + $0x1f70] sm:$0xff]
    %v1587 = vld [vmem:[#allocation8 + $0x1f78] sm:$0xff]
    %v1588 = vld [vmem:[#allocation8 + $0x1f80] sm:$0xff]
    %v1589 = vld [vmem:[#allocation8 + $0x1f88] sm:$0xff]
    %v1590 = vld [vmem:[#allocation8 + $0x1f90] sm:$0xff]
    %v1591 = vld [vmem:[#allocation8 + $0x1f98] sm:$0xff]
    %v1592 = vld [vmem:[#allocation8 + $0x1fa0] sm:$0xff]
    %v1593 = vld [vmem:[#allocation8 + $0x1fa8] sm:$0xff]
    %v1594 = vld [vmem:[#allocation8 + $0x1fb0] sm:$0xff]
    %v1595 = vld [vmem:[#allocation8 + $0x1fb8] sm:$0xff]
    %v1596 = vld [vmem:[#allocation8 + $0x1fc0] sm:$0xff]
    %v1597 = vld [vmem:[#allocation8 + $0x1fc8] sm:$0xff]
    %v1598 = vld [vmem:[#allocation8 + $0x1fd0] sm:$0xff]
    %v1599 = vld [vmem:[#allocation8 + $0x1fd8] sm:$0xff]
    %v1600 = vld [vmem:[#allocation8 + $0x1fe0] sm:$0xff]
    %v1601 = vld [vmem:[#allocation8 + $0x1fe8] sm:$0xff]
    %v1602 = vld [vmem:[#allocation8 + $0x1ff0] sm:$0xff]
    %v1603 = vld [vmem:[#allocation8 + $0x1ff8] sm:$0xff]
    %v1604 = vld [vmem:[#allocation10] sm:$0xff]
    %v1606 = vlaneseq
    %v1607 = vshrl.u32 %v1606, 7
    %v1608 = vsub.s32 0, %v1607
    %v1609 = vrot.slane %v1604, %v1608
    %v1610 = vlaneseq
    %v1611 = vshrl.u32 %v1610, 7
    %v1612 = vsub.s32 1, %v1611
    %v1613 = vrot.slane %v1604, %v1612
    %v1614 = vlaneseq
    %v1615 = vshrl.u32 %v1614, 7
    %v1616 = vsub.s32 2, %v1615
    %v1617 = vrot.slane %v1604, %v1616
    %v1618 = vlaneseq
    %v1619 = vshrl.u32 %v1618, 7
    %v1620 = vsub.s32 3, %v1619
    %v1621 = vrot.slane %v1604, %v1620
    %v1622 = vlaneseq
    %v1623 = vshrl.u32 %v1622, 7
    %v1624 = vsub.s32 4, %v1623
    %v1625 = vrot.slane %v1604, %v1624
    %v1626 = vlaneseq
    %v1627 = vshrl.u32 %v1626, 7
    %v1628 = vsub.s32 5, %v1627
    %v1629 = vrot.slane %v1604, %v1628
    %v1630 = vlaneseq
    %v1631 = vshrl.u32 %v1630, 7
    %v1632 = vsub.s32 6, %v1631
    %v1633 = vrot.slane %v1604, %v1632
    %v1634 = vlaneseq
    %v1635 = vshrl.u32 %v1634, 7
    %v1636 = vsub.s32 7, %v1635
    %v1637 = vrot.slane %v1604, %v1636
    %1646 = vmatprep.subr.mxu0 %v701
    %1647 = vmatpush1.msra.mxu0 %v700
    %1648 = vmatprep.subr.mxu0 %v693
    %1649 = vmatpush1.msra.mxu0 %v692
    %1650 = vmatprep.subr.mxu0 %v685
    %1651 = vmatpush1.msra.mxu0 %v684
    %1652 = vmatprep.subr.mxu0 %v677
    %1653 = vmatpush1.msra.mxu0 %v676
    %1654 = vmatprep.subr.mxu0 %v669
    %1655 = vmatpush1.msra.mxu0 %v668
    %1656 = vmatprep.subr.mxu0 %v661
    %1657 = vmatpush1.msra.mxu0 %v660
    %1658 = vmatprep.subr.mxu0 %v653
    %1659 = vmatpush1.msra.mxu0 %v652
    %1660 = vmatprep.subr.mxu0 %v645
    %1661 = vmatpush1.msra.mxu0 %v644
    %1662 = vmatprep.subr.mxu0 %v637
    %1663 = vmatpush1.msra.mxu0 %v636
    %1664 = vmatprep.subr.mxu0 %v629
    %1665 = vmatpush1.msra.mxu0 %v628
    %1666 = vmatprep.subr.mxu0 %v621
    %1667 = vmatpush1.msra.mxu0 %v620
    %1668 = vmatprep.subr.mxu0 %v613
    %1669 = vmatpush1.msra.mxu0 %v612
    %1670 = vmatprep.subr.mxu0 %v605
    %1671 = vmatpush1.msra.mxu0 %v604
    %1672 = vmatprep.subr.mxu0 %v597
    %1673 = vmatpush1.msra.mxu0 %v596
    %1674 = vmatprep.subr.mxu0 %v589
    %1675 = vmatpush1.msra.mxu0 %v588
    %1676 = vmatprep.subr.mxu0 %v581
    %1677 = vmatpush1.msra.mxu0 %v580
    %1678 = vmatprep.subr.mxu0 %v829
    %1679 = vmatpush2.msra.mxu0 %v828
    %1680 = vmatprep.subr.mxu0 %v821
    %1681 = vmatpush2.msra.mxu0 %v820
    %1682 = vmatprep.subr.mxu0 %v813
    %1683 = vmatpush2.msra.mxu0 %v812
    %1684 = vmatprep.subr.mxu0 %v805
    %1685 = vmatpush2.msra.mxu0 %v804
    %1686 = vmatprep.subr.mxu0 %v797
    %1687 = vmatpush2.msra.mxu0 %v796
    %1688 = vmatprep.subr.mxu0 %v789
    %1689 = vmatpush2.msra.mxu0 %v788
    %1690 = vmatprep.subr.mxu0 %v781
    %1691 = vmatpush2.msra.mxu0 %v780
    %1692 = vmatprep.subr.mxu0 %v773
    %1693 = vmatpush2.msra.mxu0 %v772
    %1694 = vmatprep.subr.mxu0 %v765
    %1695 = vmatpush2.msra.mxu0 %v764
    %1696 = vmatprep.subr.mxu0 %v757
    %1697 = vmatpush2.msra.mxu0 %v756
    %1698 = vmatprep.subr.mxu0 %v749
    %1699 = vmatpush2.msra.mxu0 %v748
    %1700 = vmatprep.subr.mxu0 %v741
    %1701 = vmatpush2.msra.mxu0 %v740
    %1702 = vmatprep.subr.mxu0 %v733
    %1703 = vmatpush2.msra.mxu0 %v732
    %1704 = vmatprep.subr.mxu0 %v725
    %1705 = vmatpush2.msra.mxu0 %v724
    %1706 = vmatprep.subr.mxu0 %v717
    %1707 = vmatpush2.msra.mxu0 %v716
    %1708 = vmatprep.subr.mxu0 %v709
    %1709 = vmatpush2.msra.mxu0 %v708
    %1710 = vmatprep.mubr.f32.mxu0 %v573
    %1711 = vmatmul.mubr.f32.gmra.mxu0 %v572
    %v1712 = vpop.f32.mrf.mxu0
    %v1713 = vadd.f32 %v1609, %v1712
    %v1714 = vpop.f32.mrf.mxu0
    %v1715 = vadd.f32 %v1613, %v1714
    %1716 = vdwg.mxu0
    %1717 = vmatprep.subr.mxu0 %v957
    %1718 = vmatpush1.msra.mxu0 %v956
    %1719 = vmatprep.subr.mxu0 %v949
    %1720 = vmatpush1.msra.mxu0 %v948
    %1721 = vmatprep.subr.mxu0 %v941
    %1722 = vmatpush1.msra.mxu0 %v940
    %1723 = vmatprep.subr.mxu0 %v933
    %1724 = vmatpush1.msra.mxu0 %v932
    %1725 = vmatprep.subr.mxu0 %v925
    %1726 = vmatpush1.msra.mxu0 %v924
    %1727 = vmatprep.subr.mxu0 %v917
    %1728 = vmatpush1.msra.mxu0 %v916
    %1729 = vmatprep.subr.mxu0 %v909
    %1730 = vmatpush1.msra.mxu0 %v908
    %1731 = vmatprep.subr.mxu0 %v901
    %1732 = vmatpush1.msra.mxu0 %v900
    %1733 = vmatprep.subr.mxu0 %v893
    %1734 = vmatpush1.msra.mxu0 %v892
    %1735 = vmatprep.subr.mxu0 %v885
    %1736 = vmatpush1.msra.mxu0 %v884
    %1737 = vmatprep.subr.mxu0 %v877
    %1738 = vmatpush1.msra.mxu0 %v876
    %1739 = vmatprep.subr.mxu0 %v869
    %1740 = vmatpush1.msra.mxu0 %v868
    %1741 = vmatprep.subr.mxu0 %v861
    %1742 = vmatpush1.msra.mxu0 %v860
    %1743 = vmatprep.subr.mxu0 %v853
    %1744 = vmatpush1.msra.mxu0 %v852
    %1745 = vmatprep.subr.mxu0 %v845
    %1746 = vmatpush1.msra.mxu0 %v844
    %1747 = vmatprep.subr.mxu0 %v837
    %1748 = vmatpush1.msra.mxu0 %v836
    %1749 = vmatprep.subr.mxu0 %v1085
    %1750 = vmatpush2.msra.mxu0 %v1084
    %1751 = vmatprep.subr.mxu0 %v1077
    %1752 = vmatpush2.msra.mxu0 %v1076
    %1753 = vmatprep.subr.mxu0 %v1069
    %1754 = vmatpush2.msra.mxu0 %v1068
    %1755 = vmatprep.subr.mxu0 %v1061
    %1756 = vmatpush2.msra.mxu0 %v1060
    %1757 = vmatprep.subr.mxu0 %v1053
    %1758 = vmatpush2.msra.mxu0 %v1052
    %1759 = vmatprep.subr.mxu0 %v1045
    %1760 = vmatpush2.msra.mxu0 %v1044
    %1761 = vmatprep.subr.mxu0 %v1037
    %1762 = vmatpush2.msra.mxu0 %v1036
    %1763 = vmatprep.subr.mxu0 %v1029
    %1764 = vmatpush2.msra.mxu0 %v1028
    %1765 = vmatprep.subr.mxu0 %v1021
    %1766 = vmatpush2.msra.mxu0 %v1020
    %1767 = vmatprep.subr.mxu0 %v1013
    %1768 = vmatpush2.msra.mxu0 %v1012
    %1769 = vmatprep.subr.mxu0 %v1005
    %1770 = vmatpush2.msra.mxu0 %v1004
    %1771 = vmatprep.subr.mxu0 %v997
    %1772 = vmatpush2.msra.mxu0 %v996
    %1773 = vmatprep.subr.mxu0 %v989
    %1774 = vmatpush2.msra.mxu0 %v988
    %1775 = vmatprep.subr.mxu0 %v981
    %1776 = vmatpush2.msra.mxu0 %v980
    %1777 = vmatprep.subr.mxu0 %v973
    %1778 = vmatpush2.msra.mxu0 %v972
    %1779 = vmatprep.subr.mxu0 %v965
    %1780 = vmatpush2.msra.mxu0 %v964
    %1781 = vmatprep.mubr.f32.mxu0 %v575
    %1782 = vmatmul.mubr.f32.gmra.mxu0 %v574
    %v1783 = vpop.f32.mrf.mxu0
    %v1784 = vadd.f32 %v1713, %v1783
    %v1785 = vpop.f32.mrf.mxu0
    %v1786 = vadd.f32 %v1715, %v1785
    %1787 = vdwg.mxu0
    %1788 = vmatprep.subr.mxu0 %v1213
    %1789 = vmatpush1.msra.mxu0 %v1212
    %1790 = vmatprep.subr.mxu0 %v1205
    %1791 = vmatpush1.msra.mxu0 %v1204
    %1792 = vmatprep.subr.mxu0 %v1197
    %1793 = vmatpush1.msra.mxu0 %v1196
    %1794 = vmatprep.subr.mxu0 %v1189
    %1795 = vmatpush1.msra.mxu0 %v1188
    %1796 = vmatprep.subr.mxu0 %v1181
    %1797 = vmatpush1.msra.mxu0 %v1180
    %1798 = vmatprep.subr.mxu0 %v1173
    %1799 = vmatpush1.msra.mxu0 %v1172
    %1800 = vmatprep.subr.mxu0 %v1165
    %1801 = vmatpush1.msra.mxu0 %v1164
    %1802 = vmatprep.subr.mxu0 %v1157
    %1803 = vmatpush1.msra.mxu0 %v1156
    %1804 = vmatprep.subr.mxu0 %v1149
    %1805 = vmatpush1.msra.mxu0 %v1148
    %1806 = vmatprep.subr.mxu0 %v1141
    %1807 = vmatpush1.msra.mxu0 %v1140
    %1808 = vmatprep.subr.mxu0 %v1133
    %1809 = vmatpush1.msra.mxu0 %v1132
    %1810 = vmatprep.subr.mxu0 %v1125
    %1811 = vmatpush1.msra.mxu0 %v1124
    %1812 = vmatprep.subr.mxu0 %v1117
    %1813 = vmatpush1.msra.mxu0 %v1116
    %1814 = vmatprep.subr.mxu0 %v1109
    %1815 = vmatpush1.msra.mxu0 %v1108
    %1816 = vmatprep.subr.mxu0 %v1101
    %1817 = vmatpush1.msra.mxu0 %v1100
    %1818 = vmatprep.subr.mxu0 %v1093
    %1819 = vmatpush1.msra.mxu0 %v1092
    %1820 = vmatprep.subr.mxu0 %v1341
    %1821 = vmatpush2.msra.mxu0 %v1340
    %1822 = vmatprep.subr.mxu0 %v1333
    %1823 = vmatpush2.msra.mxu0 %v1332
    %1824 = vmatprep.subr.mxu0 %v1325
    %1825 = vmatpush2.msra.mxu0 %v1324
    %1826 = vmatprep.subr.mxu0 %v1317
    %1827 = vmatpush2.msra.mxu0 %v1316
    %1828 = vmatprep.subr.mxu0 %v1309
    %1829 = vmatpush2.msra.mxu0 %v1308
    %1830 = vmatprep.subr.mxu0 %v1301
    %1831 = vmatpush2.msra.mxu0 %v1300
    %1832 = vmatprep.subr.mxu0 %v1293
    %1833 = vmatpush2.msra.mxu0 %v1292
    %1834 = vmatprep.subr.mxu0 %v1285
    %1835 = vmatpush2.msra.mxu0 %v1284
    %1836 = vmatprep.subr.mxu0 %v1277
    %1837 = vmatpush2.msra.mxu0 %v1276
    %1838 = vmatprep.subr.mxu0 %v1269
    %1839 = vmatpush2.msra.mxu0 %v1268
    %1840 = vmatprep.subr.mxu0 %v1261
    %1841 = vmatpush2.msra.mxu0 %v1260
    %1842 = vmatprep.subr.mxu0 %v1253
    %1843 = vmatpush2.msra.mxu0 %v1252
    %1844 = vmatprep.subr.mxu0 %v1245
    %1845 = vmatpush2.msra.mxu0 %v1244
    %1846 = vmatprep.subr.mxu0 %v1237
    %1847 = vmatpush2.msra.mxu0 %v1236
    %1848 = vmatprep.subr.mxu0 %v1229
    %1849 = vmatpush2.msra.mxu0 %v1228
    %1850 = vmatprep.subr.mxu0 %v1221
    %1851 = vmatpush2.msra.mxu0 %v1220
    %1852 = vmatprep.mubr.f32.mxu0 %v577
    %1853 = vmatmul.mubr.f32.gmra.mxu0 %v576
    %v1854 = vpop.f32.mrf.mxu0
    %v1855 = vadd.f32 %v1784, %v1854
    %v1856 = vpop.f32.mrf.mxu0
    %v1857 = vadd.f32 %v1786, %v1856
    %1858 = vdwg.mxu0
    %1859 = vmatprep.subr.mxu0 %v1469
    %1860 = vmatpush1.msra.mxu0 %v1468
    %1861 = vmatprep.subr.mxu0 %v1461
    %1862 = vmatpush1.msra.mxu0 %v1460
    %1863 = vmatprep.subr.mxu0 %v1453
    %1864 = vmatpush1.msra.mxu0 %v1452
    %1865 = vmatprep.subr.mxu0 %v1445
    %1866 = vmatpush1.msra.mxu0 %v1444
    %1867 = vmatprep.subr.mxu0 %v1437
    %1868 = vmatpush1.msra.mxu0 %v1436
    %1869 = vmatprep.subr.mxu0 %v1429
    %1870 = vmatpush1.msra.mxu0 %v1428
    %1871 = vmatprep.subr.mxu0 %v1421
    %1872 = vmatpush1.msra.mxu0 %v1420
    %1873 = vmatprep.subr.mxu0 %v1413
    %1874 = vmatpush1.msra.mxu0 %v1412
    %1875 = vmatprep.subr.mxu0 %v1405
    %1876 = vmatpush1.msra.mxu0 %v1404
    %1877 = vmatprep.subr.mxu0 %v1397
    %1878 = vmatpush1.msra.mxu0 %v1396
    %1879 = vmatprep.subr.mxu0 %v1389
    %1880 = vmatpush1.msra.mxu0 %v1388
    %1881 = vmatprep.subr.mxu0 %v1381
    %1882 = vmatpush1.msra.mxu0 %v1380
    %1883 = vmatprep.subr.mxu0 %v1373
    %1884 = vmatpush1.msra.mxu0 %v1372
    %1885 = vmatprep.subr.mxu0 %v1365
    %1886 = vmatpush1.msra.mxu0 %v1364
    %1887 = vmatprep.subr.mxu0 %v1357
    %1888 = vmatpush1.msra.mxu0 %v1356
    %1889 = vmatprep.subr.mxu0 %v1349
    %1890 = vmatpush1.msra.mxu0 %v1348
    %1891 = vmatprep.subr.mxu0 %v1597
    %1892 = vmatpush2.msra.mxu0 %v1596
    %1893 = vmatprep.subr.mxu0 %v1589
    %1894 = vmatpush2.msra.mxu0 %v1588
    %1895 = vmatprep.subr.mxu0 %v1581
    %1896 = vmatpush2.msra.mxu0 %v1580
    %1897 = vmatprep.subr.mxu0 %v1573
    %1898 = vmatpush2.msra.mxu0 %v1572
    %1899 = vmatprep.subr.mxu0 %v1565
    %1900 = vmatpush2.msra.mxu0 %v1564
    %1901 = vmatprep.subr.mxu0 %v1557
    %1902 = vmatpush2.msra.mxu0 %v1556
    %1903 = vmatprep.subr.mxu0 %v1549
    %1904 = vmatpush2.msra.mxu0 %v1548
    %1905 = vmatprep.subr.mxu0 %v1541
    %1906 = vmatpush2.msra.mxu0 %v1540
    %1907 = vmatprep.subr.mxu0 %v1533
    %1908 = vmatpush2.msra.mxu0 %v1532
    %1909 = vmatprep.subr.mxu0 %v1525
    %1910 = vmatpush2.msra.mxu0 %v1524
    %1911 = vmatprep.subr.mxu0 %v1517
    %1912 = vmatpush2.msra.mxu0 %v1516
    %1913 = vmatprep.subr.mxu0 %v1509
    %1914 = vmatpush2.msra.mxu0 %v1508
    %1915 = vmatprep.subr.mxu0 %v1501
    %1916 = vmatpush2.msra.mxu0 %v1500
    %1917 = vmatprep.subr.mxu0 %v1493
    %1918 = vmatpush2.msra.mxu0 %v1492
    %1919 = vmatprep.subr.mxu0 %v1485
    %1920 = vmatpush2.msra.mxu0 %v1484
    %1921 = vmatprep.subr.mxu0 %v1477
    %1922 = vmatpush2.msra.mxu0 %v1476
    %1923 = vmatprep.mubr.f32.mxu0 %v579
    %1924 = vmatmul.mubr.f32.gmra.mxu0 %v578
    %v1925 = vpop.f32.mrf.mxu0
    %v1926 = vadd.f32 %v1855, %v1925
    %v1927 = vpop.f32.mrf.mxu0
    %v1928 = vadd.f32 %v1857, %v1927
    %1929 = vdwg.mxu0
    %1930 = vmatprep.subr.mxu0 %v703
    %1931 = vmatpush1.msra.mxu0 %v702
    %1932 = vmatprep.subr.mxu0 %v695
    %1933 = vmatpush1.msra.mxu0 %v694
    %1934 = vmatprep.subr.mxu0 %v687
    %1935 = vmatpush1.msra.mxu0 %v686
    %1936 = vmatprep.subr.mxu0 %v679
    %1937 = vmatpush1.msra.mxu0 %v678
    %1938 = vmatprep.subr.mxu0 %v671
    %1939 = vmatpush1.msra.mxu0 %v670
    %1940 = vmatprep.subr.mxu0 %v663
    %1941 = vmatpush1.msra.mxu0 %v662
    %1942 = vmatprep.subr.mxu0 %v655
    %1943 = vmatpush1.msra.mxu0 %v654
    %1944 = vmatprep.subr.mxu0 %v647
    %1945 = vmatpush1.msra.mxu0 %v646
    %1946 = vmatprep.subr.mxu0 %v639
    %1947 = vmatpush1.msra.mxu0 %v638
    %1948 = vmatprep.subr.mxu0 %v631
    %1949 = vmatpush1.msra.mxu0 %v630
    %1950 = vmatprep.subr.mxu0 %v623
    %1951 = vmatpush1.msra.mxu0 %v622
    %1952 = vmatprep.subr.mxu0 %v615
    %1953 = vmatpush1.msra.mxu0 %v614
    %1954 = vmatprep.subr.mxu0 %v607
    %1955 = vmatpush1.msra.mxu0 %v606
    %1956 = vmatprep.subr.mxu0 %v599
    %1957 = vmatpush1.msra.mxu0 %v598
    %1958 = vmatprep.subr.mxu0 %v591
    %1959 = vmatpush1.msra.mxu0 %v590
    %1960 = vmatprep.subr.mxu0 %v583
    %1961 = vmatpush1.msra.mxu0 %v582
    %1962 = vmatprep.subr.mxu0 %v831
    %1963 = vmatpush2.msra.mxu0 %v830
    %1964 = vmatprep.subr.mxu0 %v823
    %1965 = vmatpush2.msra.mxu0 %v822
    %1966 = vmatprep.subr.mxu0 %v815
    %1967 = vmatpush2.msra.mxu0 %v814
    %1968 = vmatprep.subr.mxu0 %v807
    %1969 = vmatpush2.msra.mxu0 %v806
    %1970 = vmatprep.subr.mxu0 %v799
    %1971 = vmatpush2.msra.mxu0 %v798
    %1972 = vmatprep.subr.mxu0 %v791
    %1973 = vmatpush2.msra.mxu0 %v790
    %1974 = vmatprep.subr.mxu0 %v783
    %1975 = vmatpush2.msra.mxu0 %v782
    %1976 = vmatprep.subr.mxu0 %v775
    %1977 = vmatpush2.msra.mxu0 %v774
    %1978 = vmatprep.subr.mxu0 %v767
    %1979 = vmatpush2.msra.mxu0 %v766
    %1980 = vmatprep.subr.mxu0 %v759
    %1981 = vmatpush2.msra.mxu0 %v758
    %1982 = vmatprep.subr.mxu0 %v751
    %1983 = vmatpush2.msra.mxu0 %v750
    %1984 = vmatprep.subr.mxu0 %v743
    %1985 = vmatpush2.msra.mxu0 %v742
    %1986 = vmatprep.subr.mxu0 %v735
    %1987 = vmatpush2.msra.mxu0 %v734
    %1988 = vmatprep.subr.mxu0 %v727
    %1989 = vmatpush2.msra.mxu0 %v726
    %1990 = vmatprep.subr.mxu0 %v719
    %1991 = vmatpush2.msra.mxu0 %v718
    %1992 = vmatprep.subr.mxu0 %v711
    %1993 = vmatpush2.msra.mxu0 %v710
    %1994 = vmatprep.mubr.f32.mxu0 %v573
    %1995 = vmatmul.mubr.f32.gmra.mxu0 %v572
    %v1996 = vpop.f32.mrf.mxu0
    %v1997 = vadd.f32 %v1617, %v1996
    %v1998 = vpop.f32.mrf.mxu0
    %v1999 = vadd.f32 %v1621, %v1998
    %2000 = vdwg.mxu0
    %2001 = vmatprep.subr.mxu0 %v959
    %2002 = vmatpush1.msra.mxu0 %v958
    %2003 = vmatprep.subr.mxu0 %v951
    %2004 = vmatpush1.msra.mxu0 %v950
    %2005 = vmatprep.subr.mxu0 %v943
    %2006 = vmatpush1.msra.mxu0 %v942
    %2007 = vmatprep.subr.mxu0 %v935
    %2008 = vmatpush1.msra.mxu0 %v934
    %2009 = vmatprep.subr.mxu0 %v927
    %2010 = vmatpush1.msra.mxu0 %v926
    %2011 = vmatprep.subr.mxu0 %v919
    %2012 = vmatpush1.msra.mxu0 %v918
    %2013 = vmatprep.subr.mxu0 %v911
    %2014 = vmatpush1.msra.mxu0 %v910
    %2015 = vmatprep.subr.mxu0 %v903
    %2016 = vmatpush1.msra.mxu0 %v902
    %2017 = vmatprep.subr.mxu0 %v895
    %2018 = vmatpush1.msra.mxu0 %v894
    %2019 = vmatprep.subr.mxu0 %v887
    %2020 = vmatpush1.msra.mxu0 %v886
    %2021 = vmatprep.subr.mxu0 %v879
    %2022 = vmatpush1.msra.mxu0 %v878
    %2023 = vmatprep.subr.mxu0 %v871
    %2024 = vmatpush1.msra.mxu0 %v870
    %2025 = vmatprep.subr.mxu0 %v863
    %2026 = vmatpush1.msra.mxu0 %v862
    %2027 = vmatprep.subr.mxu0 %v855
    %2028 = vmatpush1.msra.mxu0 %v854
    %2029 = vmatprep.subr.mxu0 %v847
    %2030 = vmatpush1.msra.mxu0 %v846
    %2031 = vmatprep.subr.mxu0 %v839
    %2032 = vmatpush1.msra.mxu0 %v838
    %2033 = vmatprep.subr.mxu0 %v1087
    %2034 = vmatpush2.msra.mxu0 %v1086
    %2035 = vmatprep.subr.mxu0 %v1079
    %2036 = vmatpush2.msra.mxu0 %v1078
    %2037 = vmatprep.subr.mxu0 %v1071
    %2038 = vmatpush2.msra.mxu0 %v1070
    %2039 = vmatprep.subr.mxu0 %v1063
    %2040 = vmatpush2.msra.mxu0 %v1062
    %2041 = vmatprep.subr.mxu0 %v1055
    %2042 = vmatpush2.msra.mxu0 %v1054
    %2043 = vmatprep.subr.mxu0 %v1047
    %2044 = vmatpush2.msra.mxu0 %v1046
    %2045 = vmatprep.subr.mxu0 %v1039
    %2046 = vmatpush2.msra.mxu0 %v1038
    %2047 = vmatprep.subr.mxu0 %v1031
    %2048 = vmatpush2.msra.mxu0 %v1030
    %2049 = vmatprep.subr.mxu0 %v1023
    %2050 = vmatpush2.msra.mxu0 %v1022
    %2051 = vmatprep.subr.mxu0 %v1015
    %2052 = vmatpush2.msra.mxu0 %v1014
    %2053 = vmatprep.subr.mxu0 %v1007
    %2054 = vmatpush2.msra.mxu0 %v1006
    %2055 = vmatprep.subr.mxu0 %v999
    %2056 = vmatpush2.msra.mxu0 %v998
    %2057 = vmatprep.subr.mxu0 %v991
    %2058 = vmatpush2.msra.mxu0 %v990
    %2059 = vmatprep.subr.mxu0 %v983
    %2060 = vmatpush2.msra.mxu0 %v982
    %2061 = vmatprep.subr.mxu0 %v975
    %2062 = vmatpush2.msra.mxu0 %v974
    %2063 = vmatprep.subr.mxu0 %v967
    %2064 = vmatpush2.msra.mxu0 %v966
    %2065 = vmatprep.mubr.f32.mxu0 %v575
    %2066 = vmatmul.mubr.f32.gmra.mxu0 %v574
    %v2067 = vpop.f32.mrf.mxu0
    %v2068 = vadd.f32 %v1997, %v2067
    %v2069 = vpop.f32.mrf.mxu0
    %v2070 = vadd.f32 %v1999, %v2069
    %2071 = vdwg.mxu0
    %2072 = vmatprep.subr.mxu0 %v1215
    %2073 = vmatpush1.msra.mxu0 %v1214
    %2074 = vmatprep.subr.mxu0 %v1207
    %2075 = vmatpush1.msra.mxu0 %v1206
    %2076 = vmatprep.subr.mxu0 %v1199
    %2077 = vmatpush1.msra.mxu0 %v1198
    %2078 = vmatprep.subr.mxu0 %v1191
    %2079 = vmatpush1.msra.mxu0 %v1190
    %2080 = vmatprep.subr.mxu0 %v1183
    %2081 = vmatpush1.msra.mxu0 %v1182
    %2082 = vmatprep.subr.mxu0 %v1175
    %2083 = vmatpush1.msra.mxu0 %v1174
    %2084 = vmatprep.subr.mxu0 %v1167
    %2085 = vmatpush1.msra.mxu0 %v1166
    %2086 = vmatprep.subr.mxu0 %v1159
    %2087 = vmatpush1.msra.mxu0 %v1158
    %2088 = vmatprep.subr.mxu0 %v1151
    %2089 = vmatpush1.msra.mxu0 %v1150
    %2090 = vmatprep.subr.mxu0 %v1143
    %2091 = vmatpush1.msra.mxu0 %v1142
    %2092 = vmatprep.subr.mxu0 %v1135
    %2093 = vmatpush1.msra.mxu0 %v1134
    %2094 = vmatprep.subr.mxu0 %v1127
    %2095 = vmatpush1.msra.mxu0 %v1126
    %2096 = vmatprep.subr.mxu0 %v1119
    %2097 = vmatpush1.msra.mxu0 %v1118
    %2098 = vmatprep.subr.mxu0 %v1111
    %2099 = vmatpush1.msra.mxu0 %v1110
    %2100 = vmatprep.subr.mxu0 %v1103
    %2101 = vmatpush1.msra.mxu0 %v1102
    %2102 = vmatprep.subr.mxu0 %v1095
    %2103 = vmatpush1.msra.mxu0 %v1094
    %2104 = vmatprep.subr.mxu0 %v1343
    %2105 = vmatpush2.msra.mxu0 %v1342
    %2106 = vmatprep.subr.mxu0 %v1335
    %2107 = vmatpush2.msra.mxu0 %v1334
    %2108 = vmatprep.subr.mxu0 %v1327
    %2109 = vmatpush2.msra.mxu0 %v1326
    %2110 = vmatprep.subr.mxu0 %v1319
    %2111 = vmatpush2.msra.mxu0 %v1318
    %2112 = vmatprep.subr.mxu0 %v1311
    %2113 = vmatpush2.msra.mxu0 %v1310
    %2114 = vmatprep.subr.mxu0 %v1303
    %2115 = vmatpush2.msra.mxu0 %v1302
    %2116 = vmatprep.subr.mxu0 %v1295
    %2117 = vmatpush2.msra.mxu0 %v1294
    %2118 = vmatprep.subr.mxu0 %v1287
    %2119 = vmatpush2.msra.mxu0 %v1286
    %2120 = vmatprep.subr.mxu0 %v1279
    %2121 = vmatpush2.msra.mxu0 %v1278
    %2122 = vmatprep.subr.mxu0 %v1271
    %2123 = vmatpush2.msra.mxu0 %v1270
    %2124 = vmatprep.subr.mxu0 %v1263
    %2125 = vmatpush2.msra.mxu0 %v1262
    %2126 = vmatprep.subr.mxu0 %v1255
    %2127 = vmatpush2.msra.mxu0 %v1254
    %2128 = vmatprep.subr.mxu0 %v1247
    %2129 = vmatpush2.msra.mxu0 %v1246
    %2130 = vmatprep.subr.mxu0 %v1239
    %2131 = vmatpush2.msra.mxu0 %v1238
    %2132 = vmatprep.subr.mxu0 %v1231
    %2133 = vmatpush2.msra.mxu0 %v1230
    %2134 = vmatprep.subr.mxu0 %v1223
    %2135 = vmatpush2.msra.mxu0 %v1222
    %2136 = vmatprep.mubr.f32.mxu0 %v577
    %2137 = vmatmul.mubr.f32.gmra.mxu0 %v576
    %v2138 = vpop.f32.mrf.mxu0
    %v2139 = vadd.f32 %v2068, %v2138
    %v2140 = vpop.f32.mrf.mxu0
    %v2141 = vadd.f32 %v2070, %v2140
    %2142 = vdwg.mxu0
    %2143 = vmatprep.subr.mxu0 %v1471
    %2144 = vmatpush1.msra.mxu0 %v1470
    %2145 = vmatprep.subr.mxu0 %v1463
    %2146 = vmatpush1.msra.mxu0 %v1462
    %2147 = vmatprep.subr.mxu0 %v1455
    %2148 = vmatpush1.msra.mxu0 %v1454
    %2149 = vmatprep.subr.mxu0 %v1447
    %2150 = vmatpush1.msra.mxu0 %v1446
    %2151 = vmatprep.subr.mxu0 %v1439
    %2152 = vmatpush1.msra.mxu0 %v1438
    %2153 = vmatprep.subr.mxu0 %v1431
    %2154 = vmatpush1.msra.mxu0 %v1430
    %2155 = vmatprep.subr.mxu0 %v1423
    %2156 = vmatpush1.msra.mxu0 %v1422
    %2157 = vmatprep.subr.mxu0 %v1415
    %2158 = vmatpush1.msra.mxu0 %v1414
    %2159 = vmatprep.subr.mxu0 %v1407
    %2160 = vmatpush1.msra.mxu0 %v1406
    %2161 = vmatprep.subr.mxu0 %v1399
    %2162 = vmatpush1.msra.mxu0 %v1398
    %2163 = vmatprep.subr.mxu0 %v1391
    %2164 = vmatpush1.msra.mxu0 %v1390
    %2165 = vmatprep.subr.mxu0 %v1383
    %2166 = vmatpush1.msra.mxu0 %v1382
    %2167 = vmatprep.subr.mxu0 %v1375
    %2168 = vmatpush1.msra.mxu0 %v1374
    %2169 = vmatprep.subr.mxu0 %v1367
    %2170 = vmatpush1.msra.mxu0 %v1366
    %2171 = vmatprep.subr.mxu0 %v1359
    %2172 = vmatpush1.msra.mxu0 %v1358
    %2173 = vmatprep.subr.mxu0 %v1351
    %2174 = vmatpush1.msra.mxu0 %v1350
    %2175 = vmatprep.subr.mxu0 %v1599
    %2176 = vmatpush2.msra.mxu0 %v1598
    %2177 = vmatprep.subr.mxu0 %v1591
    %2178 = vmatpush2.msra.mxu0 %v1590
    %2179 = vmatprep.subr.mxu0 %v1583
    %2180 = vmatpush2.msra.mxu0 %v1582
    %2181 = vmatprep.subr.mxu0 %v1575
    %2182 = vmatpush2.msra.mxu0 %v1574
    %2183 = vmatprep.subr.mxu0 %v1567
    %2184 = vmatpush2.msra.mxu0 %v1566
    %2185 = vmatprep.subr.mxu0 %v1559
    %2186 = vmatpush2.msra.mxu0 %v1558
    %2187 = vmatprep.subr.mxu0 %v1551
    %2188 = vmatpush2.msra.mxu0 %v1550
    %2189 = vmatprep.subr.mxu0 %v1543
    %2190 = vmatpush2.msra.mxu0 %v1542
    %2191 = vmatprep.subr.mxu0 %v1535
    %2192 = vmatpush2.msra.mxu0 %v1534
    %2193 = vmatprep.subr.mxu0 %v1527
    %2194 = vmatpush2.msra.mxu0 %v1526
    %2195 = vmatprep.subr.mxu0 %v1519
    %2196 = vmatpush2.msra.mxu0 %v1518
    %2197 = vmatprep.subr.mxu0 %v1511
    %2198 = vmatpush2.msra.mxu0 %v1510
    %2199 = vmatprep.subr.mxu0 %v1503
    %2200 = vmatpush2.msra.mxu0 %v1502
    %2201 = vmatprep.subr.mxu0 %v1495
    %2202 = vmatpush2.msra.mxu0 %v1494
    %2203 = vmatprep.subr.mxu0 %v1487
    %2204 = vmatpush2.msra.mxu0 %v1486
    %2205 = vmatprep.subr.mxu0 %v1479
    %2206 = vmatpush2.msra.mxu0 %v1478
    %2207 = vmatprep.mubr.f32.mxu0 %v579
    %2208 = vmatmul.mubr.f32.gmra.mxu0 %v578
    %v2209 = vpop.f32.mrf.mxu0
    %v2210 = vadd.f32 %v2139, %v2209
    %v2211 = vpop.f32.mrf.mxu0
    %v2212 = vadd.f32 %v2141, %v2211
    %2213 = vdwg.mxu0
    %2214 = vmatprep.subr.mxu0 %v705
    %2215 = vmatpush1.msra.mxu0 %v704
    %2216 = vmatprep.subr.mxu0 %v697
    %2217 = vmatpush1.msra.mxu0 %v696
    %2218 = vmatprep.subr.mxu0 %v689
    %2219 = vmatpush1.msra.mxu0 %v688
    %2220 = vmatprep.subr.mxu0 %v681
    %2221 = vmatpush1.msra.mxu0 %v680
    %2222 = vmatprep.subr.mxu0 %v673
    %2223 = vmatpush1.msra.mxu0 %v672
    %2224 = vmatprep.subr.mxu0 %v665
    %2225 = vmatpush1.msra.mxu0 %v664
    %2226 = vmatprep.subr.mxu0 %v657
    %2227 = vmatpush1.msra.mxu0 %v656
    %2228 = vmatprep.subr.mxu0 %v649
    %2229 = vmatpush1.msra.mxu0 %v648
    %2230 = vmatprep.subr.mxu0 %v641
    %2231 = vmatpush1.msra.mxu0 %v640
    %2232 = vmatprep.subr.mxu0 %v633
    %2233 = vmatpush1.msra.mxu0 %v632
    %2234 = vmatprep.subr.mxu0 %v625
    %2235 = vmatpush1.msra.mxu0 %v624
    %2236 = vmatprep.subr.mxu0 %v617
    %2237 = vmatpush1.msra.mxu0 %v616
    %2238 = vmatprep.subr.mxu0 %v609
    %2239 = vmatpush1.msra.mxu0 %v608
    %2240 = vmatprep.subr.mxu0 %v601
    %2241 = vmatpush1.msra.mxu0 %v600
    %2242 = vmatprep.subr.mxu0 %v593
    %2243 = vmatpush1.msra.mxu0 %v592
    %2244 = vmatprep.subr.mxu0 %v585
    %2245 = vmatpush1.msra.mxu0 %v584
    %2246 = vmatprep.subr.mxu0 %v833
    %2247 = vmatpush2.msra.mxu0 %v832
    %2248 = vmatprep.subr.mxu0 %v825
    %2249 = vmatpush2.msra.mxu0 %v824
    %2250 = vmatprep.subr.mxu0 %v817
    %2251 = vmatpush2.msra.mxu0 %v816
    %2252 = vmatprep.subr.mxu0 %v809
    %2253 = vmatpush2.msra.mxu0 %v808
    %2254 = vmatprep.subr.mxu0 %v801
    %2255 = vmatpush2.msra.mxu0 %v800
    %2256 = vmatprep.subr.mxu0 %v793
    %2257 = vmatpush2.msra.mxu0 %v792
    %2258 = vmatprep.subr.mxu0 %v785
    %2259 = vmatpush2.msra.mxu0 %v784
    %2260 = vmatprep.subr.mxu0 %v777
    %2261 = vmatpush2.msra.mxu0 %v776
    %2262 = vmatprep.subr.mxu0 %v769
    %2263 = vmatpush2.msra.mxu0 %v768
    %2264 = vmatprep.subr.mxu0 %v761
    %2265 = vmatpush2.msra.mxu0 %v760
    %2266 = vmatprep.subr.mxu0 %v753
    %2267 = vmatpush2.msra.mxu0 %v752
    %2268 = vmatprep.subr.mxu0 %v745
    %2269 = vmatpush2.msra.mxu0 %v744
    %2270 = vmatprep.subr.mxu0 %v737
    %2271 = vmatpush2.msra.mxu0 %v736
    %2272 = vmatprep.subr.mxu0 %v729
    %2273 = vmatpush2.msra.mxu0 %v728
    %2274 = vmatprep.subr.mxu0 %v721
    %2275 = vmatpush2.msra.mxu0 %v720
    %2276 = vmatprep.subr.mxu0 %v713
    %2277 = vmatpush2.msra.mxu0 %v712
    %2278 = vmatprep.mubr.f32.mxu0 %v573
    %2279 = vmatmul.mubr.f32.gmra.mxu0 %v572
    %v2280 = vpop.f32.mrf.mxu0
    %v2281 = vadd.f32 %v1625, %v2280
    %v2282 = vpop.f32.mrf.mxu0
    %v2283 = vadd.f32 %v1629, %v2282
    %2284 = vdwg.mxu0
    %2285 = vmatprep.subr.mxu0 %v961
    %2286 = vmatpush1.msra.mxu0 %v960
    %2287 = vmatprep.subr.mxu0 %v953
    %2288 = vmatpush1.msra.mxu0 %v952
    %2289 = vmatprep.subr.mxu0 %v945
    %2290 = vmatpush1.msra.mxu0 %v944
    %2291 = vmatprep.subr.mxu0 %v937
    %2292 = vmatpush1.msra.mxu0 %v936
    %2293 = vmatprep.subr.mxu0 %v929
    %2294 = vmatpush1.msra.mxu0 %v928
    %2295 = vmatprep.subr.mxu0 %v921
    %2296 = vmatpush1.msra.mxu0 %v920
    %2297 = vmatprep.subr.mxu0 %v913
    %2298 = vmatpush1.msra.mxu0 %v912
    %2299 = vmatprep.subr.mxu0 %v905
    %2300 = vmatpush1.msra.mxu0 %v904
    %2301 = vmatprep.subr.mxu0 %v897
    %2302 = vmatpush1.msra.mxu0 %v896
    %2303 = vmatprep.subr.mxu0 %v889
    %2304 = vmatpush1.msra.mxu0 %v888
    %2305 = vmatprep.subr.mxu0 %v881
    %2306 = vmatpush1.msra.mxu0 %v880
    %2307 = vmatprep.subr.mxu0 %v873
    %2308 = vmatpush1.msra.mxu0 %v872
    %2309 = vmatprep.subr.mxu0 %v865
    %2310 = vmatpush1.msra.mxu0 %v864
    %2311 = vmatprep.subr.mxu0 %v857
    %2312 = vmatpush1.msra.mxu0 %v856
    %2313 = vmatprep.subr.mxu0 %v849
    %2314 = vmatpush1.msra.mxu0 %v848
    %2315 = vmatprep.subr.mxu0 %v841
    %2316 = vmatpush1.msra.mxu0 %v840
    %2317 = vmatprep.subr.mxu0 %v1089
    %2318 = vmatpush2.msra.mxu0 %v1088
    %2319 = vmatprep.subr.mxu0 %v1081
    %2320 = vmatpush2.msra.mxu0 %v1080
    %2321 = vmatprep.subr.mxu0 %v1073
    %2322 = vmatpush2.msra.mxu0 %v1072
    %2323 = vmatprep.subr.mxu0 %v1065
    %2324 = vmatpush2.msra.mxu0 %v1064
    %2325 = vmatprep.subr.mxu0 %v1057
    %2326 = vmatpush2.msra.mxu0 %v1056
    %2327 = vmatprep.subr.mxu0 %v1049
    %2328 = vmatpush2.msra.mxu0 %v1048
    %2329 = vmatprep.subr.mxu0 %v1041
    %2330 = vmatpush2.msra.mxu0 %v1040
    %2331 = vmatprep.subr.mxu0 %v1033
    %2332 = vmatpush2.msra.mxu0 %v1032
    %2333 = vmatprep.subr.mxu0 %v1025
    %2334 = vmatpush2.msra.mxu0 %v1024
    %2335 = vmatprep.subr.mxu0 %v1017
    %2336 = vmatpush2.msra.mxu0 %v1016
    %2337 = vmatprep.subr.mxu0 %v1009
    %2338 = vmatpush2.msra.mxu0 %v1008
    %2339 = vmatprep.subr.mxu0 %v1001
    %2340 = vmatpush2.msra.mxu0 %v1000
    %2341 = vmatprep.subr.mxu0 %v993
    %2342 = vmatpush2.msra.mxu0 %v992
    %2343 = vmatprep.subr.mxu0 %v985
    %2344 = vmatpush2.msra.mxu0 %v984
    %2345 = vmatprep.subr.mxu0 %v977
    %2346 = vmatpush2.msra.mxu0 %v976
    %2347 = vmatprep.subr.mxu0 %v969
    %2348 = vmatpush2.msra.mxu0 %v968
    %2349 = vmatprep.mubr.f32.mxu0 %v575
    %2350 = vmatmul.mubr.f32.gmra.mxu0 %v574
    %v2351 = vpop.f32.mrf.mxu0
    %v2352 = vadd.f32 %v2281, %v2351
    %v2353 = vpop.f32.mrf.mxu0
    %v2354 = vadd.f32 %v2283, %v2353
    %2355 = vdwg.mxu0
    %2356 = vmatprep.subr.mxu0 %v1217
    %2357 = vmatpush1.msra.mxu0 %v1216
    %2358 = vmatprep.subr.mxu0 %v1209
    %2359 = vmatpush1.msra.mxu0 %v1208
    %2360 = vmatprep.subr.mxu0 %v1201
    %2361 = vmatpush1.msra.mxu0 %v1200
    %2362 = vmatprep.subr.mxu0 %v1193
    %2363 = vmatpush1.msra.mxu0 %v1192
    %2364 = vmatprep.subr.mxu0 %v1185
    %2365 = vmatpush1.msra.mxu0 %v1184
    %2366 = vmatprep.subr.mxu0 %v1177
    %2367 = vmatpush1.msra.mxu0 %v1176
    %2368 = vmatprep.subr.mxu0 %v1169
    %2369 = vmatpush1.msra.mxu0 %v1168
    %2370 = vmatprep.subr.mxu0 %v1161
    %2371 = vmatpush1.msra.mxu0 %v1160
    %2372 = vmatprep.subr.mxu0 %v1153
    %2373 = vmatpush1.msra.mxu0 %v1152
    %2374 = vmatprep.subr.mxu0 %v1145
    %2375 = vmatpush1.msra.mxu0 %v1144
    %2376 = vmatprep.subr.mxu0 %v1137
    %2377 = vmatpush1.msra.mxu0 %v1136
    %2378 = vmatprep.subr.mxu0 %v1129
    %2379 = vmatpush1.msra.mxu0 %v1128
    %2380 = vmatprep.subr.mxu0 %v1121
    %2381 = vmatpush1.msra.mxu0 %v1120
    %2382 = vmatprep.subr.mxu0 %v1113
    %2383 = vmatpush1.msra.mxu0 %v1112
    %2384 = vmatprep.subr.mxu0 %v1105
    %2385 = vmatpush1.msra.mxu0 %v1104
    %2386 = vmatprep.subr.mxu0 %v1097
    %2387 = vmatpush1.msra.mxu0 %v1096
    %2388 = vmatprep.subr.mxu0 %v1345
    %2389 = vmatpush2.msra.mxu0 %v1344
    %2390 = vmatprep.subr.mxu0 %v1337
    %2391 = vmatpush2.msra.mxu0 %v1336
    %2392 = vmatprep.subr.mxu0 %v1329
    %2393 = vmatpush2.msra.mxu0 %v1328
    %2394 = vmatprep.subr.mxu0 %v1321
    %2395 = vmatpush2.msra.mxu0 %v1320
    %2396 = vmatprep.subr.mxu0 %v1313
    %2397 = vmatpush2.msra.mxu0 %v1312
    %2398 = vmatprep.subr.mxu0 %v1305
    %2399 = vmatpush2.msra.mxu0 %v1304
    %2400 = vmatprep.subr.mxu0 %v1297
    %2401 = vmatpush2.msra.mxu0 %v1296
    %2402 = vmatprep.subr.mxu0 %v1289
    %2403 = vmatpush2.msra.mxu0 %v1288
    %2404 = vmatprep.subr.mxu0 %v1281
    %2405 = vmatpush2.msra.mxu0 %v1280
    %2406 = vmatprep.subr.mxu0 %v1273
    %2407 = vmatpush2.msra.mxu0 %v1272
    %2408 = vmatprep.subr.mxu0 %v1265
    %2409 = vmatpush2.msra.mxu0 %v1264
    %2410 = vmatprep.subr.mxu0 %v1257
    %2411 = vmatpush2.msra.mxu0 %v1256
    %2412 = vmatprep.subr.mxu0 %v1249
    %2413 = vmatpush2.msra.mxu0 %v1248
    %2414 = vmatprep.subr.mxu0 %v1241
    %2415 = vmatpush2.msra.mxu0 %v1240
    %2416 = vmatprep.subr.mxu0 %v1233
    %2417 = vmatpush2.msra.mxu0 %v1232
    %2418 = vmatprep.subr.mxu0 %v1225
    %2419 = vmatpush2.msra.mxu0 %v1224
    %2420 = vmatprep.mubr.f32.mxu0 %v577
    %2421 = vmatmul.mubr.f32.gmra.mxu0 %v576
    %v2422 = vpop.f32.mrf.mxu0
    %v2423 = vadd.f32 %v2352, %v2422
    %v2424 = vpop.f32.mrf.mxu0
    %v2425 = vadd.f32 %v2354, %v2424
    %2426 = vdwg.mxu0
    %2427 = vmatprep.subr.mxu0 %v1473
    %2428 = vmatpush1.msra.mxu0 %v1472
    %2429 = vmatprep.subr.mxu0 %v1465
    %2430 = vmatpush1.msra.mxu0 %v1464
    %2431 = vmatprep.subr.mxu0 %v1457
    %2432 = vmatpush1.msra.mxu0 %v1456
    %2433 = vmatprep.subr.mxu0 %v1449
    %2434 = vmatpush1.msra.mxu0 %v1448
    %2435 = vmatprep.subr.mxu0 %v1441
    %2436 = vmatpush1.msra.mxu0 %v1440
    %2437 = vmatprep.subr.mxu0 %v1433
    %2438 = vmatpush1.msra.mxu0 %v1432
    %2439 = vmatprep.subr.mxu0 %v1425
    %2440 = vmatpush1.msra.mxu0 %v1424
    %2441 = vmatprep.subr.mxu0 %v1417
    %2442 = vmatpush1.msra.mxu0 %v1416
    %2443 = vmatprep.subr.mxu0 %v1409
    %2444 = vmatpush1.msra.mxu0 %v1408
    %2445 = vmatprep.subr.mxu0 %v1401
    %2446 = vmatpush1.msra.mxu0 %v1400
    %2447 = vmatprep.subr.mxu0 %v1393
    %2448 = vmatpush1.msra.mxu0 %v1392
    %2449 = vmatprep.subr.mxu0 %v1385
    %2450 = vmatpush1.msra.mxu0 %v1384
    %2451 = vmatprep.subr.mxu0 %v1377
    %2452 = vmatpush1.msra.mxu0 %v1376
    %2453 = vmatprep.subr.mxu0 %v1369
    %2454 = vmatpush1.msra.mxu0 %v1368
    %2455 = vmatprep.subr.mxu0 %v1361
    %2456 = vmatpush1.msra.mxu0 %v1360
    %2457 = vmatprep.subr.mxu0 %v1353
    %2458 = vmatpush1.msra.mxu0 %v1352
    %2459 = vmatprep.subr.mxu0 %v1601
    %2460 = vmatpush2.msra.mxu0 %v1600
    %2461 = vmatprep.subr.mxu0 %v1593
    %2462 = vmatpush2.msra.mxu0 %v1592
    %2463 = vmatprep.subr.mxu0 %v1585
    %2464 = vmatpush2.msra.mxu0 %v1584
    %2465 = vmatprep.subr.mxu0 %v1577
    %2466 = vmatpush2.msra.mxu0 %v1576
    %2467 = vmatprep.subr.mxu0 %v1569
    %2468 = vmatpush2.msra.mxu0 %v1568
    %2469 = vmatprep.subr.mxu0 %v1561
    %2470 = vmatpush2.msra.mxu0 %v1560
    %2471 = vmatprep.subr.mxu0 %v1553
    %2472 = vmatpush2.msra.mxu0 %v1552
    %2473 = vmatprep.subr.mxu0 %v1545
    %2474 = vmatpush2.msra.mxu0 %v1544
    %2475 = vmatprep.subr.mxu0 %v1537
    %2476 = vmatpush2.msra.mxu0 %v1536
    %2477 = vmatprep.subr.mxu0 %v1529
    %2478 = vmatpush2.msra.mxu0 %v1528
    %2479 = vmatprep.subr.mxu0 %v1521
    %2480 = vmatpush2.msra.mxu0 %v1520
    %2481 = vmatprep.subr.mxu0 %v1513
    %2482 = vmatpush2.msra.mxu0 %v1512
    %2483 = vmatprep.subr.mxu0 %v1505
    %2484 = vmatpush2.msra.mxu0 %v1504
    %2485 = vmatprep.subr.mxu0 %v1497
    %2486 = vmatpush2.msra.mxu0 %v1496
    %2487 = vmatprep.subr.mxu0 %v1489
    %2488 = vmatpush2.msra.mxu0 %v1488
    %2489 = vmatprep.subr.mxu0 %v1481
    %2490 = vmatpush2.msra.mxu0 %v1480
    %2491 = vmatprep.mubr.f32.mxu0 %v579
    %2492 = vmatmul.mubr.f32.gmra.mxu0 %v578
    %v2493 = vpop.f32.mrf.mxu0
    %v2494 = vadd.f32 %v2423, %v2493
    %v2495 = vpop.f32.mrf.mxu0
    %v2496 = vadd.f32 %v2425, %v2495
    %2497 = vdwg.mxu0
    %2498 = vmatprep.subr.mxu0 %v707
    %2499 = vmatpush1.msra.mxu0 %v706
    %2500 = vmatprep.subr.mxu0 %v699
    %2501 = vmatpush1.msra.mxu0 %v698
    %2502 = vmatprep.subr.mxu0 %v691
    %2503 = vmatpush1.msra.mxu0 %v690
    %2504 = vmatprep.subr.mxu0 %v683
    %2505 = vmatpush1.msra.mxu0 %v682
    %2506 = vmatprep.subr.mxu0 %v675
    %2507 = vmatpush1.msra.mxu0 %v674
    %2508 = vmatprep.subr.mxu0 %v667
    %2509 = vmatpush1.msra.mxu0 %v666
    %2510 = vmatprep.subr.mxu0 %v659
    %2511 = vmatpush1.msra.mxu0 %v658
    %2512 = vmatprep.subr.mxu0 %v651
    %2513 = vmatpush1.msra.mxu0 %v650
    %2514 = vmatprep.subr.mxu0 %v643
    %2515 = vmatpush1.msra.mxu0 %v642
    %2516 = vmatprep.subr.mxu0 %v635
    %2517 = vmatpush1.msra.mxu0 %v634
    %2518 = vmatprep.subr.mxu0 %v627
    %2519 = vmatpush1.msra.mxu0 %v626
    %2520 = vmatprep.subr.mxu0 %v619
    %2521 = vmatpush1.msra.mxu0 %v618
    %2522 = vmatprep.subr.mxu0 %v611
    %2523 = vmatpush1.msra.mxu0 %v610
    %2524 = vmatprep.subr.mxu0 %v603
    %2525 = vmatpush1.msra.mxu0 %v602
    %2526 = vmatprep.subr.mxu0 %v595
    %2527 = vmatpush1.msra.mxu0 %v594
    %2528 = vmatprep.subr.mxu0 %v587
    %2529 = vmatpush1.msra.mxu0 %v586
    %2530 = vmatprep.subr.mxu0 %v835
    %2531 = vmatpush2.msra.mxu0 %v834
    %2532 = vmatprep.subr.mxu0 %v827
    %2533 = vmatpush2.msra.mxu0 %v826
    %2534 = vmatprep.subr.mxu0 %v819
    %2535 = vmatpush2.msra.mxu0 %v818
    %2536 = vmatprep.subr.mxu0 %v811
    %2537 = vmatpush2.msra.mxu0 %v810
    %2538 = vmatprep.subr.mxu0 %v803
    %2539 = vmatpush2.msra.mxu0 %v802
    %2540 = vmatprep.subr.mxu0 %v795
    %2541 = vmatpush2.msra.mxu0 %v794
    %2542 = vmatprep.subr.mxu0 %v787
    %2543 = vmatpush2.msra.mxu0 %v786
    %2544 = vmatprep.subr.mxu0 %v779
    %2545 = vmatpush2.msra.mxu0 %v778
    %2546 = vmatprep.subr.mxu0 %v771
    %2547 = vmatpush2.msra.mxu0 %v770
    %2548 = vmatprep.subr.mxu0 %v763
    %2549 = vmatpush2.msra.mxu0 %v762
    %2550 = vmatprep.subr.mxu0 %v755
    %2551 = vmatpush2.msra.mxu0 %v754
    %2552 = vmatprep.subr.mxu0 %v747
    %2553 = vmatpush2.msra.mxu0 %v746
    %2554 = vmatprep.subr.mxu0 %v739
    %2555 = vmatpush2.msra.mxu0 %v738
    %2556 = vmatprep.subr.mxu0 %v731
    %2557 = vmatpush2.msra.mxu0 %v730
    %2558 = vmatprep.subr.mxu0 %v723
    %2559 = vmatpush2.msra.mxu0 %v722
    %2560 = vmatprep.subr.mxu0 %v715
    %2561 = vmatpush2.msra.mxu0 %v714
    %2562 = vmatprep.mubr.f32.mxu0 %v573
    %2563 = vmatmul.mubr.f32.gmra.mxu0 %v572
    %v2564 = vpop.f32.mrf.mxu0
    %v2565 = vadd.f32 %v1633, %v2564
    %v2566 = vpop.f32.mrf.mxu0
    %v2567 = vadd.f32 %v1637, %v2566
    %2568 = vdwg.mxu0
    %2569 = vmatprep.subr.mxu0 %v963
    %2570 = vmatpush1.msra.mxu0 %v962
    %2571 = vmatprep.subr.mxu0 %v955
    %2572 = vmatpush1.msra.mxu0 %v954
    %2573 = vmatprep.subr.mxu0 %v947
    %2574 = vmatpush1.msra.mxu0 %v946
    %2575 = vmatprep.subr.mxu0 %v939
    %2576 = vmatpush1.msra.mxu0 %v938
    %2577 = vmatprep.subr.mxu0 %v931
    %2578 = vmatpush1.msra.mxu0 %v930
    %2579 = vmatprep.subr.mxu0 %v923
    %2580 = vmatpush1.msra.mxu0 %v922
    %2581 = vmatprep.subr.mxu0 %v915
    %2582 = vmatpush1.msra.mxu0 %v914
    %2583 = vmatprep.subr.mxu0 %v907
    %2584 = vmatpush1.msra.mxu0 %v906
    %2585 = vmatprep.subr.mxu0 %v899
    %2586 = vmatpush1.msra.mxu0 %v898
    %2587 = vmatprep.subr.mxu0 %v891
    %2588 = vmatpush1.msra.mxu0 %v890
    %2589 = vmatprep.subr.mxu0 %v883
    %2590 = vmatpush1.msra.mxu0 %v882
    %2591 = vmatprep.subr.mxu0 %v875
    %2592 = vmatpush1.msra.mxu0 %v874
    %2593 = vmatprep.subr.mxu0 %v867
    %2594 = vmatpush1.msra.mxu0 %v866
    %2595 = vmatprep.subr.mxu0 %v859
    %2596 = vmatpush1.msra.mxu0 %v858
    %2597 = vmatprep.subr.mxu0 %v851
    %2598 = vmatpush1.msra.mxu0 %v850
    %2599 = vmatprep.subr.mxu0 %v843
    %2600 = vmatpush1.msra.mxu0 %v842
    %2601 = vmatprep.subr.mxu0 %v1091
    %2602 = vmatpush2.msra.mxu0 %v1090
    %2603 = vmatprep.subr.mxu0 %v1083
    %2604 = vmatpush2.msra.mxu0 %v1082
    %2605 = vmatprep.subr.mxu0 %v1075
    %2606 = vmatpush2.msra.mxu0 %v1074
    %2607 = vmatprep.subr.mxu0 %v1067
    %2608 = vmatpush2.msra.mxu0 %v1066
    %2609 = vmatprep.subr.mxu0 %v1059
    %2610 = vmatpush2.msra.mxu0 %v1058
    %2611 = vmatprep.subr.mxu0 %v1051
    %2612 = vmatpush2.msra.mxu0 %v1050
    %2613 = vmatprep.subr.mxu0 %v1043
    %2614 = vmatpush2.msra.mxu0 %v1042
    %2615 = vmatprep.subr.mxu0 %v1035
    %2616 = vmatpush2.msra.mxu0 %v1034
    %2617 = vmatprep.subr.mxu0 %v1027
    %2618 = vmatpush2.msra.mxu0 %v1026
    %2619 = vmatprep.subr.mxu0 %v1019
    %2620 = vmatpush2.msra.mxu0 %v1018
    %2621 = vmatprep.subr.mxu0 %v1011
    %2622 = vmatpush2.msra.mxu0 %v1010
    %2623 = vmatprep.subr.mxu0 %v1003
    %2624 = vmatpush2.msra.mxu0 %v1002
    %2625 = vmatprep.subr.mxu0 %v995
    %2626 = vmatpush2.msra.mxu0 %v994
    %2627 = vmatprep.subr.mxu0 %v987
    %2628 = vmatpush2.msra.mxu0 %v986
    %2629 = vmatprep.subr.mxu0 %v979
    %2630 = vmatpush2.msra.mxu0 %v978
    %2631 = vmatprep.subr.mxu0 %v971
    %2632 = vmatpush2.msra.mxu0 %v970
    %2633 = vmatprep.mubr.f32.mxu0 %v575
    %2634 = vmatmul.mubr.f32.gmra.mxu0 %v574
    %v2635 = vpop.f32.mrf.mxu0
    %v2636 = vadd.f32 %v2565, %v2635
    %v2637 = vpop.f32.mrf.mxu0
    %v2638 = vadd.f32 %v2567, %v2637
    %2639 = vdwg.mxu0
    %2640 = vmatprep.subr.mxu0 %v1219
    %2641 = vmatpush1.msra.mxu0 %v1218
    %2642 = vmatprep.subr.mxu0 %v1211
    %2643 = vmatpush1.msra.mxu0 %v1210
    %2644 = vmatprep.subr.mxu0 %v1203
    %2645 = vmatpush1.msra.mxu0 %v1202
    %2646 = vmatprep.subr.mxu0 %v1195
    %2647 = vmatpush1.msra.mxu0 %v1194
    %2648 = vmatprep.subr.mxu0 %v1187
    %2649 = vmatpush1.msra.mxu0 %v1186
    %2650 = vmatprep.subr.mxu0 %v1179
    %2651 = vmatpush1.msra.mxu0 %v1178
    %2652 = vmatprep.subr.mxu0 %v1171
    %2653 = vmatpush1.msra.mxu0 %v1170
    %2654 = vmatprep.subr.mxu0 %v1163
    %2655 = vmatpush1.msra.mxu0 %v1162
    %2656 = vmatprep.subr.mxu0 %v1155
    %2657 = vmatpush1.msra.mxu0 %v1154
    %2658 = vmatprep.subr.mxu0 %v1147
    %2659 = vmatpush1.msra.mxu0 %v1146
    %2660 = vmatprep.subr.mxu0 %v1139
    %2661 = vmatpush1.msra.mxu0 %v1138
    %2662 = vmatprep.subr.mxu0 %v1131
    %2663 = vmatpush1.msra.mxu0 %v1130
    %2664 = vmatprep.subr.mxu0 %v1123
    %2665 = vmatpush1.msra.mxu0 %v1122
    %2666 = vmatprep.subr.mxu0 %v1115
    %2667 = vmatpush1.msra.mxu0 %v1114
    %2668 = vmatprep.subr.mxu0 %v1107
    %2669 = vmatpush1.msra.mxu0 %v1106
    %2670 = vmatprep.subr.mxu0 %v1099
    %2671 = vmatpush1.msra.mxu0 %v1098
    %2672 = vmatprep.subr.mxu0 %v1347
    %2673 = vmatpush2.msra.mxu0 %v1346
    %2674 = vmatprep.subr.mxu0 %v1339
    %2675 = vmatpush2.msra.mxu0 %v1338
    %2676 = vmatprep.subr.mxu0 %v1331
    %2677 = vmatpush2.msra.mxu0 %v1330
    %2678 = vmatprep.subr.mxu0 %v1323
    %2679 = vmatpush2.msra.mxu0 %v1322
    %2680 = vmatprep.subr.mxu0 %v1315
    %2681 = vmatpush2.msra.mxu0 %v1314
    %2682 = vmatprep.subr.mxu0 %v1307
    %2683 = vmatpush2.msra.mxu0 %v1306
    %2684 = vmatprep.subr.mxu0 %v1299
    %2685 = vmatpush2.msra.mxu0 %v1298
    %2686 = vmatprep.subr.mxu0 %v1291
    %2687 = vmatpush2.msra.mxu0 %v1290
    %2688 = vmatprep.subr.mxu0 %v1283
    %2689 = vmatpush2.msra.mxu0 %v1282
    %2690 = vmatprep.subr.mxu0 %v1275
    %2691 = vmatpush2.msra.mxu0 %v1274
    %2692 = vmatprep.subr.mxu0 %v1267
    %2693 = vmatpush2.msra.mxu0 %v1266
    %2694 = vmatprep.subr.mxu0 %v1259
    %2695 = vmatpush2.msra.mxu0 %v1258
    %2696 = vmatprep.subr.mxu0 %v1251
    %2697 = vmatpush2.msra.mxu0 %v1250
    %2698 = vmatprep.subr.mxu0 %v1243
    %2699 = vmatpush2.msra.mxu0 %v1242
    %2700 = vmatprep.subr.mxu0 %v1235
    %2701 = vmatpush2.msra.mxu0 %v1234
    %2702 = vmatprep.subr.mxu0 %v1227
    %2703 = vmatpush2.msra.mxu0 %v1226
    %2704 = vmatprep.mubr.f32.mxu0 %v577
    %2705 = vmatmul.mubr.f32.gmra.mxu0 %v576
    %v2706 = vpop.f32.mrf.mxu0
    %v2707 = vadd.f32 %v2636, %v2706
    %v2708 = vpop.f32.mrf.mxu0
    %v2709 = vadd.f32 %v2638, %v2708
    %2710 = vdwg.mxu0
    %2711 = vmatprep.subr.mxu0 %v1475
    %2712 = vmatpush1.msra.mxu0 %v1474
    %2713 = vmatprep.subr.mxu0 %v1467
    %2714 = vmatpush1.msra.mxu0 %v1466
    %2715 = vmatprep.subr.mxu0 %v1459
    %2716 = vmatpush1.msra.mxu0 %v1458
    %2717 = vmatprep.subr.mxu0 %v1451
    %2718 = vmatpush1.msra.mxu0 %v1450
    %2719 = vmatprep.subr.mxu0 %v1443
    %2720 = vmatpush1.msra.mxu0 %v1442
    %2721 = vmatprep.subr.mxu0 %v1435
    %2722 = vmatpush1.msra.mxu0 %v1434
    %2723 = vmatprep.subr.mxu0 %v1427
    %2724 = vmatpush1.msra.mxu0 %v1426
    %2725 = vmatprep.subr.mxu0 %v1419
    %2726 = vmatpush1.msra.mxu0 %v1418
    %2727 = vmatprep.subr.mxu0 %v1411
    %2728 = vmatpush1.msra.mxu0 %v1410
    %2729 = vmatprep.subr.mxu0 %v1403
    %2730 = vmatpush1.msra.mxu0 %v1402
    %2731 = vmatprep.subr.mxu0 %v1395
    %2732 = vmatpush1.msra.mxu0 %v1394
    %2733 = vmatprep.subr.mxu0 %v1387
    %2734 = vmatpush1.msra.mxu0 %v1386
    %2735 = vmatprep.subr.mxu0 %v1379
    %2736 = vmatpush1.msra.mxu0 %v1378
    %2737 = vmatprep.subr.mxu0 %v1371
    %2738 = vmatpush1.msra.mxu0 %v1370
    %2739 = vmatprep.subr.mxu0 %v1363
    %2740 = vmatpush1.msra.mxu0 %v1362
    %2741 = vmatprep.subr.mxu0 %v1355
    %2742 = vmatpush1.msra.mxu0 %v1354
    %2743 = vmatprep.subr.mxu0 %v1603
    %2744 = vmatpush2.msra.mxu0 %v1602
    %2745 = vmatprep.subr.mxu0 %v1595
    %2746 = vmatpush2.msra.mxu0 %v1594
    %2747 = vmatprep.subr.mxu0 %v1587
    %2748 = vmatpush2.msra.mxu0 %v1586
    %2749 = vmatprep.subr.mxu0 %v1579
    %2750 = vmatpush2.msra.mxu0 %v1578
    %2751 = vmatprep.subr.mxu0 %v1571
    %2752 = vmatpush2.msra.mxu0 %v1570
    %2753 = vmatprep.subr.mxu0 %v1563
    %2754 = vmatpush2.msra.mxu0 %v1562
    %2755 = vmatprep.subr.mxu0 %v1555
    %2756 = vmatpush2.msra.mxu0 %v1554
    %2757 = vmatprep.subr.mxu0 %v1547
    %2758 = vmatpush2.msra.mxu0 %v1546
    %2759 = vmatprep.subr.mxu0 %v1539
    %2760 = vmatpush2.msra.mxu0 %v1538
    %2761 = vmatprep.subr.mxu0 %v1531
    %2762 = vmatpush2.msra.mxu0 %v1530
    %2763 = vmatprep.subr.mxu0 %v1523
    %2764 = vmatpush2.msra.mxu0 %v1522
    %2765 = vmatprep.subr.mxu0 %v1515
    %2766 = vmatpush2.msra.mxu0 %v1514
    %2767 = vmatprep.subr.mxu0 %v1507
    %2768 = vmatpush2.msra.mxu0 %v1506
    %2769 = vmatprep.subr.mxu0 %v1499
    %2770 = vmatpush2.msra.mxu0 %v1498
    %2771 = vmatprep.subr.mxu0 %v1491
    %2772 = vmatpush2.msra.mxu0 %v1490
    %2773 = vmatprep.subr.mxu0 %v1483
    %2774 = vmatpush2.msra.mxu0 %v1482
    %2775 = vmatprep.mubr.f32.mxu0 %v579
    %2776 = vmatmul.mubr.f32.gmra.mxu0 %v578
    %v2777 = vpop.f32.mrf.mxu0
    %v2778 = vadd.f32 %v2707, %v2777
    %v2779 = vpop.f32.mrf.mxu0
    %v2780 = vadd.f32 %v2709, %v2779
    %2781 = vdwg.mxu0
    %v2782 = vmax.f32 %v1926, 0.0
    %v2783 = vmax.f32 %v1928, 0.0
    %v2784 = vmax.f32 %v2210, 0.0
    %v2785 = vmax.f32 %v2212, 0.0
    %v2786 = vmax.f32 %v2494, 0.0
    %v2787 = vmax.f32 %v2496, 0.0
    %v2788 = vmax.f32 %v2778, 0.0
    %v2789 = vmax.f32 %v2780, 0.0
    %v2790 = vld [vmem:[#allocation11] sm:$0xff]
    %v2791 = vld [vmem:[#allocation11 + $0x8] sm:$0xff]
    %v2792 = vld [vmem:[#allocation11 + $0x10] sm:$0xff]
    %v2793 = vld [vmem:[#allocation11 + $0x18] sm:$0xff]
    %v2794 = vld [vmem:[#allocation11 + $0x20] sm:$0xff]
    %v2795 = vld [vmem:[#allocation11 + $0x28] sm:$0xff]
    %v2796 = vld [vmem:[#allocation11 + $0x30] sm:$0xff]
    %v2797 = vld [vmem:[#allocation11 + $0x38] sm:$0xff]
    %v2798 = vld [vmem:[#allocation11 + $0x40] sm:$0xff]
    %v2799 = vld [vmem:[#allocation11 + $0x48] sm:$0xff]
    %v2800 = vld [vmem:[#allocation11 + $0x50] sm:$0xff]
    %v2801 = vld [vmem:[#allocation11 + $0x58] sm:$0xff]
    %v2802 = vld [vmem:[#allocation11 + $0x60] sm:$0xff]
    %v2803 = vld [vmem:[#allocation11 + $0x68] sm:$0xff]
    %v2804 = vld [vmem:[#allocation11 + $0x70] sm:$0xff]
    %v2805 = vld [vmem:[#allocation11 + $0x78] sm:$0xff]
    %v2806 = vld [vmem:[#allocation11 + $0x80] sm:$0xff]
    %v2807 = vld [vmem:[#allocation11 + $0x88] sm:$0xff]
    %v2808 = vld [vmem:[#allocation11 + $0x90] sm:$0xff]
    %v2809 = vld [vmem:[#allocation11 + $0x98] sm:$0xff]
    %v2810 = vld [vmem:[#allocation11 + $0xa0] sm:$0xff]
    %v2811 = vld [vmem:[#allocation11 + $0xa8] sm:$0xff]
    %v2812 = vld [vmem:[#allocation11 + $0xb0] sm:$0xff]
    %v2813 = vld [vmem:[#allocation11 + $0xb8] sm:$0xff]
    %v2814 = vld [vmem:[#allocation11 + $0xc0] sm:$0xff]
    %v2815 = vld [vmem:[#allocation11 + $0xc8] sm:$0xff]
    %v2816 = vld [vmem:[#allocation11 + $0xd0] sm:$0xff]
    %v2817 = vld [vmem:[#allocation11 + $0xd8] sm:$0xff]
    %v2818 = vld [vmem:[#allocation11 + $0xe0] sm:$0xff]
    %v2819 = vld [vmem:[#allocation11 + $0xe8] sm:$0xff]
    %v2820 = vld [vmem:[#allocation11 + $0xf0] sm:$0xff]
    %v2821 = vld [vmem:[#allocation11 + $0xf8] sm:$0xff]
    %v2822 = vld [vmem:[#allocation11 + $0x100] sm:$0xff]
    %v2823 = vld [vmem:[#allocation11 + $0x108] sm:$0xff]
    %v2824 = vld [vmem:[#allocation11 + $0x110] sm:$0xff]
    %v2825 = vld [vmem:[#allocation11 + $0x118] sm:$0xff]
    %v2826 = vld [vmem:[#allocation11 + $0x120] sm:$0xff]
    %v2827 = vld [vmem:[#allocation11 + $0x128] sm:$0xff]
    %v2828 = vld [vmem:[#allocation11 + $0x130] sm:$0xff]
    %v2829 = vld [vmem:[#allocation11 + $0x138] sm:$0xff]
    %v2830 = vld [vmem:[#allocation11 + $0x140] sm:$0xff]
    %v2831 = vld [vmem:[#allocation11 + $0x148] sm:$0xff]
    %v2832 = vld [vmem:[#allocation11 + $0x150] sm:$0xff]
    %v2833 = vld [vmem:[#allocation11 + $0x158] sm:$0xff]
    %v2834 = vld [vmem:[#allocation11 + $0x160] sm:$0xff]
    %v2835 = vld [vmem:[#allocation11 + $0x168] sm:$0xff]
    %v2836 = vld [vmem:[#allocation11 + $0x170] sm:$0xff]
    %v2837 = vld [vmem:[#allocation11 + $0x178] sm:$0xff]
    %v2838 = vld [vmem:[#allocation11 + $0x180] sm:$0xff]
    %v2839 = vld [vmem:[#allocation11 + $0x188] sm:$0xff]
    %v2840 = vld [vmem:[#allocation11 + $0x190] sm:$0xff]
    %v2841 = vld [vmem:[#allocation11 + $0x198] sm:$0xff]
    %v2842 = vld [vmem:[#allocation11 + $0x1a0] sm:$0xff]
    %v2843 = vld [vmem:[#allocation11 + $0x1a8] sm:$0xff]
    %v2844 = vld [vmem:[#allocation11 + $0x1b0] sm:$0xff]
    %v2845 = vld [vmem:[#allocation11 + $0x1b8] sm:$0xff]
    %v2846 = vld [vmem:[#allocation11 + $0x1c0] sm:$0xff]
    %v2847 = vld [vmem:[#allocation11 + $0x1c8] sm:$0xff]
    %v2848 = vld [vmem:[#allocation11 + $0x1d0] sm:$0xff]
    %v2849 = vld [vmem:[#allocation11 + $0x1d8] sm:$0xff]
    %v2850 = vld [vmem:[#allocation11 + $0x1e0] sm:$0xff]
    %v2851 = vld [vmem:[#allocation11 + $0x1e8] sm:$0xff]
    %v2852 = vld [vmem:[#allocation11 + $0x1f0] sm:$0xff]
    %v2853 = vld [vmem:[#allocation11 + $0x1f8] sm:$0xff]
    %v2854 = vld [vmem:[#allocation11 + $0x200] sm:$0xff]
    %v2855 = vld [vmem:[#allocation11 + $0x208] sm:$0xff]
    %v2856 = vld [vmem:[#allocation11 + $0x210] sm:$0xff]
    %v2857 = vld [vmem:[#allocation11 + $0x218] sm:$0xff]
    %v2858 = vld [vmem:[#allocation11 + $0x220] sm:$0xff]
    %v2859 = vld [vmem:[#allocation11 + $0x228] sm:$0xff]
    %v2860 = vld [vmem:[#allocation11 + $0x230] sm:$0xff]
    %v2861 = vld [vmem:[#allocation11 + $0x238] sm:$0xff]
    %v2862 = vld [vmem:[#allocation11 + $0x240] sm:$0xff]
    %v2863 = vld [vmem:[#allocation11 + $0x248] sm:$0xff]
    %v2864 = vld [vmem:[#allocation11 + $0x250] sm:$0xff]
    %v2865 = vld [vmem:[#allocation11 + $0x258] sm:$0xff]
    %v2866 = vld [vmem:[#allocation11 + $0x260] sm:$0xff]
    %v2867 = vld [vmem:[#allocation11 + $0x268] sm:$0xff]
    %v2868 = vld [vmem:[#allocation11 + $0x270] sm:$0xff]
    %v2869 = vld [vmem:[#allocation11 + $0x278] sm:$0xff]
    %v2870 = vld [vmem:[#allocation11 + $0x280] sm:$0xff]
    %v2871 = vld [vmem:[#allocation11 + $0x288] sm:$0xff]
    %v2872 = vld [vmem:[#allocation11 + $0x290] sm:$0xff]
    %v2873 = vld [vmem:[#allocation11 + $0x298] sm:$0xff]
    %v2874 = vld [vmem:[#allocation11 + $0x2a0] sm:$0xff]
    %v2875 = vld [vmem:[#allocation11 + $0x2a8] sm:$0xff]
    %v2876 = vld [vmem:[#allocation11 + $0x2b0] sm:$0xff]
    %v2877 = vld [vmem:[#allocation11 + $0x2b8] sm:$0xff]
    %v2878 = vld [vmem:[#allocation11 + $0x2c0] sm:$0xff]
    %v2879 = vld [vmem:[#allocation11 + $0x2c8] sm:$0xff]
    %v2880 = vld [vmem:[#allocation11 + $0x2d0] sm:$0xff]
    %v2881 = vld [vmem:[#allocation11 + $0x2d8] sm:$0xff]
    %v2882 = vld [vmem:[#allocation11 + $0x2e0] sm:$0xff]
    %v2883 = vld [vmem:[#allocation11 + $0x2e8] sm:$0xff]
    %v2884 = vld [vmem:[#allocation11 + $0x2f0] sm:$0xff]
    %v2885 = vld [vmem:[#allocation11 + $0x2f8] sm:$0xff]
    %v2886 = vld [vmem:[#allocation11 + $0x300] sm:$0xff]
    %v2887 = vld [vmem:[#allocation11 + $0x308] sm:$0xff]
    %v2888 = vld [vmem:[#allocation11 + $0x310] sm:$0xff]
    %v2889 = vld [vmem:[#allocation11 + $0x318] sm:$0xff]
    %v2890 = vld [vmem:[#allocation11 + $0x320] sm:$0xff]
    %v2891 = vld [vmem:[#allocation11 + $0x328] sm:$0xff]
    %v2892 = vld [vmem:[#allocation11 + $0x330] sm:$0xff]
    %v2893 = vld [vmem:[#allocation11 + $0x338] sm:$0xff]
    %v2894 = vld [vmem:[#allocation11 + $0x340] sm:$0xff]
    %v2895 = vld [vmem:[#allocation11 + $0x348] sm:$0xff]
    %v2896 = vld [vmem:[#allocation11 + $0x350] sm:$0xff]
    %v2897 = vld [vmem:[#allocation11 + $0x358] sm:$0xff]
    %v2898 = vld [vmem:[#allocation11 + $0x360] sm:$0xff]
    %v2899 = vld [vmem:[#allocation11 + $0x368] sm:$0xff]
    %v2900 = vld [vmem:[#allocation11 + $0x370] sm:$0xff]
    %v2901 = vld [vmem:[#allocation11 + $0x378] sm:$0xff]
    %v2902 = vld [vmem:[#allocation11 + $0x380] sm:$0xff]
    %v2903 = vld [vmem:[#allocation11 + $0x388] sm:$0xff]
    %v2904 = vld [vmem:[#allocation11 + $0x390] sm:$0xff]
    %v2905 = vld [vmem:[#allocation11 + $0x398] sm:$0xff]
    %v2906 = vld [vmem:[#allocation11 + $0x3a0] sm:$0xff]
    %v2907 = vld [vmem:[#allocation11 + $0x3a8] sm:$0xff]
    %v2908 = vld [vmem:[#allocation11 + $0x3b0] sm:$0xff]
    %v2909 = vld [vmem:[#allocation11 + $0x3b8] sm:$0xff]
    %v2910 = vld [vmem:[#allocation11 + $0x3c0] sm:$0xff]
    %v2911 = vld [vmem:[#allocation11 + $0x3c8] sm:$0xff]
    %v2912 = vld [vmem:[#allocation11 + $0x3d0] sm:$0xff]
    %v2913 = vld [vmem:[#allocation11 + $0x3d8] sm:$0xff]
    %v2914 = vld [vmem:[#allocation11 + $0x3e0] sm:$0xff]
    %v2915 = vld [vmem:[#allocation11 + $0x3e8] sm:$0xff]
    %v2916 = vld [vmem:[#allocation11 + $0x3f0] sm:$0xff]
    %v2917 = vld [vmem:[#allocation11 + $0x3f8] sm:$0xff]
    %v2918 = vld [vmem:[#allocation11 + $0x400] sm:$0xff]
    %v2919 = vld [vmem:[#allocation11 + $0x408] sm:$0xff]
    %v2920 = vld [vmem:[#allocation11 + $0x410] sm:$0xff]
    %v2921 = vld [vmem:[#allocation11 + $0x418] sm:$0xff]
    %v2922 = vld [vmem:[#allocation11 + $0x420] sm:$0xff]
    %v2923 = vld [vmem:[#allocation11 + $0x428] sm:$0xff]
    %v2924 = vld [vmem:[#allocation11 + $0x430] sm:$0xff]
    %v2925 = vld [vmem:[#allocation11 + $0x438] sm:$0xff]
    %v2926 = vld [vmem:[#allocation11 + $0x440] sm:$0xff]
    %v2927 = vld [vmem:[#allocation11 + $0x448] sm:$0xff]
    %v2928 = vld [vmem:[#allocation11 + $0x450] sm:$0xff]
    %v2929 = vld [vmem:[#allocation11 + $0x458] sm:$0xff]
    %v2930 = vld [vmem:[#allocation11 + $0x460] sm:$0xff]
    %v2931 = vld [vmem:[#allocation11 + $0x468] sm:$0xff]
    %v2932 = vld [vmem:[#allocation11 + $0x470] sm:$0xff]
    %v2933 = vld [vmem:[#allocation11 + $0x478] sm:$0xff]
    %v2934 = vld [vmem:[#allocation11 + $0x480] sm:$0xff]
    %v2935 = vld [vmem:[#allocation11 + $0x488] sm:$0xff]
    %v2936 = vld [vmem:[#allocation11 + $0x490] sm:$0xff]
    %v2937 = vld [vmem:[#allocation11 + $0x498] sm:$0xff]
    %v2938 = vld [vmem:[#allocation11 + $0x4a0] sm:$0xff]
    %v2939 = vld [vmem:[#allocation11 + $0x4a8] sm:$0xff]
    %v2940 = vld [vmem:[#allocation11 + $0x4b0] sm:$0xff]
    %v2941 = vld [vmem:[#allocation11 + $0x4b8] sm:$0xff]
    %v2942 = vld [vmem:[#allocation11 + $0x4c0] sm:$0xff]
    %v2943 = vld [vmem:[#allocation11 + $0x4c8] sm:$0xff]
    %v2944 = vld [vmem:[#allocation11 + $0x4d0] sm:$0xff]
    %v2945 = vld [vmem:[#allocation11 + $0x4d8] sm:$0xff]
    %v2946 = vld [vmem:[#allocation11 + $0x4e0] sm:$0xff]
    %v2947 = vld [vmem:[#allocation11 + $0x4e8] sm:$0xff]
    %v2948 = vld [vmem:[#allocation11 + $0x4f0] sm:$0xff]
    %v2949 = vld [vmem:[#allocation11 + $0x4f8] sm:$0xff]
    %v2950 = vld [vmem:[#allocation11 + $0x500] sm:$0xff]
    %v2951 = vld [vmem:[#allocation11 + $0x508] sm:$0xff]
    %v2952 = vld [vmem:[#allocation11 + $0x510] sm:$0xff]
    %v2953 = vld [vmem:[#allocation11 + $0x518] sm:$0xff]
    %v2954 = vld [vmem:[#allocation11 + $0x520] sm:$0xff]
    %v2955 = vld [vmem:[#allocation11 + $0x528] sm:$0xff]
    %v2956 = vld [vmem:[#allocation11 + $0x530] sm:$0xff]
    %v2957 = vld [vmem:[#allocation11 + $0x538] sm:$0xff]
    %v2958 = vld [vmem:[#allocation11 + $0x540] sm:$0xff]
    %v2959 = vld [vmem:[#allocation11 + $0x548] sm:$0xff]
    %v2960 = vld [vmem:[#allocation11 + $0x550] sm:$0xff]
    %v2961 = vld [vmem:[#allocation11 + $0x558] sm:$0xff]
    %v2962 = vld [vmem:[#allocation11 + $0x560] sm:$0xff]
    %v2963 = vld [vmem:[#allocation11 + $0x568] sm:$0xff]
    %v2964 = vld [vmem:[#allocation11 + $0x570] sm:$0xff]
    %v2965 = vld [vmem:[#allocation11 + $0x578] sm:$0xff]
    %v2966 = vld [vmem:[#allocation11 + $0x580] sm:$0xff]
    %v2967 = vld [vmem:[#allocation11 + $0x588] sm:$0xff]
    %v2968 = vld [vmem:[#allocation11 + $0x590] sm:$0xff]
    %v2969 = vld [vmem:[#allocation11 + $0x598] sm:$0xff]
    %v2970 = vld [vmem:[#allocation11 + $0x5a0] sm:$0xff]
    %v2971 = vld [vmem:[#allocation11 + $0x5a8] sm:$0xff]
    %v2972 = vld [vmem:[#allocation11 + $0x5b0] sm:$0xff]
    %v2973 = vld [vmem:[#allocation11 + $0x5b8] sm:$0xff]
    %v2974 = vld [vmem:[#allocation11 + $0x5c0] sm:$0xff]
    %v2975 = vld [vmem:[#allocation11 + $0x5c8] sm:$0xff]
    %v2976 = vld [vmem:[#allocation11 + $0x5d0] sm:$0xff]
    %v2977 = vld [vmem:[#allocation11 + $0x5d8] sm:$0xff]
    %v2978 = vld [vmem:[#allocation11 + $0x5e0] sm:$0xff]
    %v2979 = vld [vmem:[#allocation11 + $0x5e8] sm:$0xff]
    %v2980 = vld [vmem:[#allocation11 + $0x5f0] sm:$0xff]
    %v2981 = vld [vmem:[#allocation11 + $0x5f8] sm:$0xff]
    %v2982 = vld [vmem:[#allocation11 + $0x600] sm:$0xff]
    %v2983 = vld [vmem:[#allocation11 + $0x608] sm:$0xff]
    %v2984 = vld [vmem:[#allocation11 + $0x610] sm:$0xff]
    %v2985 = vld [vmem:[#allocation11 + $0x618] sm:$0xff]
    %v2986 = vld [vmem:[#allocation11 + $0x620] sm:$0xff]
    %v2987 = vld [vmem:[#allocation11 + $0x628] sm:$0xff]
    %v2988 = vld [vmem:[#allocation11 + $0x630] sm:$0xff]
    %v2989 = vld [vmem:[#allocation11 + $0x638] sm:$0xff]
    %v2990 = vld [vmem:[#allocation11 + $0x640] sm:$0xff]
    %v2991 = vld [vmem:[#allocation11 + $0x648] sm:$0xff]
    %v2992 = vld [vmem:[#allocation11 + $0x650] sm:$0xff]
    %v2993 = vld [vmem:[#allocation11 + $0x658] sm:$0xff]
    %v2994 = vld [vmem:[#allocation11 + $0x660] sm:$0xff]
    %v2995 = vld [vmem:[#allocation11 + $0x668] sm:$0xff]
    %v2996 = vld [vmem:[#allocation11 + $0x670] sm:$0xff]
    %v2997 = vld [vmem:[#allocation11 + $0x678] sm:$0xff]
    %v2998 = vld [vmem:[#allocation11 + $0x680] sm:$0xff]
    %v2999 = vld [vmem:[#allocation11 + $0x688] sm:$0xff]
    %v3000 = vld [vmem:[#allocation11 + $0x690] sm:$0xff]
    %v3001 = vld [vmem:[#allocation11 + $0x698] sm:$0xff]
    %v3002 = vld [vmem:[#allocation11 + $0x6a0] sm:$0xff]
    %v3003 = vld [vmem:[#allocation11 + $0x6a8] sm:$0xff]
    %v3004 = vld [vmem:[#allocation11 + $0x6b0] sm:$0xff]
    %v3005 = vld [vmem:[#allocation11 + $0x6b8] sm:$0xff]
    %v3006 = vld [vmem:[#allocation11 + $0x6c0] sm:$0xff]
    %v3007 = vld [vmem:[#allocation11 + $0x6c8] sm:$0xff]
    %v3008 = vld [vmem:[#allocation11 + $0x6d0] sm:$0xff]
    %v3009 = vld [vmem:[#allocation11 + $0x6d8] sm:$0xff]
    %v3010 = vld [vmem:[#allocation11 + $0x6e0] sm:$0xff]
    %v3011 = vld [vmem:[#allocation11 + $0x6e8] sm:$0xff]
    %v3012 = vld [vmem:[#allocation11 + $0x6f0] sm:$0xff]
    %v3013 = vld [vmem:[#allocation11 + $0x6f8] sm:$0xff]
    %v3014 = vld [vmem:[#allocation11 + $0x700] sm:$0xff]
    %v3015 = vld [vmem:[#allocation11 + $0x708] sm:$0xff]
    %v3016 = vld [vmem:[#allocation11 + $0x710] sm:$0xff]
    %v3017 = vld [vmem:[#allocation11 + $0x718] sm:$0xff]
    %v3018 = vld [vmem:[#allocation11 + $0x720] sm:$0xff]
    %v3019 = vld [vmem:[#allocation11 + $0x728] sm:$0xff]
    %v3020 = vld [vmem:[#allocation11 + $0x730] sm:$0xff]
    %v3021 = vld [vmem:[#allocation11 + $0x738] sm:$0xff]
    %v3022 = vld [vmem:[#allocation11 + $0x740] sm:$0xff]
    %v3023 = vld [vmem:[#allocation11 + $0x748] sm:$0xff]
    %v3024 = vld [vmem:[#allocation11 + $0x750] sm:$0xff]
    %v3025 = vld [vmem:[#allocation11 + $0x758] sm:$0xff]
    %v3026 = vld [vmem:[#allocation11 + $0x760] sm:$0xff]
    %v3027 = vld [vmem:[#allocation11 + $0x768] sm:$0xff]
    %v3028 = vld [vmem:[#allocation11 + $0x770] sm:$0xff]
    %v3029 = vld [vmem:[#allocation11 + $0x778] sm:$0xff]
    %v3030 = vld [vmem:[#allocation11 + $0x780] sm:$0xff]
    %v3031 = vld [vmem:[#allocation11 + $0x788] sm:$0xff]
    %v3032 = vld [vmem:[#allocation11 + $0x790] sm:$0xff]
    %v3033 = vld [vmem:[#allocation11 + $0x798] sm:$0xff]
    %v3034 = vld [vmem:[#allocation11 + $0x7a0] sm:$0xff]
    %v3035 = vld [vmem:[#allocation11 + $0x7a8] sm:$0xff]
    %v3036 = vld [vmem:[#allocation11 + $0x7b0] sm:$0xff]
    %v3037 = vld [vmem:[#allocation11 + $0x7b8] sm:$0xff]
    %v3038 = vld [vmem:[#allocation11 + $0x7c0] sm:$0xff]
    %v3039 = vld [vmem:[#allocation11 + $0x7c8] sm:$0xff]
    %v3040 = vld [vmem:[#allocation11 + $0x7d0] sm:$0xff]
    %v3041 = vld [vmem:[#allocation11 + $0x7d8] sm:$0xff]
    %v3042 = vld [vmem:[#allocation11 + $0x7e0] sm:$0xff]
    %v3043 = vld [vmem:[#allocation11 + $0x7e8] sm:$0xff]
    %v3044 = vld [vmem:[#allocation11 + $0x7f0] sm:$0xff]
    %v3045 = vld [vmem:[#allocation11 + $0x7f8] sm:$0xff]
    %v3046 = vld [vmem:[#allocation11 + $0x800] sm:$0xff]
    %v3047 = vld [vmem:[#allocation11 + $0x808] sm:$0xff]
    %v3048 = vld [vmem:[#allocation11 + $0x810] sm:$0xff]
    %v3049 = vld [vmem:[#allocation11 + $0x818] sm:$0xff]
    %v3050 = vld [vmem:[#allocation11 + $0x820] sm:$0xff]
    %v3051 = vld [vmem:[#allocation11 + $0x828] sm:$0xff]
    %v3052 = vld [vmem:[#allocation11 + $0x830] sm:$0xff]
    %v3053 = vld [vmem:[#allocation11 + $0x838] sm:$0xff]
    %v3054 = vld [vmem:[#allocation11 + $0x840] sm:$0xff]
    %v3055 = vld [vmem:[#allocation11 + $0x848] sm:$0xff]
    %v3056 = vld [vmem:[#allocation11 + $0x850] sm:$0xff]
    %v3057 = vld [vmem:[#allocation11 + $0x858] sm:$0xff]
    %v3058 = vld [vmem:[#allocation11 + $0x860] sm:$0xff]
    %v3059 = vld [vmem:[#allocation11 + $0x868] sm:$0xff]
    %v3060 = vld [vmem:[#allocation11 + $0x870] sm:$0xff]
    %v3061 = vld [vmem:[#allocation11 + $0x878] sm:$0xff]
    %v3062 = vld [vmem:[#allocation11 + $0x880] sm:$0xff]
    %v3063 = vld [vmem:[#allocation11 + $0x888] sm:$0xff]
    %v3064 = vld [vmem:[#allocation11 + $0x890] sm:$0xff]
    %v3065 = vld [vmem:[#allocation11 + $0x898] sm:$0xff]
    %v3066 = vld [vmem:[#allocation11 + $0x8a0] sm:$0xff]
    %v3067 = vld [vmem:[#allocation11 + $0x8a8] sm:$0xff]
    %v3068 = vld [vmem:[#allocation11 + $0x8b0] sm:$0xff]
    %v3069 = vld [vmem:[#allocation11 + $0x8b8] sm:$0xff]
    %v3070 = vld [vmem:[#allocation11 + $0x8c0] sm:$0xff]
    %v3071 = vld [vmem:[#allocation11 + $0x8c8] sm:$0xff]
    %v3072 = vld [vmem:[#allocation11 + $0x8d0] sm:$0xff]
    %v3073 = vld [vmem:[#allocation11 + $0x8d8] sm:$0xff]
    %v3074 = vld [vmem:[#allocation11 + $0x8e0] sm:$0xff]
    %v3075 = vld [vmem:[#allocation11 + $0x8e8] sm:$0xff]
    %v3076 = vld [vmem:[#allocation11 + $0x8f0] sm:$0xff]
    %v3077 = vld [vmem:[#allocation11 + $0x8f8] sm:$0xff]
    %v3078 = vld [vmem:[#allocation11 + $0x900] sm:$0xff]
    %v3079 = vld [vmem:[#allocation11 + $0x908] sm:$0xff]
    %v3080 = vld [vmem:[#allocation11 + $0x910] sm:$0xff]
    %v3081 = vld [vmem:[#allocation11 + $0x918] sm:$0xff]
    %v3082 = vld [vmem:[#allocation11 + $0x920] sm:$0xff]
    %v3083 = vld [vmem:[#allocation11 + $0x928] sm:$0xff]
    %v3084 = vld [vmem:[#allocation11 + $0x930] sm:$0xff]
    %v3085 = vld [vmem:[#allocation11 + $0x938] sm:$0xff]
    %v3086 = vld [vmem:[#allocation11 + $0x940] sm:$0xff]
    %v3087 = vld [vmem:[#allocation11 + $0x948] sm:$0xff]
    %v3088 = vld [vmem:[#allocation11 + $0x950] sm:$0xff]
    %v3089 = vld [vmem:[#allocation11 + $0x958] sm:$0xff]
    %v3090 = vld [vmem:[#allocation11 + $0x960] sm:$0xff]
    %v3091 = vld [vmem:[#allocation11 + $0x968] sm:$0xff]
    %v3092 = vld [vmem:[#allocation11 + $0x970] sm:$0xff]
    %v3093 = vld [vmem:[#allocation11 + $0x978] sm:$0xff]
    %v3094 = vld [vmem:[#allocation11 + $0x980] sm:$0xff]
    %v3095 = vld [vmem:[#allocation11 + $0x988] sm:$0xff]
    %v3096 = vld [vmem:[#allocation11 + $0x990] sm:$0xff]
    %v3097 = vld [vmem:[#allocation11 + $0x998] sm:$0xff]
    %v3098 = vld [vmem:[#allocation11 + $0x9a0] sm:$0xff]
    %v3099 = vld [vmem:[#allocation11 + $0x9a8] sm:$0xff]
    %v3100 = vld [vmem:[#allocation11 + $0x9b0] sm:$0xff]
    %v3101 = vld [vmem:[#allocation11 + $0x9b8] sm:$0xff]
    %v3102 = vld [vmem:[#allocation11 + $0x9c0] sm:$0xff]
    %v3103 = vld [vmem:[#allocation11 + $0x9c8] sm:$0xff]
    %v3104 = vld [vmem:[#allocation11 + $0x9d0] sm:$0xff]
    %v3105 = vld [vmem:[#allocation11 + $0x9d8] sm:$0xff]
    %v3106 = vld [vmem:[#allocation11 + $0x9e0] sm:$0xff]
    %v3107 = vld [vmem:[#allocation11 + $0x9e8] sm:$0xff]
    %v3108 = vld [vmem:[#allocation11 + $0x9f0] sm:$0xff]
    %v3109 = vld [vmem:[#allocation11 + $0x9f8] sm:$0xff]
    %v3110 = vld [vmem:[#allocation11 + $0xa00] sm:$0xff]
    %v3111 = vld [vmem:[#allocation11 + $0xa08] sm:$0xff]
    %v3112 = vld [vmem:[#allocation11 + $0xa10] sm:$0xff]
    %v3113 = vld [vmem:[#allocation11 + $0xa18] sm:$0xff]
    %v3114 = vld [vmem:[#allocation11 + $0xa20] sm:$0xff]
    %v3115 = vld [vmem:[#allocation11 + $0xa28] sm:$0xff]
    %v3116 = vld [vmem:[#allocation11 + $0xa30] sm:$0xff]
    %v3117 = vld [vmem:[#allocation11 + $0xa38] sm:$0xff]
    %v3118 = vld [vmem:[#allocation11 + $0xa40] sm:$0xff]
    %v3119 = vld [vmem:[#allocation11 + $0xa48] sm:$0xff]
    %v3120 = vld [vmem:[#allocation11 + $0xa50] sm:$0xff]
    %v3121 = vld [vmem:[#allocation11 + $0xa58] sm:$0xff]
    %v3122 = vld [vmem:[#allocation11 + $0xa60] sm:$0xff]
    %v3123 = vld [vmem:[#allocation11 + $0xa68] sm:$0xff]
    %v3124 = vld [vmem:[#allocation11 + $0xa70] sm:$0xff]
    %v3125 = vld [vmem:[#allocation11 + $0xa78] sm:$0xff]
    %v3126 = vld [vmem:[#allocation11 + $0xa80] sm:$0xff]
    %v3127 = vld [vmem:[#allocation11 + $0xa88] sm:$0xff]
    %v3128 = vld [vmem:[#allocation11 + $0xa90] sm:$0xff]
    %v3129 = vld [vmem:[#allocation11 + $0xa98] sm:$0xff]
    %v3130 = vld [vmem:[#allocation11 + $0xaa0] sm:$0xff]
    %v3131 = vld [vmem:[#allocation11 + $0xaa8] sm:$0xff]
    %v3132 = vld [vmem:[#allocation11 + $0xab0] sm:$0xff]
    %v3133 = vld [vmem:[#allocation11 + $0xab8] sm:$0xff]
    %v3134 = vld [vmem:[#allocation11 + $0xac0] sm:$0xff]
    %v3135 = vld [vmem:[#allocation11 + $0xac8] sm:$0xff]
    %v3136 = vld [vmem:[#allocation11 + $0xad0] sm:$0xff]
    %v3137 = vld [vmem:[#allocation11 + $0xad8] sm:$0xff]
    %v3138 = vld [vmem:[#allocation11 + $0xae0] sm:$0xff]
    %v3139 = vld [vmem:[#allocation11 + $0xae8] sm:$0xff]
    %v3140 = vld [vmem:[#allocation11 + $0xaf0] sm:$0xff]
    %v3141 = vld [vmem:[#allocation11 + $0xaf8] sm:$0xff]
    %v3142 = vld [vmem:[#allocation11 + $0xb00] sm:$0xff]
    %v3143 = vld [vmem:[#allocation11 + $0xb08] sm:$0xff]
    %v3144 = vld [vmem:[#allocation11 + $0xb10] sm:$0xff]
    %v3145 = vld [vmem:[#allocation11 + $0xb18] sm:$0xff]
    %v3146 = vld [vmem:[#allocation11 + $0xb20] sm:$0xff]
    %v3147 = vld [vmem:[#allocation11 + $0xb28] sm:$0xff]
    %v3148 = vld [vmem:[#allocation11 + $0xb30] sm:$0xff]
    %v3149 = vld [vmem:[#allocation11 + $0xb38] sm:$0xff]
    %v3150 = vld [vmem:[#allocation11 + $0xb40] sm:$0xff]
    %v3151 = vld [vmem:[#allocation11 + $0xb48] sm:$0xff]
    %v3152 = vld [vmem:[#allocation11 + $0xb50] sm:$0xff]
    %v3153 = vld [vmem:[#allocation11 + $0xb58] sm:$0xff]
    %v3154 = vld [vmem:[#allocation11 + $0xb60] sm:$0xff]
    %v3155 = vld [vmem:[#allocation11 + $0xb68] sm:$0xff]
    %v3156 = vld [vmem:[#allocation11 + $0xb70] sm:$0xff]
    %v3157 = vld [vmem:[#allocation11 + $0xb78] sm:$0xff]
    %v3158 = vld [vmem:[#allocation11 + $0xb80] sm:$0xff]
    %v3159 = vld [vmem:[#allocation11 + $0xb88] sm:$0xff]
    %v3160 = vld [vmem:[#allocation11 + $0xb90] sm:$0xff]
    %v3161 = vld [vmem:[#allocation11 + $0xb98] sm:$0xff]
    %v3162 = vld [vmem:[#allocation11 + $0xba0] sm:$0xff]
    %v3163 = vld [vmem:[#allocation11 + $0xba8] sm:$0xff]
    %v3164 = vld [vmem:[#allocation11 + $0xbb0] sm:$0xff]
    %v3165 = vld [vmem:[#allocation11 + $0xbb8] sm:$0xff]
    %v3166 = vld [vmem:[#allocation11 + $0xbc0] sm:$0xff]
    %v3167 = vld [vmem:[#allocation11 + $0xbc8] sm:$0xff]
    %v3168 = vld [vmem:[#allocation11 + $0xbd0] sm:$0xff]
    %v3169 = vld [vmem:[#allocation11 + $0xbd8] sm:$0xff]
    %v3170 = vld [vmem:[#allocation11 + $0xbe0] sm:$0xff]
    %v3171 = vld [vmem:[#allocation11 + $0xbe8] sm:$0xff]
    %v3172 = vld [vmem:[#allocation11 + $0xbf0] sm:$0xff]
    %v3173 = vld [vmem:[#allocation11 + $0xbf8] sm:$0xff]
    %v3174 = vld [vmem:[#allocation11 + $0xc00] sm:$0xff]
    %v3175 = vld [vmem:[#allocation11 + $0xc08] sm:$0xff]
    %v3176 = vld [vmem:[#allocation11 + $0xc10] sm:$0xff]
    %v3177 = vld [vmem:[#allocation11 + $0xc18] sm:$0xff]
    %v3178 = vld [vmem:[#allocation11 + $0xc20] sm:$0xff]
    %v3179 = vld [vmem:[#allocation11 + $0xc28] sm:$0xff]
    %v3180 = vld [vmem:[#allocation11 + $0xc30] sm:$0xff]
    %v3181 = vld [vmem:[#allocation11 + $0xc38] sm:$0xff]
    %v3182 = vld [vmem:[#allocation11 + $0xc40] sm:$0xff]
    %v3183 = vld [vmem:[#allocation11 + $0xc48] sm:$0xff]
    %v3184 = vld [vmem:[#allocation11 + $0xc50] sm:$0xff]
    %v3185 = vld [vmem:[#allocation11 + $0xc58] sm:$0xff]
    %v3186 = vld [vmem:[#allocation11 + $0xc60] sm:$0xff]
    %v3187 = vld [vmem:[#allocation11 + $0xc68] sm:$0xff]
    %v3188 = vld [vmem:[#allocation11 + $0xc70] sm:$0xff]
    %v3189 = vld [vmem:[#allocation11 + $0xc78] sm:$0xff]
    %v3190 = vld [vmem:[#allocation11 + $0xc80] sm:$0xff]
    %v3191 = vld [vmem:[#allocation11 + $0xc88] sm:$0xff]
    %v3192 = vld [vmem:[#allocation11 + $0xc90] sm:$0xff]
    %v3193 = vld [vmem:[#allocation11 + $0xc98] sm:$0xff]
    %v3194 = vld [vmem:[#allocation11 + $0xca0] sm:$0xff]
    %v3195 = vld [vmem:[#allocation11 + $0xca8] sm:$0xff]
    %v3196 = vld [vmem:[#allocation11 + $0xcb0] sm:$0xff]
    %v3197 = vld [vmem:[#allocation11 + $0xcb8] sm:$0xff]
    %v3198 = vld [vmem:[#allocation11 + $0xcc0] sm:$0xff]
    %v3199 = vld [vmem:[#allocation11 + $0xcc8] sm:$0xff]
    %v3200 = vld [vmem:[#allocation11 + $0xcd0] sm:$0xff]
    %v3201 = vld [vmem:[#allocation11 + $0xcd8] sm:$0xff]
    %v3202 = vld [vmem:[#allocation11 + $0xce0] sm:$0xff]
    %v3203 = vld [vmem:[#allocation11 + $0xce8] sm:$0xff]
    %v3204 = vld [vmem:[#allocation11 + $0xcf0] sm:$0xff]
    %v3205 = vld [vmem:[#allocation11 + $0xcf8] sm:$0xff]
    %v3206 = vld [vmem:[#allocation11 + $0xd00] sm:$0xff]
    %v3207 = vld [vmem:[#allocation11 + $0xd08] sm:$0xff]
    %v3208 = vld [vmem:[#allocation11 + $0xd10] sm:$0xff]
    %v3209 = vld [vmem:[#allocation11 + $0xd18] sm:$0xff]
    %v3210 = vld [vmem:[#allocation11 + $0xd20] sm:$0xff]
    %v3211 = vld [vmem:[#allocation11 + $0xd28] sm:$0xff]
    %v3212 = vld [vmem:[#allocation11 + $0xd30] sm:$0xff]
    %v3213 = vld [vmem:[#allocation11 + $0xd38] sm:$0xff]
    %v3214 = vld [vmem:[#allocation11 + $0xd40] sm:$0xff]
    %v3215 = vld [vmem:[#allocation11 + $0xd48] sm:$0xff]
    %v3216 = vld [vmem:[#allocation11 + $0xd50] sm:$0xff]
    %v3217 = vld [vmem:[#allocation11 + $0xd58] sm:$0xff]
    %v3218 = vld [vmem:[#allocation11 + $0xd60] sm:$0xff]
    %v3219 = vld [vmem:[#allocation11 + $0xd68] sm:$0xff]
    %v3220 = vld [vmem:[#allocation11 + $0xd70] sm:$0xff]
    %v3221 = vld [vmem:[#allocation11 + $0xd78] sm:$0xff]
    %v3222 = vld [vmem:[#allocation11 + $0xd80] sm:$0xff]
    %v3223 = vld [vmem:[#allocation11 + $0xd88] sm:$0xff]
    %v3224 = vld [vmem:[#allocation11 + $0xd90] sm:$0xff]
    %v3225 = vld [vmem:[#allocation11 + $0xd98] sm:$0xff]
    %v3226 = vld [vmem:[#allocation11 + $0xda0] sm:$0xff]
    %v3227 = vld [vmem:[#allocation11 + $0xda8] sm:$0xff]
    %v3228 = vld [vmem:[#allocation11 + $0xdb0] sm:$0xff]
    %v3229 = vld [vmem:[#allocation11 + $0xdb8] sm:$0xff]
    %v3230 = vld [vmem:[#allocation11 + $0xdc0] sm:$0xff]
    %v3231 = vld [vmem:[#allocation11 + $0xdc8] sm:$0xff]
    %v3232 = vld [vmem:[#allocation11 + $0xdd0] sm:$0xff]
    %v3233 = vld [vmem:[#allocation11 + $0xdd8] sm:$0xff]
    %v3234 = vld [vmem:[#allocation11 + $0xde0] sm:$0xff]
    %v3235 = vld [vmem:[#allocation11 + $0xde8] sm:$0xff]
    %v3236 = vld [vmem:[#allocation11 + $0xdf0] sm:$0xff]
    %v3237 = vld [vmem:[#allocation11 + $0xdf8] sm:$0xff]
    %v3238 = vld [vmem:[#allocation11 + $0xe00] sm:$0xff]
    %v3239 = vld [vmem:[#allocation11 + $0xe08] sm:$0xff]
    %v3240 = vld [vmem:[#allocation11 + $0xe10] sm:$0xff]
    %v3241 = vld [vmem:[#allocation11 + $0xe18] sm:$0xff]
    %v3242 = vld [vmem:[#allocation11 + $0xe20] sm:$0xff]
    %v3243 = vld [vmem:[#allocation11 + $0xe28] sm:$0xff]
    %v3244 = vld [vmem:[#allocation11 + $0xe30] sm:$0xff]
    %v3245 = vld [vmem:[#allocation11 + $0xe38] sm:$0xff]
    %v3246 = vld [vmem:[#allocation11 + $0xe40] sm:$0xff]
    %v3247 = vld [vmem:[#allocation11 + $0xe48] sm:$0xff]
    %v3248 = vld [vmem:[#allocation11 + $0xe50] sm:$0xff]
    %v3249 = vld [vmem:[#allocation11 + $0xe58] sm:$0xff]
    %v3250 = vld [vmem:[#allocation11 + $0xe60] sm:$0xff]
    %v3251 = vld [vmem:[#allocation11 + $0xe68] sm:$0xff]
    %v3252 = vld [vmem:[#allocation11 + $0xe70] sm:$0xff]
    %v3253 = vld [vmem:[#allocation11 + $0xe78] sm:$0xff]
    %v3254 = vld [vmem:[#allocation11 + $0xe80] sm:$0xff]
    %v3255 = vld [vmem:[#allocation11 + $0xe88] sm:$0xff]
    %v3256 = vld [vmem:[#allocation11 + $0xe90] sm:$0xff]
    %v3257 = vld [vmem:[#allocation11 + $0xe98] sm:$0xff]
    %v3258 = vld [vmem:[#allocation11 + $0xea0] sm:$0xff]
    %v3259 = vld [vmem:[#allocation11 + $0xea8] sm:$0xff]
    %v3260 = vld [vmem:[#allocation11 + $0xeb0] sm:$0xff]
    %v3261 = vld [vmem:[#allocation11 + $0xeb8] sm:$0xff]
    %v3262 = vld [vmem:[#allocation11 + $0xec0] sm:$0xff]
    %v3263 = vld [vmem:[#allocation11 + $0xec8] sm:$0xff]
    %v3264 = vld [vmem:[#allocation11 + $0xed0] sm:$0xff]
    %v3265 = vld [vmem:[#allocation11 + $0xed8] sm:$0xff]
    %v3266 = vld [vmem:[#allocation11 + $0xee0] sm:$0xff]
    %v3267 = vld [vmem:[#allocation11 + $0xee8] sm:$0xff]
    %v3268 = vld [vmem:[#allocation11 + $0xef0] sm:$0xff]
    %v3269 = vld [vmem:[#allocation11 + $0xef8] sm:$0xff]
    %v3270 = vld [vmem:[#allocation11 + $0xf00] sm:$0xff]
    %v3271 = vld [vmem:[#allocation11 + $0xf08] sm:$0xff]
    %v3272 = vld [vmem:[#allocation11 + $0xf10] sm:$0xff]
    %v3273 = vld [vmem:[#allocation11 + $0xf18] sm:$0xff]
    %v3274 = vld [vmem:[#allocation11 + $0xf20] sm:$0xff]
    %v3275 = vld [vmem:[#allocation11 + $0xf28] sm:$0xff]
    %v3276 = vld [vmem:[#allocation11 + $0xf30] sm:$0xff]
    %v3277 = vld [vmem:[#allocation11 + $0xf38] sm:$0xff]
    %v3278 = vld [vmem:[#allocation11 + $0xf40] sm:$0xff]
    %v3279 = vld [vmem:[#allocation11 + $0xf48] sm:$0xff]
    %v3280 = vld [vmem:[#allocation11 + $0xf50] sm:$0xff]
    %v3281 = vld [vmem:[#allocation11 + $0xf58] sm:$0xff]
    %v3282 = vld [vmem:[#allocation11 + $0xf60] sm:$0xff]
    %v3283 = vld [vmem:[#allocation11 + $0xf68] sm:$0xff]
    %v3284 = vld [vmem:[#allocation11 + $0xf70] sm:$0xff]
    %v3285 = vld [vmem:[#allocation11 + $0xf78] sm:$0xff]
    %v3286 = vld [vmem:[#allocation11 + $0xf80] sm:$0xff]
    %v3287 = vld [vmem:[#allocation11 + $0xf88] sm:$0xff]
    %v3288 = vld [vmem:[#allocation11 + $0xf90] sm:$0xff]
    %v3289 = vld [vmem:[#allocation11 + $0xf98] sm:$0xff]
    %v3290 = vld [vmem:[#allocation11 + $0xfa0] sm:$0xff]
    %v3291 = vld [vmem:[#allocation11 + $0xfa8] sm:$0xff]
    %v3292 = vld [vmem:[#allocation11 + $0xfb0] sm:$0xff]
    %v3293 = vld [vmem:[#allocation11 + $0xfb8] sm:$0xff]
    %v3294 = vld [vmem:[#allocation11 + $0xfc0] sm:$0xff]
    %v3295 = vld [vmem:[#allocation11 + $0xfc8] sm:$0xff]
    %v3296 = vld [vmem:[#allocation11 + $0xfd0] sm:$0xff]
    %v3297 = vld [vmem:[#allocation11 + $0xfd8] sm:$0xff]
    %v3298 = vld [vmem:[#allocation11 + $0xfe0] sm:$0xff]
    %v3299 = vld [vmem:[#allocation11 + $0xfe8] sm:$0xff]
    %v3300 = vld [vmem:[#allocation11 + $0xff0] sm:$0xff]
    %v3301 = vld [vmem:[#allocation11 + $0xff8] sm:$0xff]
    %v3302 = vld [vmem:[#allocation11 + $0x1000] sm:$0xff]
    %v3303 = vld [vmem:[#allocation11 + $0x1008] sm:$0xff]
    %v3304 = vld [vmem:[#allocation11 + $0x1010] sm:$0xff]
    %v3305 = vld [vmem:[#allocation11 + $0x1018] sm:$0xff]
    %v3306 = vld [vmem:[#allocation11 + $0x1020] sm:$0xff]
    %v3307 = vld [vmem:[#allocation11 + $0x1028] sm:$0xff]
    %v3308 = vld [vmem:[#allocation11 + $0x1030] sm:$0xff]
    %v3309 = vld [vmem:[#allocation11 + $0x1038] sm:$0xff]
    %v3310 = vld [vmem:[#allocation11 + $0x1040] sm:$0xff]
    %v3311 = vld [vmem:[#allocation11 + $0x1048] sm:$0xff]
    %v3312 = vld [vmem:[#allocation11 + $0x1050] sm:$0xff]
    %v3313 = vld [vmem:[#allocation11 + $0x1058] sm:$0xff]
    %v3314 = vld [vmem:[#allocation11 + $0x1060] sm:$0xff]
    %v3315 = vld [vmem:[#allocation11 + $0x1068] sm:$0xff]
    %v3316 = vld [vmem:[#allocation11 + $0x1070] sm:$0xff]
    %v3317 = vld [vmem:[#allocation11 + $0x1078] sm:$0xff]
    %v3318 = vld [vmem:[#allocation11 + $0x1080] sm:$0xff]
    %v3319 = vld [vmem:[#allocation11 + $0x1088] sm:$0xff]
    %v3320 = vld [vmem:[#allocation11 + $0x1090] sm:$0xff]
    %v3321 = vld [vmem:[#allocation11 + $0x1098] sm:$0xff]
    %v3322 = vld [vmem:[#allocation11 + $0x10a0] sm:$0xff]
    %v3323 = vld [vmem:[#allocation11 + $0x10a8] sm:$0xff]
    %v3324 = vld [vmem:[#allocation11 + $0x10b0] sm:$0xff]
    %v3325 = vld [vmem:[#allocation11 + $0x10b8] sm:$0xff]
    %v3326 = vld [vmem:[#allocation11 + $0x10c0] sm:$0xff]
    %v3327 = vld [vmem:[#allocation11 + $0x10c8] sm:$0xff]
    %v3328 = vld [vmem:[#allocation11 + $0x10d0] sm:$0xff]
    %v3329 = vld [vmem:[#allocation11 + $0x10d8] sm:$0xff]
    %v3330 = vld [vmem:[#allocation11 + $0x10e0] sm:$0xff]
    %v3331 = vld [vmem:[#allocation11 + $0x10e8] sm:$0xff]
    %v3332 = vld [vmem:[#allocation11 + $0x10f0] sm:$0xff]
    %v3333 = vld [vmem:[#allocation11 + $0x10f8] sm:$0xff]
    %v3334 = vld [vmem:[#allocation11 + $0x1100] sm:$0xff]
    %v3335 = vld [vmem:[#allocation11 + $0x1108] sm:$0xff]
    %v3336 = vld [vmem:[#allocation11 + $0x1110] sm:$0xff]
    %v3337 = vld [vmem:[#allocation11 + $0x1118] sm:$0xff]
    %v3338 = vld [vmem:[#allocation11 + $0x1120] sm:$0xff]
    %v3339 = vld [vmem:[#allocation11 + $0x1128] sm:$0xff]
    %v3340 = vld [vmem:[#allocation11 + $0x1130] sm:$0xff]
    %v3341 = vld [vmem:[#allocation11 + $0x1138] sm:$0xff]
    %v3342 = vld [vmem:[#allocation11 + $0x1140] sm:$0xff]
    %v3343 = vld [vmem:[#allocation11 + $0x1148] sm:$0xff]
    %v3344 = vld [vmem:[#allocation11 + $0x1150] sm:$0xff]
    %v3345 = vld [vmem:[#allocation11 + $0x1158] sm:$0xff]
    %v3346 = vld [vmem:[#allocation11 + $0x1160] sm:$0xff]
    %v3347 = vld [vmem:[#allocation11 + $0x1168] sm:$0xff]
    %v3348 = vld [vmem:[#allocation11 + $0x1170] sm:$0xff]
    %v3349 = vld [vmem:[#allocation11 + $0x1178] sm:$0xff]
    %v3350 = vld [vmem:[#allocation11 + $0x1180] sm:$0xff]
    %v3351 = vld [vmem:[#allocation11 + $0x1188] sm:$0xff]
    %v3352 = vld [vmem:[#allocation11 + $0x1190] sm:$0xff]
    %v3353 = vld [vmem:[#allocation11 + $0x1198] sm:$0xff]
    %v3354 = vld [vmem:[#allocation11 + $0x11a0] sm:$0xff]
    %v3355 = vld [vmem:[#allocation11 + $0x11a8] sm:$0xff]
    %v3356 = vld [vmem:[#allocation11 + $0x11b0] sm:$0xff]
    %v3357 = vld [vmem:[#allocation11 + $0x11b8] sm:$0xff]
    %v3358 = vld [vmem:[#allocation11 + $0x11c0] sm:$0xff]
    %v3359 = vld [vmem:[#allocation11 + $0x11c8] sm:$0xff]
    %v3360 = vld [vmem:[#allocation11 + $0x11d0] sm:$0xff]
    %v3361 = vld [vmem:[#allocation11 + $0x11d8] sm:$0xff]
    %v3362 = vld [vmem:[#allocation11 + $0x11e0] sm:$0xff]
    %v3363 = vld [vmem:[#allocation11 + $0x11e8] sm:$0xff]
    %v3364 = vld [vmem:[#allocation11 + $0x11f0] sm:$0xff]
    %v3365 = vld [vmem:[#allocation11 + $0x11f8] sm:$0xff]
    %v3366 = vld [vmem:[#allocation11 + $0x1200] sm:$0xff]
    %v3367 = vld [vmem:[#allocation11 + $0x1208] sm:$0xff]
    %v3368 = vld [vmem:[#allocation11 + $0x1210] sm:$0xff]
    %v3369 = vld [vmem:[#allocation11 + $0x1218] sm:$0xff]
    %v3370 = vld [vmem:[#allocation11 + $0x1220] sm:$0xff]
    %v3371 = vld [vmem:[#allocation11 + $0x1228] sm:$0xff]
    %v3372 = vld [vmem:[#allocation11 + $0x1230] sm:$0xff]
    %v3373 = vld [vmem:[#allocation11 + $0x1238] sm:$0xff]
    %v3374 = vld [vmem:[#allocation11 + $0x1240] sm:$0xff]
    %v3375 = vld [vmem:[#allocation11 + $0x1248] sm:$0xff]
    %v3376 = vld [vmem:[#allocation11 + $0x1250] sm:$0xff]
    %v3377 = vld [vmem:[#allocation11 + $0x1258] sm:$0xff]
    %v3378 = vld [vmem:[#allocation11 + $0x1260] sm:$0xff]
    %v3379 = vld [vmem:[#allocation11 + $0x1268] sm:$0xff]
    %v3380 = vld [vmem:[#allocation11 + $0x1270] sm:$0xff]
    %v3381 = vld [vmem:[#allocation11 + $0x1278] sm:$0xff]
    %v3382 = vld [vmem:[#allocation11 + $0x1280] sm:$0xff]
    %v3383 = vld [vmem:[#allocation11 + $0x1288] sm:$0xff]
    %v3384 = vld [vmem:[#allocation11 + $0x1290] sm:$0xff]
    %v3385 = vld [vmem:[#allocation11 + $0x1298] sm:$0xff]
    %v3386 = vld [vmem:[#allocation11 + $0x12a0] sm:$0xff]
    %v3387 = vld [vmem:[#allocation11 + $0x12a8] sm:$0xff]
    %v3388 = vld [vmem:[#allocation11 + $0x12b0] sm:$0xff]
    %v3389 = vld [vmem:[#allocation11 + $0x12b8] sm:$0xff]
    %v3390 = vld [vmem:[#allocation11 + $0x12c0] sm:$0xff]
    %v3391 = vld [vmem:[#allocation11 + $0x12c8] sm:$0xff]
    %v3392 = vld [vmem:[#allocation11 + $0x12d0] sm:$0xff]
    %v3393 = vld [vmem:[#allocation11 + $0x12d8] sm:$0xff]
    %v3394 = vld [vmem:[#allocation11 + $0x12e0] sm:$0xff]
    %v3395 = vld [vmem:[#allocation11 + $0x12e8] sm:$0xff]
    %v3396 = vld [vmem:[#allocation11 + $0x12f0] sm:$0xff]
    %v3397 = vld [vmem:[#allocation11 + $0x12f8] sm:$0xff]
    %v3398 = vld [vmem:[#allocation11 + $0x1300] sm:$0xff]
    %v3399 = vld [vmem:[#allocation11 + $0x1308] sm:$0xff]
    %v3400 = vld [vmem:[#allocation11 + $0x1310] sm:$0xff]
    %v3401 = vld [vmem:[#allocation11 + $0x1318] sm:$0xff]
    %v3402 = vld [vmem:[#allocation11 + $0x1320] sm:$0xff]
    %v3403 = vld [vmem:[#allocation11 + $0x1328] sm:$0xff]
    %v3404 = vld [vmem:[#allocation11 + $0x1330] sm:$0xff]
    %v3405 = vld [vmem:[#allocation11 + $0x1338] sm:$0xff]
    %v3406 = vld [vmem:[#allocation11 + $0x1340] sm:$0xff]
    %v3407 = vld [vmem:[#allocation11 + $0x1348] sm:$0xff]
    %v3408 = vld [vmem:[#allocation11 + $0x1350] sm:$0xff]
    %v3409 = vld [vmem:[#allocation11 + $0x1358] sm:$0xff]
    %v3410 = vld [vmem:[#allocation11 + $0x1360] sm:$0xff]
    %v3411 = vld [vmem:[#allocation11 + $0x1368] sm:$0xff]
    %v3412 = vld [vmem:[#allocation11 + $0x1370] sm:$0xff]
    %v3413 = vld [vmem:[#allocation11 + $0x1378] sm:$0xff]
    %v3414 = vld [vmem:[#allocation11 + $0x1380] sm:$0xff]
    %v3415 = vld [vmem:[#allocation11 + $0x1388] sm:$0xff]
    %v3416 = vld [vmem:[#allocation11 + $0x1390] sm:$0xff]
    %v3417 = vld [vmem:[#allocation11 + $0x1398] sm:$0xff]
    %v3418 = vld [vmem:[#allocation11 + $0x13a0] sm:$0xff]
    %v3419 = vld [vmem:[#allocation11 + $0x13a8] sm:$0xff]
    %v3420 = vld [vmem:[#allocation11 + $0x13b0] sm:$0xff]
    %v3421 = vld [vmem:[#allocation11 + $0x13b8] sm:$0xff]
    %v3422 = vld [vmem:[#allocation11 + $0x13c0] sm:$0xff]
    %v3423 = vld [vmem:[#allocation11 + $0x13c8] sm:$0xff]
    %v3424 = vld [vmem:[#allocation11 + $0x13d0] sm:$0xff]
    %v3425 = vld [vmem:[#allocation11 + $0x13d8] sm:$0xff]
    %v3426 = vld [vmem:[#allocation11 + $0x13e0] sm:$0xff]
    %v3427 = vld [vmem:[#allocation11 + $0x13e8] sm:$0xff]
    %v3428 = vld [vmem:[#allocation11 + $0x13f0] sm:$0xff]
    %v3429 = vld [vmem:[#allocation11 + $0x13f8] sm:$0xff]
    %v3430 = vld [vmem:[#allocation11 + $0x1400] sm:$0xff]
    %v3431 = vld [vmem:[#allocation11 + $0x1408] sm:$0xff]
    %v3432 = vld [vmem:[#allocation11 + $0x1410] sm:$0xff]
    %v3433 = vld [vmem:[#allocation11 + $0x1418] sm:$0xff]
    %v3434 = vld [vmem:[#allocation11 + $0x1420] sm:$0xff]
    %v3435 = vld [vmem:[#allocation11 + $0x1428] sm:$0xff]
    %v3436 = vld [vmem:[#allocation11 + $0x1430] sm:$0xff]
    %v3437 = vld [vmem:[#allocation11 + $0x1438] sm:$0xff]
    %v3438 = vld [vmem:[#allocation11 + $0x1440] sm:$0xff]
    %v3439 = vld [vmem:[#allocation11 + $0x1448] sm:$0xff]
    %v3440 = vld [vmem:[#allocation11 + $0x1450] sm:$0xff]
    %v3441 = vld [vmem:[#allocation11 + $0x1458] sm:$0xff]
    %v3442 = vld [vmem:[#allocation11 + $0x1460] sm:$0xff]
    %v3443 = vld [vmem:[#allocation11 + $0x1468] sm:$0xff]
    %v3444 = vld [vmem:[#allocation11 + $0x1470] sm:$0xff]
    %v3445 = vld [vmem:[#allocation11 + $0x1478] sm:$0xff]
    %v3446 = vld [vmem:[#allocation11 + $0x1480] sm:$0xff]
    %v3447 = vld [vmem:[#allocation11 + $0x1488] sm:$0xff]
    %v3448 = vld [vmem:[#allocation11 + $0x1490] sm:$0xff]
    %v3449 = vld [vmem:[#allocation11 + $0x1498] sm:$0xff]
    %v3450 = vld [vmem:[#allocation11 + $0x14a0] sm:$0xff]
    %v3451 = vld [vmem:[#allocation11 + $0x14a8] sm:$0xff]
    %v3452 = vld [vmem:[#allocation11 + $0x14b0] sm:$0xff]
    %v3453 = vld [vmem:[#allocation11 + $0x14b8] sm:$0xff]
    %v3454 = vld [vmem:[#allocation11 + $0x14c0] sm:$0xff]
    %v3455 = vld [vmem:[#allocation11 + $0x14c8] sm:$0xff]
    %v3456 = vld [vmem:[#allocation11 + $0x14d0] sm:$0xff]
    %v3457 = vld [vmem:[#allocation11 + $0x14d8] sm:$0xff]
    %v3458 = vld [vmem:[#allocation11 + $0x14e0] sm:$0xff]
    %v3459 = vld [vmem:[#allocation11 + $0x14e8] sm:$0xff]
    %v3460 = vld [vmem:[#allocation11 + $0x14f0] sm:$0xff]
    %v3461 = vld [vmem:[#allocation11 + $0x14f8] sm:$0xff]
    %v3462 = vld [vmem:[#allocation11 + $0x1500] sm:$0xff]
    %v3463 = vld [vmem:[#allocation11 + $0x1508] sm:$0xff]
    %v3464 = vld [vmem:[#allocation11 + $0x1510] sm:$0xff]
    %v3465 = vld [vmem:[#allocation11 + $0x1518] sm:$0xff]
    %v3466 = vld [vmem:[#allocation11 + $0x1520] sm:$0xff]
    %v3467 = vld [vmem:[#allocation11 + $0x1528] sm:$0xff]
    %v3468 = vld [vmem:[#allocation11 + $0x1530] sm:$0xff]
    %v3469 = vld [vmem:[#allocation11 + $0x1538] sm:$0xff]
    %v3470 = vld [vmem:[#allocation11 + $0x1540] sm:$0xff]
    %v3471 = vld [vmem:[#allocation11 + $0x1548] sm:$0xff]
    %v3472 = vld [vmem:[#allocation11 + $0x1550] sm:$0xff]
    %v3473 = vld [vmem:[#allocation11 + $0x1558] sm:$0xff]
    %v3474 = vld [vmem:[#allocation11 + $0x1560] sm:$0xff]
    %v3475 = vld [vmem:[#allocation11 + $0x1568] sm:$0xff]
    %v3476 = vld [vmem:[#allocation11 + $0x1570] sm:$0xff]
    %v3477 = vld [vmem:[#allocation11 + $0x1578] sm:$0xff]
    %v3478 = vld [vmem:[#allocation11 + $0x1580] sm:$0xff]
    %v3479 = vld [vmem:[#allocation11 + $0x1588] sm:$0xff]
    %v3480 = vld [vmem:[#allocation11 + $0x1590] sm:$0xff]
    %v3481 = vld [vmem:[#allocation11 + $0x1598] sm:$0xff]
    %v3482 = vld [vmem:[#allocation11 + $0x15a0] sm:$0xff]
    %v3483 = vld [vmem:[#allocation11 + $0x15a8] sm:$0xff]
    %v3484 = vld [vmem:[#allocation11 + $0x15b0] sm:$0xff]
    %v3485 = vld [vmem:[#allocation11 + $0x15b8] sm:$0xff]
    %v3486 = vld [vmem:[#allocation11 + $0x15c0] sm:$0xff]
    %v3487 = vld [vmem:[#allocation11 + $0x15c8] sm:$0xff]
    %v3488 = vld [vmem:[#allocation11 + $0x15d0] sm:$0xff]
    %v3489 = vld [vmem:[#allocation11 + $0x15d8] sm:$0xff]
    %v3490 = vld [vmem:[#allocation11 + $0x15e0] sm:$0xff]
    %v3491 = vld [vmem:[#allocation11 + $0x15e8] sm:$0xff]
    %v3492 = vld [vmem:[#allocation11 + $0x15f0] sm:$0xff]
    %v3493 = vld [vmem:[#allocation11 + $0x15f8] sm:$0xff]
    %v3494 = vld [vmem:[#allocation11 + $0x1600] sm:$0xff]
    %v3495 = vld [vmem:[#allocation11 + $0x1608] sm:$0xff]
    %v3496 = vld [vmem:[#allocation11 + $0x1610] sm:$0xff]
    %v3497 = vld [vmem:[#allocation11 + $0x1618] sm:$0xff]
    %v3498 = vld [vmem:[#allocation11 + $0x1620] sm:$0xff]
    %v3499 = vld [vmem:[#allocation11 + $0x1628] sm:$0xff]
    %v3500 = vld [vmem:[#allocation11 + $0x1630] sm:$0xff]
    %v3501 = vld [vmem:[#allocation11 + $0x1638] sm:$0xff]
    %v3502 = vld [vmem:[#allocation11 + $0x1640] sm:$0xff]
    %v3503 = vld [vmem:[#allocation11 + $0x1648] sm:$0xff]
    %v3504 = vld [vmem:[#allocation11 + $0x1650] sm:$0xff]
    %v3505 = vld [vmem:[#allocation11 + $0x1658] sm:$0xff]
    %v3506 = vld [vmem:[#allocation11 + $0x1660] sm:$0xff]
    %v3507 = vld [vmem:[#allocation11 + $0x1668] sm:$0xff]
    %v3508 = vld [vmem:[#allocation11 + $0x1670] sm:$0xff]
    %v3509 = vld [vmem:[#allocation11 + $0x1678] sm:$0xff]
    %v3510 = vld [vmem:[#allocation11 + $0x1680] sm:$0xff]
    %v3511 = vld [vmem:[#allocation11 + $0x1688] sm:$0xff]
    %v3512 = vld [vmem:[#allocation11 + $0x1690] sm:$0xff]
    %v3513 = vld [vmem:[#allocation11 + $0x1698] sm:$0xff]
    %v3514 = vld [vmem:[#allocation11 + $0x16a0] sm:$0xff]
    %v3515 = vld [vmem:[#allocation11 + $0x16a8] sm:$0xff]
    %v3516 = vld [vmem:[#allocation11 + $0x16b0] sm:$0xff]
    %v3517 = vld [vmem:[#allocation11 + $0x16b8] sm:$0xff]
    %v3518 = vld [vmem:[#allocation11 + $0x16c0] sm:$0xff]
    %v3519 = vld [vmem:[#allocation11 + $0x16c8] sm:$0xff]
    %v3520 = vld [vmem:[#allocation11 + $0x16d0] sm:$0xff]
    %v3521 = vld [vmem:[#allocation11 + $0x16d8] sm:$0xff]
    %v3522 = vld [vmem:[#allocation11 + $0x16e0] sm:$0xff]
    %v3523 = vld [vmem:[#allocation11 + $0x16e8] sm:$0xff]
    %v3524 = vld [vmem:[#allocation11 + $0x16f0] sm:$0xff]
    %v3525 = vld [vmem:[#allocation11 + $0x16f8] sm:$0xff]
    %v3526 = vld [vmem:[#allocation11 + $0x1700] sm:$0xff]
    %v3527 = vld [vmem:[#allocation11 + $0x1708] sm:$0xff]
    %v3528 = vld [vmem:[#allocation11 + $0x1710] sm:$0xff]
    %v3529 = vld [vmem:[#allocation11 + $0x1718] sm:$0xff]
    %v3530 = vld [vmem:[#allocation11 + $0x1720] sm:$0xff]
    %v3531 = vld [vmem:[#allocation11 + $0x1728] sm:$0xff]
    %v3532 = vld [vmem:[#allocation11 + $0x1730] sm:$0xff]
    %v3533 = vld [vmem:[#allocation11 + $0x1738] sm:$0xff]
    %v3534 = vld [vmem:[#allocation11 + $0x1740] sm:$0xff]
    %v3535 = vld [vmem:[#allocation11 + $0x1748] sm:$0xff]
    %v3536 = vld [vmem:[#allocation11 + $0x1750] sm:$0xff]
    %v3537 = vld [vmem:[#allocation11 + $0x1758] sm:$0xff]
    %v3538 = vld [vmem:[#allocation11 + $0x1760] sm:$0xff]
    %v3539 = vld [vmem:[#allocation11 + $0x1768] sm:$0xff]
    %v3540 = vld [vmem:[#allocation11 + $0x1770] sm:$0xff]
    %v3541 = vld [vmem:[#allocation11 + $0x1778] sm:$0xff]
    %v3542 = vld [vmem:[#allocation11 + $0x1780] sm:$0xff]
    %v3543 = vld [vmem:[#allocation11 + $0x1788] sm:$0xff]
    %v3544 = vld [vmem:[#allocation11 + $0x1790] sm:$0xff]
    %v3545 = vld [vmem:[#allocation11 + $0x1798] sm:$0xff]
    %v3546 = vld [vmem:[#allocation11 + $0x17a0] sm:$0xff]
    %v3547 = vld [vmem:[#allocation11 + $0x17a8] sm:$0xff]
    %v3548 = vld [vmem:[#allocation11 + $0x17b0] sm:$0xff]
    %v3549 = vld [vmem:[#allocation11 + $0x17b8] sm:$0xff]
    %v3550 = vld [vmem:[#allocation11 + $0x17c0] sm:$0xff]
    %v3551 = vld [vmem:[#allocation11 + $0x17c8] sm:$0xff]
    %v3552 = vld [vmem:[#allocation11 + $0x17d0] sm:$0xff]
    %v3553 = vld [vmem:[#allocation11 + $0x17d8] sm:$0xff]
    %v3554 = vld [vmem:[#allocation11 + $0x17e0] sm:$0xff]
    %v3555 = vld [vmem:[#allocation11 + $0x17e8] sm:$0xff]
    %v3556 = vld [vmem:[#allocation11 + $0x17f0] sm:$0xff]
    %v3557 = vld [vmem:[#allocation11 + $0x17f8] sm:$0xff]
    %v3558 = vld [vmem:[#allocation11 + $0x1800] sm:$0xff]
    %v3559 = vld [vmem:[#allocation11 + $0x1808] sm:$0xff]
    %v3560 = vld [vmem:[#allocation11 + $0x1810] sm:$0xff]
    %v3561 = vld [vmem:[#allocation11 + $0x1818] sm:$0xff]
    %v3562 = vld [vmem:[#allocation11 + $0x1820] sm:$0xff]
    %v3563 = vld [vmem:[#allocation11 + $0x1828] sm:$0xff]
    %v3564 = vld [vmem:[#allocation11 + $0x1830] sm:$0xff]
    %v3565 = vld [vmem:[#allocation11 + $0x1838] sm:$0xff]
    %v3566 = vld [vmem:[#allocation11 + $0x1840] sm:$0xff]
    %v3567 = vld [vmem:[#allocation11 + $0x1848] sm:$0xff]
    %v3568 = vld [vmem:[#allocation11 + $0x1850] sm:$0xff]
    %v3569 = vld [vmem:[#allocation11 + $0x1858] sm:$0xff]
    %v3570 = vld [vmem:[#allocation11 + $0x1860] sm:$0xff]
    %v3571 = vld [vmem:[#allocation11 + $0x1868] sm:$0xff]
    %v3572 = vld [vmem:[#allocation11 + $0x1870] sm:$0xff]
    %v3573 = vld [vmem:[#allocation11 + $0x1878] sm:$0xff]
    %v3574 = vld [vmem:[#allocation11 + $0x1880] sm:$0xff]
    %v3575 = vld [vmem:[#allocation11 + $0x1888] sm:$0xff]
    %v3576 = vld [vmem:[#allocation11 + $0x1890] sm:$0xff]
    %v3577 = vld [vmem:[#allocation11 + $0x1898] sm:$0xff]
    %v3578 = vld [vmem:[#allocation11 + $0x18a0] sm:$0xff]
    %v3579 = vld [vmem:[#allocation11 + $0x18a8] sm:$0xff]
    %v3580 = vld [vmem:[#allocation11 + $0x18b0] sm:$0xff]
    %v3581 = vld [vmem:[#allocation11 + $0x18b8] sm:$0xff]
    %v3582 = vld [vmem:[#allocation11 + $0x18c0] sm:$0xff]
    %v3583 = vld [vmem:[#allocation11 + $0x18c8] sm:$0xff]
    %v3584 = vld [vmem:[#allocation11 + $0x18d0] sm:$0xff]
    %v3585 = vld [vmem:[#allocation11 + $0x18d8] sm:$0xff]
    %v3586 = vld [vmem:[#allocation11 + $0x18e0] sm:$0xff]
    %v3587 = vld [vmem:[#allocation11 + $0x18e8] sm:$0xff]
    %v3588 = vld [vmem:[#allocation11 + $0x18f0] sm:$0xff]
    %v3589 = vld [vmem:[#allocation11 + $0x18f8] sm:$0xff]
    %v3590 = vld [vmem:[#allocation11 + $0x1900] sm:$0xff]
    %v3591 = vld [vmem:[#allocation11 + $0x1908] sm:$0xff]
    %v3592 = vld [vmem:[#allocation11 + $0x1910] sm:$0xff]
    %v3593 = vld [vmem:[#allocation11 + $0x1918] sm:$0xff]
    %v3594 = vld [vmem:[#allocation11 + $0x1920] sm:$0xff]
    %v3595 = vld [vmem:[#allocation11 + $0x1928] sm:$0xff]
    %v3596 = vld [vmem:[#allocation11 + $0x1930] sm:$0xff]
    %v3597 = vld [vmem:[#allocation11 + $0x1938] sm:$0xff]
    %v3598 = vld [vmem:[#allocation11 + $0x1940] sm:$0xff]
    %v3599 = vld [vmem:[#allocation11 + $0x1948] sm:$0xff]
    %v3600 = vld [vmem:[#allocation11 + $0x1950] sm:$0xff]
    %v3601 = vld [vmem:[#allocation11 + $0x1958] sm:$0xff]
    %v3602 = vld [vmem:[#allocation11 + $0x1960] sm:$0xff]
    %v3603 = vld [vmem:[#allocation11 + $0x1968] sm:$0xff]
    %v3604 = vld [vmem:[#allocation11 + $0x1970] sm:$0xff]
    %v3605 = vld [vmem:[#allocation11 + $0x1978] sm:$0xff]
    %v3606 = vld [vmem:[#allocation11 + $0x1980] sm:$0xff]
    %v3607 = vld [vmem:[#allocation11 + $0x1988] sm:$0xff]
    %v3608 = vld [vmem:[#allocation11 + $0x1990] sm:$0xff]
    %v3609 = vld [vmem:[#allocation11 + $0x1998] sm:$0xff]
    %v3610 = vld [vmem:[#allocation11 + $0x19a0] sm:$0xff]
    %v3611 = vld [vmem:[#allocation11 + $0x19a8] sm:$0xff]
    %v3612 = vld [vmem:[#allocation11 + $0x19b0] sm:$0xff]
    %v3613 = vld [vmem:[#allocation11 + $0x19b8] sm:$0xff]
    %v3614 = vld [vmem:[#allocation11 + $0x19c0] sm:$0xff]
    %v3615 = vld [vmem:[#allocation11 + $0x19c8] sm:$0xff]
    %v3616 = vld [vmem:[#allocation11 + $0x19d0] sm:$0xff]
    %v3617 = vld [vmem:[#allocation11 + $0x19d8] sm:$0xff]
    %v3618 = vld [vmem:[#allocation11 + $0x19e0] sm:$0xff]
    %v3619 = vld [vmem:[#allocation11 + $0x19e8] sm:$0xff]
    %v3620 = vld [vmem:[#allocation11 + $0x19f0] sm:$0xff]
    %v3621 = vld [vmem:[#allocation11 + $0x19f8] sm:$0xff]
    %v3622 = vld [vmem:[#allocation11 + $0x1a00] sm:$0xff]
    %v3623 = vld [vmem:[#allocation11 + $0x1a08] sm:$0xff]
    %v3624 = vld [vmem:[#allocation11 + $0x1a10] sm:$0xff]
    %v3625 = vld [vmem:[#allocation11 + $0x1a18] sm:$0xff]
    %v3626 = vld [vmem:[#allocation11 + $0x1a20] sm:$0xff]
    %v3627 = vld [vmem:[#allocation11 + $0x1a28] sm:$0xff]
    %v3628 = vld [vmem:[#allocation11 + $0x1a30] sm:$0xff]
    %v3629 = vld [vmem:[#allocation11 + $0x1a38] sm:$0xff]
    %v3630 = vld [vmem:[#allocation11 + $0x1a40] sm:$0xff]
    %v3631 = vld [vmem:[#allocation11 + $0x1a48] sm:$0xff]
    %v3632 = vld [vmem:[#allocation11 + $0x1a50] sm:$0xff]
    %v3633 = vld [vmem:[#allocation11 + $0x1a58] sm:$0xff]
    %v3634 = vld [vmem:[#allocation11 + $0x1a60] sm:$0xff]
    %v3635 = vld [vmem:[#allocation11 + $0x1a68] sm:$0xff]
    %v3636 = vld [vmem:[#allocation11 + $0x1a70] sm:$0xff]
    %v3637 = vld [vmem:[#allocation11 + $0x1a78] sm:$0xff]
    %v3638 = vld [vmem:[#allocation11 + $0x1a80] sm:$0xff]
    %v3639 = vld [vmem:[#allocation11 + $0x1a88] sm:$0xff]
    %v3640 = vld [vmem:[#allocation11 + $0x1a90] sm:$0xff]
    %v3641 = vld [vmem:[#allocation11 + $0x1a98] sm:$0xff]
    %v3642 = vld [vmem:[#allocation11 + $0x1aa0] sm:$0xff]
    %v3643 = vld [vmem:[#allocation11 + $0x1aa8] sm:$0xff]
    %v3644 = vld [vmem:[#allocation11 + $0x1ab0] sm:$0xff]
    %v3645 = vld [vmem:[#allocation11 + $0x1ab8] sm:$0xff]
    %v3646 = vld [vmem:[#allocation11 + $0x1ac0] sm:$0xff]
    %v3647 = vld [vmem:[#allocation11 + $0x1ac8] sm:$0xff]
    %v3648 = vld [vmem:[#allocation11 + $0x1ad0] sm:$0xff]
    %v3649 = vld [vmem:[#allocation11 + $0x1ad8] sm:$0xff]
    %v3650 = vld [vmem:[#allocation11 + $0x1ae0] sm:$0xff]
    %v3651 = vld [vmem:[#allocation11 + $0x1ae8] sm:$0xff]
    %v3652 = vld [vmem:[#allocation11 + $0x1af0] sm:$0xff]
    %v3653 = vld [vmem:[#allocation11 + $0x1af8] sm:$0xff]
    %v3654 = vld [vmem:[#allocation11 + $0x1b00] sm:$0xff]
    %v3655 = vld [vmem:[#allocation11 + $0x1b08] sm:$0xff]
    %v3656 = vld [vmem:[#allocation11 + $0x1b10] sm:$0xff]
    %v3657 = vld [vmem:[#allocation11 + $0x1b18] sm:$0xff]
    %v3658 = vld [vmem:[#allocation11 + $0x1b20] sm:$0xff]
    %v3659 = vld [vmem:[#allocation11 + $0x1b28] sm:$0xff]
    %v3660 = vld [vmem:[#allocation11 + $0x1b30] sm:$0xff]
    %v3661 = vld [vmem:[#allocation11 + $0x1b38] sm:$0xff]
    %v3662 = vld [vmem:[#allocation11 + $0x1b40] sm:$0xff]
    %v3663 = vld [vmem:[#allocation11 + $0x1b48] sm:$0xff]
    %v3664 = vld [vmem:[#allocation11 + $0x1b50] sm:$0xff]
    %v3665 = vld [vmem:[#allocation11 + $0x1b58] sm:$0xff]
    %v3666 = vld [vmem:[#allocation11 + $0x1b60] sm:$0xff]
    %v3667 = vld [vmem:[#allocation11 + $0x1b68] sm:$0xff]
    %v3668 = vld [vmem:[#allocation11 + $0x1b70] sm:$0xff]
    %v3669 = vld [vmem:[#allocation11 + $0x1b78] sm:$0xff]
    %v3670 = vld [vmem:[#allocation11 + $0x1b80] sm:$0xff]
    %v3671 = vld [vmem:[#allocation11 + $0x1b88] sm:$0xff]
    %v3672 = vld [vmem:[#allocation11 + $0x1b90] sm:$0xff]
    %v3673 = vld [vmem:[#allocation11 + $0x1b98] sm:$0xff]
    %v3674 = vld [vmem:[#allocation11 + $0x1ba0] sm:$0xff]
    %v3675 = vld [vmem:[#allocation11 + $0x1ba8] sm:$0xff]
    %v3676 = vld [vmem:[#allocation11 + $0x1bb0] sm:$0xff]
    %v3677 = vld [vmem:[#allocation11 + $0x1bb8] sm:$0xff]
    %v3678 = vld [vmem:[#allocation11 + $0x1bc0] sm:$0xff]
    %v3679 = vld [vmem:[#allocation11 + $0x1bc8] sm:$0xff]
    %v3680 = vld [vmem:[#allocation11 + $0x1bd0] sm:$0xff]
    %v3681 = vld [vmem:[#allocation11 + $0x1bd8] sm:$0xff]
    %v3682 = vld [vmem:[#allocation11 + $0x1be0] sm:$0xff]
    %v3683 = vld [vmem:[#allocation11 + $0x1be8] sm:$0xff]
    %v3684 = vld [vmem:[#allocation11 + $0x1bf0] sm:$0xff]
    %v3685 = vld [vmem:[#allocation11 + $0x1bf8] sm:$0xff]
    %v3686 = vld [vmem:[#allocation11 + $0x1c00] sm:$0xff]
    %v3687 = vld [vmem:[#allocation11 + $0x1c08] sm:$0xff]
    %v3688 = vld [vmem:[#allocation11 + $0x1c10] sm:$0xff]
    %v3689 = vld [vmem:[#allocation11 + $0x1c18] sm:$0xff]
    %v3690 = vld [vmem:[#allocation11 + $0x1c20] sm:$0xff]
    %v3691 = vld [vmem:[#allocation11 + $0x1c28] sm:$0xff]
    %v3692 = vld [vmem:[#allocation11 + $0x1c30] sm:$0xff]
    %v3693 = vld [vmem:[#allocation11 + $0x1c38] sm:$0xff]
    %v3694 = vld [vmem:[#allocation11 + $0x1c40] sm:$0xff]
    %v3695 = vld [vmem:[#allocation11 + $0x1c48] sm:$0xff]
    %v3696 = vld [vmem:[#allocation11 + $0x1c50] sm:$0xff]
    %v3697 = vld [vmem:[#allocation11 + $0x1c58] sm:$0xff]
    %v3698 = vld [vmem:[#allocation11 + $0x1c60] sm:$0xff]
    %v3699 = vld [vmem:[#allocation11 + $0x1c68] sm:$0xff]
    %v3700 = vld [vmem:[#allocation11 + $0x1c70] sm:$0xff]
    %v3701 = vld [vmem:[#allocation11 + $0x1c78] sm:$0xff]
    %v3702 = vld [vmem:[#allocation11 + $0x1c80] sm:$0xff]
    %v3703 = vld [vmem:[#allocation11 + $0x1c88] sm:$0xff]
    %v3704 = vld [vmem:[#allocation11 + $0x1c90] sm:$0xff]
    %v3705 = vld [vmem:[#allocation11 + $0x1c98] sm:$0xff]
    %v3706 = vld [vmem:[#allocation11 + $0x1ca0] sm:$0xff]
    %v3707 = vld [vmem:[#allocation11 + $0x1ca8] sm:$0xff]
    %v3708 = vld [vmem:[#allocation11 + $0x1cb0] sm:$0xff]
    %v3709 = vld [vmem:[#allocation11 + $0x1cb8] sm:$0xff]
    %v3710 = vld [vmem:[#allocation11 + $0x1cc0] sm:$0xff]
    %v3711 = vld [vmem:[#allocation11 + $0x1cc8] sm:$0xff]
    %v3712 = vld [vmem:[#allocation11 + $0x1cd0] sm:$0xff]
    %v3713 = vld [vmem:[#allocation11 + $0x1cd8] sm:$0xff]
    %v3714 = vld [vmem:[#allocation11 + $0x1ce0] sm:$0xff]
    %v3715 = vld [vmem:[#allocation11 + $0x1ce8] sm:$0xff]
    %v3716 = vld [vmem:[#allocation11 + $0x1cf0] sm:$0xff]
    %v3717 = vld [vmem:[#allocation11 + $0x1cf8] sm:$0xff]
    %v3718 = vld [vmem:[#allocation11 + $0x1d00] sm:$0xff]
    %v3719 = vld [vmem:[#allocation11 + $0x1d08] sm:$0xff]
    %v3720 = vld [vmem:[#allocation11 + $0x1d10] sm:$0xff]
    %v3721 = vld [vmem:[#allocation11 + $0x1d18] sm:$0xff]
    %v3722 = vld [vmem:[#allocation11 + $0x1d20] sm:$0xff]
    %v3723 = vld [vmem:[#allocation11 + $0x1d28] sm:$0xff]
    %v3724 = vld [vmem:[#allocation11 + $0x1d30] sm:$0xff]
    %v3725 = vld [vmem:[#allocation11 + $0x1d38] sm:$0xff]
    %v3726 = vld [vmem:[#allocation11 + $0x1d40] sm:$0xff]
    %v3727 = vld [vmem:[#allocation11 + $0x1d48] sm:$0xff]
    %v3728 = vld [vmem:[#allocation11 + $0x1d50] sm:$0xff]
    %v3729 = vld [vmem:[#allocation11 + $0x1d58] sm:$0xff]
    %v3730 = vld [vmem:[#allocation11 + $0x1d60] sm:$0xff]
    %v3731 = vld [vmem:[#allocation11 + $0x1d68] sm:$0xff]
    %v3732 = vld [vmem:[#allocation11 + $0x1d70] sm:$0xff]
    %v3733 = vld [vmem:[#allocation11 + $0x1d78] sm:$0xff]
    %v3734 = vld [vmem:[#allocation11 + $0x1d80] sm:$0xff]
    %v3735 = vld [vmem:[#allocation11 + $0x1d88] sm:$0xff]
    %v3736 = vld [vmem:[#allocation11 + $0x1d90] sm:$0xff]
    %v3737 = vld [vmem:[#allocation11 + $0x1d98] sm:$0xff]
    %v3738 = vld [vmem:[#allocation11 + $0x1da0] sm:$0xff]
    %v3739 = vld [vmem:[#allocation11 + $0x1da8] sm:$0xff]
    %v3740 = vld [vmem:[#allocation11 + $0x1db0] sm:$0xff]
    %v3741 = vld [vmem:[#allocation11 + $0x1db8] sm:$0xff]
    %v3742 = vld [vmem:[#allocation11 + $0x1dc0] sm:$0xff]
    %v3743 = vld [vmem:[#allocation11 + $0x1dc8] sm:$0xff]
    %v3744 = vld [vmem:[#allocation11 + $0x1dd0] sm:$0xff]
    %v3745 = vld [vmem:[#allocation11 + $0x1dd8] sm:$0xff]
    %v3746 = vld [vmem:[#allocation11 + $0x1de0] sm:$0xff]
    %v3747 = vld [vmem:[#allocation11 + $0x1de8] sm:$0xff]
    %v3748 = vld [vmem:[#allocation11 + $0x1df0] sm:$0xff]
    %v3749 = vld [vmem:[#allocation11 + $0x1df8] sm:$0xff]
    %v3750 = vld [vmem:[#allocation11 + $0x1e00] sm:$0xff]
    %v3751 = vld [vmem:[#allocation11 + $0x1e08] sm:$0xff]
    %v3752 = vld [vmem:[#allocation11 + $0x1e10] sm:$0xff]
    %v3753 = vld [vmem:[#allocation11 + $0x1e18] sm:$0xff]
    %v3754 = vld [vmem:[#allocation11 + $0x1e20] sm:$0xff]
    %v3755 = vld [vmem:[#allocation11 + $0x1e28] sm:$0xff]
    %v3756 = vld [vmem:[#allocation11 + $0x1e30] sm:$0xff]
    %v3757 = vld [vmem:[#allocation11 + $0x1e38] sm:$0xff]
    %v3758 = vld [vmem:[#allocation11 + $0x1e40] sm:$0xff]
    %v3759 = vld [vmem:[#allocation11 + $0x1e48] sm:$0xff]
    %v3760 = vld [vmem:[#allocation11 + $0x1e50] sm:$0xff]
    %v3761 = vld [vmem:[#allocation11 + $0x1e58] sm:$0xff]
    %v3762 = vld [vmem:[#allocation11 + $0x1e60] sm:$0xff]
    %v3763 = vld [vmem:[#allocation11 + $0x1e68] sm:$0xff]
    %v3764 = vld [vmem:[#allocation11 + $0x1e70] sm:$0xff]
    %v3765 = vld [vmem:[#allocation11 + $0x1e78] sm:$0xff]
    %v3766 = vld [vmem:[#allocation11 + $0x1e80] sm:$0xff]
    %v3767 = vld [vmem:[#allocation11 + $0x1e88] sm:$0xff]
    %v3768 = vld [vmem:[#allocation11 + $0x1e90] sm:$0xff]
    %v3769 = vld [vmem:[#allocation11 + $0x1e98] sm:$0xff]
    %v3770 = vld [vmem:[#allocation11 + $0x1ea0] sm:$0xff]
    %v3771 = vld [vmem:[#allocation11 + $0x1ea8] sm:$0xff]
    %v3772 = vld [vmem:[#allocation11 + $0x1eb0] sm:$0xff]
    %v3773 = vld [vmem:[#allocation11 + $0x1eb8] sm:$0xff]
    %v3774 = vld [vmem:[#allocation11 + $0x1ec0] sm:$0xff]
    %v3775 = vld [vmem:[#allocation11 + $0x1ec8] sm:$0xff]
    %v3776 = vld [vmem:[#allocation11 + $0x1ed0] sm:$0xff]
    %v3777 = vld [vmem:[#allocation11 + $0x1ed8] sm:$0xff]
    %v3778 = vld [vmem:[#allocation11 + $0x1ee0] sm:$0xff]
    %v3779 = vld [vmem:[#allocation11 + $0x1ee8] sm:$0xff]
    %v3780 = vld [vmem:[#allocation11 + $0x1ef0] sm:$0xff]
    %v3781 = vld [vmem:[#allocation11 + $0x1ef8] sm:$0xff]
    %v3782 = vld [vmem:[#allocation11 + $0x1f00] sm:$0xff]
    %v3783 = vld [vmem:[#allocation11 + $0x1f08] sm:$0xff]
    %v3784 = vld [vmem:[#allocation11 + $0x1f10] sm:$0xff]
    %v3785 = vld [vmem:[#allocation11 + $0x1f18] sm:$0xff]
    %v3786 = vld [vmem:[#allocation11 + $0x1f20] sm:$0xff]
    %v3787 = vld [vmem:[#allocation11 + $0x1f28] sm:$0xff]
    %v3788 = vld [vmem:[#allocation11 + $0x1f30] sm:$0xff]
    %v3789 = vld [vmem:[#allocation11 + $0x1f38] sm:$0xff]
    %v3790 = vld [vmem:[#allocation11 + $0x1f40] sm:$0xff]
    %v3791 = vld [vmem:[#allocation11 + $0x1f48] sm:$0xff]
    %v3792 = vld [vmem:[#allocation11 + $0x1f50] sm:$0xff]
    %v3793 = vld [vmem:[#allocation11 + $0x1f58] sm:$0xff]
    %v3794 = vld [vmem:[#allocation11 + $0x1f60] sm:$0xff]
    %v3795 = vld [vmem:[#allocation11 + $0x1f68] sm:$0xff]
    %v3796 = vld [vmem:[#allocation11 + $0x1f70] sm:$0xff]
    %v3797 = vld [vmem:[#allocation11 + $0x1f78] sm:$0xff]
    %v3798 = vld [vmem:[#allocation11 + $0x1f80] sm:$0xff]
    %v3799 = vld [vmem:[#allocation11 + $0x1f88] sm:$0xff]
    %v3800 = vld [vmem:[#allocation11 + $0x1f90] sm:$0xff]
    %v3801 = vld [vmem:[#allocation11 + $0x1f98] sm:$0xff]
    %v3802 = vld [vmem:[#allocation11 + $0x1fa0] sm:$0xff]
    %v3803 = vld [vmem:[#allocation11 + $0x1fa8] sm:$0xff]
    %v3804 = vld [vmem:[#allocation11 + $0x1fb0] sm:$0xff]
    %v3805 = vld [vmem:[#allocation11 + $0x1fb8] sm:$0xff]
    %v3806 = vld [vmem:[#allocation11 + $0x1fc0] sm:$0xff]
    %v3807 = vld [vmem:[#allocation11 + $0x1fc8] sm:$0xff]
    %v3808 = vld [vmem:[#allocation11 + $0x1fd0] sm:$0xff]
    %v3809 = vld [vmem:[#allocation11 + $0x1fd8] sm:$0xff]
    %v3810 = vld [vmem:[#allocation11 + $0x1fe0] sm:$0xff]
    %v3811 = vld [vmem:[#allocation11 + $0x1fe8] sm:$0xff]
    %v3812 = vld [vmem:[#allocation11 + $0x1ff0] sm:$0xff]
    %v3813 = vld [vmem:[#allocation11 + $0x1ff8] sm:$0xff]
    %v3814 = vld [vmem:[#allocation13] sm:$0xff]
    %v3816 = vlaneseq
    %v3817 = vshrl.u32 %v3816, 7
    %v3818 = vsub.s32 0, %v3817
    %v3819 = vrot.slane %v3814, %v3818
    %v3820 = vlaneseq
    %v3821 = vshrl.u32 %v3820, 7
    %v3822 = vsub.s32 1, %v3821
    %v3823 = vrot.slane %v3814, %v3822
    %v3824 = vlaneseq
    %v3825 = vshrl.u32 %v3824, 7
    %v3826 = vsub.s32 2, %v3825
    %v3827 = vrot.slane %v3814, %v3826
    %v3828 = vlaneseq
    %v3829 = vshrl.u32 %v3828, 7
    %v3830 = vsub.s32 3, %v3829
    %v3831 = vrot.slane %v3814, %v3830
    %v3832 = vlaneseq
    %v3833 = vshrl.u32 %v3832, 7
    %v3834 = vsub.s32 4, %v3833
    %v3835 = vrot.slane %v3814, %v3834
    %v3836 = vlaneseq
    %v3837 = vshrl.u32 %v3836, 7
    %v3838 = vsub.s32 5, %v3837
    %v3839 = vrot.slane %v3814, %v3838
    %v3840 = vlaneseq
    %v3841 = vshrl.u32 %v3840, 7
    %v3842 = vsub.s32 6, %v3841
    %v3843 = vrot.slane %v3814, %v3842
    %v3844 = vlaneseq
    %v3845 = vshrl.u32 %v3844, 7
    %v3846 = vsub.s32 7, %v3845
    %v3847 = vrot.slane %v3814, %v3846
    %3856 = vmatprep.subr.mxu0 %v2911
    %3857 = vmatpush1.msra.mxu0 %v2910
    %3858 = vmatprep.subr.mxu0 %v2903
    %3859 = vmatpush1.msra.mxu0 %v2902
    %3860 = vmatprep.subr.mxu0 %v2895
    %3861 = vmatpush1.msra.mxu0 %v2894
    %3862 = vmatprep.subr.mxu0 %v2887
    %3863 = vmatpush1.msra.mxu0 %v2886
    %3864 = vmatprep.subr.mxu0 %v2879
    %3865 = vmatpush1.msra.mxu0 %v2878
    %3866 = vmatprep.subr.mxu0 %v2871
    %3867 = vmatpush1.msra.mxu0 %v2870
    %3868 = vmatprep.subr.mxu0 %v2863
    %3869 = vmatpush1.msra.mxu0 %v2862
    %3870 = vmatprep.subr.mxu0 %v2855
    %3871 = vmatpush1.msra.mxu0 %v2854
    %3872 = vmatprep.subr.mxu0 %v2847
    %3873 = vmatpush1.msra.mxu0 %v2846
    %3874 = vmatprep.subr.mxu0 %v2839
    %3875 = vmatpush1.msra.mxu0 %v2838
    %3876 = vmatprep.subr.mxu0 %v2831
    %3877 = vmatpush1.msra.mxu0 %v2830
    %3878 = vmatprep.subr.mxu0 %v2823
    %3879 = vmatpush1.msra.mxu0 %v2822
    %3880 = vmatprep.subr.mxu0 %v2815
    %3881 = vmatpush1.msra.mxu0 %v2814
    %3882 = vmatprep.subr.mxu0 %v2807
    %3883 = vmatpush1.msra.mxu0 %v2806
    %3884 = vmatprep.subr.mxu0 %v2799
    %3885 = vmatpush1.msra.mxu0 %v2798
    %3886 = vmatprep.subr.mxu0 %v2791
    %3887 = vmatpush1.msra.mxu0 %v2790
    %3888 = vmatprep.subr.mxu0 %v3039
    %3889 = vmatpush2.msra.mxu0 %v3038
    %3890 = vmatprep.subr.mxu0 %v3031
    %3891 = vmatpush2.msra.mxu0 %v3030
    %3892 = vmatprep.subr.mxu0 %v3023
    %3893 = vmatpush2.msra.mxu0 %v3022
    %3894 = vmatprep.subr.mxu0 %v3015
    %3895 = vmatpush2.msra.mxu0 %v3014
    %3896 = vmatprep.subr.mxu0 %v3007
    %3897 = vmatpush2.msra.mxu0 %v3006
    %3898 = vmatprep.subr.mxu0 %v2999
    %3899 = vmatpush2.msra.mxu0 %v2998
    %3900 = vmatprep.subr.mxu0 %v2991
    %3901 = vmatpush2.msra.mxu0 %v2990
    %3902 = vmatprep.subr.mxu0 %v2983
    %3903 = vmatpush2.msra.mxu0 %v2982
    %3904 = vmatprep.subr.mxu0 %v2975
    %3905 = vmatpush2.msra.mxu0 %v2974
    %3906 = vmatprep.subr.mxu0 %v2967
    %3907 = vmatpush2.msra.mxu0 %v2966
    %3908 = vmatprep.subr.mxu0 %v2959
    %3909 = vmatpush2.msra.mxu0 %v2958
    %3910 = vmatprep.subr.mxu0 %v2951
    %3911 = vmatpush2.msra.mxu0 %v2950
    %3912 = vmatprep.subr.mxu0 %v2943
    %3913 = vmatpush2.msra.mxu0 %v2942
    %3914 = vmatprep.subr.mxu0 %v2935
    %3915 = vmatpush2.msra.mxu0 %v2934
    %3916 = vmatprep.subr.mxu0 %v2927
    %3917 = vmatpush2.msra.mxu0 %v2926
    %3918 = vmatprep.subr.mxu0 %v2919
    %3919 = vmatpush2.msra.mxu0 %v2918
    %3920 = vmatprep.mubr.f32.mxu0 %v2783
    %3921 = vmatmul.mubr.f32.gmra.mxu0 %v2782
    %v3922 = vpop.f32.mrf.mxu0
    %v3923 = vadd.f32 %v3819, %v3922
    %v3924 = vpop.f32.mrf.mxu0
    %v3925 = vadd.f32 %v3823, %v3924
    %3926 = vdwg.mxu0
    %3927 = vmatprep.subr.mxu0 %v3167
    %3928 = vmatpush1.msra.mxu0 %v3166
    %3929 = vmatprep.subr.mxu0 %v3159
    %3930 = vmatpush1.msra.mxu0 %v3158
    %3931 = vmatprep.subr.mxu0 %v3151
    %3932 = vmatpush1.msra.mxu0 %v3150
    %3933 = vmatprep.subr.mxu0 %v3143
    %3934 = vmatpush1.msra.mxu0 %v3142
    %3935 = vmatprep.subr.mxu0 %v3135
    %3936 = vmatpush1.msra.mxu0 %v3134
    %3937 = vmatprep.subr.mxu0 %v3127
    %3938 = vmatpush1.msra.mxu0 %v3126
    %3939 = vmatprep.subr.mxu0 %v3119
    %3940 = vmatpush1.msra.mxu0 %v3118
    %3941 = vmatprep.subr.mxu0 %v3111
    %3942 = vmatpush1.msra.mxu0 %v3110
    %3943 = vmatprep.subr.mxu0 %v3103
    %3944 = vmatpush1.msra.mxu0 %v3102
    %3945 = vmatprep.subr.mxu0 %v3095
    %3946 = vmatpush1.msra.mxu0 %v3094
    %3947 = vmatprep.subr.mxu0 %v3087
    %3948 = vmatpush1.msra.mxu0 %v3086
    %3949 = vmatprep.subr.mxu0 %v3079
    %3950 = vmatpush1.msra.mxu0 %v3078
    %3951 = vmatprep.subr.mxu0 %v3071
    %3952 = vmatpush1.msra.mxu0 %v3070
    %3953 = vmatprep.subr.mxu0 %v3063
    %3954 = vmatpush1.msra.mxu0 %v3062
    %3955 = vmatprep.subr.mxu0 %v3055
    %3956 = vmatpush1.msra.mxu0 %v3054
    %3957 = vmatprep.subr.mxu0 %v3047
    %3958 = vmatpush1.msra.mxu0 %v3046
    %3959 = vmatprep.subr.mxu0 %v3295
    %3960 = vmatpush2.msra.mxu0 %v3294
    %3961 = vmatprep.subr.mxu0 %v3287
    %3962 = vmatpush2.msra.mxu0 %v3286
    %3963 = vmatprep.subr.mxu0 %v3279
    %3964 = vmatpush2.msra.mxu0 %v3278
    %3965 = vmatprep.subr.mxu0 %v3271
    %3966 = vmatpush2.msra.mxu0 %v3270
    %3967 = vmatprep.subr.mxu0 %v3263
    %3968 = vmatpush2.msra.mxu0 %v3262
    %3969 = vmatprep.subr.mxu0 %v3255
    %3970 = vmatpush2.msra.mxu0 %v3254
    %3971 = vmatprep.subr.mxu0 %v3247
    %3972 = vmatpush2.msra.mxu0 %v3246
    %3973 = vmatprep.subr.mxu0 %v3239
    %3974 = vmatpush2.msra.mxu0 %v3238
    %3975 = vmatprep.subr.mxu0 %v3231
    %3976 = vmatpush2.msra.mxu0 %v3230
    %3977 = vmatprep.subr.mxu0 %v3223
    %3978 = vmatpush2.msra.mxu0 %v3222
    %3979 = vmatprep.subr.mxu0 %v3215
    %3980 = vmatpush2.msra.mxu0 %v3214
    %3981 = vmatprep.subr.mxu0 %v3207
    %3982 = vmatpush2.msra.mxu0 %v3206
    %3983 = vmatprep.subr.mxu0 %v3199
    %3984 = vmatpush2.msra.mxu0 %v3198
    %3985 = vmatprep.subr.mxu0 %v3191
    %3986 = vmatpush2.msra.mxu0 %v3190
    %3987 = vmatprep.subr.mxu0 %v3183
    %3988 = vmatpush2.msra.mxu0 %v3182
    %3989 = vmatprep.subr.mxu0 %v3175
    %3990 = vmatpush2.msra.mxu0 %v3174
    %3991 = vmatprep.mubr.f32.mxu0 %v2785
    %3992 = vmatmul.mubr.f32.gmra.mxu0 %v2784
    %v3993 = vpop.f32.mrf.mxu0
    %v3994 = vadd.f32 %v3923, %v3993
    %v3995 = vpop.f32.mrf.mxu0
    %v3996 = vadd.f32 %v3925, %v3995
    %3997 = vdwg.mxu0
    %3998 = vmatprep.subr.mxu0 %v3423
    %3999 = vmatpush1.msra.mxu0 %v3422
    %4000 = vmatprep.subr.mxu0 %v3415
    %4001 = vmatpush1.msra.mxu0 %v3414
    %4002 = vmatprep.subr.mxu0 %v3407
    %4003 = vmatpush1.msra.mxu0 %v3406
    %4004 = vmatprep.subr.mxu0 %v3399
    %4005 = vmatpush1.msra.mxu0 %v3398
    %4006 = vmatprep.subr.mxu0 %v3391
    %4007 = vmatpush1.msra.mxu0 %v3390
    %4008 = vmatprep.subr.mxu0 %v3383
    %4009 = vmatpush1.msra.mxu0 %v3382
    %4010 = vmatprep.subr.mxu0 %v3375
    %4011 = vmatpush1.msra.mxu0 %v3374
    %4012 = vmatprep.subr.mxu0 %v3367
    %4013 = vmatpush1.msra.mxu0 %v3366
    %4014 = vmatprep.subr.mxu0 %v3359
    %4015 = vmatpush1.msra.mxu0 %v3358
    %4016 = vmatprep.subr.mxu0 %v3351
    %4017 = vmatpush1.msra.mxu0 %v3350
    %4018 = vmatprep.subr.mxu0 %v3343
    %4019 = vmatpush1.msra.mxu0 %v3342
    %4020 = vmatprep.subr.mxu0 %v3335
    %4021 = vmatpush1.msra.mxu0 %v3334
    %4022 = vmatprep.subr.mxu0 %v3327
    %4023 = vmatpush1.msra.mxu0 %v3326
    %4024 = vmatprep.subr.mxu0 %v3319
    %4025 = vmatpush1.msra.mxu0 %v3318
    %4026 = vmatprep.subr.mxu0 %v3311
    %4027 = vmatpush1.msra.mxu0 %v3310
    %4028 = vmatprep.subr.mxu0 %v3303
    %4029 = vmatpush1.msra.mxu0 %v3302
    %4030 = vmatprep.subr.mxu0 %v3551
    %4031 = vmatpush2.msra.mxu0 %v3550
    %4032 = vmatprep.subr.mxu0 %v3543
    %4033 = vmatpush2.msra.mxu0 %v3542
    %4034 = vmatprep.subr.mxu0 %v3535
    %4035 = vmatpush2.msra.mxu0 %v3534
    %4036 = vmatprep.subr.mxu0 %v3527
    %4037 = vmatpush2.msra.mxu0 %v3526
    %4038 = vmatprep.subr.mxu0 %v3519
    %4039 = vmatpush2.msra.mxu0 %v3518
    %4040 = vmatprep.subr.mxu0 %v3511
    %4041 = vmatpush2.msra.mxu0 %v3510
    %4042 = vmatprep.subr.mxu0 %v3503
    %4043 = vmatpush2.msra.mxu0 %v3502
    %4044 = vmatprep.subr.mxu0 %v3495
    %4045 = vmatpush2.msra.mxu0 %v3494
    %4046 = vmatprep.subr.mxu0 %v3487
    %4047 = vmatpush2.msra.mxu0 %v3486
    %4048 = vmatprep.subr.mxu0 %v3479
    %4049 = vmatpush2.msra.mxu0 %v3478
    %4050 = vmatprep.subr.mxu0 %v3471
    %4051 = vmatpush2.msra.mxu0 %v3470
    %4052 = vmatprep.subr.mxu0 %v3463
    %4053 = vmatpush2.msra.mxu0 %v3462
    %4054 = vmatprep.subr.mxu0 %v3455
    %4055 = vmatpush2.msra.mxu0 %v3454
    %4056 = vmatprep.subr.mxu0 %v3447
    %4057 = vmatpush2.msra.mxu0 %v3446
    %4058 = vmatprep.subr.mxu0 %v3439
    %4059 = vmatpush2.msra.mxu0 %v3438
    %4060 = vmatprep.subr.mxu0 %v3431
    %4061 = vmatpush2.msra.mxu0 %v3430
    %4062 = vmatprep.mubr.f32.mxu0 %v2787
    %4063 = vmatmul.mubr.f32.gmra.mxu0 %v2786
    %v4064 = vpop.f32.mrf.mxu0
    %v4065 = vadd.f32 %v3994, %v4064
    %v4066 = vpop.f32.mrf.mxu0
    %v4067 = vadd.f32 %v3996, %v4066
    %4068 = vdwg.mxu0
    %4069 = vmatprep.subr.mxu0 %v3679
    %4070 = vmatpush1.msra.mxu0 %v3678
    %4071 = vmatprep.subr.mxu0 %v3671
    %4072 = vmatpush1.msra.mxu0 %v3670
    %4073 = vmatprep.subr.mxu0 %v3663
    %4074 = vmatpush1.msra.mxu0 %v3662
    %4075 = vmatprep.subr.mxu0 %v3655
    %4076 = vmatpush1.msra.mxu0 %v3654
    %4077 = vmatprep.subr.mxu0 %v3647
    %4078 = vmatpush1.msra.mxu0 %v3646
    %4079 = vmatprep.subr.mxu0 %v3639
    %4080 = vmatpush1.msra.mxu0 %v3638
    %4081 = vmatprep.subr.mxu0 %v3631
    %4082 = vmatpush1.msra.mxu0 %v3630
    %4083 = vmatprep.subr.mxu0 %v3623
    %4084 = vmatpush1.msra.mxu0 %v3622
    %4085 = vmatprep.subr.mxu0 %v3615
    %4086 = vmatpush1.msra.mxu0 %v3614
    %4087 = vmatprep.subr.mxu0 %v3607
    %4088 = vmatpush1.msra.mxu0 %v3606
    %4089 = vmatprep.subr.mxu0 %v3599
    %4090 = vmatpush1.msra.mxu0 %v3598
    %4091 = vmatprep.subr.mxu0 %v3591
    %4092 = vmatpush1.msra.mxu0 %v3590
    %4093 = vmatprep.subr.mxu0 %v3583
    %4094 = vmatpush1.msra.mxu0 %v3582
    %4095 = vmatprep.subr.mxu0 %v3575
    %4096 = vmatpush1.msra.mxu0 %v3574
    %4097 = vmatprep.subr.mxu0 %v3567
    %4098 = vmatpush1.msra.mxu0 %v3566
    %4099 = vmatprep.subr.mxu0 %v3559
    %4100 = vmatpush1.msra.mxu0 %v3558
    %4101 = vmatprep.subr.mxu0 %v3807
    %4102 = vmatpush2.msra.mxu0 %v3806
    %4103 = vmatprep.subr.mxu0 %v3799
    %4104 = vmatpush2.msra.mxu0 %v3798
    %4105 = vmatprep.subr.mxu0 %v3791
    %4106 = vmatpush2.msra.mxu0 %v3790
    %4107 = vmatprep.subr.mxu0 %v3783
    %4108 = vmatpush2.msra.mxu0 %v3782
    %4109 = vmatprep.subr.mxu0 %v3775
    %4110 = vmatpush2.msra.mxu0 %v3774
    %4111 = vmatprep.subr.mxu0 %v3767
    %4112 = vmatpush2.msra.mxu0 %v3766
    %4113 = vmatprep.subr.mxu0 %v3759
    %4114 = vmatpush2.msra.mxu0 %v3758
    %4115 = vmatprep.subr.mxu0 %v3751
    %4116 = vmatpush2.msra.mxu0 %v3750
    %4117 = vmatprep.subr.mxu0 %v3743
    %4118 = vmatpush2.msra.mxu0 %v3742
    %4119 = vmatprep.subr.mxu0 %v3735
    %4120 = vmatpush2.msra.mxu0 %v3734
    %4121 = vmatprep.subr.mxu0 %v3727
    %4122 = vmatpush2.msra.mxu0 %v3726
    %4123 = vmatprep.subr.mxu0 %v3719
    %4124 = vmatpush2.msra.mxu0 %v3718
    %4125 = vmatprep.subr.mxu0 %v3711
    %4126 = vmatpush2.msra.mxu0 %v3710
    %4127 = vmatprep.subr.mxu0 %v3703
    %4128 = vmatpush2.msra.mxu0 %v3702
    %4129 = vmatprep.subr.mxu0 %v3695
    %4130 = vmatpush2.msra.mxu0 %v3694
    %4131 = vmatprep.subr.mxu0 %v3687
    %4132 = vmatpush2.msra.mxu0 %v3686
    %4133 = vmatprep.mubr.f32.mxu0 %v2789
    %4134 = vmatmul.mubr.f32.gmra.mxu0 %v2788
    %v4135 = vpop.f32.mrf.mxu0
    %v4136 = vadd.f32 %v4065, %v4135
    %v4137 = vpop.f32.mrf.mxu0
    %v4138 = vadd.f32 %v4067, %v4137
    %4139 = vdwg.mxu0
    %4140 = vmatprep.subr.mxu0 %v2913
    %4141 = vmatpush1.msra.mxu0 %v2912
    %4142 = vmatprep.subr.mxu0 %v2905
    %4143 = vmatpush1.msra.mxu0 %v2904
    %4144 = vmatprep.subr.mxu0 %v2897
    %4145 = vmatpush1.msra.mxu0 %v2896
    %4146 = vmatprep.subr.mxu0 %v2889
    %4147 = vmatpush1.msra.mxu0 %v2888
    %4148 = vmatprep.subr.mxu0 %v2881
    %4149 = vmatpush1.msra.mxu0 %v2880
    %4150 = vmatprep.subr.mxu0 %v2873
    %4151 = vmatpush1.msra.mxu0 %v2872
    %4152 = vmatprep.subr.mxu0 %v2865
    %4153 = vmatpush1.msra.mxu0 %v2864
    %4154 = vmatprep.subr.mxu0 %v2857
    %4155 = vmatpush1.msra.mxu0 %v2856
    %4156 = vmatprep.subr.mxu0 %v2849
    %4157 = vmatpush1.msra.mxu0 %v2848
    %4158 = vmatprep.subr.mxu0 %v2841
    %4159 = vmatpush1.msra.mxu0 %v2840
    %4160 = vmatprep.subr.mxu0 %v2833
    %4161 = vmatpush1.msra.mxu0 %v2832
    %4162 = vmatprep.subr.mxu0 %v2825
    %4163 = vmatpush1.msra.mxu0 %v2824
    %4164 = vmatprep.subr.mxu0 %v2817
    %4165 = vmatpush1.msra.mxu0 %v2816
    %4166 = vmatprep.subr.mxu0 %v2809
    %4167 = vmatpush1.msra.mxu0 %v2808
    %4168 = vmatprep.subr.mxu0 %v2801
    %4169 = vmatpush1.msra.mxu0 %v2800
    %4170 = vmatprep.subr.mxu0 %v2793
    %4171 = vmatpush1.msra.mxu0 %v2792
    %4172 = vmatprep.subr.mxu0 %v3041
    %4173 = vmatpush2.msra.mxu0 %v3040
    %4174 = vmatprep.subr.mxu0 %v3033
    %4175 = vmatpush2.msra.mxu0 %v3032
    %4176 = vmatprep.subr.mxu0 %v3025
    %4177 = vmatpush2.msra.mxu0 %v3024
    %4178 = vmatprep.subr.mxu0 %v3017
    %4179 = vmatpush2.msra.mxu0 %v3016
    %4180 = vmatprep.subr.mxu0 %v3009
    %4181 = vmatpush2.msra.mxu0 %v3008
    %4182 = vmatprep.subr.mxu0 %v3001
    %4183 = vmatpush2.msra.mxu0 %v3000
    %4184 = vmatprep.subr.mxu0 %v2993
    %4185 = vmatpush2.msra.mxu0 %v2992
    %4186 = vmatprep.subr.mxu0 %v2985
    %4187 = vmatpush2.msra.mxu0 %v2984
    %4188 = vmatprep.subr.mxu0 %v2977
    %4189 = vmatpush2.msra.mxu0 %v2976
    %4190 = vmatprep.subr.mxu0 %v2969
    %4191 = vmatpush2.msra.mxu0 %v2968
    %4192 = vmatprep.subr.mxu0 %v2961
    %4193 = vmatpush2.msra.mxu0 %v2960
    %4194 = vmatprep.subr.mxu0 %v2953
    %4195 = vmatpush2.msra.mxu0 %v2952
    %4196 = vmatprep.subr.mxu0 %v2945
    %4197 = vmatpush2.msra.mxu0 %v2944
    %4198 = vmatprep.subr.mxu0 %v2937
    %4199 = vmatpush2.msra.mxu0 %v2936
    %4200 = vmatprep.subr.mxu0 %v2929
    %4201 = vmatpush2.msra.mxu0 %v2928
    %4202 = vmatprep.subr.mxu0 %v2921
    %4203 = vmatpush2.msra.mxu0 %v2920
    %4204 = vmatprep.mubr.f32.mxu0 %v2783
    %4205 = vmatmul.mubr.f32.gmra.mxu0 %v2782
    %v4206 = vpop.f32.mrf.mxu0
    %v4207 = vadd.f32 %v3827, %v4206
    %v4208 = vpop.f32.mrf.mxu0
    %v4209 = vadd.f32 %v3831, %v4208
    %4210 = vdwg.mxu0
    %4211 = vmatprep.subr.mxu0 %v3169
    %4212 = vmatpush1.msra.mxu0 %v3168
    %4213 = vmatprep.subr.mxu0 %v3161
    %4214 = vmatpush1.msra.mxu0 %v3160
    %4215 = vmatprep.subr.mxu0 %v3153
    %4216 = vmatpush1.msra.mxu0 %v3152
    %4217 = vmatprep.subr.mxu0 %v3145
    %4218 = vmatpush1.msra.mxu0 %v3144
    %4219 = vmatprep.subr.mxu0 %v3137
    %4220 = vmatpush1.msra.mxu0 %v3136
    %4221 = vmatprep.subr.mxu0 %v3129
    %4222 = vmatpush1.msra.mxu0 %v3128
    %4223 = vmatprep.subr.mxu0 %v3121
    %4224 = vmatpush1.msra.mxu0 %v3120
    %4225 = vmatprep.subr.mxu0 %v3113
    %4226 = vmatpush1.msra.mxu0 %v3112
    %4227 = vmatprep.subr.mxu0 %v3105
    %4228 = vmatpush1.msra.mxu0 %v3104
    %4229 = vmatprep.subr.mxu0 %v3097
    %4230 = vmatpush1.msra.mxu0 %v3096
    %4231 = vmatprep.subr.mxu0 %v3089
    %4232 = vmatpush1.msra.mxu0 %v3088
    %4233 = vmatprep.subr.mxu0 %v3081
    %4234 = vmatpush1.msra.mxu0 %v3080
    %4235 = vmatprep.subr.mxu0 %v3073
    %4236 = vmatpush1.msra.mxu0 %v3072
    %4237 = vmatprep.subr.mxu0 %v3065
    %4238 = vmatpush1.msra.mxu0 %v3064
    %4239 = vmatprep.subr.mxu0 %v3057
    %4240 = vmatpush1.msra.mxu0 %v3056
    %4241 = vmatprep.subr.mxu0 %v3049
    %4242 = vmatpush1.msra.mxu0 %v3048
    %4243 = vmatprep.subr.mxu0 %v3297
    %4244 = vmatpush2.msra.mxu0 %v3296
    %4245 = vmatprep.subr.mxu0 %v3289
    %4246 = vmatpush2.msra.mxu0 %v3288
    %4247 = vmatprep.subr.mxu0 %v3281
    %4248 = vmatpush2.msra.mxu0 %v3280
    %4249 = vmatprep.subr.mxu0 %v3273
    %4250 = vmatpush2.msra.mxu0 %v3272
    %4251 = vmatprep.subr.mxu0 %v3265
    %4252 = vmatpush2.msra.mxu0 %v3264
    %4253 = vmatprep.subr.mxu0 %v3257
    %4254 = vmatpush2.msra.mxu0 %v3256
    %4255 = vmatprep.subr.mxu0 %v3249
    %4256 = vmatpush2.msra.mxu0 %v3248
    %4257 = vmatprep.subr.mxu0 %v3241
    %4258 = vmatpush2.msra.mxu0 %v3240
    %4259 = vmatprep.subr.mxu0 %v3233
    %4260 = vmatpush2.msra.mxu0 %v3232
    %4261 = vmatprep.subr.mxu0 %v3225
    %4262 = vmatpush2.msra.mxu0 %v3224
    %4263 = vmatprep.subr.mxu0 %v3217
    %4264 = vmatpush2.msra.mxu0 %v3216
    %4265 = vmatprep.subr.mxu0 %v3209
    %4266 = vmatpush2.msra.mxu0 %v3208
    %4267 = vmatprep.subr.mxu0 %v3201
    %4268 = vmatpush2.msra.mxu0 %v3200
    %4269 = vmatprep.subr.mxu0 %v3193
    %4270 = vmatpush2.msra.mxu0 %v3192
    %4271 = vmatprep.subr.mxu0 %v3185
    %4272 = vmatpush2.msra.mxu0 %v3184
    %4273 = vmatprep.subr.mxu0 %v3177
    %4274 = vmatpush2.msra.mxu0 %v3176
    %4275 = vmatprep.mubr.f32.mxu0 %v2785
    %4276 = vmatmul.mubr.f32.gmra.mxu0 %v2784
    %v4277 = vpop.f32.mrf.mxu0
    %v4278 = vadd.f32 %v4207, %v4277
    %v4279 = vpop.f32.mrf.mxu0
    %v4280 = vadd.f32 %v4209, %v4279
    %4281 = vdwg.mxu0
    %4282 = vmatprep.subr.mxu0 %v3425
    %4283 = vmatpush1.msra.mxu0 %v3424
    %4284 = vmatprep.subr.mxu0 %v3417
    %4285 = vmatpush1.msra.mxu0 %v3416
    %4286 = vmatprep.subr.mxu0 %v3409
    %4287 = vmatpush1.msra.mxu0 %v3408
    %4288 = vmatprep.subr.mxu0 %v3401
    %4289 = vmatpush1.msra.mxu0 %v3400
    %4290 = vmatprep.subr.mxu0 %v3393
    %4291 = vmatpush1.msra.mxu0 %v3392
    %4292 = vmatprep.subr.mxu0 %v3385
    %4293 = vmatpush1.msra.mxu0 %v3384
    %4294 = vmatprep.subr.mxu0 %v3377
    %4295 = vmatpush1.msra.mxu0 %v3376
    %4296 = vmatprep.subr.mxu0 %v3369
    %4297 = vmatpush1.msra.mxu0 %v3368
    %4298 = vmatprep.subr.mxu0 %v3361
    %4299 = vmatpush1.msra.mxu0 %v3360
    %4300 = vmatprep.subr.mxu0 %v3353
    %4301 = vmatpush1.msra.mxu0 %v3352
    %4302 = vmatprep.subr.mxu0 %v3345
    %4303 = vmatpush1.msra.mxu0 %v3344
    %4304 = vmatprep.subr.mxu0 %v3337
    %4305 = vmatpush1.msra.mxu0 %v3336
    %4306 = vmatprep.subr.mxu0 %v3329
    %4307 = vmatpush1.msra.mxu0 %v3328
    %4308 = vmatprep.subr.mxu0 %v3321
    %4309 = vmatpush1.msra.mxu0 %v3320
    %4310 = vmatprep.subr.mxu0 %v3313
    %4311 = vmatpush1.msra.mxu0 %v3312
    %4312 = vmatprep.subr.mxu0 %v3305
    %4313 = vmatpush1.msra.mxu0 %v3304
    %4314 = vmatprep.subr.mxu0 %v3553
    %4315 = vmatpush2.msra.mxu0 %v3552
    %4316 = vmatprep.subr.mxu0 %v3545
    %4317 = vmatpush2.msra.mxu0 %v3544
    %4318 = vmatprep.subr.mxu0 %v3537
    %4319 = vmatpush2.msra.mxu0 %v3536
    %4320 = vmatprep.subr.mxu0 %v3529
    %4321 = vmatpush2.msra.mxu0 %v3528
    %4322 = vmatprep.subr.mxu0 %v3521
    %4323 = vmatpush2.msra.mxu0 %v3520
    %4324 = vmatprep.subr.mxu0 %v3513
    %4325 = vmatpush2.msra.mxu0 %v3512
    %4326 = vmatprep.subr.mxu0 %v3505
    %4327 = vmatpush2.msra.mxu0 %v3504
    %4328 = vmatprep.subr.mxu0 %v3497
    %4329 = vmatpush2.msra.mxu0 %v3496
    %4330 = vmatprep.subr.mxu0 %v3489
    %4331 = vmatpush2.msra.mxu0 %v3488
    %4332 = vmatprep.subr.mxu0 %v3481
    %4333 = vmatpush2.msra.mxu0 %v3480
    %4334 = vmatprep.subr.mxu0 %v3473
    %4335 = vmatpush2.msra.mxu0 %v3472
    %4336 = vmatprep.subr.mxu0 %v3465
    %4337 = vmatpush2.msra.mxu0 %v3464
    %4338 = vmatprep.subr.mxu0 %v3457
    %4339 = vmatpush2.msra.mxu0 %v3456
    %4340 = vmatprep.subr.mxu0 %v3449
    %4341 = vmatpush2.msra.mxu0 %v3448
    %4342 = vmatprep.subr.mxu0 %v3441
    %4343 = vmatpush2.msra.mxu0 %v3440
    %4344 = vmatprep.subr.mxu0 %v3433
    %4345 = vmatpush2.msra.mxu0 %v3432
    %4346 = vmatprep.mubr.f32.mxu0 %v2787
    %4347 = vmatmul.mubr.f32.gmra.mxu0 %v2786
    %v4348 = vpop.f32.mrf.mxu0
    %v4349 = vadd.f32 %v4278, %v4348
    %v4350 = vpop.f32.mrf.mxu0
    %v4351 = vadd.f32 %v4280, %v4350
    %4352 = vdwg.mxu0
    %4353 = vmatprep.subr.mxu0 %v3681
    %4354 = vmatpush1.msra.mxu0 %v3680
    %4355 = vmatprep.subr.mxu0 %v3673
    %4356 = vmatpush1.msra.mxu0 %v3672
    %4357 = vmatprep.subr.mxu0 %v3665
    %4358 = vmatpush1.msra.mxu0 %v3664
    %4359 = vmatprep.subr.mxu0 %v3657
    %4360 = vmatpush1.msra.mxu0 %v3656
    %4361 = vmatprep.subr.mxu0 %v3649
    %4362 = vmatpush1.msra.mxu0 %v3648
    %4363 = vmatprep.subr.mxu0 %v3641
    %4364 = vmatpush1.msra.mxu0 %v3640
    %4365 = vmatprep.subr.mxu0 %v3633
    %4366 = vmatpush1.msra.mxu0 %v3632
    %4367 = vmatprep.subr.mxu0 %v3625
    %4368 = vmatpush1.msra.mxu0 %v3624
    %4369 = vmatprep.subr.mxu0 %v3617
    %4370 = vmatpush1.msra.mxu0 %v3616
    %4371 = vmatprep.subr.mxu0 %v3609
    %4372 = vmatpush1.msra.mxu0 %v3608
    %4373 = vmatprep.subr.mxu0 %v3601
    %4374 = vmatpush1.msra.mxu0 %v3600
    %4375 = vmatprep.subr.mxu0 %v3593
    %4376 = vmatpush1.msra.mxu0 %v3592
    %4377 = vmatprep.subr.mxu0 %v3585
    %4378 = vmatpush1.msra.mxu0 %v3584
    %4379 = vmatprep.subr.mxu0 %v3577
    %4380 = vmatpush1.msra.mxu0 %v3576
    %4381 = vmatprep.subr.mxu0 %v3569
    %4382 = vmatpush1.msra.mxu0 %v3568
    %4383 = vmatprep.subr.mxu0 %v3561
    %4384 = vmatpush1.msra.mxu0 %v3560
    %4385 = vmatprep.subr.mxu0 %v3809
    %4386 = vmatpush2.msra.mxu0 %v3808
    %4387 = vmatprep.subr.mxu0 %v3801
    %4388 = vmatpush2.msra.mxu0 %v3800
    %4389 = vmatprep.subr.mxu0 %v3793
    %4390 = vmatpush2.msra.mxu0 %v3792
    %4391 = vmatprep.subr.mxu0 %v3785
    %4392 = vmatpush2.msra.mxu0 %v3784
    %4393 = vmatprep.subr.mxu0 %v3777
    %4394 = vmatpush2.msra.mxu0 %v3776
    %4395 = vmatprep.subr.mxu0 %v3769
    %4396 = vmatpush2.msra.mxu0 %v3768
    %4397 = vmatprep.subr.mxu0 %v3761
    %4398 = vmatpush2.msra.mxu0 %v3760
    %4399 = vmatprep.subr.mxu0 %v3753
    %4400 = vmatpush2.msra.mxu0 %v3752
    %4401 = vmatprep.subr.mxu0 %v3745
    %4402 = vmatpush2.msra.mxu0 %v3744
    %4403 = vmatprep.subr.mxu0 %v3737
    %4404 = vmatpush2.msra.mxu0 %v3736
    %4405 = vmatprep.subr.mxu0 %v3729
    %4406 = vmatpush2.msra.mxu0 %v3728
    %4407 = vmatprep.subr.mxu0 %v3721
    %4408 = vmatpush2.msra.mxu0 %v3720
    %4409 = vmatprep.subr.mxu0 %v3713
    %4410 = vmatpush2.msra.mxu0 %v3712
    %4411 = vmatprep.subr.mxu0 %v3705
    %4412 = vmatpush2.msra.mxu0 %v3704
    %4413 = vmatprep.subr.mxu0 %v3697
    %4414 = vmatpush2.msra.mxu0 %v3696
    %4415 = vmatprep.subr.mxu0 %v3689
    %4416 = vmatpush2.msra.mxu0 %v3688
    %4417 = vmatprep.mubr.f32.mxu0 %v2789
    %4418 = vmatmul.mubr.f32.gmra.mxu0 %v2788
    %v4419 = vpop.f32.mrf.mxu0
    %v4420 = vadd.f32 %v4349, %v4419
    %v4421 = vpop.f32.mrf.mxu0
    %v4422 = vadd.f32 %v4351, %v4421
    %4423 = vdwg.mxu0
    %4424 = vmatprep.subr.mxu0 %v2915
    %4425 = vmatpush1.msra.mxu0 %v2914
    %4426 = vmatprep.subr.mxu0 %v2907
    %4427 = vmatpush1.msra.mxu0 %v2906
    %4428 = vmatprep.subr.mxu0 %v2899
    %4429 = vmatpush1.msra.mxu0 %v2898
    %4430 = vmatprep.subr.mxu0 %v2891
    %4431 = vmatpush1.msra.mxu0 %v2890
    %4432 = vmatprep.subr.mxu0 %v2883
    %4433 = vmatpush1.msra.mxu0 %v2882
    %4434 = vmatprep.subr.mxu0 %v2875
    %4435 = vmatpush1.msra.mxu0 %v2874
    %4436 = vmatprep.subr.mxu0 %v2867
    %4437 = vmatpush1.msra.mxu0 %v2866
    %4438 = vmatprep.subr.mxu0 %v2859
    %4439 = vmatpush1.msra.mxu0 %v2858
    %4440 = vmatprep.subr.mxu0 %v2851
    %4441 = vmatpush1.msra.mxu0 %v2850
    %4442 = vmatprep.subr.mxu0 %v2843
    %4443 = vmatpush1.msra.mxu0 %v2842
    %4444 = vmatprep.subr.mxu0 %v2835
    %4445 = vmatpush1.msra.mxu0 %v2834
    %4446 = vmatprep.subr.mxu0 %v2827
    %4447 = vmatpush1.msra.mxu0 %v2826
    %4448 = vmatprep.subr.mxu0 %v2819
    %4449 = vmatpush1.msra.mxu0 %v2818
    %4450 = vmatprep.subr.mxu0 %v2811
    %4451 = vmatpush1.msra.mxu0 %v2810
    %4452 = vmatprep.subr.mxu0 %v2803
    %4453 = vmatpush1.msra.mxu0 %v2802
    %4454 = vmatprep.subr.mxu0 %v2795
    %4455 = vmatpush1.msra.mxu0 %v2794
    %4456 = vmatprep.subr.mxu0 %v3043
    %4457 = vmatpush2.msra.mxu0 %v3042
    %4458 = vmatprep.subr.mxu0 %v3035
    %4459 = vmatpush2.msra.mxu0 %v3034
    %4460 = vmatprep.subr.mxu0 %v3027
    %4461 = vmatpush2.msra.mxu0 %v3026
    %4462 = vmatprep.subr.mxu0 %v3019
    %4463 = vmatpush2.msra.mxu0 %v3018
    %4464 = vmatprep.subr.mxu0 %v3011
    %4465 = vmatpush2.msra.mxu0 %v3010
    %4466 = vmatprep.subr.mxu0 %v3003
    %4467 = vmatpush2.msra.mxu0 %v3002
    %4468 = vmatprep.subr.mxu0 %v2995
    %4469 = vmatpush2.msra.mxu0 %v2994
    %4470 = vmatprep.subr.mxu0 %v2987
    %4471 = vmatpush2.msra.mxu0 %v2986
    %4472 = vmatprep.subr.mxu0 %v2979
    %4473 = vmatpush2.msra.mxu0 %v2978
    %4474 = vmatprep.subr.mxu0 %v2971
    %4475 = vmatpush2.msra.mxu0 %v2970
    %4476 = vmatprep.subr.mxu0 %v2963
    %4477 = vmatpush2.msra.mxu0 %v2962
    %4478 = vmatprep.subr.mxu0 %v2955
    %4479 = vmatpush2.msra.mxu0 %v2954
    %4480 = vmatprep.subr.mxu0 %v2947
    %4481 = vmatpush2.msra.mxu0 %v2946
    %4482 = vmatprep.subr.mxu0 %v2939
    %4483 = vmatpush2.msra.mxu0 %v2938
    %4484 = vmatprep.subr.mxu0 %v2931
    %4485 = vmatpush2.msra.mxu0 %v2930
    %4486 = vmatprep.subr.mxu0 %v2923
    %4487 = vmatpush2.msra.mxu0 %v2922
    %4488 = vmatprep.mubr.f32.mxu0 %v2783
    %4489 = vmatmul.mubr.f32.gmra.mxu0 %v2782
    %v4490 = vpop.f32.mrf.mxu0
    %v4491 = vadd.f32 %v3835, %v4490
    %v4492 = vpop.f32.mrf.mxu0
    %v4493 = vadd.f32 %v3839, %v4492
    %4494 = vdwg.mxu0
    %4495 = vmatprep.subr.mxu0 %v3171
    %4496 = vmatpush1.msra.mxu0 %v3170
    %4497 = vmatprep.subr.mxu0 %v3163
    %4498 = vmatpush1.msra.mxu0 %v3162
    %4499 = vmatprep.subr.mxu0 %v3155
    %4500 = vmatpush1.msra.mxu0 %v3154
    %4501 = vmatprep.subr.mxu0 %v3147
    %4502 = vmatpush1.msra.mxu0 %v3146
    %4503 = vmatprep.subr.mxu0 %v3139
    %4504 = vmatpush1.msra.mxu0 %v3138
    %4505 = vmatprep.subr.mxu0 %v3131
    %4506 = vmatpush1.msra.mxu0 %v3130
    %4507 = vmatprep.subr.mxu0 %v3123
    %4508 = vmatpush1.msra.mxu0 %v3122
    %4509 = vmatprep.subr.mxu0 %v3115
    %4510 = vmatpush1.msra.mxu0 %v3114
    %4511 = vmatprep.subr.mxu0 %v3107
    %4512 = vmatpush1.msra.mxu0 %v3106
    %4513 = vmatprep.subr.mxu0 %v3099
    %4514 = vmatpush1.msra.mxu0 %v3098
    %4515 = vmatprep.subr.mxu0 %v3091
    %4516 = vmatpush1.msra.mxu0 %v3090
    %4517 = vmatprep.subr.mxu0 %v3083
    %4518 = vmatpush1.msra.mxu0 %v3082
    %4519 = vmatprep.subr.mxu0 %v3075
    %4520 = vmatpush1.msra.mxu0 %v3074
    %4521 = vmatprep.subr.mxu0 %v3067
    %4522 = vmatpush1.msra.mxu0 %v3066
    %4523 = vmatprep.subr.mxu0 %v3059
    %4524 = vmatpush1.msra.mxu0 %v3058
    %4525 = vmatprep.subr.mxu0 %v3051
    %4526 = vmatpush1.msra.mxu0 %v3050
    %4527 = vmatprep.subr.mxu0 %v3299
    %4528 = vmatpush2.msra.mxu0 %v3298
    %4529 = vmatprep.subr.mxu0 %v3291
    %4530 = vmatpush2.msra.mxu0 %v3290
    %4531 = vmatprep.subr.mxu0 %v3283
    %4532 = vmatpush2.msra.mxu0 %v3282
    %4533 = vmatprep.subr.mxu0 %v3275
    %4534 = vmatpush2.msra.mxu0 %v3274
    %4535 = vmatprep.subr.mxu0 %v3267
    %4536 = vmatpush2.msra.mxu0 %v3266
    %4537 = vmatprep.subr.mxu0 %v3259
    %4538 = vmatpush2.msra.mxu0 %v3258
    %4539 = vmatprep.subr.mxu0 %v3251
    %4540 = vmatpush2.msra.mxu0 %v3250
    %4541 = vmatprep.subr.mxu0 %v3243
    %4542 = vmatpush2.msra.mxu0 %v3242
    %4543 = vmatprep.subr.mxu0 %v3235
    %4544 = vmatpush2.msra.mxu0 %v3234
    %4545 = vmatprep.subr.mxu0 %v3227
    %4546 = vmatpush2.msra.mxu0 %v3226
    %4547 = vmatprep.subr.mxu0 %v3219
    %4548 = vmatpush2.msra.mxu0 %v3218
    %4549 = vmatprep.subr.mxu0 %v3211
    %4550 = vmatpush2.msra.mxu0 %v3210
    %4551 = vmatprep.subr.mxu0 %v3203
    %4552 = vmatpush2.msra.mxu0 %v3202
    %4553 = vmatprep.subr.mxu0 %v3195
    %4554 = vmatpush2.msra.mxu0 %v3194
    %4555 = vmatprep.subr.mxu0 %v3187
    %4556 = vmatpush2.msra.mxu0 %v3186
    %4557 = vmatprep.subr.mxu0 %v3179
    %4558 = vmatpush2.msra.mxu0 %v3178
    %4559 = vmatprep.mubr.f32.mxu0 %v2785
    %4560 = vmatmul.mubr.f32.gmra.mxu0 %v2784
    %v4561 = vpop.f32.mrf.mxu0
    %v4562 = vadd.f32 %v4491, %v4561
    %v4563 = vpop.f32.mrf.mxu0
    %v4564 = vadd.f32 %v4493, %v4563
    %4565 = vdwg.mxu0
    %4566 = vmatprep.subr.mxu0 %v3427
    %4567 = vmatpush1.msra.mxu0 %v3426
    %4568 = vmatprep.subr.mxu0 %v3419
    %4569 = vmatpush1.msra.mxu0 %v3418
    %4570 = vmatprep.subr.mxu0 %v3411
    %4571 = vmatpush1.msra.mxu0 %v3410
    %4572 = vmatprep.subr.mxu0 %v3403
    %4573 = vmatpush1.msra.mxu0 %v3402
    %4574 = vmatprep.subr.mxu0 %v3395
    %4575 = vmatpush1.msra.mxu0 %v3394
    %4576 = vmatprep.subr.mxu0 %v3387
    %4577 = vmatpush1.msra.mxu0 %v3386
    %4578 = vmatprep.subr.mxu0 %v3379
    %4579 = vmatpush1.msra.mxu0 %v3378
    %4580 = vmatprep.subr.mxu0 %v3371
    %4581 = vmatpush1.msra.mxu0 %v3370
    %4582 = vmatprep.subr.mxu0 %v3363
    %4583 = vmatpush1.msra.mxu0 %v3362
    %4584 = vmatprep.subr.mxu0 %v3355
    %4585 = vmatpush1.msra.mxu0 %v3354
    %4586 = vmatprep.subr.mxu0 %v3347
    %4587 = vmatpush1.msra.mxu0 %v3346
    %4588 = vmatprep.subr.mxu0 %v3339
    %4589 = vmatpush1.msra.mxu0 %v3338
    %4590 = vmatprep.subr.mxu0 %v3331
    %4591 = vmatpush1.msra.mxu0 %v3330
    %4592 = vmatprep.subr.mxu0 %v3323
    %4593 = vmatpush1.msra.mxu0 %v3322
    %4594 = vmatprep.subr.mxu0 %v3315
    %4595 = vmatpush1.msra.mxu0 %v3314
    %4596 = vmatprep.subr.mxu0 %v3307
    %4597 = vmatpush1.msra.mxu0 %v3306
    %4598 = vmatprep.subr.mxu0 %v3555
    %4599 = vmatpush2.msra.mxu0 %v3554
    %4600 = vmatprep.subr.mxu0 %v3547
    %4601 = vmatpush2.msra.mxu0 %v3546
    %4602 = vmatprep.subr.mxu0 %v3539
    %4603 = vmatpush2.msra.mxu0 %v3538
    %4604 = vmatprep.subr.mxu0 %v3531
    %4605 = vmatpush2.msra.mxu0 %v3530
    %4606 = vmatprep.subr.mxu0 %v3523
    %4607 = vmatpush2.msra.mxu0 %v3522
    %4608 = vmatprep.subr.mxu0 %v3515
    %4609 = vmatpush2.msra.mxu0 %v3514
    %4610 = vmatprep.subr.mxu0 %v3507
    %4611 = vmatpush2.msra.mxu0 %v3506
    %4612 = vmatprep.subr.mxu0 %v3499
    %4613 = vmatpush2.msra.mxu0 %v3498
    %4614 = vmatprep.subr.mxu0 %v3491
    %4615 = vmatpush2.msra.mxu0 %v3490
    %4616 = vmatprep.subr.mxu0 %v3483
    %4617 = vmatpush2.msra.mxu0 %v3482
    %4618 = vmatprep.subr.mxu0 %v3475
    %4619 = vmatpush2.msra.mxu0 %v3474
    %4620 = vmatprep.subr.mxu0 %v3467
    %4621 = vmatpush2.msra.mxu0 %v3466
    %4622 = vmatprep.subr.mxu0 %v3459
    %4623 = vmatpush2.msra.mxu0 %v3458
    %4624 = vmatprep.subr.mxu0 %v3451
    %4625 = vmatpush2.msra.mxu0 %v3450
    %4626 = vmatprep.subr.mxu0 %v3443
    %4627 = vmatpush2.msra.mxu0 %v3442
    %4628 = vmatprep.subr.mxu0 %v3435
    %4629 = vmatpush2.msra.mxu0 %v3434
    %4630 = vmatprep.mubr.f32.mxu0 %v2787
    %4631 = vmatmul.mubr.f32.gmra.mxu0 %v2786
    %v4632 = vpop.f32.mrf.mxu0
    %v4633 = vadd.f32 %v4562, %v4632
    %v4634 = vpop.f32.mrf.mxu0
    %v4635 = vadd.f32 %v4564, %v4634
    %4636 = vdwg.mxu0
    %4637 = vmatprep.subr.mxu0 %v3683
    %4638 = vmatpush1.msra.mxu0 %v3682
    %4639 = vmatprep.subr.mxu0 %v3675
    %4640 = vmatpush1.msra.mxu0 %v3674
    %4641 = vmatprep.subr.mxu0 %v3667
    %4642 = vmatpush1.msra.mxu0 %v3666
    %4643 = vmatprep.subr.mxu0 %v3659
    %4644 = vmatpush1.msra.mxu0 %v3658
    %4645 = vmatprep.subr.mxu0 %v3651
    %4646 = vmatpush1.msra.mxu0 %v3650
    %4647 = vmatprep.subr.mxu0 %v3643
    %4648 = vmatpush1.msra.mxu0 %v3642
    %4649 = vmatprep.subr.mxu0 %v3635
    %4650 = vmatpush1.msra.mxu0 %v3634
    %4651 = vmatprep.subr.mxu0 %v3627
    %4652 = vmatpush1.msra.mxu0 %v3626
    %4653 = vmatprep.subr.mxu0 %v3619
    %4654 = vmatpush1.msra.mxu0 %v3618
    %4655 = vmatprep.subr.mxu0 %v3611
    %4656 = vmatpush1.msra.mxu0 %v3610
    %4657 = vmatprep.subr.mxu0 %v3603
    %4658 = vmatpush1.msra.mxu0 %v3602
    %4659 = vmatprep.subr.mxu0 %v3595
    %4660 = vmatpush1.msra.mxu0 %v3594
    %4661 = vmatprep.subr.mxu0 %v3587
    %4662 = vmatpush1.msra.mxu0 %v3586
    %4663 = vmatprep.subr.mxu0 %v3579
    %4664 = vmatpush1.msra.mxu0 %v3578
    %4665 = vmatprep.subr.mxu0 %v3571
    %4666 = vmatpush1.msra.mxu0 %v3570
    %4667 = vmatprep.subr.mxu0 %v3563
    %4668 = vmatpush1.msra.mxu0 %v3562
    %4669 = vmatprep.subr.mxu0 %v3811
    %4670 = vmatpush2.msra.mxu0 %v3810
    %4671 = vmatprep.subr.mxu0 %v3803
    %4672 = vmatpush2.msra.mxu0 %v3802
    %4673 = vmatprep.subr.mxu0 %v3795
    %4674 = vmatpush2.msra.mxu0 %v3794
    %4675 = vmatprep.subr.mxu0 %v3787
    %4676 = vmatpush2.msra.mxu0 %v3786
    %4677 = vmatprep.subr.mxu0 %v3779
    %4678 = vmatpush2.msra.mxu0 %v3778
    %4679 = vmatprep.subr.mxu0 %v3771
    %4680 = vmatpush2.msra.mxu0 %v3770
    %4681 = vmatprep.subr.mxu0 %v3763
    %4682 = vmatpush2.msra.mxu0 %v3762
    %4683 = vmatprep.subr.mxu0 %v3755
    %4684 = vmatpush2.msra.mxu0 %v3754
    %4685 = vmatprep.subr.mxu0 %v3747
    %4686 = vmatpush2.msra.mxu0 %v3746
    %4687 = vmatprep.subr.mxu0 %v3739
    %4688 = vmatpush2.msra.mxu0 %v3738
    %4689 = vmatprep.subr.mxu0 %v3731
    %4690 = vmatpush2.msra.mxu0 %v3730
    %4691 = vmatprep.subr.mxu0 %v3723
    %4692 = vmatpush2.msra.mxu0 %v3722
    %4693 = vmatprep.subr.mxu0 %v3715
    %4694 = vmatpush2.msra.mxu0 %v3714
    %4695 = vmatprep.subr.mxu0 %v3707
    %4696 = vmatpush2.msra.mxu0 %v3706
    %4697 = vmatprep.subr.mxu0 %v3699
    %4698 = vmatpush2.msra.mxu0 %v3698
    %4699 = vmatprep.subr.mxu0 %v3691
    %4700 = vmatpush2.msra.mxu0 %v3690
    %4701 = vmatprep.mubr.f32.mxu0 %v2789
    %4702 = vmatmul.mubr.f32.gmra.mxu0 %v2788
    %v4703 = vpop.f32.mrf.mxu0
    %v4704 = vadd.f32 %v4633, %v4703
    %v4705 = vpop.f32.mrf.mxu0
    %v4706 = vadd.f32 %v4635, %v4705
    %4707 = vdwg.mxu0
    %4708 = vmatprep.subr.mxu0 %v2917
    %4709 = vmatpush1.msra.mxu0 %v2916
    %4710 = vmatprep.subr.mxu0 %v2909
    %4711 = vmatpush1.msra.mxu0 %v2908
    %4712 = vmatprep.subr.mxu0 %v2901
    %4713 = vmatpush1.msra.mxu0 %v2900
    %4714 = vmatprep.subr.mxu0 %v2893
    %4715 = vmatpush1.msra.mxu0 %v2892
    %4716 = vmatprep.subr.mxu0 %v2885
    %4717 = vmatpush1.msra.mxu0 %v2884
    %4718 = vmatprep.subr.mxu0 %v2877
    %4719 = vmatpush1.msra.mxu0 %v2876
    %4720 = vmatprep.subr.mxu0 %v2869
    %4721 = vmatpush1.msra.mxu0 %v2868
    %4722 = vmatprep.subr.mxu0 %v2861
    %4723 = vmatpush1.msra.mxu0 %v2860
    %4724 = vmatprep.subr.mxu0 %v2853
    %4725 = vmatpush1.msra.mxu0 %v2852
    %4726 = vmatprep.subr.mxu0 %v2845
    %4727 = vmatpush1.msra.mxu0 %v2844
    %4728 = vmatprep.subr.mxu0 %v2837
    %4729 = vmatpush1.msra.mxu0 %v2836
    %4730 = vmatprep.subr.mxu0 %v2829
    %4731 = vmatpush1.msra.mxu0 %v2828
    %4732 = vmatprep.subr.mxu0 %v2821
    %4733 = vmatpush1.msra.mxu0 %v2820
    %4734 = vmatprep.subr.mxu0 %v2813
    %4735 = vmatpush1.msra.mxu0 %v2812
    %4736 = vmatprep.subr.mxu0 %v2805
    %4737 = vmatpush1.msra.mxu0 %v2804
    %4738 = vmatprep.subr.mxu0 %v2797
    %4739 = vmatpush1.msra.mxu0 %v2796
    %4740 = vmatprep.subr.mxu0 %v3045
    %4741 = vmatpush2.msra.mxu0 %v3044
    %4742 = vmatprep.subr.mxu0 %v3037
    %4743 = vmatpush2.msra.mxu0 %v3036
    %4744 = vmatprep.subr.mxu0 %v3029
    %4745 = vmatpush2.msra.mxu0 %v3028
    %4746 = vmatprep.subr.mxu0 %v3021
    %4747 = vmatpush2.msra.mxu0 %v3020
    %4748 = vmatprep.subr.mxu0 %v3013
    %4749 = vmatpush2.msra.mxu0 %v3012
    %4750 = vmatprep.subr.mxu0 %v3005
    %4751 = vmatpush2.msra.mxu0 %v3004
    %4752 = vmatprep.subr.mxu0 %v2997
    %4753 = vmatpush2.msra.mxu0 %v2996
    %4754 = vmatprep.subr.mxu0 %v2989
    %4755 = vmatpush2.msra.mxu0 %v2988
    %4756 = vmatprep.subr.mxu0 %v2981
    %4757 = vmatpush2.msra.mxu0 %v2980
    %4758 = vmatprep.subr.mxu0 %v2973
    %4759 = vmatpush2.msra.mxu0 %v2972
    %4760 = vmatprep.subr.mxu0 %v2965
    %4761 = vmatpush2.msra.mxu0 %v2964
    %4762 = vmatprep.subr.mxu0 %v2957
    %4763 = vmatpush2.msra.mxu0 %v2956
    %4764 = vmatprep.subr.mxu0 %v2949
    %4765 = vmatpush2.msra.mxu0 %v2948
    %4766 = vmatprep.subr.mxu0 %v2941
    %4767 = vmatpush2.msra.mxu0 %v2940
    %4768 = vmatprep.subr.mxu0 %v2933
    %4769 = vmatpush2.msra.mxu0 %v2932
    %4770 = vmatprep.subr.mxu0 %v2925
    %4771 = vmatpush2.msra.mxu0 %v2924
    %4772 = vmatprep.mubr.f32.mxu0 %v2783
    %4773 = vmatmul.mubr.f32.gmra.mxu0 %v2782
    %v4774 = vpop.f32.mrf.mxu0
    %v4775 = vadd.f32 %v3843, %v4774
    %v4776 = vpop.f32.mrf.mxu0
    %v4777 = vadd.f32 %v3847, %v4776
    %4778 = vdwg.mxu0
    %4779 = vmatprep.subr.mxu0 %v3173
    %4780 = vmatpush1.msra.mxu0 %v3172
    %4781 = vmatprep.subr.mxu0 %v3165
    %4782 = vmatpush1.msra.mxu0 %v3164
    %4783 = vmatprep.subr.mxu0 %v3157
    %4784 = vmatpush1.msra.mxu0 %v3156
    %4785 = vmatprep.subr.mxu0 %v3149
    %4786 = vmatpush1.msra.mxu0 %v3148
    %4787 = vmatprep.subr.mxu0 %v3141
    %4788 = vmatpush1.msra.mxu0 %v3140
    %4789 = vmatprep.subr.mxu0 %v3133
    %4790 = vmatpush1.msra.mxu0 %v3132
    %4791 = vmatprep.subr.mxu0 %v3125
    %4792 = vmatpush1.msra.mxu0 %v3124
    %4793 = vmatprep.subr.mxu0 %v3117
    %4794 = vmatpush1.msra.mxu0 %v3116
    %4795 = vmatprep.subr.mxu0 %v3109
    %4796 = vmatpush1.msra.mxu0 %v3108
    %4797 = vmatprep.subr.mxu0 %v3101
    %4798 = vmatpush1.msra.mxu0 %v3100
    %4799 = vmatprep.subr.mxu0 %v3093
    %4800 = vmatpush1.msra.mxu0 %v3092
    %4801 = vmatprep.subr.mxu0 %v3085
    %4802 = vmatpush1.msra.mxu0 %v3084
    %4803 = vmatprep.subr.mxu0 %v3077
    %4804 = vmatpush1.msra.mxu0 %v3076
    %4805 = vmatprep.subr.mxu0 %v3069
    %4806 = vmatpush1.msra.mxu0 %v3068
    %4807 = vmatprep.subr.mxu0 %v3061
    %4808 = vmatpush1.msra.mxu0 %v3060
    %4809 = vmatprep.subr.mxu0 %v3053
    %4810 = vmatpush1.msra.mxu0 %v3052
    %4811 = vmatprep.subr.mxu0 %v3301
    %4812 = vmatpush2.msra.mxu0 %v3300
    %4813 = vmatprep.subr.mxu0 %v3293
    %4814 = vmatpush2.msra.mxu0 %v3292
    %4815 = vmatprep.subr.mxu0 %v3285
    %4816 = vmatpush2.msra.mxu0 %v3284
    %4817 = vmatprep.subr.mxu0 %v3277
    %4818 = vmatpush2.msra.mxu0 %v3276
    %4819 = vmatprep.subr.mxu0 %v3269
    %4820 = vmatpush2.msra.mxu0 %v3268
    %4821 = vmatprep.subr.mxu0 %v3261
    %4822 = vmatpush2.msra.mxu0 %v3260
    %4823 = vmatprep.subr.mxu0 %v3253
    %4824 = vmatpush2.msra.mxu0 %v3252
    %4825 = vmatprep.subr.mxu0 %v3245
    %4826 = vmatpush2.msra.mxu0 %v3244
    %4827 = vmatprep.subr.mxu0 %v3237
    %4828 = vmatpush2.msra.mxu0 %v3236
    %4829 = vmatprep.subr.mxu0 %v3229
    %4830 = vmatpush2.msra.mxu0 %v3228
    %4831 = vmatprep.subr.mxu0 %v3221
    %4832 = vmatpush2.msra.mxu0 %v3220
    %4833 = vmatprep.subr.mxu0 %v3213
    %4834 = vmatpush2.msra.mxu0 %v3212
    %4835 = vmatprep.subr.mxu0 %v3205
    %4836 = vmatpush2.msra.mxu0 %v3204
    %4837 = vmatprep.subr.mxu0 %v3197
    %4838 = vmatpush2.msra.mxu0 %v3196
    %4839 = vmatprep.subr.mxu0 %v3189
    %4840 = vmatpush2.msra.mxu0 %v3188
    %4841 = vmatprep.subr.mxu0 %v3181
    %4842 = vmatpush2.msra.mxu0 %v3180
    %4843 = vmatprep.mubr.f32.mxu0 %v2785
    %4844 = vmatmul.mubr.f32.gmra.mxu0 %v2784
    %v4845 = vpop.f32.mrf.mxu0
    %v4846 = vadd.f32 %v4775, %v4845
    %v4847 = vpop.f32.mrf.mxu0
    %v4848 = vadd.f32 %v4777, %v4847
    %4849 = vdwg.mxu0
    %4850 = vmatprep.subr.mxu0 %v3429
    %4851 = vmatpush1.msra.mxu0 %v3428
    %4852 = vmatprep.subr.mxu0 %v3421
    %4853 = vmatpush1.msra.mxu0 %v3420
    %4854 = vmatprep.subr.mxu0 %v3413
    %4855 = vmatpush1.msra.mxu0 %v3412
    %4856 = vmatprep.subr.mxu0 %v3405
    %4857 = vmatpush1.msra.mxu0 %v3404
    %4858 = vmatprep.subr.mxu0 %v3397
    %4859 = vmatpush1.msra.mxu0 %v3396
    %4860 = vmatprep.subr.mxu0 %v3389
    %4861 = vmatpush1.msra.mxu0 %v3388
    %4862 = vmatprep.subr.mxu0 %v3381
    %4863 = vmatpush1.msra.mxu0 %v3380
    %4864 = vmatprep.subr.mxu0 %v3373
    %4865 = vmatpush1.msra.mxu0 %v3372
    %4866 = vmatprep.subr.mxu0 %v3365
    %4867 = vmatpush1.msra.mxu0 %v3364
    %4868 = vmatprep.subr.mxu0 %v3357
    %4869 = vmatpush1.msra.mxu0 %v3356
    %4870 = vmatprep.subr.mxu0 %v3349
    %4871 = vmatpush1.msra.mxu0 %v3348
    %4872 = vmatprep.subr.mxu0 %v3341
    %4873 = vmatpush1.msra.mxu0 %v3340
    %4874 = vmatprep.subr.mxu0 %v3333
    %4875 = vmatpush1.msra.mxu0 %v3332
    %4876 = vmatprep.subr.mxu0 %v3325
    %4877 = vmatpush1.msra.mxu0 %v3324
    %4878 = vmatprep.subr.mxu0 %v3317
    %4879 = vmatpush1.msra.mxu0 %v3316
    %4880 = vmatprep.subr.mxu0 %v3309
    %4881 = vmatpush1.msra.mxu0 %v3308
    %4882 = vmatprep.subr.mxu0 %v3557
    %4883 = vmatpush2.msra.mxu0 %v3556
    %4884 = vmatprep.subr.mxu0 %v3549
    %4885 = vmatpush2.msra.mxu0 %v3548
    %4886 = vmatprep.subr.mxu0 %v3541
    %4887 = vmatpush2.msra.mxu0 %v3540
    %4888 = vmatprep.subr.mxu0 %v3533
    %4889 = vmatpush2.msra.mxu0 %v3532
    %4890 = vmatprep.subr.mxu0 %v3525
    %4891 = vmatpush2.msra.mxu0 %v3524
    %4892 = vmatprep.subr.mxu0 %v3517
    %4893 = vmatpush2.msra.mxu0 %v3516
    %4894 = vmatprep.subr.mxu0 %v3509
    %4895 = vmatpush2.msra.mxu0 %v3508
    %4896 = vmatprep.subr.mxu0 %v3501
    %4897 = vmatpush2.msra.mxu0 %v3500
    %4898 = vmatprep.subr.mxu0 %v3493
    %4899 = vmatpush2.msra.mxu0 %v3492
    %4900 = vmatprep.subr.mxu0 %v3485
    %4901 = vmatpush2.msra.mxu0 %v3484
    %4902 = vmatprep.subr.mxu0 %v3477
    %4903 = vmatpush2.msra.mxu0 %v3476
    %4904 = vmatprep.subr.mxu0 %v3469
    %4905 = vmatpush2.msra.mxu0 %v3468
    %4906 = vmatprep.subr.mxu0 %v3461
    %4907 = vmatpush2.msra.mxu0 %v3460
    %4908 = vmatprep.subr.mxu0 %v3453
    %4909 = vmatpush2.msra.mxu0 %v3452
    %4910 = vmatprep.subr.mxu0 %v3445
    %4911 = vmatpush2.msra.mxu0 %v3444
    %4912 = vmatprep.subr.mxu0 %v3437
    %4913 = vmatpush2.msra.mxu0 %v3436
    %4914 = vmatprep.mubr.f32.mxu0 %v2787
    %4915 = vmatmul.mubr.f32.gmra.mxu0 %v2786
    %v4916 = vpop.f32.mrf.mxu0
    %v4917 = vadd.f32 %v4846, %v4916
    %v4918 = vpop.f32.mrf.mxu0
    %v4919 = vadd.f32 %v4848, %v4918
    %4920 = vdwg.mxu0
    %4921 = vmatprep.subr.mxu0 %v3685
    %4922 = vmatpush1.msra.mxu0 %v3684
    %4923 = vmatprep.subr.mxu0 %v3677
    %4924 = vmatpush1.msra.mxu0 %v3676
    %4925 = vmatprep.subr.mxu0 %v3669
    %4926 = vmatpush1.msra.mxu0 %v3668
    %4927 = vmatprep.subr.mxu0 %v3661
    %4928 = vmatpush1.msra.mxu0 %v3660
    %4929 = vmatprep.subr.mxu0 %v3653
    %4930 = vmatpush1.msra.mxu0 %v3652
    %4931 = vmatprep.subr.mxu0 %v3645
    %4932 = vmatpush1.msra.mxu0 %v3644
    %4933 = vmatprep.subr.mxu0 %v3637
    %4934 = vmatpush1.msra.mxu0 %v3636
    %4935 = vmatprep.subr.mxu0 %v3629
    %4936 = vmatpush1.msra.mxu0 %v3628
    %4937 = vmatprep.subr.mxu0 %v3621
    %4938 = vmatpush1.msra.mxu0 %v3620
    %4939 = vmatprep.subr.mxu0 %v3613
    %4940 = vmatpush1.msra.mxu0 %v3612
    %4941 = vmatprep.subr.mxu0 %v3605
    %4942 = vmatpush1.msra.mxu0 %v3604
    %4943 = vmatprep.subr.mxu0 %v3597
    %4944 = vmatpush1.msra.mxu0 %v3596
    %4945 = vmatprep.subr.mxu0 %v3589
    %4946 = vmatpush1.msra.mxu0 %v3588
    %4947 = vmatprep.subr.mxu0 %v3581
    %4948 = vmatpush1.msra.mxu0 %v3580
    %4949 = vmatprep.subr.mxu0 %v3573
    %4950 = vmatpush1.msra.mxu0 %v3572
    %4951 = vmatprep.subr.mxu0 %v3565
    %4952 = vmatpush1.msra.mxu0 %v3564
    %4953 = vmatprep.subr.mxu0 %v3813
    %4954 = vmatpush2.msra.mxu0 %v3812
    %4955 = vmatprep.subr.mxu0 %v3805
    %4956 = vmatpush2.msra.mxu0 %v3804
    %4957 = vmatprep.subr.mxu0 %v3797
    %4958 = vmatpush2.msra.mxu0 %v3796
    %4959 = vmatprep.subr.mxu0 %v3789
    %4960 = vmatpush2.msra.mxu0 %v3788
    %4961 = vmatprep.subr.mxu0 %v3781
    %4962 = vmatpush2.msra.mxu0 %v3780
    %4963 = vmatprep.subr.mxu0 %v3773
    %4964 = vmatpush2.msra.mxu0 %v3772
    %4965 = vmatprep.subr.mxu0 %v3765
    %4966 = vmatpush2.msra.mxu0 %v3764
    %4967 = vmatprep.subr.mxu0 %v3757
    %4968 = vmatpush2.msra.mxu0 %v3756
    %4969 = vmatprep.subr.mxu0 %v3749
    %4970 = vmatpush2.msra.mxu0 %v3748
    %4971 = vmatprep.subr.mxu0 %v3741
    %4972 = vmatpush2.msra.mxu0 %v3740
    %4973 = vmatprep.subr.mxu0 %v3733
    %4974 = vmatpush2.msra.mxu0 %v3732
    %4975 = vmatprep.subr.mxu0 %v3725
    %4976 = vmatpush2.msra.mxu0 %v3724
    %4977 = vmatprep.subr.mxu0 %v3717
    %4978 = vmatpush2.msra.mxu0 %v3716
    %4979 = vmatprep.subr.mxu0 %v3709
    %4980 = vmatpush2.msra.mxu0 %v3708
    %4981 = vmatprep.subr.mxu0 %v3701
    %4982 = vmatpush2.msra.mxu0 %v3700
    %4983 = vmatprep.subr.mxu0 %v3693
    %4984 = vmatpush2.msra.mxu0 %v3692
    %4985 = vmatprep.mubr.f32.mxu0 %v2789
    %4986 = vmatmul.mubr.f32.gmra.mxu0 %v2788
    %v4987 = vpop.f32.mrf.mxu0
    %v4988 = vadd.f32 %v4917, %v4987
    %v4989 = vpop.f32.mrf.mxu0
    %v4990 = vadd.f32 %v4919, %v4989
    %4991 = vdwg.mxu0
    %v4992 = vmax.f32 %v4136, 0.0
    %v4993 = vmax.f32 %v4138, 0.0
    %v4994 = vmax.f32 %v4420, 0.0
    %v4995 = vmax.f32 %v4422, 0.0
    %v4996 = vmax.f32 %v4704, 0.0
    %v4997 = vmax.f32 %v4706, 0.0
    %v4998 = vmax.f32 %v4988, 0.0
    %v4999 = vmax.f32 %v4990, 0.0
    %v5000 = vadd.f32 %v572, %v4992
    %v5001 = vadd.f32 %v573, %v4993
    %v5002 = vadd.f32 %v574, %v4994
    %v5003 = vadd.f32 %v575, %v4995
    %v5004 = vadd.f32 %v576, %v4996
    %v5005 = vadd.f32 %v577, %v4997
    %v5006 = vadd.f32 %v578, %v4998
    %v5007 = vadd.f32 %v579, %v4999
    %v5008 = vld [vmem:[#allocation14] sm:$0xff]
    %v5009 = vld [vmem:[#allocation14 + $0x8] sm:$0xff]
    %v5010 = vld [vmem:[#allocation14 + $0x10] sm:$0xff]
    %v5011 = vld [vmem:[#allocation14 + $0x18] sm:$0xff]
    %v5012 = vld [vmem:[#allocation14 + $0x20] sm:$0xff]
    %v5013 = vld [vmem:[#allocation14 + $0x28] sm:$0xff]
    %v5014 = vld [vmem:[#allocation14 + $0x30] sm:$0xff]
    %v5015 = vld [vmem:[#allocation14 + $0x38] sm:$0xff]
    %v5016 = vld [vmem:[#allocation14 + $0x40] sm:$0xff]
    %v5017 = vld [vmem:[#allocation14 + $0x48] sm:$0xff]
    %v5018 = vld [vmem:[#allocation14 + $0x50] sm:$0xff]
    %v5019 = vld [vmem:[#allocation14 + $0x58] sm:$0xff]
    %v5020 = vld [vmem:[#allocation14 + $0x60] sm:$0xff]
    %v5021 = vld [vmem:[#allocation14 + $0x68] sm:$0xff]
    %v5022 = vld [vmem:[#allocation14 + $0x70] sm:$0xff]
    %v5023 = vld [vmem:[#allocation14 + $0x78] sm:$0xff]
    %v5024 = vld [vmem:[#allocation14 + $0x80] sm:$0xff]
    %v5025 = vld [vmem:[#allocation14 + $0x88] sm:$0xff]
    %v5026 = vld [vmem:[#allocation14 + $0x90] sm:$0xff]
    %v5027 = vld [vmem:[#allocation14 + $0x98] sm:$0xff]
    %v5028 = vld [vmem:[#allocation14 + $0xa0] sm:$0xff]
    %v5029 = vld [vmem:[#allocation14 + $0xa8] sm:$0xff]
    %v5030 = vld [vmem:[#allocation14 + $0xb0] sm:$0xff]
    %v5031 = vld [vmem:[#allocation14 + $0xb8] sm:$0xff]
    %v5032 = vld [vmem:[#allocation14 + $0xc0] sm:$0xff]
    %v5033 = vld [vmem:[#allocation14 + $0xc8] sm:$0xff]
    %v5034 = vld [vmem:[#allocation14 + $0xd0] sm:$0xff]
    %v5035 = vld [vmem:[#allocation14 + $0xd8] sm:$0xff]
    %v5036 = vld [vmem:[#allocation14 + $0xe0] sm:$0xff]
    %v5037 = vld [vmem:[#allocation14 + $0xe8] sm:$0xff]
    %v5038 = vld [vmem:[#allocation14 + $0xf0] sm:$0xff]
    %v5039 = vld [vmem:[#allocation14 + $0xf8] sm:$0xff]
    %v5040 = vld [vmem:[#allocation14 + $0x100] sm:$0xff]
    %v5041 = vld [vmem:[#allocation14 + $0x108] sm:$0xff]
    %v5042 = vld [vmem:[#allocation14 + $0x110] sm:$0xff]
    %v5043 = vld [vmem:[#allocation14 + $0x118] sm:$0xff]
    %v5044 = vld [vmem:[#allocation14 + $0x120] sm:$0xff]
    %v5045 = vld [vmem:[#allocation14 + $0x128] sm:$0xff]
    %v5046 = vld [vmem:[#allocation14 + $0x130] sm:$0xff]
    %v5047 = vld [vmem:[#allocation14 + $0x138] sm:$0xff]
    %v5048 = vld [vmem:[#allocation14 + $0x140] sm:$0xff]
    %v5049 = vld [vmem:[#allocation14 + $0x148] sm:$0xff]
    %v5050 = vld [vmem:[#allocation14 + $0x150] sm:$0xff]
    %v5051 = vld [vmem:[#allocation14 + $0x158] sm:$0xff]
    %v5052 = vld [vmem:[#allocation14 + $0x160] sm:$0xff]
    %v5053 = vld [vmem:[#allocation14 + $0x168] sm:$0xff]
    %v5054 = vld [vmem:[#allocation14 + $0x170] sm:$0xff]
    %v5055 = vld [vmem:[#allocation14 + $0x178] sm:$0xff]
    %v5056 = vld [vmem:[#allocation14 + $0x180] sm:$0xff]
    %v5057 = vld [vmem:[#allocation14 + $0x188] sm:$0xff]
    %v5058 = vld [vmem:[#allocation14 + $0x190] sm:$0xff]
    %v5059 = vld [vmem:[#allocation14 + $0x198] sm:$0xff]
    %v5060 = vld [vmem:[#allocation14 + $0x1a0] sm:$0xff]
    %v5061 = vld [vmem:[#allocation14 + $0x1a8] sm:$0xff]
    %v5062 = vld [vmem:[#allocation14 + $0x1b0] sm:$0xff]
    %v5063 = vld [vmem:[#allocation14 + $0x1b8] sm:$0xff]
    %v5064 = vld [vmem:[#allocation14 + $0x1c0] sm:$0xff]
    %v5065 = vld [vmem:[#allocation14 + $0x1c8] sm:$0xff]
    %v5066 = vld [vmem:[#allocation14 + $0x1d0] sm:$0xff]
    %v5067 = vld [vmem:[#allocation14 + $0x1d8] sm:$0xff]
    %v5068 = vld [vmem:[#allocation14 + $0x1e0] sm:$0xff]
    %v5069 = vld [vmem:[#allocation14 + $0x1e8] sm:$0xff]
    %v5070 = vld [vmem:[#allocation14 + $0x1f0] sm:$0xff]
    %v5071 = vld [vmem:[#allocation14 + $0x1f8] sm:$0xff]
    %v5072 = vld [vmem:[#allocation14 + $0x200] sm:$0xff]
    %v5073 = vld [vmem:[#allocation14 + $0x208] sm:$0xff]
    %v5074 = vld [vmem:[#allocation14 + $0x210] sm:$0xff]
    %v5075 = vld [vmem:[#allocation14 + $0x218] sm:$0xff]
    %v5076 = vld [vmem:[#allocation14 + $0x220] sm:$0xff]
    %v5077 = vld [vmem:[#allocation14 + $0x228] sm:$0xff]
    %v5078 = vld [vmem:[#allocation14 + $0x230] sm:$0xff]
    %v5079 = vld [vmem:[#allocation14 + $0x238] sm:$0xff]
    %v5080 = vld [vmem:[#allocation14 + $0x240] sm:$0xff]
    %v5081 = vld [vmem:[#allocation14 + $0x248] sm:$0xff]
    %v5082 = vld [vmem:[#allocation14 + $0x250] sm:$0xff]
    %v5083 = vld [vmem:[#allocation14 + $0x258] sm:$0xff]
    %v5084 = vld [vmem:[#allocation14 + $0x260] sm:$0xff]
    %v5085 = vld [vmem:[#allocation14 + $0x268] sm:$0xff]
    %v5086 = vld [vmem:[#allocation14 + $0x270] sm:$0xff]
    %v5087 = vld [vmem:[#allocation14 + $0x278] sm:$0xff]
    %v5088 = vld [vmem:[#allocation14 + $0x280] sm:$0xff]
    %v5089 = vld [vmem:[#allocation14 + $0x288] sm:$0xff]
    %v5090 = vld [vmem:[#allocation14 + $0x290] sm:$0xff]
    %v5091 = vld [vmem:[#allocation14 + $0x298] sm:$0xff]
    %v5092 = vld [vmem:[#allocation14 + $0x2a0] sm:$0xff]
    %v5093 = vld [vmem:[#allocation14 + $0x2a8] sm:$0xff]
    %v5094 = vld [vmem:[#allocation14 + $0x2b0] sm:$0xff]
    %v5095 = vld [vmem:[#allocation14 + $0x2b8] sm:$0xff]
    %v5096 = vld [vmem:[#allocation14 + $0x2c0] sm:$0xff]
    %v5097 = vld [vmem:[#allocation14 + $0x2c8] sm:$0xff]
    %v5098 = vld [vmem:[#allocation14 + $0x2d0] sm:$0xff]
    %v5099 = vld [vmem:[#allocation14 + $0x2d8] sm:$0xff]
    %v5100 = vld [vmem:[#allocation14 + $0x2e0] sm:$0xff]
    %v5101 = vld [vmem:[#allocation14 + $0x2e8] sm:$0xff]
    %v5102 = vld [vmem:[#allocation14 + $0x2f0] sm:$0xff]
    %v5103 = vld [vmem:[#allocation14 + $0x2f8] sm:$0xff]
    %v5104 = vld [vmem:[#allocation14 + $0x300] sm:$0xff]
    %v5105 = vld [vmem:[#allocation14 + $0x308] sm:$0xff]
    %v5106 = vld [vmem:[#allocation14 + $0x310] sm:$0xff]
    %v5107 = vld [vmem:[#allocation14 + $0x318] sm:$0xff]
    %v5108 = vld [vmem:[#allocation14 + $0x320] sm:$0xff]
    %v5109 = vld [vmem:[#allocation14 + $0x328] sm:$0xff]
    %v5110 = vld [vmem:[#allocation14 + $0x330] sm:$0xff]
    %v5111 = vld [vmem:[#allocation14 + $0x338] sm:$0xff]
    %v5112 = vld [vmem:[#allocation14 + $0x340] sm:$0xff]
    %v5113 = vld [vmem:[#allocation14 + $0x348] sm:$0xff]
    %v5114 = vld [vmem:[#allocation14 + $0x350] sm:$0xff]
    %v5115 = vld [vmem:[#allocation14 + $0x358] sm:$0xff]
    %v5116 = vld [vmem:[#allocation14 + $0x360] sm:$0xff]
    %v5117 = vld [vmem:[#allocation14 + $0x368] sm:$0xff]
    %v5118 = vld [vmem:[#allocation14 + $0x370] sm:$0xff]
    %v5119 = vld [vmem:[#allocation14 + $0x378] sm:$0xff]
    %v5120 = vld [vmem:[#allocation14 + $0x380] sm:$0xff]
    %v5121 = vld [vmem:[#allocation14 + $0x388] sm:$0xff]
    %v5122 = vld [vmem:[#allocation14 + $0x390] sm:$0xff]
    %v5123 = vld [vmem:[#allocation14 + $0x398] sm:$0xff]
    %v5124 = vld [vmem:[#allocation14 + $0x3a0] sm:$0xff]
    %v5125 = vld [vmem:[#allocation14 + $0x3a8] sm:$0xff]
    %v5126 = vld [vmem:[#allocation14 + $0x3b0] sm:$0xff]
    %v5127 = vld [vmem:[#allocation14 + $0x3b8] sm:$0xff]
    %v5128 = vld [vmem:[#allocation14 + $0x3c0] sm:$0xff]
    %v5129 = vld [vmem:[#allocation14 + $0x3c8] sm:$0xff]
    %v5130 = vld [vmem:[#allocation14 + $0x3d0] sm:$0xff]
    %v5131 = vld [vmem:[#allocation14 + $0x3d8] sm:$0xff]
    %v5132 = vld [vmem:[#allocation14 + $0x3e0] sm:$0xff]
    %v5133 = vld [vmem:[#allocation14 + $0x3e8] sm:$0xff]
    %v5134 = vld [vmem:[#allocation14 + $0x3f0] sm:$0xff]
    %v5135 = vld [vmem:[#allocation14 + $0x3f8] sm:$0xff]
    %v5136 = vld [vmem:[#allocation14 + $0x400] sm:$0xff]
    %v5137 = vld [vmem:[#allocation14 + $0x408] sm:$0xff]
    %v5138 = vld [vmem:[#allocation14 + $0x410] sm:$0xff]
    %v5139 = vld [vmem:[#allocation14 + $0x418] sm:$0xff]
    %v5140 = vld [vmem:[#allocation14 + $0x420] sm:$0xff]
    %v5141 = vld [vmem:[#allocation14 + $0x428] sm:$0xff]
    %v5142 = vld [vmem:[#allocation14 + $0x430] sm:$0xff]
    %v5143 = vld [vmem:[#allocation14 + $0x438] sm:$0xff]
    %v5144 = vld [vmem:[#allocation14 + $0x440] sm:$0xff]
    %v5145 = vld [vmem:[#allocation14 + $0x448] sm:$0xff]
    %v5146 = vld [vmem:[#allocation14 + $0x450] sm:$0xff]
    %v5147 = vld [vmem:[#allocation14 + $0x458] sm:$0xff]
    %v5148 = vld [vmem:[#allocation14 + $0x460] sm:$0xff]
    %v5149 = vld [vmem:[#allocation14 + $0x468] sm:$0xff]
    %v5150 = vld [vmem:[#allocation14 + $0x470] sm:$0xff]
    %v5151 = vld [vmem:[#allocation14 + $0x478] sm:$0xff]
    %v5152 = vld [vmem:[#allocation14 + $0x480] sm:$0xff]
    %v5153 = vld [vmem:[#allocation14 + $0x488] sm:$0xff]
    %v5154 = vld [vmem:[#allocation14 + $0x490] sm:$0xff]
    %v5155 = vld [vmem:[#allocation14 + $0x498] sm:$0xff]
    %v5156 = vld [vmem:[#allocation14 + $0x4a0] sm:$0xff]
    %v5157 = vld [vmem:[#allocation14 + $0x4a8] sm:$0xff]
    %v5158 = vld [vmem:[#allocation14 + $0x4b0] sm:$0xff]
    %v5159 = vld [vmem:[#allocation14 + $0x4b8] sm:$0xff]
    %v5160 = vld [vmem:[#allocation14 + $0x4c0] sm:$0xff]
    %v5161 = vld [vmem:[#allocation14 + $0x4c8] sm:$0xff]
    %v5162 = vld [vmem:[#allocation14 + $0x4d0] sm:$0xff]
    %v5163 = vld [vmem:[#allocation14 + $0x4d8] sm:$0xff]
    %v5164 = vld [vmem:[#allocation14 + $0x4e0] sm:$0xff]
    %v5165 = vld [vmem:[#allocation14 + $0x4e8] sm:$0xff]
    %v5166 = vld [vmem:[#allocation14 + $0x4f0] sm:$0xff]
    %v5167 = vld [vmem:[#allocation14 + $0x4f8] sm:$0xff]
    %v5168 = vld [vmem:[#allocation14 + $0x500] sm:$0xff]
    %v5169 = vld [vmem:[#allocation14 + $0x508] sm:$0xff]
    %v5170 = vld [vmem:[#allocation14 + $0x510] sm:$0xff]
    %v5171 = vld [vmem:[#allocation14 + $0x518] sm:$0xff]
    %v5172 = vld [vmem:[#allocation14 + $0x520] sm:$0xff]
    %v5173 = vld [vmem:[#allocation14 + $0x528] sm:$0xff]
    %v5174 = vld [vmem:[#allocation14 + $0x530] sm:$0xff]
    %v5175 = vld [vmem:[#allocation14 + $0x538] sm:$0xff]
    %v5176 = vld [vmem:[#allocation14 + $0x540] sm:$0xff]
    %v5177 = vld [vmem:[#allocation14 + $0x548] sm:$0xff]
    %v5178 = vld [vmem:[#allocation14 + $0x550] sm:$0xff]
    %v5179 = vld [vmem:[#allocation14 + $0x558] sm:$0xff]
    %v5180 = vld [vmem:[#allocation14 + $0x560] sm:$0xff]
    %v5181 = vld [vmem:[#allocation14 + $0x568] sm:$0xff]
    %v5182 = vld [vmem:[#allocation14 + $0x570] sm:$0xff]
    %v5183 = vld [vmem:[#allocation14 + $0x578] sm:$0xff]
    %v5184 = vld [vmem:[#allocation14 + $0x580] sm:$0xff]
    %v5185 = vld [vmem:[#allocation14 + $0x588] sm:$0xff]
    %v5186 = vld [vmem:[#allocation14 + $0x590] sm:$0xff]
    %v5187 = vld [vmem:[#allocation14 + $0x598] sm:$0xff]
    %v5188 = vld [vmem:[#allocation14 + $0x5a0] sm:$0xff]
    %v5189 = vld [vmem:[#allocation14 + $0x5a8] sm:$0xff]
    %v5190 = vld [vmem:[#allocation14 + $0x5b0] sm:$0xff]
    %v5191 = vld [vmem:[#allocation14 + $0x5b8] sm:$0xff]
    %v5192 = vld [vmem:[#allocation14 + $0x5c0] sm:$0xff]
    %v5193 = vld [vmem:[#allocation14 + $0x5c8] sm:$0xff]
    %v5194 = vld [vmem:[#allocation14 + $0x5d0] sm:$0xff]
    %v5195 = vld [vmem:[#allocation14 + $0x5d8] sm:$0xff]
    %v5196 = vld [vmem:[#allocation14 + $0x5e0] sm:$0xff]
    %v5197 = vld [vmem:[#allocation14 + $0x5e8] sm:$0xff]
    %v5198 = vld [vmem:[#allocation14 + $0x5f0] sm:$0xff]
    %v5199 = vld [vmem:[#allocation14 + $0x5f8] sm:$0xff]
    %v5200 = vld [vmem:[#allocation14 + $0x600] sm:$0xff]
    %v5201 = vld [vmem:[#allocation14 + $0x608] sm:$0xff]
    %v5202 = vld [vmem:[#allocation14 + $0x610] sm:$0xff]
    %v5203 = vld [vmem:[#allocation14 + $0x618] sm:$0xff]
    %v5204 = vld [vmem:[#allocation14 + $0x620] sm:$0xff]
    %v5205 = vld [vmem:[#allocation14 + $0x628] sm:$0xff]
    %v5206 = vld [vmem:[#allocation14 + $0x630] sm:$0xff]
    %v5207 = vld [vmem:[#allocation14 + $0x638] sm:$0xff]
    %v5208 = vld [vmem:[#allocation14 + $0x640] sm:$0xff]
    %v5209 = vld [vmem:[#allocation14 + $0x648] sm:$0xff]
    %v5210 = vld [vmem:[#allocation14 + $0x650] sm:$0xff]
    %v5211 = vld [vmem:[#allocation14 + $0x658] sm:$0xff]
    %v5212 = vld [vmem:[#allocation14 + $0x660] sm:$0xff]
    %v5213 = vld [vmem:[#allocation14 + $0x668] sm:$0xff]
    %v5214 = vld [vmem:[#allocation14 + $0x670] sm:$0xff]
    %v5215 = vld [vmem:[#allocation14 + $0x678] sm:$0xff]
    %v5216 = vld [vmem:[#allocation14 + $0x680] sm:$0xff]
    %v5217 = vld [vmem:[#allocation14 + $0x688] sm:$0xff]
    %v5218 = vld [vmem:[#allocation14 + $0x690] sm:$0xff]
    %v5219 = vld [vmem:[#allocation14 + $0x698] sm:$0xff]
    %v5220 = vld [vmem:[#allocation14 + $0x6a0] sm:$0xff]
    %v5221 = vld [vmem:[#allocation14 + $0x6a8] sm:$0xff]
    %v5222 = vld [vmem:[#allocation14 + $0x6b0] sm:$0xff]
    %v5223 = vld [vmem:[#allocation14 + $0x6b8] sm:$0xff]
    %v5224 = vld [vmem:[#allocation14 + $0x6c0] sm:$0xff]
    %v5225 = vld [vmem:[#allocation14 + $0x6c8] sm:$0xff]
    %v5226 = vld [vmem:[#allocation14 + $0x6d0] sm:$0xff]
    %v5227 = vld [vmem:[#allocation14 + $0x6d8] sm:$0xff]
    %v5228 = vld [vmem:[#allocation14 + $0x6e0] sm:$0xff]
    %v5229 = vld [vmem:[#allocation14 + $0x6e8] sm:$0xff]
    %v5230 = vld [vmem:[#allocation14 + $0x6f0] sm:$0xff]
    %v5231 = vld [vmem:[#allocation14 + $0x6f8] sm:$0xff]
    %v5232 = vld [vmem:[#allocation14 + $0x700] sm:$0xff]
    %v5233 = vld [vmem:[#allocation14 + $0x708] sm:$0xff]
    %v5234 = vld [vmem:[#allocation14 + $0x710] sm:$0xff]
    %v5235 = vld [vmem:[#allocation14 + $0x718] sm:$0xff]
    %v5236 = vld [vmem:[#allocation14 + $0x720] sm:$0xff]
    %v5237 = vld [vmem:[#allocation14 + $0x728] sm:$0xff]
    %v5238 = vld [vmem:[#allocation14 + $0x730] sm:$0xff]
    %v5239 = vld [vmem:[#allocation14 + $0x738] sm:$0xff]
    %v5240 = vld [vmem:[#allocation14 + $0x740] sm:$0xff]
    %v5241 = vld [vmem:[#allocation14 + $0x748] sm:$0xff]
    %v5242 = vld [vmem:[#allocation14 + $0x750] sm:$0xff]
    %v5243 = vld [vmem:[#allocation14 + $0x758] sm:$0xff]
    %v5244 = vld [vmem:[#allocation14 + $0x760] sm:$0xff]
    %v5245 = vld [vmem:[#allocation14 + $0x768] sm:$0xff]
    %v5246 = vld [vmem:[#allocation14 + $0x770] sm:$0xff]
    %v5247 = vld [vmem:[#allocation14 + $0x778] sm:$0xff]
    %v5248 = vld [vmem:[#allocation14 + $0x780] sm:$0xff]
    %v5249 = vld [vmem:[#allocation14 + $0x788] sm:$0xff]
    %v5250 = vld [vmem:[#allocation14 + $0x790] sm:$0xff]
    %v5251 = vld [vmem:[#allocation14 + $0x798] sm:$0xff]
    %v5252 = vld [vmem:[#allocation14 + $0x7a0] sm:$0xff]
    %v5253 = vld [vmem:[#allocation14 + $0x7a8] sm:$0xff]
    %v5254 = vld [vmem:[#allocation14 + $0x7b0] sm:$0xff]
    %v5255 = vld [vmem:[#allocation14 + $0x7b8] sm:$0xff]
    %v5256 = vld [vmem:[#allocation14 + $0x7c0] sm:$0xff]
    %v5257 = vld [vmem:[#allocation14 + $0x7c8] sm:$0xff]
    %v5258 = vld [vmem:[#allocation14 + $0x7d0] sm:$0xff]
    %v5259 = vld [vmem:[#allocation14 + $0x7d8] sm:$0xff]
    %v5260 = vld [vmem:[#allocation14 + $0x7e0] sm:$0xff]
    %v5261 = vld [vmem:[#allocation14 + $0x7e8] sm:$0xff]
    %v5262 = vld [vmem:[#allocation14 + $0x7f0] sm:$0xff]
    %v5263 = vld [vmem:[#allocation14 + $0x7f8] sm:$0xff]
    %v5264 = vld [vmem:[#allocation14 + $0x800] sm:$0xff]
    %v5265 = vld [vmem:[#allocation14 + $0x808] sm:$0xff]
    %v5266 = vld [vmem:[#allocation14 + $0x810] sm:$0xff]
    %v5267 = vld [vmem:[#allocation14 + $0x818] sm:$0xff]
    %v5268 = vld [vmem:[#allocation14 + $0x820] sm:$0xff]
    %v5269 = vld [vmem:[#allocation14 + $0x828] sm:$0xff]
    %v5270 = vld [vmem:[#allocation14 + $0x830] sm:$0xff]
    %v5271 = vld [vmem:[#allocation14 + $0x838] sm:$0xff]
    %v5272 = vld [vmem:[#allocation14 + $0x840] sm:$0xff]
    %v5273 = vld [vmem:[#allocation14 + $0x848] sm:$0xff]
    %v5274 = vld [vmem:[#allocation14 + $0x850] sm:$0xff]
    %v5275 = vld [vmem:[#allocation14 + $0x858] sm:$0xff]
    %v5276 = vld [vmem:[#allocation14 + $0x860] sm:$0xff]
    %v5277 = vld [vmem:[#allocation14 + $0x868] sm:$0xff]
    %v5278 = vld [vmem:[#allocation14 + $0x870] sm:$0xff]
    %v5279 = vld [vmem:[#allocation14 + $0x878] sm:$0xff]
    %v5280 = vld [vmem:[#allocation14 + $0x880] sm:$0xff]
    %v5281 = vld [vmem:[#allocation14 + $0x888] sm:$0xff]
    %v5282 = vld [vmem:[#allocation14 + $0x890] sm:$0xff]
    %v5283 = vld [vmem:[#allocation14 + $0x898] sm:$0xff]
    %v5284 = vld [vmem:[#allocation14 + $0x8a0] sm:$0xff]
    %v5285 = vld [vmem:[#allocation14 + $0x8a8] sm:$0xff]
    %v5286 = vld [vmem:[#allocation14 + $0x8b0] sm:$0xff]
    %v5287 = vld [vmem:[#allocation14 + $0x8b8] sm:$0xff]
    %v5288 = vld [vmem:[#allocation14 + $0x8c0] sm:$0xff]
    %v5289 = vld [vmem:[#allocation14 + $0x8c8] sm:$0xff]
    %v5290 = vld [vmem:[#allocation14 + $0x8d0] sm:$0xff]
    %v5291 = vld [vmem:[#allocation14 + $0x8d8] sm:$0xff]
    %v5292 = vld [vmem:[#allocation14 + $0x8e0] sm:$0xff]
    %v5293 = vld [vmem:[#allocation14 + $0x8e8] sm:$0xff]
    %v5294 = vld [vmem:[#allocation14 + $0x8f0] sm:$0xff]
    %v5295 = vld [vmem:[#allocation14 + $0x8f8] sm:$0xff]
    %v5296 = vld [vmem:[#allocation14 + $0x900] sm:$0xff]
    %v5297 = vld [vmem:[#allocation14 + $0x908] sm:$0xff]
    %v5298 = vld [vmem:[#allocation14 + $0x910] sm:$0xff]
    %v5299 = vld [vmem:[#allocation14 + $0x918] sm:$0xff]
    %v5300 = vld [vmem:[#allocation14 + $0x920] sm:$0xff]
    %v5301 = vld [vmem:[#allocation14 + $0x928] sm:$0xff]
    %v5302 = vld [vmem:[#allocation14 + $0x930] sm:$0xff]
    %v5303 = vld [vmem:[#allocation14 + $0x938] sm:$0xff]
    %v5304 = vld [vmem:[#allocation14 + $0x940] sm:$0xff]
    %v5305 = vld [vmem:[#allocation14 + $0x948] sm:$0xff]
    %v5306 = vld [vmem:[#allocation14 + $0x950] sm:$0xff]
    %v5307 = vld [vmem:[#allocation14 + $0x958] sm:$0xff]
    %v5308 = vld [vmem:[#allocation14 + $0x960] sm:$0xff]
    %v5309 = vld [vmem:[#allocation14 + $0x968] sm:$0xff]
    %v5310 = vld [vmem:[#allocation14 + $0x970] sm:$0xff]
    %v5311 = vld [vmem:[#allocation14 + $0x978] sm:$0xff]
    %v5312 = vld [vmem:[#allocation14 + $0x980] sm:$0xff]
    %v5313 = vld [vmem:[#allocation14 + $0x988] sm:$0xff]
    %v5314 = vld [vmem:[#allocation14 + $0x990] sm:$0xff]
    %v5315 = vld [vmem:[#allocation14 + $0x998] sm:$0xff]
    %v5316 = vld [vmem:[#allocation14 + $0x9a0] sm:$0xff]
    %v5317 = vld [vmem:[#allocation14 + $0x9a8] sm:$0xff]
    %v5318 = vld [vmem:[#allocation14 + $0x9b0] sm:$0xff]
    %v5319 = vld [vmem:[#allocation14 + $0x9b8] sm:$0xff]
    %v5320 = vld [vmem:[#allocation14 + $0x9c0] sm:$0xff]
    %v5321 = vld [vmem:[#allocation14 + $0x9c8] sm:$0xff]
    %v5322 = vld [vmem:[#allocation14 + $0x9d0] sm:$0xff]
    %v5323 = vld [vmem:[#allocation14 + $0x9d8] sm:$0xff]
    %v5324 = vld [vmem:[#allocation14 + $0x9e0] sm:$0xff]
    %v5325 = vld [vmem:[#allocation14 + $0x9e8] sm:$0xff]
    %v5326 = vld [vmem:[#allocation14 + $0x9f0] sm:$0xff]
    %v5327 = vld [vmem:[#allocation14 + $0x9f8] sm:$0xff]
    %v5328 = vld [vmem:[#allocation14 + $0xa00] sm:$0xff]
    %v5329 = vld [vmem:[#allocation14 + $0xa08] sm:$0xff]
    %v5330 = vld [vmem:[#allocation14 + $0xa10] sm:$0xff]
    %v5331 = vld [vmem:[#allocation14 + $0xa18] sm:$0xff]
    %v5332 = vld [vmem:[#allocation14 + $0xa20] sm:$0xff]
    %v5333 = vld [vmem:[#allocation14 + $0xa28] sm:$0xff]
    %v5334 = vld [vmem:[#allocation14 + $0xa30] sm:$0xff]
    %v5335 = vld [vmem:[#allocation14 + $0xa38] sm:$0xff]
    %v5336 = vld [vmem:[#allocation14 + $0xa40] sm:$0xff]
    %v5337 = vld [vmem:[#allocation14 + $0xa48] sm:$0xff]
    %v5338 = vld [vmem:[#allocation14 + $0xa50] sm:$0xff]
    %v5339 = vld [vmem:[#allocation14 + $0xa58] sm:$0xff]
    %v5340 = vld [vmem:[#allocation14 + $0xa60] sm:$0xff]
    %v5341 = vld [vmem:[#allocation14 + $0xa68] sm:$0xff]
    %v5342 = vld [vmem:[#allocation14 + $0xa70] sm:$0xff]
    %v5343 = vld [vmem:[#allocation14 + $0xa78] sm:$0xff]
    %v5344 = vld [vmem:[#allocation14 + $0xa80] sm:$0xff]
    %v5345 = vld [vmem:[#allocation14 + $0xa88] sm:$0xff]
    %v5346 = vld [vmem:[#allocation14 + $0xa90] sm:$0xff]
    %v5347 = vld [vmem:[#allocation14 + $0xa98] sm:$0xff]
    %v5348 = vld [vmem:[#allocation14 + $0xaa0] sm:$0xff]
    %v5349 = vld [vmem:[#allocation14 + $0xaa8] sm:$0xff]
    %v5350 = vld [vmem:[#allocation14 + $0xab0] sm:$0xff]
    %v5351 = vld [vmem:[#allocation14 + $0xab8] sm:$0xff]
    %v5352 = vld [vmem:[#allocation14 + $0xac0] sm:$0xff]
    %v5353 = vld [vmem:[#allocation14 + $0xac8] sm:$0xff]
    %v5354 = vld [vmem:[#allocation14 + $0xad0] sm:$0xff]
    %v5355 = vld [vmem:[#allocation14 + $0xad8] sm:$0xff]
    %v5356 = vld [vmem:[#allocation14 + $0xae0] sm:$0xff]
    %v5357 = vld [vmem:[#allocation14 + $0xae8] sm:$0xff]
    %v5358 = vld [vmem:[#allocation14 + $0xaf0] sm:$0xff]
    %v5359 = vld [vmem:[#allocation14 + $0xaf8] sm:$0xff]
    %v5360 = vld [vmem:[#allocation14 + $0xb00] sm:$0xff]
    %v5361 = vld [vmem:[#allocation14 + $0xb08] sm:$0xff]
    %v5362 = vld [vmem:[#allocation14 + $0xb10] sm:$0xff]
    %v5363 = vld [vmem:[#allocation14 + $0xb18] sm:$0xff]
    %v5364 = vld [vmem:[#allocation14 + $0xb20] sm:$0xff]
    %v5365 = vld [vmem:[#allocation14 + $0xb28] sm:$0xff]
    %v5366 = vld [vmem:[#allocation14 + $0xb30] sm:$0xff]
    %v5367 = vld [vmem:[#allocation14 + $0xb38] sm:$0xff]
    %v5368 = vld [vmem:[#allocation14 + $0xb40] sm:$0xff]
    %v5369 = vld [vmem:[#allocation14 + $0xb48] sm:$0xff]
    %v5370 = vld [vmem:[#allocation14 + $0xb50] sm:$0xff]
    %v5371 = vld [vmem:[#allocation14 + $0xb58] sm:$0xff]
    %v5372 = vld [vmem:[#allocation14 + $0xb60] sm:$0xff]
    %v5373 = vld [vmem:[#allocation14 + $0xb68] sm:$0xff]
    %v5374 = vld [vmem:[#allocation14 + $0xb70] sm:$0xff]
    %v5375 = vld [vmem:[#allocation14 + $0xb78] sm:$0xff]
    %v5376 = vld [vmem:[#allocation14 + $0xb80] sm:$0xff]
    %v5377 = vld [vmem:[#allocation14 + $0xb88] sm:$0xff]
    %v5378 = vld [vmem:[#allocation14 + $0xb90] sm:$0xff]
    %v5379 = vld [vmem:[#allocation14 + $0xb98] sm:$0xff]
    %v5380 = vld [vmem:[#allocation14 + $0xba0] sm:$0xff]
    %v5381 = vld [vmem:[#allocation14 + $0xba8] sm:$0xff]
    %v5382 = vld [vmem:[#allocation14 + $0xbb0] sm:$0xff]
    %v5383 = vld [vmem:[#allocation14 + $0xbb8] sm:$0xff]
    %v5384 = vld [vmem:[#allocation14 + $0xbc0] sm:$0xff]
    %v5385 = vld [vmem:[#allocation14 + $0xbc8] sm:$0xff]
    %v5386 = vld [vmem:[#allocation14 + $0xbd0] sm:$0xff]
    %v5387 = vld [vmem:[#allocation14 + $0xbd8] sm:$0xff]
    %v5388 = vld [vmem:[#allocation14 + $0xbe0] sm:$0xff]
    %v5389 = vld [vmem:[#allocation14 + $0xbe8] sm:$0xff]
    %v5390 = vld [vmem:[#allocation14 + $0xbf0] sm:$0xff]
    %v5391 = vld [vmem:[#allocation14 + $0xbf8] sm:$0xff]
    %v5392 = vld [vmem:[#allocation14 + $0xc00] sm:$0xff]
    %v5393 = vld [vmem:[#allocation14 + $0xc08] sm:$0xff]
    %v5394 = vld [vmem:[#allocation14 + $0xc10] sm:$0xff]
    %v5395 = vld [vmem:[#allocation14 + $0xc18] sm:$0xff]
    %v5396 = vld [vmem:[#allocation14 + $0xc20] sm:$0xff]
    %v5397 = vld [vmem:[#allocation14 + $0xc28] sm:$0xff]
    %v5398 = vld [vmem:[#allocation14 + $0xc30] sm:$0xff]
    %v5399 = vld [vmem:[#allocation14 + $0xc38] sm:$0xff]
    %v5400 = vld [vmem:[#allocation14 + $0xc40] sm:$0xff]
    %v5401 = vld [vmem:[#allocation14 + $0xc48] sm:$0xff]
    %v5402 = vld [vmem:[#allocation14 + $0xc50] sm:$0xff]
    %v5403 = vld [vmem:[#allocation14 + $0xc58] sm:$0xff]
    %v5404 = vld [vmem:[#allocation14 + $0xc60] sm:$0xff]
    %v5405 = vld [vmem:[#allocation14 + $0xc68] sm:$0xff]
    %v5406 = vld [vmem:[#allocation14 + $0xc70] sm:$0xff]
    %v5407 = vld [vmem:[#allocation14 + $0xc78] sm:$0xff]
    %v5408 = vld [vmem:[#allocation14 + $0xc80] sm:$0xff]
    %v5409 = vld [vmem:[#allocation14 + $0xc88] sm:$0xff]
    %v5410 = vld [vmem:[#allocation14 + $0xc90] sm:$0xff]
    %v5411 = vld [vmem:[#allocation14 + $0xc98] sm:$0xff]
    %v5412 = vld [vmem:[#allocation14 + $0xca0] sm:$0xff]
    %v5413 = vld [vmem:[#allocation14 + $0xca8] sm:$0xff]
    %v5414 = vld [vmem:[#allocation14 + $0xcb0] sm:$0xff]
    %v5415 = vld [vmem:[#allocation14 + $0xcb8] sm:$0xff]
    %v5416 = vld [vmem:[#allocation14 + $0xcc0] sm:$0xff]
    %v5417 = vld [vmem:[#allocation14 + $0xcc8] sm:$0xff]
    %v5418 = vld [vmem:[#allocation14 + $0xcd0] sm:$0xff]
    %v5419 = vld [vmem:[#allocation14 + $0xcd8] sm:$0xff]
    %v5420 = vld [vmem:[#allocation14 + $0xce0] sm:$0xff]
    %v5421 = vld [vmem:[#allocation14 + $0xce8] sm:$0xff]
    %v5422 = vld [vmem:[#allocation14 + $0xcf0] sm:$0xff]
    %v5423 = vld [vmem:[#allocation14 + $0xcf8] sm:$0xff]
    %v5424 = vld [vmem:[#allocation14 + $0xd00] sm:$0xff]
    %v5425 = vld [vmem:[#allocation14 + $0xd08] sm:$0xff]
    %v5426 = vld [vmem:[#allocation14 + $0xd10] sm:$0xff]
    %v5427 = vld [vmem:[#allocation14 + $0xd18] sm:$0xff]
    %v5428 = vld [vmem:[#allocation14 + $0xd20] sm:$0xff]
    %v5429 = vld [vmem:[#allocation14 + $0xd28] sm:$0xff]
    %v5430 = vld [vmem:[#allocation14 + $0xd30] sm:$0xff]
    %v5431 = vld [vmem:[#allocation14 + $0xd38] sm:$0xff]
    %v5432 = vld [vmem:[#allocation14 + $0xd40] sm:$0xff]
    %v5433 = vld [vmem:[#allocation14 + $0xd48] sm:$0xff]
    %v5434 = vld [vmem:[#allocation14 + $0xd50] sm:$0xff]
    %v5435 = vld [vmem:[#allocation14 + $0xd58] sm:$0xff]
    %v5436 = vld [vmem:[#allocation14 + $0xd60] sm:$0xff]
    %v5437 = vld [vmem:[#allocation14 + $0xd68] sm:$0xff]
    %v5438 = vld [vmem:[#allocation14 + $0xd70] sm:$0xff]
    %v5439 = vld [vmem:[#allocation14 + $0xd78] sm:$0xff]
    %v5440 = vld [vmem:[#allocation14 + $0xd80] sm:$0xff]
    %v5441 = vld [vmem:[#allocation14 + $0xd88] sm:$0xff]
    %v5442 = vld [vmem:[#allocation14 + $0xd90] sm:$0xff]
    %v5443 = vld [vmem:[#allocation14 + $0xd98] sm:$0xff]
    %v5444 = vld [vmem:[#allocation14 + $0xda0] sm:$0xff]
    %v5445 = vld [vmem:[#allocation14 + $0xda8] sm:$0xff]
    %v5446 = vld [vmem:[#allocation14 + $0xdb0] sm:$0xff]
    %v5447 = vld [vmem:[#allocation14 + $0xdb8] sm:$0xff]
    %v5448 = vld [vmem:[#allocation14 + $0xdc0] sm:$0xff]
    %v5449 = vld [vmem:[#allocation14 + $0xdc8] sm:$0xff]
    %v5450 = vld [vmem:[#allocation14 + $0xdd0] sm:$0xff]
    %v5451 = vld [vmem:[#allocation14 + $0xdd8] sm:$0xff]
    %v5452 = vld [vmem:[#allocation14 + $0xde0] sm:$0xff]
    %v5453 = vld [vmem:[#allocation14 + $0xde8] sm:$0xff]
    %v5454 = vld [vmem:[#allocation14 + $0xdf0] sm:$0xff]
    %v5455 = vld [vmem:[#allocation14 + $0xdf8] sm:$0xff]
    %v5456 = vld [vmem:[#allocation14 + $0xe00] sm:$0xff]
    %v5457 = vld [vmem:[#allocation14 + $0xe08] sm:$0xff]
    %v5458 = vld [vmem:[#allocation14 + $0xe10] sm:$0xff]
    %v5459 = vld [vmem:[#allocation14 + $0xe18] sm:$0xff]
    %v5460 = vld [vmem:[#allocation14 + $0xe20] sm:$0xff]
    %v5461 = vld [vmem:[#allocation14 + $0xe28] sm:$0xff]
    %v5462 = vld [vmem:[#allocation14 + $0xe30] sm:$0xff]
    %v5463 = vld [vmem:[#allocation14 + $0xe38] sm:$0xff]
    %v5464 = vld [vmem:[#allocation14 + $0xe40] sm:$0xff]
    %v5465 = vld [vmem:[#allocation14 + $0xe48] sm:$0xff]
    %v5466 = vld [vmem:[#allocation14 + $0xe50] sm:$0xff]
    %v5467 = vld [vmem:[#allocation14 + $0xe58] sm:$0xff]
    %v5468 = vld [vmem:[#allocation14 + $0xe60] sm:$0xff]
    %v5469 = vld [vmem:[#allocation14 + $0xe68] sm:$0xff]
    %v5470 = vld [vmem:[#allocation14 + $0xe70] sm:$0xff]
    %v5471 = vld [vmem:[#allocation14 + $0xe78] sm:$0xff]
    %v5472 = vld [vmem:[#allocation14 + $0xe80] sm:$0xff]
    %v5473 = vld [vmem:[#allocation14 + $0xe88] sm:$0xff]
    %v5474 = vld [vmem:[#allocation14 + $0xe90] sm:$0xff]
    %v5475 = vld [vmem:[#allocation14 + $0xe98] sm:$0xff]
    %v5476 = vld [vmem:[#allocation14 + $0xea0] sm:$0xff]
    %v5477 = vld [vmem:[#allocation14 + $0xea8] sm:$0xff]
    %v5478 = vld [vmem:[#allocation14 + $0xeb0] sm:$0xff]
    %v5479 = vld [vmem:[#allocation14 + $0xeb8] sm:$0xff]
    %v5480 = vld [vmem:[#allocation14 + $0xec0] sm:$0xff]
    %v5481 = vld [vmem:[#allocation14 + $0xec8] sm:$0xff]
    %v5482 = vld [vmem:[#allocation14 + $0xed0] sm:$0xff]
    %v5483 = vld [vmem:[#allocation14 + $0xed8] sm:$0xff]
    %v5484 = vld [vmem:[#allocation14 + $0xee0] sm:$0xff]
    %v5485 = vld [vmem:[#allocation14 + $0xee8] sm:$0xff]
    %v5486 = vld [vmem:[#allocation14 + $0xef0] sm:$0xff]
    %v5487 = vld [vmem:[#allocation14 + $0xef8] sm:$0xff]
    %v5488 = vld [vmem:[#allocation14 + $0xf00] sm:$0xff]
    %v5489 = vld [vmem:[#allocation14 + $0xf08] sm:$0xff]
    %v5490 = vld [vmem:[#allocation14 + $0xf10] sm:$0xff]
    %v5491 = vld [vmem:[#allocation14 + $0xf18] sm:$0xff]
    %v5492 = vld [vmem:[#allocation14 + $0xf20] sm:$0xff]
    %v5493 = vld [vmem:[#allocation14 + $0xf28] sm:$0xff]
    %v5494 = vld [vmem:[#allocation14 + $0xf30] sm:$0xff]
    %v5495 = vld [vmem:[#allocation14 + $0xf38] sm:$0xff]
    %v5496 = vld [vmem:[#allocation14 + $0xf40] sm:$0xff]
    %v5497 = vld [vmem:[#allocation14 + $0xf48] sm:$0xff]
    %v5498 = vld [vmem:[#allocation14 + $0xf50] sm:$0xff]
    %v5499 = vld [vmem:[#allocation14 + $0xf58] sm:$0xff]
    %v5500 = vld [vmem:[#allocation14 + $0xf60] sm:$0xff]
    %v5501 = vld [vmem:[#allocation14 + $0xf68] sm:$0xff]
    %v5502 = vld [vmem:[#allocation14 + $0xf70] sm:$0xff]
    %v5503 = vld [vmem:[#allocation14 + $0xf78] sm:$0xff]
    %v5504 = vld [vmem:[#allocation14 + $0xf80] sm:$0xff]
    %v5505 = vld [vmem:[#allocation14 + $0xf88] sm:$0xff]
    %v5506 = vld [vmem:[#allocation14 + $0xf90] sm:$0xff]
    %v5507 = vld [vmem:[#allocation14 + $0xf98] sm:$0xff]
    %v5508 = vld [vmem:[#allocation14 + $0xfa0] sm:$0xff]
    %v5509 = vld [vmem:[#allocation14 + $0xfa8] sm:$0xff]
    %v5510 = vld [vmem:[#allocation14 + $0xfb0] sm:$0xff]
    %v5511 = vld [vmem:[#allocation14 + $0xfb8] sm:$0xff]
    %v5512 = vld [vmem:[#allocation14 + $0xfc0] sm:$0xff]
    %v5513 = vld [vmem:[#allocation14 + $0xfc8] sm:$0xff]
    %v5514 = vld [vmem:[#allocation14 + $0xfd0] sm:$0xff]
    %v5515 = vld [vmem:[#allocation14 + $0xfd8] sm:$0xff]
    %v5516 = vld [vmem:[#allocation14 + $0xfe0] sm:$0xff]
    %v5517 = vld [vmem:[#allocation14 + $0xfe8] sm:$0xff]
    %v5518 = vld [vmem:[#allocation14 + $0xff0] sm:$0xff]
    %v5519 = vld [vmem:[#allocation14 + $0xff8] sm:$0xff]
    %v5520 = vld [vmem:[#allocation14 + $0x1000] sm:$0xff]
    %v5521 = vld [vmem:[#allocation14 + $0x1008] sm:$0xff]
    %v5522 = vld [vmem:[#allocation14 + $0x1010] sm:$0xff]
    %v5523 = vld [vmem:[#allocation14 + $0x1018] sm:$0xff]
    %v5524 = vld [vmem:[#allocation14 + $0x1020] sm:$0xff]
    %v5525 = vld [vmem:[#allocation14 + $0x1028] sm:$0xff]
    %v5526 = vld [vmem:[#allocation14 + $0x1030] sm:$0xff]
    %v5527 = vld [vmem:[#allocation14 + $0x1038] sm:$0xff]
    %v5528 = vld [vmem:[#allocation14 + $0x1040] sm:$0xff]
    %v5529 = vld [vmem:[#allocation14 + $0x1048] sm:$0xff]
    %v5530 = vld [vmem:[#allocation14 + $0x1050] sm:$0xff]
    %v5531 = vld [vmem:[#allocation14 + $0x1058] sm:$0xff]
    %v5532 = vld [vmem:[#allocation14 + $0x1060] sm:$0xff]
    %v5533 = vld [vmem:[#allocation14 + $0x1068] sm:$0xff]
    %v5534 = vld [vmem:[#allocation14 + $0x1070] sm:$0xff]
    %v5535 = vld [vmem:[#allocation14 + $0x1078] sm:$0xff]
    %v5536 = vld [vmem:[#allocation14 + $0x1080] sm:$0xff]
    %v5537 = vld [vmem:[#allocation14 + $0x1088] sm:$0xff]
    %v5538 = vld [vmem:[#allocation14 + $0x1090] sm:$0xff]
    %v5539 = vld [vmem:[#allocation14 + $0x1098] sm:$0xff]
    %v5540 = vld [vmem:[#allocation14 + $0x10a0] sm:$0xff]
    %v5541 = vld [vmem:[#allocation14 + $0x10a8] sm:$0xff]
    %v5542 = vld [vmem:[#allocation14 + $0x10b0] sm:$0xff]
    %v5543 = vld [vmem:[#allocation14 + $0x10b8] sm:$0xff]
    %v5544 = vld [vmem:[#allocation14 + $0x10c0] sm:$0xff]
    %v5545 = vld [vmem:[#allocation14 + $0x10c8] sm:$0xff]
    %v5546 = vld [vmem:[#allocation14 + $0x10d0] sm:$0xff]
    %v5547 = vld [vmem:[#allocation14 + $0x10d8] sm:$0xff]
    %v5548 = vld [vmem:[#allocation14 + $0x10e0] sm:$0xff]
    %v5549 = vld [vmem:[#allocation14 + $0x10e8] sm:$0xff]
    %v5550 = vld [vmem:[#allocation14 + $0x10f0] sm:$0xff]
    %v5551 = vld [vmem:[#allocation14 + $0x10f8] sm:$0xff]
    %v5552 = vld [vmem:[#allocation14 + $0x1100] sm:$0xff]
    %v5553 = vld [vmem:[#allocation14 + $0x1108] sm:$0xff]
    %v5554 = vld [vmem:[#allocation14 + $0x1110] sm:$0xff]
    %v5555 = vld [vmem:[#allocation14 + $0x1118] sm:$0xff]
    %v5556 = vld [vmem:[#allocation14 + $0x1120] sm:$0xff]
    %v5557 = vld [vmem:[#allocation14 + $0x1128] sm:$0xff]
    %v5558 = vld [vmem:[#allocation14 + $0x1130] sm:$0xff]
    %v5559 = vld [vmem:[#allocation14 + $0x1138] sm:$0xff]
    %v5560 = vld [vmem:[#allocation14 + $0x1140] sm:$0xff]
    %v5561 = vld [vmem:[#allocation14 + $0x1148] sm:$0xff]
    %v5562 = vld [vmem:[#allocation14 + $0x1150] sm:$0xff]
    %v5563 = vld [vmem:[#allocation14 + $0x1158] sm:$0xff]
    %v5564 = vld [vmem:[#allocation14 + $0x1160] sm:$0xff]
    %v5565 = vld [vmem:[#allocation14 + $0x1168] sm:$0xff]
    %v5566 = vld [vmem:[#allocation14 + $0x1170] sm:$0xff]
    %v5567 = vld [vmem:[#allocation14 + $0x1178] sm:$0xff]
    %v5568 = vld [vmem:[#allocation14 + $0x1180] sm:$0xff]
    %v5569 = vld [vmem:[#allocation14 + $0x1188] sm:$0xff]
    %v5570 = vld [vmem:[#allocation14 + $0x1190] sm:$0xff]
    %v5571 = vld [vmem:[#allocation14 + $0x1198] sm:$0xff]
    %v5572 = vld [vmem:[#allocation14 + $0x11a0] sm:$0xff]
    %v5573 = vld [vmem:[#allocation14 + $0x11a8] sm:$0xff]
    %v5574 = vld [vmem:[#allocation14 + $0x11b0] sm:$0xff]
    %v5575 = vld [vmem:[#allocation14 + $0x11b8] sm:$0xff]
    %v5576 = vld [vmem:[#allocation14 + $0x11c0] sm:$0xff]
    %v5577 = vld [vmem:[#allocation14 + $0x11c8] sm:$0xff]
    %v5578 = vld [vmem:[#allocation14 + $0x11d0] sm:$0xff]
    %v5579 = vld [vmem:[#allocation14 + $0x11d8] sm:$0xff]
    %v5580 = vld [vmem:[#allocation14 + $0x11e0] sm:$0xff]
    %v5581 = vld [vmem:[#allocation14 + $0x11e8] sm:$0xff]
    %v5582 = vld [vmem:[#allocation14 + $0x11f0] sm:$0xff]
    %v5583 = vld [vmem:[#allocation14 + $0x11f8] sm:$0xff]
    %v5584 = vld [vmem:[#allocation14 + $0x1200] sm:$0xff]
    %v5585 = vld [vmem:[#allocation14 + $0x1208] sm:$0xff]
    %v5586 = vld [vmem:[#allocation14 + $0x1210] sm:$0xff]
    %v5587 = vld [vmem:[#allocation14 + $0x1218] sm:$0xff]
    %v5588 = vld [vmem:[#allocation14 + $0x1220] sm:$0xff]
    %v5589 = vld [vmem:[#allocation14 + $0x1228] sm:$0xff]
    %v5590 = vld [vmem:[#allocation14 + $0x1230] sm:$0xff]
    %v5591 = vld [vmem:[#allocation14 + $0x1238] sm:$0xff]
    %v5592 = vld [vmem:[#allocation14 + $0x1240] sm:$0xff]
    %v5593 = vld [vmem:[#allocation14 + $0x1248] sm:$0xff]
    %v5594 = vld [vmem:[#allocation14 + $0x1250] sm:$0xff]
    %v5595 = vld [vmem:[#allocation14 + $0x1258] sm:$0xff]
    %v5596 = vld [vmem:[#allocation14 + $0x1260] sm:$0xff]
    %v5597 = vld [vmem:[#allocation14 + $0x1268] sm:$0xff]
    %v5598 = vld [vmem:[#allocation14 + $0x1270] sm:$0xff]
    %v5599 = vld [vmem:[#allocation14 + $0x1278] sm:$0xff]
    %v5600 = vld [vmem:[#allocation14 + $0x1280] sm:$0xff]
    %v5601 = vld [vmem:[#allocation14 + $0x1288] sm:$0xff]
    %v5602 = vld [vmem:[#allocation14 + $0x1290] sm:$0xff]
    %v5603 = vld [vmem:[#allocation14 + $0x1298] sm:$0xff]
    %v5604 = vld [vmem:[#allocation14 + $0x12a0] sm:$0xff]
    %v5605 = vld [vmem:[#allocation14 + $0x12a8] sm:$0xff]
    %v5606 = vld [vmem:[#allocation14 + $0x12b0] sm:$0xff]
    %v5607 = vld [vmem:[#allocation14 + $0x12b8] sm:$0xff]
    %v5608 = vld [vmem:[#allocation14 + $0x12c0] sm:$0xff]
    %v5609 = vld [vmem:[#allocation14 + $0x12c8] sm:$0xff]
    %v5610 = vld [vmem:[#allocation14 + $0x12d0] sm:$0xff]
    %v5611 = vld [vmem:[#allocation14 + $0x12d8] sm:$0xff]
    %v5612 = vld [vmem:[#allocation14 + $0x12e0] sm:$0xff]
    %v5613 = vld [vmem:[#allocation14 + $0x12e8] sm:$0xff]
    %v5614 = vld [vmem:[#allocation14 + $0x12f0] sm:$0xff]
    %v5615 = vld [vmem:[#allocation14 + $0x12f8] sm:$0xff]
    %v5616 = vld [vmem:[#allocation14 + $0x1300] sm:$0xff]
    %v5617 = vld [vmem:[#allocation14 + $0x1308] sm:$0xff]
    %v5618 = vld [vmem:[#allocation14 + $0x1310] sm:$0xff]
    %v5619 = vld [vmem:[#allocation14 + $0x1318] sm:$0xff]
    %v5620 = vld [vmem:[#allocation14 + $0x1320] sm:$0xff]
    %v5621 = vld [vmem:[#allocation14 + $0x1328] sm:$0xff]
    %v5622 = vld [vmem:[#allocation14 + $0x1330] sm:$0xff]
    %v5623 = vld [vmem:[#allocation14 + $0x1338] sm:$0xff]
    %v5624 = vld [vmem:[#allocation14 + $0x1340] sm:$0xff]
    %v5625 = vld [vmem:[#allocation14 + $0x1348] sm:$0xff]
    %v5626 = vld [vmem:[#allocation14 + $0x1350] sm:$0xff]
    %v5627 = vld [vmem:[#allocation14 + $0x1358] sm:$0xff]
    %v5628 = vld [vmem:[#allocation14 + $0x1360] sm:$0xff]
    %v5629 = vld [vmem:[#allocation14 + $0x1368] sm:$0xff]
    %v5630 = vld [vmem:[#allocation14 + $0x1370] sm:$0xff]
    %v5631 = vld [vmem:[#allocation14 + $0x1378] sm:$0xff]
    %v5632 = vld [vmem:[#allocation14 + $0x1380] sm:$0xff]
    %v5633 = vld [vmem:[#allocation14 + $0x1388] sm:$0xff]
    %v5634 = vld [vmem:[#allocation14 + $0x1390] sm:$0xff]
    %v5635 = vld [vmem:[#allocation14 + $0x1398] sm:$0xff]
    %v5636 = vld [vmem:[#allocation14 + $0x13a0] sm:$0xff]
    %v5637 = vld [vmem:[#allocation14 + $0x13a8] sm:$0xff]
    %v5638 = vld [vmem:[#allocation14 + $0x13b0] sm:$0xff]
    %v5639 = vld [vmem:[#allocation14 + $0x13b8] sm:$0xff]
    %v5640 = vld [vmem:[#allocation14 + $0x13c0] sm:$0xff]
    %v5641 = vld [vmem:[#allocation14 + $0x13c8] sm:$0xff]
    %v5642 = vld [vmem:[#allocation14 + $0x13d0] sm:$0xff]
    %v5643 = vld [vmem:[#allocation14 + $0x13d8] sm:$0xff]
    %v5644 = vld [vmem:[#allocation14 + $0x13e0] sm:$0xff]
    %v5645 = vld [vmem:[#allocation14 + $0x13e8] sm:$0xff]
    %v5646 = vld [vmem:[#allocation14 + $0x13f0] sm:$0xff]
    %v5647 = vld [vmem:[#allocation14 + $0x13f8] sm:$0xff]
    %v5648 = vld [vmem:[#allocation14 + $0x1400] sm:$0xff]
    %v5649 = vld [vmem:[#allocation14 + $0x1408] sm:$0xff]
    %v5650 = vld [vmem:[#allocation14 + $0x1410] sm:$0xff]
    %v5651 = vld [vmem:[#allocation14 + $0x1418] sm:$0xff]
    %v5652 = vld [vmem:[#allocation14 + $0x1420] sm:$0xff]
    %v5653 = vld [vmem:[#allocation14 + $0x1428] sm:$0xff]
    %v5654 = vld [vmem:[#allocation14 + $0x1430] sm:$0xff]
    %v5655 = vld [vmem:[#allocation14 + $0x1438] sm:$0xff]
    %v5656 = vld [vmem:[#allocation14 + $0x1440] sm:$0xff]
    %v5657 = vld [vmem:[#allocation14 + $0x1448] sm:$0xff]
    %v5658 = vld [vmem:[#allocation14 + $0x1450] sm:$0xff]
    %v5659 = vld [vmem:[#allocation14 + $0x1458] sm:$0xff]
    %v5660 = vld [vmem:[#allocation14 + $0x1460] sm:$0xff]
    %v5661 = vld [vmem:[#allocation14 + $0x1468] sm:$0xff]
    %v5662 = vld [vmem:[#allocation14 + $0x1470] sm:$0xff]
    %v5663 = vld [vmem:[#allocation14 + $0x1478] sm:$0xff]
    %v5664 = vld [vmem:[#allocation14 + $0x1480] sm:$0xff]
    %v5665 = vld [vmem:[#allocation14 + $0x1488] sm:$0xff]
    %v5666 = vld [vmem:[#allocation14 + $0x1490] sm:$0xff]
    %v5667 = vld [vmem:[#allocation14 + $0x1498] sm:$0xff]
    %v5668 = vld [vmem:[#allocation14 + $0x14a0] sm:$0xff]
    %v5669 = vld [vmem:[#allocation14 + $0x14a8] sm:$0xff]
    %v5670 = vld [vmem:[#allocation14 + $0x14b0] sm:$0xff]
    %v5671 = vld [vmem:[#allocation14 + $0x14b8] sm:$0xff]
    %v5672 = vld [vmem:[#allocation14 + $0x14c0] sm:$0xff]
    %v5673 = vld [vmem:[#allocation14 + $0x14c8] sm:$0xff]
    %v5674 = vld [vmem:[#allocation14 + $0x14d0] sm:$0xff]
    %v5675 = vld [vmem:[#allocation14 + $0x14d8] sm:$0xff]
    %v5676 = vld [vmem:[#allocation14 + $0x14e0] sm:$0xff]
    %v5677 = vld [vmem:[#allocation14 + $0x14e8] sm:$0xff]
    %v5678 = vld [vmem:[#allocation14 + $0x14f0] sm:$0xff]
    %v5679 = vld [vmem:[#allocation14 + $0x14f8] sm:$0xff]
    %v5680 = vld [vmem:[#allocation14 + $0x1500] sm:$0xff]
    %v5681 = vld [vmem:[#allocation14 + $0x1508] sm:$0xff]
    %v5682 = vld [vmem:[#allocation14 + $0x1510] sm:$0xff]
    %v5683 = vld [vmem:[#allocation14 + $0x1518] sm:$0xff]
    %v5684 = vld [vmem:[#allocation14 + $0x1520] sm:$0xff]
    %v5685 = vld [vmem:[#allocation14 + $0x1528] sm:$0xff]
    %v5686 = vld [vmem:[#allocation14 + $0x1530] sm:$0xff]
    %v5687 = vld [vmem:[#allocation14 + $0x1538] sm:$0xff]
    %v5688 = vld [vmem:[#allocation14 + $0x1540] sm:$0xff]
    %v5689 = vld [vmem:[#allocation14 + $0x1548] sm:$0xff]
    %v5690 = vld [vmem:[#allocation14 + $0x1550] sm:$0xff]
    %v5691 = vld [vmem:[#allocation14 + $0x1558] sm:$0xff]
    %v5692 = vld [vmem:[#allocation14 + $0x1560] sm:$0xff]
    %v5693 = vld [vmem:[#allocation14 + $0x1568] sm:$0xff]
    %v5694 = vld [vmem:[#allocation14 + $0x1570] sm:$0xff]
    %v5695 = vld [vmem:[#allocation14 + $0x1578] sm:$0xff]
    %v5696 = vld [vmem:[#allocation14 + $0x1580] sm:$0xff]
    %v5697 = vld [vmem:[#allocation14 + $0x1588] sm:$0xff]
    %v5698 = vld [vmem:[#allocation14 + $0x1590] sm:$0xff]
    %v5699 = vld [vmem:[#allocation14 + $0x1598] sm:$0xff]
    %v5700 = vld [vmem:[#allocation14 + $0x15a0] sm:$0xff]
    %v5701 = vld [vmem:[#allocation14 + $0x15a8] sm:$0xff]
    %v5702 = vld [vmem:[#allocation14 + $0x15b0] sm:$0xff]
    %v5703 = vld [vmem:[#allocation14 + $0x15b8] sm:$0xff]
    %v5704 = vld [vmem:[#allocation14 + $0x15c0] sm:$0xff]
    %v5705 = vld [vmem:[#allocation14 + $0x15c8] sm:$0xff]
    %v5706 = vld [vmem:[#allocation14 + $0x15d0] sm:$0xff]
    %v5707 = vld [vmem:[#allocation14 + $0x15d8] sm:$0xff]
    %v5708 = vld [vmem:[#allocation14 + $0x15e0] sm:$0xff]
    %v5709 = vld [vmem:[#allocation14 + $0x15e8] sm:$0xff]
    %v5710 = vld [vmem:[#allocation14 + $0x15f0] sm:$0xff]
    %v5711 = vld [vmem:[#allocation14 + $0x15f8] sm:$0xff]
    %v5712 = vld [vmem:[#allocation14 + $0x1600] sm:$0xff]
    %v5713 = vld [vmem:[#allocation14 + $0x1608] sm:$0xff]
    %v5714 = vld [vmem:[#allocation14 + $0x1610] sm:$0xff]
    %v5715 = vld [vmem:[#allocation14 + $0x1618] sm:$0xff]
    %v5716 = vld [vmem:[#allocation14 + $0x1620] sm:$0xff]
    %v5717 = vld [vmem:[#allocation14 + $0x1628] sm:$0xff]
    %v5718 = vld [vmem:[#allocation14 + $0x1630] sm:$0xff]
    %v5719 = vld [vmem:[#allocation14 + $0x1638] sm:$0xff]
    %v5720 = vld [vmem:[#allocation14 + $0x1640] sm:$0xff]
    %v5721 = vld [vmem:[#allocation14 + $0x1648] sm:$0xff]
    %v5722 = vld [vmem:[#allocation14 + $0x1650] sm:$0xff]
    %v5723 = vld [vmem:[#allocation14 + $0x1658] sm:$0xff]
    %v5724 = vld [vmem:[#allocation14 + $0x1660] sm:$0xff]
    %v5725 = vld [vmem:[#allocation14 + $0x1668] sm:$0xff]
    %v5726 = vld [vmem:[#allocation14 + $0x1670] sm:$0xff]
    %v5727 = vld [vmem:[#allocation14 + $0x1678] sm:$0xff]
    %v5728 = vld [vmem:[#allocation14 + $0x1680] sm:$0xff]
    %v5729 = vld [vmem:[#allocation14 + $0x1688] sm:$0xff]
    %v5730 = vld [vmem:[#allocation14 + $0x1690] sm:$0xff]
    %v5731 = vld [vmem:[#allocation14 + $0x1698] sm:$0xff]
    %v5732 = vld [vmem:[#allocation14 + $0x16a0] sm:$0xff]
    %v5733 = vld [vmem:[#allocation14 + $0x16a8] sm:$0xff]
    %v5734 = vld [vmem:[#allocation14 + $0x16b0] sm:$0xff]
    %v5735 = vld [vmem:[#allocation14 + $0x16b8] sm:$0xff]
    %v5736 = vld [vmem:[#allocation14 + $0x16c0] sm:$0xff]
    %v5737 = vld [vmem:[#allocation14 + $0x16c8] sm:$0xff]
    %v5738 = vld [vmem:[#allocation14 + $0x16d0] sm:$0xff]
    %v5739 = vld [vmem:[#allocation14 + $0x16d8] sm:$0xff]
    %v5740 = vld [vmem:[#allocation14 + $0x16e0] sm:$0xff]
    %v5741 = vld [vmem:[#allocation14 + $0x16e8] sm:$0xff]
    %v5742 = vld [vmem:[#allocation14 + $0x16f0] sm:$0xff]
    %v5743 = vld [vmem:[#allocation14 + $0x16f8] sm:$0xff]
    %v5744 = vld [vmem:[#allocation14 + $0x1700] sm:$0xff]
    %v5745 = vld [vmem:[#allocation14 + $0x1708] sm:$0xff]
    %v5746 = vld [vmem:[#allocation14 + $0x1710] sm:$0xff]
    %v5747 = vld [vmem:[#allocation14 + $0x1718] sm:$0xff]
    %v5748 = vld [vmem:[#allocation14 + $0x1720] sm:$0xff]
    %v5749 = vld [vmem:[#allocation14 + $0x1728] sm:$0xff]
    %v5750 = vld [vmem:[#allocation14 + $0x1730] sm:$0xff]
    %v5751 = vld [vmem:[#allocation14 + $0x1738] sm:$0xff]
    %v5752 = vld [vmem:[#allocation14 + $0x1740] sm:$0xff]
    %v5753 = vld [vmem:[#allocation14 + $0x1748] sm:$0xff]
    %v5754 = vld [vmem:[#allocation14 + $0x1750] sm:$0xff]
    %v5755 = vld [vmem:[#allocation14 + $0x1758] sm:$0xff]
    %v5756 = vld [vmem:[#allocation14 + $0x1760] sm:$0xff]
    %v5757 = vld [vmem:[#allocation14 + $0x1768] sm:$0xff]
    %v5758 = vld [vmem:[#allocation14 + $0x1770] sm:$0xff]
    %v5759 = vld [vmem:[#allocation14 + $0x1778] sm:$0xff]
    %v5760 = vld [vmem:[#allocation14 + $0x1780] sm:$0xff]
    %v5761 = vld [vmem:[#allocation14 + $0x1788] sm:$0xff]
    %v5762 = vld [vmem:[#allocation14 + $0x1790] sm:$0xff]
    %v5763 = vld [vmem:[#allocation14 + $0x1798] sm:$0xff]
    %v5764 = vld [vmem:[#allocation14 + $0x17a0] sm:$0xff]
    %v5765 = vld [vmem:[#allocation14 + $0x17a8] sm:$0xff]
    %v5766 = vld [vmem:[#allocation14 + $0x17b0] sm:$0xff]
    %v5767 = vld [vmem:[#allocation14 + $0x17b8] sm:$0xff]
    %v5768 = vld [vmem:[#allocation14 + $0x17c0] sm:$0xff]
    %v5769 = vld [vmem:[#allocation14 + $0x17c8] sm:$0xff]
    %v5770 = vld [vmem:[#allocation14 + $0x17d0] sm:$0xff]
    %v5771 = vld [vmem:[#allocation14 + $0x17d8] sm:$0xff]
    %v5772 = vld [vmem:[#allocation14 + $0x17e0] sm:$0xff]
    %v5773 = vld [vmem:[#allocation14 + $0x17e8] sm:$0xff]
    %v5774 = vld [vmem:[#allocation14 + $0x17f0] sm:$0xff]
    %v5775 = vld [vmem:[#allocation14 + $0x17f8] sm:$0xff]
    %v5776 = vld [vmem:[#allocation14 + $0x1800] sm:$0xff]
    %v5777 = vld [vmem:[#allocation14 + $0x1808] sm:$0xff]
    %v5778 = vld [vmem:[#allocation14 + $0x1810] sm:$0xff]
    %v5779 = vld [vmem:[#allocation14 + $0x1818] sm:$0xff]
    %v5780 = vld [vmem:[#allocation14 + $0x1820] sm:$0xff]
    %v5781 = vld [vmem:[#allocation14 + $0x1828] sm:$0xff]
    %v5782 = vld [vmem:[#allocation14 + $0x1830] sm:$0xff]
    %v5783 = vld [vmem:[#allocation14 + $0x1838] sm:$0xff]
    %v5784 = vld [vmem:[#allocation14 + $0x1840] sm:$0xff]
    %v5785 = vld [vmem:[#allocation14 + $0x1848] sm:$0xff]
    %v5786 = vld [vmem:[#allocation14 + $0x1850] sm:$0xff]
    %v5787 = vld [vmem:[#allocation14 + $0x1858] sm:$0xff]
    %v5788 = vld [vmem:[#allocation14 + $0x1860] sm:$0xff]
    %v5789 = vld [vmem:[#allocation14 + $0x1868] sm:$0xff]
    %v5790 = vld [vmem:[#allocation14 + $0x1870] sm:$0xff]
    %v5791 = vld [vmem:[#allocation14 + $0x1878] sm:$0xff]
    %v5792 = vld [vmem:[#allocation14 + $0x1880] sm:$0xff]
    %v5793 = vld [vmem:[#allocation14 + $0x1888] sm:$0xff]
    %v5794 = vld [vmem:[#allocation14 + $0x1890] sm:$0xff]
    %v5795 = vld [vmem:[#allocation14 + $0x1898] sm:$0xff]
    %v5796 = vld [vmem:[#allocation14 + $0x18a0] sm:$0xff]
    %v5797 = vld [vmem:[#allocation14 + $0x18a8] sm:$0xff]
    %v5798 = vld [vmem:[#allocation14 + $0x18b0] sm:$0xff]
    %v5799 = vld [vmem:[#allocation14 + $0x18b8] sm:$0xff]
    %v5800 = vld [vmem:[#allocation14 + $0x18c0] sm:$0xff]
    %v5801 = vld [vmem:[#allocation14 + $0x18c8] sm:$0xff]
    %v5802 = vld [vmem:[#allocation14 + $0x18d0] sm:$0xff]
    %v5803 = vld [vmem:[#allocation14 + $0x18d8] sm:$0xff]
    %v5804 = vld [vmem:[#allocation14 + $0x18e0] sm:$0xff]
    %v5805 = vld [vmem:[#allocation14 + $0x18e8] sm:$0xff]
    %v5806 = vld [vmem:[#allocation14 + $0x18f0] sm:$0xff]
    %v5807 = vld [vmem:[#allocation14 + $0x18f8] sm:$0xff]
    %v5808 = vld [vmem:[#allocation14 + $0x1900] sm:$0xff]
    %v5809 = vld [vmem:[#allocation14 + $0x1908] sm:$0xff]
    %v5810 = vld [vmem:[#allocation14 + $0x1910] sm:$0xff]
    %v5811 = vld [vmem:[#allocation14 + $0x1918] sm:$0xff]
    %v5812 = vld [vmem:[#allocation14 + $0x1920] sm:$0xff]
    %v5813 = vld [vmem:[#allocation14 + $0x1928] sm:$0xff]
    %v5814 = vld [vmem:[#allocation14 + $0x1930] sm:$0xff]
    %v5815 = vld [vmem:[#allocation14 + $0x1938] sm:$0xff]
    %v5816 = vld [vmem:[#allocation14 + $0x1940] sm:$0xff]
    %v5817 = vld [vmem:[#allocation14 + $0x1948] sm:$0xff]
    %v5818 = vld [vmem:[#allocation14 + $0x1950] sm:$0xff]
    %v5819 = vld [vmem:[#allocation14 + $0x1958] sm:$0xff]
    %v5820 = vld [vmem:[#allocation14 + $0x1960] sm:$0xff]
    %v5821 = vld [vmem:[#allocation14 + $0x1968] sm:$0xff]
    %v5822 = vld [vmem:[#allocation14 + $0x1970] sm:$0xff]
    %v5823 = vld [vmem:[#allocation14 + $0x1978] sm:$0xff]
    %v5824 = vld [vmem:[#allocation14 + $0x1980] sm:$0xff]
    %v5825 = vld [vmem:[#allocation14 + $0x1988] sm:$0xff]
    %v5826 = vld [vmem:[#allocation14 + $0x1990] sm:$0xff]
    %v5827 = vld [vmem:[#allocation14 + $0x1998] sm:$0xff]
    %v5828 = vld [vmem:[#allocation14 + $0x19a0] sm:$0xff]
    %v5829 = vld [vmem:[#allocation14 + $0x19a8] sm:$0xff]
    %v5830 = vld [vmem:[#allocation14 + $0x19b0] sm:$0xff]
    %v5831 = vld [vmem:[#allocation14 + $0x19b8] sm:$0xff]
    %v5832 = vld [vmem:[#allocation14 + $0x19c0] sm:$0xff]
    %v5833 = vld [vmem:[#allocation14 + $0x19c8] sm:$0xff]
    %v5834 = vld [vmem:[#allocation14 + $0x19d0] sm:$0xff]
    %v5835 = vld [vmem:[#allocation14 + $0x19d8] sm:$0xff]
    %v5836 = vld [vmem:[#allocation14 + $0x19e0] sm:$0xff]
    %v5837 = vld [vmem:[#allocation14 + $0x19e8] sm:$0xff]
    %v5838 = vld [vmem:[#allocation14 + $0x19f0] sm:$0xff]
    %v5839 = vld [vmem:[#allocation14 + $0x19f8] sm:$0xff]
    %v5840 = vld [vmem:[#allocation14 + $0x1a00] sm:$0xff]
    %v5841 = vld [vmem:[#allocation14 + $0x1a08] sm:$0xff]
    %v5842 = vld [vmem:[#allocation14 + $0x1a10] sm:$0xff]
    %v5843 = vld [vmem:[#allocation14 + $0x1a18] sm:$0xff]
    %v5844 = vld [vmem:[#allocation14 + $0x1a20] sm:$0xff]
    %v5845 = vld [vmem:[#allocation14 + $0x1a28] sm:$0xff]
    %v5846 = vld [vmem:[#allocation14 + $0x1a30] sm:$0xff]
    %v5847 = vld [vmem:[#allocation14 + $0x1a38] sm:$0xff]
    %v5848 = vld [vmem:[#allocation14 + $0x1a40] sm:$0xff]
    %v5849 = vld [vmem:[#allocation14 + $0x1a48] sm:$0xff]
    %v5850 = vld [vmem:[#allocation14 + $0x1a50] sm:$0xff]
    %v5851 = vld [vmem:[#allocation14 + $0x1a58] sm:$0xff]
    %v5852 = vld [vmem:[#allocation14 + $0x1a60] sm:$0xff]
    %v5853 = vld [vmem:[#allocation14 + $0x1a68] sm:$0xff]
    %v5854 = vld [vmem:[#allocation14 + $0x1a70] sm:$0xff]
    %v5855 = vld [vmem:[#allocation14 + $0x1a78] sm:$0xff]
    %v5856 = vld [vmem:[#allocation14 + $0x1a80] sm:$0xff]
    %v5857 = vld [vmem:[#allocation14 + $0x1a88] sm:$0xff]
    %v5858 = vld [vmem:[#allocation14 + $0x1a90] sm:$0xff]
    %v5859 = vld [vmem:[#allocation14 + $0x1a98] sm:$0xff]
    %v5860 = vld [vmem:[#allocation14 + $0x1aa0] sm:$0xff]
    %v5861 = vld [vmem:[#allocation14 + $0x1aa8] sm:$0xff]
    %v5862 = vld [vmem:[#allocation14 + $0x1ab0] sm:$0xff]
    %v5863 = vld [vmem:[#allocation14 + $0x1ab8] sm:$0xff]
    %v5864 = vld [vmem:[#allocation14 + $0x1ac0] sm:$0xff]
    %v5865 = vld [vmem:[#allocation14 + $0x1ac8] sm:$0xff]
    %v5866 = vld [vmem:[#allocation14 + $0x1ad0] sm:$0xff]
    %v5867 = vld [vmem:[#allocation14 + $0x1ad8] sm:$0xff]
    %v5868 = vld [vmem:[#allocation14 + $0x1ae0] sm:$0xff]
    %v5869 = vld [vmem:[#allocation14 + $0x1ae8] sm:$0xff]
    %v5870 = vld [vmem:[#allocation14 + $0x1af0] sm:$0xff]
    %v5871 = vld [vmem:[#allocation14 + $0x1af8] sm:$0xff]
    %v5872 = vld [vmem:[#allocation14 + $0x1b00] sm:$0xff]
    %v5873 = vld [vmem:[#allocation14 + $0x1b08] sm:$0xff]
    %v5874 = vld [vmem:[#allocation14 + $0x1b10] sm:$0xff]
    %v5875 = vld [vmem:[#allocation14 + $0x1b18] sm:$0xff]
    %v5876 = vld [vmem:[#allocation14 + $0x1b20] sm:$0xff]
    %v5877 = vld [vmem:[#allocation14 + $0x1b28] sm:$0xff]
    %v5878 = vld [vmem:[#allocation14 + $0x1b30] sm:$0xff]
    %v5879 = vld [vmem:[#allocation14 + $0x1b38] sm:$0xff]
    %v5880 = vld [vmem:[#allocation14 + $0x1b40] sm:$0xff]
    %v5881 = vld [vmem:[#allocation14 + $0x1b48] sm:$0xff]
    %v5882 = vld [vmem:[#allocation14 + $0x1b50] sm:$0xff]
    %v5883 = vld [vmem:[#allocation14 + $0x1b58] sm:$0xff]
    %v5884 = vld [vmem:[#allocation14 + $0x1b60] sm:$0xff]
    %v5885 = vld [vmem:[#allocation14 + $0x1b68] sm:$0xff]
    %v5886 = vld [vmem:[#allocation14 + $0x1b70] sm:$0xff]
    %v5887 = vld [vmem:[#allocation14 + $0x1b78] sm:$0xff]
    %v5888 = vld [vmem:[#allocation14 + $0x1b80] sm:$0xff]
    %v5889 = vld [vmem:[#allocation14 + $0x1b88] sm:$0xff]
    %v5890 = vld [vmem:[#allocation14 + $0x1b90] sm:$0xff]
    %v5891 = vld [vmem:[#allocation14 + $0x1b98] sm:$0xff]
    %v5892 = vld [vmem:[#allocation14 + $0x1ba0] sm:$0xff]
    %v5893 = vld [vmem:[#allocation14 + $0x1ba8] sm:$0xff]
    %v5894 = vld [vmem:[#allocation14 + $0x1bb0] sm:$0xff]
    %v5895 = vld [vmem:[#allocation14 + $0x1bb8] sm:$0xff]
    %v5896 = vld [vmem:[#allocation14 + $0x1bc0] sm:$0xff]
    %v5897 = vld [vmem:[#allocation14 + $0x1bc8] sm:$0xff]
    %v5898 = vld [vmem:[#allocation14 + $0x1bd0] sm:$0xff]
    %v5899 = vld [vmem:[#allocation14 + $0x1bd8] sm:$0xff]
    %v5900 = vld [vmem:[#allocation14 + $0x1be0] sm:$0xff]
    %v5901 = vld [vmem:[#allocation14 + $0x1be8] sm:$0xff]
    %v5902 = vld [vmem:[#allocation14 + $0x1bf0] sm:$0xff]
    %v5903 = vld [vmem:[#allocation14 + $0x1bf8] sm:$0xff]
    %v5904 = vld [vmem:[#allocation14 + $0x1c00] sm:$0xff]
    %v5905 = vld [vmem:[#allocation14 + $0x1c08] sm:$0xff]
    %v5906 = vld [vmem:[#allocation14 + $0x1c10] sm:$0xff]
    %v5907 = vld [vmem:[#allocation14 + $0x1c18] sm:$0xff]
    %v5908 = vld [vmem:[#allocation14 + $0x1c20] sm:$0xff]
    %v5909 = vld [vmem:[#allocation14 + $0x1c28] sm:$0xff]
    %v5910 = vld [vmem:[#allocation14 + $0x1c30] sm:$0xff]
    %v5911 = vld [vmem:[#allocation14 + $0x1c38] sm:$0xff]
    %v5912 = vld [vmem:[#allocation14 + $0x1c40] sm:$0xff]
    %v5913 = vld [vmem:[#allocation14 + $0x1c48] sm:$0xff]
    %v5914 = vld [vmem:[#allocation14 + $0x1c50] sm:$0xff]
    %v5915 = vld [vmem:[#allocation14 + $0x1c58] sm:$0xff]
    %v5916 = vld [vmem:[#allocation14 + $0x1c60] sm:$0xff]
    %v5917 = vld [vmem:[#allocation14 + $0x1c68] sm:$0xff]
    %v5918 = vld [vmem:[#allocation14 + $0x1c70] sm:$0xff]
    %v5919 = vld [vmem:[#allocation14 + $0x1c78] sm:$0xff]
    %v5920 = vld [vmem:[#allocation14 + $0x1c80] sm:$0xff]
    %v5921 = vld [vmem:[#allocation14 + $0x1c88] sm:$0xff]
    %v5922 = vld [vmem:[#allocation14 + $0x1c90] sm:$0xff]
    %v5923 = vld [vmem:[#allocation14 + $0x1c98] sm:$0xff]
    %v5924 = vld [vmem:[#allocation14 + $0x1ca0] sm:$0xff]
    %v5925 = vld [vmem:[#allocation14 + $0x1ca8] sm:$0xff]
    %v5926 = vld [vmem:[#allocation14 + $0x1cb0] sm:$0xff]
    %v5927 = vld [vmem:[#allocation14 + $0x1cb8] sm:$0xff]
    %v5928 = vld [vmem:[#allocation14 + $0x1cc0] sm:$0xff]
    %v5929 = vld [vmem:[#allocation14 + $0x1cc8] sm:$0xff]
    %v5930 = vld [vmem:[#allocation14 + $0x1cd0] sm:$0xff]
    %v5931 = vld [vmem:[#allocation14 + $0x1cd8] sm:$0xff]
    %v5932 = vld [vmem:[#allocation14 + $0x1ce0] sm:$0xff]
    %v5933 = vld [vmem:[#allocation14 + $0x1ce8] sm:$0xff]
    %v5934 = vld [vmem:[#allocation14 + $0x1cf0] sm:$0xff]
    %v5935 = vld [vmem:[#allocation14 + $0x1cf8] sm:$0xff]
    %v5936 = vld [vmem:[#allocation14 + $0x1d00] sm:$0xff]
    %v5937 = vld [vmem:[#allocation14 + $0x1d08] sm:$0xff]
    %v5938 = vld [vmem:[#allocation14 + $0x1d10] sm:$0xff]
    %v5939 = vld [vmem:[#allocation14 + $0x1d18] sm:$0xff]
    %v5940 = vld [vmem:[#allocation14 + $0x1d20] sm:$0xff]
    %v5941 = vld [vmem:[#allocation14 + $0x1d28] sm:$0xff]
    %v5942 = vld [vmem:[#allocation14 + $0x1d30] sm:$0xff]
    %v5943 = vld [vmem:[#allocation14 + $0x1d38] sm:$0xff]
    %v5944 = vld [vmem:[#allocation14 + $0x1d40] sm:$0xff]
    %v5945 = vld [vmem:[#allocation14 + $0x1d48] sm:$0xff]
    %v5946 = vld [vmem:[#allocation14 + $0x1d50] sm:$0xff]
    %v5947 = vld [vmem:[#allocation14 + $0x1d58] sm:$0xff]
    %v5948 = vld [vmem:[#allocation14 + $0x1d60] sm:$0xff]
    %v5949 = vld [vmem:[#allocation14 + $0x1d68] sm:$0xff]
    %v5950 = vld [vmem:[#allocation14 + $0x1d70] sm:$0xff]
    %v5951 = vld [vmem:[#allocation14 + $0x1d78] sm:$0xff]
    %v5952 = vld [vmem:[#allocation14 + $0x1d80] sm:$0xff]
    %v5953 = vld [vmem:[#allocation14 + $0x1d88] sm:$0xff]
    %v5954 = vld [vmem:[#allocation14 + $0x1d90] sm:$0xff]
    %v5955 = vld [vmem:[#allocation14 + $0x1d98] sm:$0xff]
    %v5956 = vld [vmem:[#allocation14 + $0x1da0] sm:$0xff]
    %v5957 = vld [vmem:[#allocation14 + $0x1da8] sm:$0xff]
    %v5958 = vld [vmem:[#allocation14 + $0x1db0] sm:$0xff]
    %v5959 = vld [vmem:[#allocation14 + $0x1db8] sm:$0xff]
    %v5960 = vld [vmem:[#allocation14 + $0x1dc0] sm:$0xff]
    %v5961 = vld [vmem:[#allocation14 + $0x1dc8] sm:$0xff]
    %v5962 = vld [vmem:[#allocation14 + $0x1dd0] sm:$0xff]
    %v5963 = vld [vmem:[#allocation14 + $0x1dd8] sm:$0xff]
    %v5964 = vld [vmem:[#allocation14 + $0x1de0] sm:$0xff]
    %v5965 = vld [vmem:[#allocation14 + $0x1de8] sm:$0xff]
    %v5966 = vld [vmem:[#allocation14 + $0x1df0] sm:$0xff]
    %v5967 = vld [vmem:[#allocation14 + $0x1df8] sm:$0xff]
    %v5968 = vld [vmem:[#allocation14 + $0x1e00] sm:$0xff]
    %v5969 = vld [vmem:[#allocation14 + $0x1e08] sm:$0xff]
    %v5970 = vld [vmem:[#allocation14 + $0x1e10] sm:$0xff]
    %v5971 = vld [vmem:[#allocation14 + $0x1e18] sm:$0xff]
    %v5972 = vld [vmem:[#allocation14 + $0x1e20] sm:$0xff]
    %v5973 = vld [vmem:[#allocation14 + $0x1e28] sm:$0xff]
    %v5974 = vld [vmem:[#allocation14 + $0x1e30] sm:$0xff]
    %v5975 = vld [vmem:[#allocation14 + $0x1e38] sm:$0xff]
    %v5976 = vld [vmem:[#allocation14 + $0x1e40] sm:$0xff]
    %v5977 = vld [vmem:[#allocation14 + $0x1e48] sm:$0xff]
    %v5978 = vld [vmem:[#allocation14 + $0x1e50] sm:$0xff]
    %v5979 = vld [vmem:[#allocation14 + $0x1e58] sm:$0xff]
    %v5980 = vld [vmem:[#allocation14 + $0x1e60] sm:$0xff]
    %v5981 = vld [vmem:[#allocation14 + $0x1e68] sm:$0xff]
    %v5982 = vld [vmem:[#allocation14 + $0x1e70] sm:$0xff]
    %v5983 = vld [vmem:[#allocation14 + $0x1e78] sm:$0xff]
    %v5984 = vld [vmem:[#allocation14 + $0x1e80] sm:$0xff]
    %v5985 = vld [vmem:[#allocation14 + $0x1e88] sm:$0xff]
    %v5986 = vld [vmem:[#allocation14 + $0x1e90] sm:$0xff]
    %v5987 = vld [vmem:[#allocation14 + $0x1e98] sm:$0xff]
    %v5988 = vld [vmem:[#allocation14 + $0x1ea0] sm:$0xff]
    %v5989 = vld [vmem:[#allocation14 + $0x1ea8] sm:$0xff]
    %v5990 = vld [vmem:[#allocation14 + $0x1eb0] sm:$0xff]
    %v5991 = vld [vmem:[#allocation14 + $0x1eb8] sm:$0xff]
    %v5992 = vld [vmem:[#allocation14 + $0x1ec0] sm:$0xff]
    %v5993 = vld [vmem:[#allocation14 + $0x1ec8] sm:$0xff]
    %v5994 = vld [vmem:[#allocation14 + $0x1ed0] sm:$0xff]
    %v5995 = vld [vmem:[#allocation14 + $0x1ed8] sm:$0xff]
    %v5996 = vld [vmem:[#allocation14 + $0x1ee0] sm:$0xff]
    %v5997 = vld [vmem:[#allocation14 + $0x1ee8] sm:$0xff]
    %v5998 = vld [vmem:[#allocation14 + $0x1ef0] sm:$0xff]
    %v5999 = vld [vmem:[#allocation14 + $0x1ef8] sm:$0xff]
    %v6000 = vld [vmem:[#allocation14 + $0x1f00] sm:$0xff]
    %v6001 = vld [vmem:[#allocation14 + $0x1f08] sm:$0xff]
    %v6002 = vld [vmem:[#allocation14 + $0x1f10] sm:$0xff]
    %v6003 = vld [vmem:[#allocation14 + $0x1f18] sm:$0xff]
    %v6004 = vld [vmem:[#allocation14 + $0x1f20] sm:$0xff]
    %v6005 = vld [vmem:[#allocation14 + $0x1f28] sm:$0xff]
    %v6006 = vld [vmem:[#allocation14 + $0x1f30] sm:$0xff]
    %v6007 = vld [vmem:[#allocation14 + $0x1f38] sm:$0xff]
    %v6008 = vld [vmem:[#allocation14 + $0x1f40] sm:$0xff]
    %v6009 = vld [vmem:[#allocation14 + $0x1f48] sm:$0xff]
    %v6010 = vld [vmem:[#allocation14 + $0x1f50] sm:$0xff]
    %v6011 = vld [vmem:[#allocation14 + $0x1f58] sm:$0xff]
    %v6012 = vld [vmem:[#allocation14 + $0x1f60] sm:$0xff]
    %v6013 = vld [vmem:[#allocation14 + $0x1f68] sm:$0xff]
    %v6014 = vld [vmem:[#allocation14 + $0x1f70] sm:$0xff]
    %v6015 = vld [vmem:[#allocation14 + $0x1f78] sm:$0xff]
    %v6016 = vld [vmem:[#allocation14 + $0x1f80] sm:$0xff]
    %v6017 = vld [vmem:[#allocation14 + $0x1f88] sm:$0xff]
    %v6018 = vld [vmem:[#allocation14 + $0x1f90] sm:$0xff]
    %v6019 = vld [vmem:[#allocation14 + $0x1f98] sm:$0xff]
    %v6020 = vld [vmem:[#allocation14 + $0x1fa0] sm:$0xff]
    %v6021 = vld [vmem:[#allocation14 + $0x1fa8] sm:$0xff]
    %v6022 = vld [vmem:[#allocation14 + $0x1fb0] sm:$0xff]
    %v6023 = vld [vmem:[#allocation14 + $0x1fb8] sm:$0xff]
    %v6024 = vld [vmem:[#allocation14 + $0x1fc0] sm:$0xff]
    %v6025 = vld [vmem:[#allocation14 + $0x1fc8] sm:$0xff]
    %v6026 = vld [vmem:[#allocation14 + $0x1fd0] sm:$0xff]
    %v6027 = vld [vmem:[#allocation14 + $0x1fd8] sm:$0xff]
    %v6028 = vld [vmem:[#allocation14 + $0x1fe0] sm:$0xff]
    %v6029 = vld [vmem:[#allocation14 + $0x1fe8] sm:$0xff]
    %v6030 = vld [vmem:[#allocation14 + $0x1ff0] sm:$0xff]
    %v6031 = vld [vmem:[#allocation14 + $0x1ff8] sm:$0xff]
    %v6032 = vld [vmem:[#allocation14 + $0x2000] sm:$0xff]
    %v6033 = vld [vmem:[#allocation14 + $0x2008] sm:$0xff]
    %v6034 = vld [vmem:[#allocation14 + $0x2010] sm:$0xff]
    %v6035 = vld [vmem:[#allocation14 + $0x2018] sm:$0xff]
    %v6036 = vld [vmem:[#allocation14 + $0x2020] sm:$0xff]
    %v6037 = vld [vmem:[#allocation14 + $0x2028] sm:$0xff]
    %v6038 = vld [vmem:[#allocation14 + $0x2030] sm:$0xff]
    %v6039 = vld [vmem:[#allocation14 + $0x2038] sm:$0xff]
    %v6040 = vld [vmem:[#allocation14 + $0x2040] sm:$0xff]
    %v6041 = vld [vmem:[#allocation14 + $0x2048] sm:$0xff]
    %v6042 = vld [vmem:[#allocation14 + $0x2050] sm:$0xff]
    %v6043 = vld [vmem:[#allocation14 + $0x2058] sm:$0xff]
    %v6044 = vld [vmem:[#allocation14 + $0x2060] sm:$0xff]
    %v6045 = vld [vmem:[#allocation14 + $0x2068] sm:$0xff]
    %v6046 = vld [vmem:[#allocation14 + $0x2070] sm:$0xff]
    %v6047 = vld [vmem:[#allocation14 + $0x2078] sm:$0xff]
    %v6048 = vld [vmem:[#allocation14 + $0x2080] sm:$0xff]
    %v6049 = vld [vmem:[#allocation14 + $0x2088] sm:$0xff]
    %v6050 = vld [vmem:[#allocation14 + $0x2090] sm:$0xff]
    %v6051 = vld [vmem:[#allocation14 + $0x2098] sm:$0xff]
    %v6052 = vld [vmem:[#allocation14 + $0x20a0] sm:$0xff]
    %v6053 = vld [vmem:[#allocation14 + $0x20a8] sm:$0xff]
    %v6054 = vld [vmem:[#allocation14 + $0x20b0] sm:$0xff]
    %v6055 = vld [vmem:[#allocation14 + $0x20b8] sm:$0xff]
    %v6056 = vld [vmem:[#allocation14 + $0x20c0] sm:$0xff]
    %v6057 = vld [vmem:[#allocation14 + $0x20c8] sm:$0xff]
    %v6058 = vld [vmem:[#allocation14 + $0x20d0] sm:$0xff]
    %v6059 = vld [vmem:[#allocation14 + $0x20d8] sm:$0xff]
    %v6060 = vld [vmem:[#allocation14 + $0x20e0] sm:$0xff]
    %v6061 = vld [vmem:[#allocation14 + $0x20e8] sm:$0xff]
    %v6062 = vld [vmem:[#allocation14 + $0x20f0] sm:$0xff]
    %v6063 = vld [vmem:[#allocation14 + $0x20f8] sm:$0xff]
    %v6064 = vld [vmem:[#allocation14 + $0x2100] sm:$0xff]
    %v6065 = vld [vmem:[#allocation14 + $0x2108] sm:$0xff]
    %v6066 = vld [vmem:[#allocation14 + $0x2110] sm:$0xff]
    %v6067 = vld [vmem:[#allocation14 + $0x2118] sm:$0xff]
    %v6068 = vld [vmem:[#allocation14 + $0x2120] sm:$0xff]
    %v6069 = vld [vmem:[#allocation14 + $0x2128] sm:$0xff]
    %v6070 = vld [vmem:[#allocation14 + $0x2130] sm:$0xff]
    %v6071 = vld [vmem:[#allocation14 + $0x2138] sm:$0xff]
    %v6072 = vld [vmem:[#allocation14 + $0x2140] sm:$0xff]
    %v6073 = vld [vmem:[#allocation14 + $0x2148] sm:$0xff]
    %v6074 = vld [vmem:[#allocation14 + $0x2150] sm:$0xff]
    %v6075 = vld [vmem:[#allocation14 + $0x2158] sm:$0xff]
    %v6076 = vld [vmem:[#allocation14 + $0x2160] sm:$0xff]
    %v6077 = vld [vmem:[#allocation14 + $0x2168] sm:$0xff]
    %v6078 = vld [vmem:[#allocation14 + $0x2170] sm:$0xff]
    %v6079 = vld [vmem:[#allocation14 + $0x2178] sm:$0xff]
    %v6080 = vld [vmem:[#allocation14 + $0x2180] sm:$0xff]
    %v6081 = vld [vmem:[#allocation14 + $0x2188] sm:$0xff]
    %v6082 = vld [vmem:[#allocation14 + $0x2190] sm:$0xff]
    %v6083 = vld [vmem:[#allocation14 + $0x2198] sm:$0xff]
    %v6084 = vld [vmem:[#allocation14 + $0x21a0] sm:$0xff]
    %v6085 = vld [vmem:[#allocation14 + $0x21a8] sm:$0xff]
    %v6086 = vld [vmem:[#allocation14 + $0x21b0] sm:$0xff]
    %v6087 = vld [vmem:[#allocation14 + $0x21b8] sm:$0xff]
    %v6088 = vld [vmem:[#allocation14 + $0x21c0] sm:$0xff]
    %v6089 = vld [vmem:[#allocation14 + $0x21c8] sm:$0xff]
    %v6090 = vld [vmem:[#allocation14 + $0x21d0] sm:$0xff]
    %v6091 = vld [vmem:[#allocation14 + $0x21d8] sm:$0xff]
    %v6092 = vld [vmem:[#allocation14 + $0x21e0] sm:$0xff]
    %v6093 = vld [vmem:[#allocation14 + $0x21e8] sm:$0xff]
    %v6094 = vld [vmem:[#allocation14 + $0x21f0] sm:$0xff]
    %v6095 = vld [vmem:[#allocation14 + $0x21f8] sm:$0xff]
    %v6096 = vld [vmem:[#allocation14 + $0x2200] sm:$0xff]
    %v6097 = vld [vmem:[#allocation14 + $0x2208] sm:$0xff]
    %v6098 = vld [vmem:[#allocation14 + $0x2210] sm:$0xff]
    %v6099 = vld [vmem:[#allocation14 + $0x2218] sm:$0xff]
    %v6100 = vld [vmem:[#allocation14 + $0x2220] sm:$0xff]
    %v6101 = vld [vmem:[#allocation14 + $0x2228] sm:$0xff]
    %v6102 = vld [vmem:[#allocation14 + $0x2230] sm:$0xff]
    %v6103 = vld [vmem:[#allocation14 + $0x2238] sm:$0xff]
    %v6104 = vld [vmem:[#allocation14 + $0x2240] sm:$0xff]
    %v6105 = vld [vmem:[#allocation14 + $0x2248] sm:$0xff]
    %v6106 = vld [vmem:[#allocation14 + $0x2250] sm:$0xff]
    %v6107 = vld [vmem:[#allocation14 + $0x2258] sm:$0xff]
    %v6108 = vld [vmem:[#allocation14 + $0x2260] sm:$0xff]
    %v6109 = vld [vmem:[#allocation14 + $0x2268] sm:$0xff]
    %v6110 = vld [vmem:[#allocation14 + $0x2270] sm:$0xff]
    %v6111 = vld [vmem:[#allocation14 + $0x2278] sm:$0xff]
    %v6112 = vld [vmem:[#allocation14 + $0x2280] sm:$0xff]
    %v6113 = vld [vmem:[#allocation14 + $0x2288] sm:$0xff]
    %v6114 = vld [vmem:[#allocation14 + $0x2290] sm:$0xff]
    %v6115 = vld [vmem:[#allocation14 + $0x2298] sm:$0xff]
    %v6116 = vld [vmem:[#allocation14 + $0x22a0] sm:$0xff]
    %v6117 = vld [vmem:[#allocation14 + $0x22a8] sm:$0xff]
    %v6118 = vld [vmem:[#allocation14 + $0x22b0] sm:$0xff]
    %v6119 = vld [vmem:[#allocation14 + $0x22b8] sm:$0xff]
    %v6120 = vld [vmem:[#allocation14 + $0x22c0] sm:$0xff]
    %v6121 = vld [vmem:[#allocation14 + $0x22c8] sm:$0xff]
    %v6122 = vld [vmem:[#allocation14 + $0x22d0] sm:$0xff]
    %v6123 = vld [vmem:[#allocation14 + $0x22d8] sm:$0xff]
    %v6124 = vld [vmem:[#allocation14 + $0x22e0] sm:$0xff]
    %v6125 = vld [vmem:[#allocation14 + $0x22e8] sm:$0xff]
    %v6126 = vld [vmem:[#allocation14 + $0x22f0] sm:$0xff]
    %v6127 = vld [vmem:[#allocation14 + $0x22f8] sm:$0xff]
    %v6128 = vld [vmem:[#allocation14 + $0x2300] sm:$0xff]
    %v6129 = vld [vmem:[#allocation14 + $0x2308] sm:$0xff]
    %v6130 = vld [vmem:[#allocation14 + $0x2310] sm:$0xff]
    %v6131 = vld [vmem:[#allocation14 + $0x2318] sm:$0xff]
    %v6132 = vld [vmem:[#allocation14 + $0x2320] sm:$0xff]
    %v6133 = vld [vmem:[#allocation14 + $0x2328] sm:$0xff]
    %v6134 = vld [vmem:[#allocation14 + $0x2330] sm:$0xff]
    %v6135 = vld [vmem:[#allocation14 + $0x2338] sm:$0xff]
    %v6136 = vld [vmem:[#allocation14 + $0x2340] sm:$0xff]
    %v6137 = vld [vmem:[#allocation14 + $0x2348] sm:$0xff]
    %v6138 = vld [vmem:[#allocation14 + $0x2350] sm:$0xff]
    %v6139 = vld [vmem:[#allocation14 + $0x2358] sm:$0xff]
    %v6140 = vld [vmem:[#allocation14 + $0x2360] sm:$0xff]
    %v6141 = vld [vmem:[#allocation14 + $0x2368] sm:$0xff]
    %v6142 = vld [vmem:[#allocation14 + $0x2370] sm:$0xff]
    %v6143 = vld [vmem:[#allocation14 + $0x2378] sm:$0xff]
    %v6144 = vld [vmem:[#allocation14 + $0x2380] sm:$0xff]
    %v6145 = vld [vmem:[#allocation14 + $0x2388] sm:$0xff]
    %v6146 = vld [vmem:[#allocation14 + $0x2390] sm:$0xff]
    %v6147 = vld [vmem:[#allocation14 + $0x2398] sm:$0xff]
    %v6148 = vld [vmem:[#allocation14 + $0x23a0] sm:$0xff]
    %v6149 = vld [vmem:[#allocation14 + $0x23a8] sm:$0xff]
    %v6150 = vld [vmem:[#allocation14 + $0x23b0] sm:$0xff]
    %v6151 = vld [vmem:[#allocation14 + $0x23b8] sm:$0xff]
    %v6152 = vld [vmem:[#allocation14 + $0x23c0] sm:$0xff]
    %v6153 = vld [vmem:[#allocation14 + $0x23c8] sm:$0xff]
    %v6154 = vld [vmem:[#allocation14 + $0x23d0] sm:$0xff]
    %v6155 = vld [vmem:[#allocation14 + $0x23d8] sm:$0xff]
    %v6156 = vld [vmem:[#allocation14 + $0x23e0] sm:$0xff]
    %v6157 = vld [vmem:[#allocation14 + $0x23e8] sm:$0xff]
    %v6158 = vld [vmem:[#allocation14 + $0x23f0] sm:$0xff]
    %v6159 = vld [vmem:[#allocation14 + $0x23f8] sm:$0xff]
    %v6160 = vld [vmem:[#allocation16] sm:$0xff]
    %v6161 = vld [vmem:[#allocation16 + $0x8] sm:$0x1]
    %v6164 = vlaneseq
    %v6165 = vshrl.u32 %v6164, 7
    %v6166 = vsub.s32 0, %v6165
    %v6167 = vrot.slane %v6160, %v6166
    %v6168 = vlaneseq
    %v6169 = vshrl.u32 %v6168, 7
    %v6170 = vsub.s32 1, %v6169
    %v6171 = vrot.slane %v6160, %v6170
    %v6172 = vlaneseq
    %v6173 = vshrl.u32 %v6172, 7
    %v6174 = vsub.s32 2, %v6173
    %v6175 = vrot.slane %v6160, %v6174
    %v6176 = vlaneseq
    %v6177 = vshrl.u32 %v6176, 7
    %v6178 = vsub.s32 3, %v6177
    %v6179 = vrot.slane %v6160, %v6178
    %v6180 = vlaneseq
    %v6181 = vshrl.u32 %v6180, 7
    %v6182 = vsub.s32 4, %v6181
    %v6183 = vrot.slane %v6160, %v6182
    %v6184 = vlaneseq
    %v6185 = vshrl.u32 %v6184, 7
    %v6186 = vsub.s32 5, %v6185
    %v6187 = vrot.slane %v6160, %v6186
    %v6188 = vlaneseq
    %v6189 = vshrl.u32 %v6188, 7
    %v6190 = vsub.s32 6, %v6189
    %v6191 = vrot.slane %v6160, %v6190
    %v6192 = vlaneseq
    %v6193 = vshrl.u32 %v6192, 7
    %v6194 = vsub.s32 7, %v6193
    %v6195 = vrot.slane %v6160, %v6194
    %v6196 = vlaneseq
    %v6197 = vshrl.u32 %v6196, 7
    %v6198 = vsub.s32 0, %v6197
    %v6199 = vrot.slane %v6161, %v6198
    %6209 = vmatprep.subr.mxu0 %v5144
    %6210 = vmatpush1.msra.mxu0 %v5143
    %6211 = vmatprep.subr.mxu0 %v5135
    %6212 = vmatpush1.msra.mxu0 %v5134
    %6213 = vmatprep.subr.mxu0 %v5126
    %6214 = vmatpush1.msra.mxu0 %v5125
    %6215 = vmatprep.subr.mxu0 %v5117
    %6216 = vmatpush1.msra.mxu0 %v5116
    %6217 = vmatprep.subr.mxu0 %v5108
    %6218 = vmatpush1.msra.mxu0 %v5107
    %6219 = vmatprep.subr.mxu0 %v5099
    %6220 = vmatpush1.msra.mxu0 %v5098
    %6221 = vmatprep.subr.mxu0 %v5090
    %6222 = vmatpush1.msra.mxu0 %v5089
    %6223 = vmatprep.subr.mxu0 %v5081
    %6224 = vmatpush1.msra.mxu0 %v5080
    %6225 = vmatprep.subr.mxu0 %v5072
    %6226 = vmatpush1.msra.mxu0 %v5071
    %6227 = vmatprep.subr.mxu0 %v5063
    %6228 = vmatpush1.msra.mxu0 %v5062
    %6229 = vmatprep.subr.mxu0 %v5054
    %6230 = vmatpush1.msra.mxu0 %v5053
    %6231 = vmatprep.subr.mxu0 %v5045
    %6232 = vmatpush1.msra.mxu0 %v5044
    %6233 = vmatprep.subr.mxu0 %v5036
    %6234 = vmatpush1.msra.mxu0 %v5035
    %6235 = vmatprep.subr.mxu0 %v5027
    %6236 = vmatpush1.msra.mxu0 %v5026
    %6237 = vmatprep.subr.mxu0 %v5018
    %6238 = vmatpush1.msra.mxu0 %v5017
    %6239 = vmatprep.subr.mxu0 %v5009
    %6240 = vmatpush1.msra.mxu0 %v5008
    %6241 = vmatprep.subr.mxu0 %v5288
    %6242 = vmatpush2.msra.mxu0 %v5287
    %6243 = vmatprep.subr.mxu0 %v5279
    %6244 = vmatpush2.msra.mxu0 %v5278
    %6245 = vmatprep.subr.mxu0 %v5270
    %6246 = vmatpush2.msra.mxu0 %v5269
    %6247 = vmatprep.subr.mxu0 %v5261
    %6248 = vmatpush2.msra.mxu0 %v5260
    %6249 = vmatprep.subr.mxu0 %v5252
    %6250 = vmatpush2.msra.mxu0 %v5251
    %6251 = vmatprep.subr.mxu0 %v5243
    %6252 = vmatpush2.msra.mxu0 %v5242
    %6253 = vmatprep.subr.mxu0 %v5234
    %6254 = vmatpush2.msra.mxu0 %v5233
    %6255 = vmatprep.subr.mxu0 %v5225
    %6256 = vmatpush2.msra.mxu0 %v5224
    %6257 = vmatprep.subr.mxu0 %v5216
    %6258 = vmatpush2.msra.mxu0 %v5215
    %6259 = vmatprep.subr.mxu0 %v5207
    %6260 = vmatpush2.msra.mxu0 %v5206
    %6261 = vmatprep.subr.mxu0 %v5198
    %6262 = vmatpush2.msra.mxu0 %v5197
    %6263 = vmatprep.subr.mxu0 %v5189
    %6264 = vmatpush2.msra.mxu0 %v5188
    %6265 = vmatprep.subr.mxu0 %v5180
    %6266 = vmatpush2.msra.mxu0 %v5179
    %6267 = vmatprep.subr.mxu0 %v5171
    %6268 = vmatpush2.msra.mxu0 %v5170
    %6269 = vmatprep.subr.mxu0 %v5162
    %6270 = vmatpush2.msra.mxu0 %v5161
    %6271 = vmatprep.subr.mxu0 %v5153
    %6272 = vmatpush2.msra.mxu0 %v5152
    %6273 = vmatprep.mubr.f32.mxu0 %v5001
    %6274 = vmatmul.mubr.f32.gmra.mxu0 %v5000
    %v6275 = vpop.f32.mrf.mxu0
    %v6276 = vadd.f32 %v6167, %v6275
    %v6277 = vpop.f32.mrf.mxu0
    %v6278 = vadd.f32 %v6171, %v6277
    %6279 = vdwg.mxu0
    %6280 = vmatprep.subr.mxu0 %v5432
    %6281 = vmatpush1.msra.mxu0 %v5431
    %6282 = vmatprep.subr.mxu0 %v5423
    %6283 = vmatpush1.msra.mxu0 %v5422
    %6284 = vmatprep.subr.mxu0 %v5414
    %6285 = vmatpush1.msra.mxu0 %v5413
    %6286 = vmatprep.subr.mxu0 %v5405
    %6287 = vmatpush1.msra.mxu0 %v5404
    %6288 = vmatprep.subr.mxu0 %v5396
    %6289 = vmatpush1.msra.mxu0 %v5395
    %6290 = vmatprep.subr.mxu0 %v5387
    %6291 = vmatpush1.msra.mxu0 %v5386
    %6292 = vmatprep.subr.mxu0 %v5378
    %6293 = vmatpush1.msra.mxu0 %v5377
    %6294 = vmatprep.subr.mxu0 %v5369
    %6295 = vmatpush1.msra.mxu0 %v5368
    %6296 = vmatprep.subr.mxu0 %v5360
    %6297 = vmatpush1.msra.mxu0 %v5359
    %6298 = vmatprep.subr.mxu0 %v5351
    %6299 = vmatpush1.msra.mxu0 %v5350
    %6300 = vmatprep.subr.mxu0 %v5342
    %6301 = vmatpush1.msra.mxu0 %v5341
    %6302 = vmatprep.subr.mxu0 %v5333
    %6303 = vmatpush1.msra.mxu0 %v5332
    %6304 = vmatprep.subr.mxu0 %v5324
    %6305 = vmatpush1.msra.mxu0 %v5323
    %6306 = vmatprep.subr.mxu0 %v5315
    %6307 = vmatpush1.msra.mxu0 %v5314
    %6308 = vmatprep.subr.mxu0 %v5306
    %6309 = vmatpush1.msra.mxu0 %v5305
    %6310 = vmatprep.subr.mxu0 %v5297
    %6311 = vmatpush1.msra.mxu0 %v5296
    %6312 = vmatprep.subr.mxu0 %v5576
    %6313 = vmatpush2.msra.mxu0 %v5575
    %6314 = vmatprep.subr.mxu0 %v5567
    %6315 = vmatpush2.msra.mxu0 %v5566
    %6316 = vmatprep.subr.mxu0 %v5558
    %6317 = vmatpush2.msra.mxu0 %v5557
    %6318 = vmatprep.subr.mxu0 %v5549
    %6319 = vmatpush2.msra.mxu0 %v5548
    %6320 = vmatprep.subr.mxu0 %v5540
    %6321 = vmatpush2.msra.mxu0 %v5539
    %6322 = vmatprep.subr.mxu0 %v5531
    %6323 = vmatpush2.msra.mxu0 %v5530
    %6324 = vmatprep.subr.mxu0 %v5522
    %6325 = vmatpush2.msra.mxu0 %v5521
    %6326 = vmatprep.subr.mxu0 %v5513
    %6327 = vmatpush2.msra.mxu0 %v5512
    %6328 = vmatprep.subr.mxu0 %v5504
    %6329 = vmatpush2.msra.mxu0 %v5503
    %6330 = vmatprep.subr.mxu0 %v5495
    %6331 = vmatpush2.msra.mxu0 %v5494
    %6332 = vmatprep.subr.mxu0 %v5486
    %6333 = vmatpush2.msra.mxu0 %v5485
    %6334 = vmatprep.subr.mxu0 %v5477
    %6335 = vmatpush2.msra.mxu0 %v5476
    %6336 = vmatprep.subr.mxu0 %v5468
    %6337 = vmatpush2.msra.mxu0 %v5467
    %6338 = vmatprep.subr.mxu0 %v5459
    %6339 = vmatpush2.msra.mxu0 %v5458
    %6340 = vmatprep.subr.mxu0 %v5450
    %6341 = vmatpush2.msra.mxu0 %v5449
    %6342 = vmatprep.subr.mxu0 %v5441
    %6343 = vmatpush2.msra.mxu0 %v5440
    %6344 = vmatprep.mubr.f32.mxu0 %v5003
    %6345 = vmatmul.mubr.f32.gmra.mxu0 %v5002
    %v6346 = vpop.f32.mrf.mxu0
    %v6347 = vadd.f32 %v6276, %v6346
    %v6348 = vpop.f32.mrf.mxu0
    %v6349 = vadd.f32 %v6278, %v6348
    %6350 = vdwg.mxu0
    %6351 = vmatprep.subr.mxu0 %v5720
    %6352 = vmatpush1.msra.mxu0 %v5719
    %6353 = vmatprep.subr.mxu0 %v5711
    %6354 = vmatpush1.msra.mxu0 %v5710
    %6355 = vmatprep.subr.mxu0 %v5702
    %6356 = vmatpush1.msra.mxu0 %v5701
    %6357 = vmatprep.subr.mxu0 %v5693
    %6358 = vmatpush1.msra.mxu0 %v5692
    %6359 = vmatprep.subr.mxu0 %v5684
    %6360 = vmatpush1.msra.mxu0 %v5683
    %6361 = vmatprep.subr.mxu0 %v5675
    %6362 = vmatpush1.msra.mxu0 %v5674
    %6363 = vmatprep.subr.mxu0 %v5666
    %6364 = vmatpush1.msra.mxu0 %v5665
    %6365 = vmatprep.subr.mxu0 %v5657
    %6366 = vmatpush1.msra.mxu0 %v5656
    %6367 = vmatprep.subr.mxu0 %v5648
    %6368 = vmatpush1.msra.mxu0 %v5647
    %6369 = vmatprep.subr.mxu0 %v5639
    %6370 = vmatpush1.msra.mxu0 %v5638
    %6371 = vmatprep.subr.mxu0 %v5630
    %6372 = vmatpush1.msra.mxu0 %v5629
    %6373 = vmatprep.subr.mxu0 %v5621
    %6374 = vmatpush1.msra.mxu0 %v5620
    %6375 = vmatprep.subr.mxu0 %v5612
    %6376 = vmatpush1.msra.mxu0 %v5611
    %6377 = vmatprep.subr.mxu0 %v5603
    %6378 = vmatpush1.msra.mxu0 %v5602
    %6379 = vmatprep.subr.mxu0 %v5594
    %6380 = vmatpush1.msra.mxu0 %v5593
    %6381 = vmatprep.subr.mxu0 %v5585
    %6382 = vmatpush1.msra.mxu0 %v5584
    %6383 = vmatprep.subr.mxu0 %v5864
    %6384 = vmatpush2.msra.mxu0 %v5863
    %6385 = vmatprep.subr.mxu0 %v5855
    %6386 = vmatpush2.msra.mxu0 %v5854
    %6387 = vmatprep.subr.mxu0 %v5846
    %6388 = vmatpush2.msra.mxu0 %v5845
    %6389 = vmatprep.subr.mxu0 %v5837
    %6390 = vmatpush2.msra.mxu0 %v5836
    %6391 = vmatprep.subr.mxu0 %v5828
    %6392 = vmatpush2.msra.mxu0 %v5827
    %6393 = vmatprep.subr.mxu0 %v5819
    %6394 = vmatpush2.msra.mxu0 %v5818
    %6395 = vmatprep.subr.mxu0 %v5810
    %6396 = vmatpush2.msra.mxu0 %v5809
    %6397 = vmatprep.subr.mxu0 %v5801
    %6398 = vmatpush2.msra.mxu0 %v5800
    %6399 = vmatprep.subr.mxu0 %v5792
    %6400 = vmatpush2.msra.mxu0 %v5791
    %6401 = vmatprep.subr.mxu0 %v5783
    %6402 = vmatpush2.msra.mxu0 %v5782
    %6403 = vmatprep.subr.mxu0 %v5774
    %6404 = vmatpush2.msra.mxu0 %v5773
    %6405 = vmatprep.subr.mxu0 %v5765
    %6406 = vmatpush2.msra.mxu0 %v5764
    %6407 = vmatprep.subr.mxu0 %v5756
    %6408 = vmatpush2.msra.mxu0 %v5755
    %6409 = vmatprep.subr.mxu0 %v5747
    %6410 = vmatpush2.msra.mxu0 %v5746
    %6411 = vmatprep.subr.mxu0 %v5738
    %6412 = vmatpush2.msra.mxu0 %v5737
    %6413 = vmatprep.subr.mxu0 %v5729
    %6414 = vmatpush2.msra.mxu0 %v5728
    %6415 = vmatprep.mubr.f32.mxu0 %v5005
    %6416 = vmatmul.mubr.f32.gmra.mxu0 %v5004
    %v6417 = vpop.f32.mrf.mxu0
    %v6418 = vadd.f32 %v6347, %v6417
    %v6419 = vpop.f32.mrf.mxu0
    %v6420 = vadd.f32 %v6349, %v6419
    %6421 = vdwg.mxu0
    %6422 = vmatprep.subr.mxu0 %v6008
    %6423 = vmatpush1.msra.mxu0 %v6007
    %6424 = vmatprep.subr.mxu0 %v5999
    %6425 = vmatpush1.msra.mxu0 %v5998
    %6426 = vmatprep.subr.mxu0 %v5990
    %6427 = vmatpush1.msra.mxu0 %v5989
    %6428 = vmatprep.subr.mxu0 %v5981
    %6429 = vmatpush1.msra.mxu0 %v5980
    %6430 = vmatprep.subr.mxu0 %v5972
    %6431 = vmatpush1.msra.mxu0 %v5971
    %6432 = vmatprep.subr.mxu0 %v5963
    %6433 = vmatpush1.msra.mxu0 %v5962
    %6434 = vmatprep.subr.mxu0 %v5954
    %6435 = vmatpush1.msra.mxu0 %v5953
    %6436 = vmatprep.subr.mxu0 %v5945
    %6437 = vmatpush1.msra.mxu0 %v5944
    %6438 = vmatprep.subr.mxu0 %v5936
    %6439 = vmatpush1.msra.mxu0 %v5935
    %6440 = vmatprep.subr.mxu0 %v5927
    %6441 = vmatpush1.msra.mxu0 %v5926
    %6442 = vmatprep.subr.mxu0 %v5918
    %6443 = vmatpush1.msra.mxu0 %v5917
    %6444 = vmatprep.subr.mxu0 %v5909
    %6445 = vmatpush1.msra.mxu0 %v5908
    %6446 = vmatprep.subr.mxu0 %v5900
    %6447 = vmatpush1.msra.mxu0 %v5899
    %6448 = vmatprep.subr.mxu0 %v5891
    %6449 = vmatpush1.msra.mxu0 %v5890
    %6450 = vmatprep.subr.mxu0 %v5882
    %6451 = vmatpush1.msra.mxu0 %v5881
    %6452 = vmatprep.subr.mxu0 %v5873
    %6453 = vmatpush1.msra.mxu0 %v5872
    %6454 = vmatprep.subr.mxu0 %v6152
    %6455 = vmatpush2.msra.mxu0 %v6151
    %6456 = vmatprep.subr.mxu0 %v6143
    %6457 = vmatpush2.msra.mxu0 %v6142
    %6458 = vmatprep.subr.mxu0 %v6134
    %6459 = vmatpush2.msra.mxu0 %v6133
    %6460 = vmatprep.subr.mxu0 %v6125
    %6461 = vmatpush2.msra.mxu0 %v6124
    %6462 = vmatprep.subr.mxu0 %v6116
    %6463 = vmatpush2.msra.mxu0 %v6115
    %6464 = vmatprep.subr.mxu0 %v6107
    %6465 = vmatpush2.msra.mxu0 %v6106
    %6466 = vmatprep.subr.mxu0 %v6098
    %6467 = vmatpush2.msra.mxu0 %v6097
    %6468 = vmatprep.subr.mxu0 %v6089
    %6469 = vmatpush2.msra.mxu0 %v6088
    %6470 = vmatprep.subr.mxu0 %v6080
    %6471 = vmatpush2.msra.mxu0 %v6079
    %6472 = vmatprep.subr.mxu0 %v6071
    %6473 = vmatpush2.msra.mxu0 %v6070
    %6474 = vmatprep.subr.mxu0 %v6062
    %6475 = vmatpush2.msra.mxu0 %v6061
    %6476 = vmatprep.subr.mxu0 %v6053
    %6477 = vmatpush2.msra.mxu0 %v6052
    %6478 = vmatprep.subr.mxu0 %v6044
    %6479 = vmatpush2.msra.mxu0 %v6043
    %6480 = vmatprep.subr.mxu0 %v6035
    %6481 = vmatpush2.msra.mxu0 %v6034
    %6482 = vmatprep.subr.mxu0 %v6026
    %6483 = vmatpush2.msra.mxu0 %v6025
    %6484 = vmatprep.subr.mxu0 %v6017
    %6485 = vmatpush2.msra.mxu0 %v6016
    %6486 = vmatprep.mubr.f32.mxu0 %v5007
    %6487 = vmatmul.mubr.f32.gmra.mxu0 %v5006
    %v6488 = vpop.f32.mrf.mxu0
    %v6489 = vadd.f32 %v6418, %v6488
    %v6490 = vpop.f32.mrf.mxu0
    %v6491 = vadd.f32 %v6420, %v6490
    %6492 = vdwg.mxu0
    %6493 = vmatprep.subr.mxu0 %v5146
    %6494 = vmatpush1.msra.mxu0 %v5145
    %6495 = vmatprep.subr.mxu0 %v5137
    %6496 = vmatpush1.msra.mxu0 %v5136
    %6497 = vmatprep.subr.mxu0 %v5128
    %6498 = vmatpush1.msra.mxu0 %v5127
    %6499 = vmatprep.subr.mxu0 %v5119
    %6500 = vmatpush1.msra.mxu0 %v5118
    %6501 = vmatprep.subr.mxu0 %v5110
    %6502 = vmatpush1.msra.mxu0 %v5109
    %6503 = vmatprep.subr.mxu0 %v5101
    %6504 = vmatpush1.msra.mxu0 %v5100
    %6505 = vmatprep.subr.mxu0 %v5092
    %6506 = vmatpush1.msra.mxu0 %v5091
    %6507 = vmatprep.subr.mxu0 %v5083
    %6508 = vmatpush1.msra.mxu0 %v5082
    %6509 = vmatprep.subr.mxu0 %v5074
    %6510 = vmatpush1.msra.mxu0 %v5073
    %6511 = vmatprep.subr.mxu0 %v5065
    %6512 = vmatpush1.msra.mxu0 %v5064
    %6513 = vmatprep.subr.mxu0 %v5056
    %6514 = vmatpush1.msra.mxu0 %v5055
    %6515 = vmatprep.subr.mxu0 %v5047
    %6516 = vmatpush1.msra.mxu0 %v5046
    %6517 = vmatprep.subr.mxu0 %v5038
    %6518 = vmatpush1.msra.mxu0 %v5037
    %6519 = vmatprep.subr.mxu0 %v5029
    %6520 = vmatpush1.msra.mxu0 %v5028
    %6521 = vmatprep.subr.mxu0 %v5020
    %6522 = vmatpush1.msra.mxu0 %v5019
    %6523 = vmatprep.subr.mxu0 %v5011
    %6524 = vmatpush1.msra.mxu0 %v5010
    %6525 = vmatprep.subr.mxu0 %v5290
    %6526 = vmatpush2.msra.mxu0 %v5289
    %6527 = vmatprep.subr.mxu0 %v5281
    %6528 = vmatpush2.msra.mxu0 %v5280
    %6529 = vmatprep.subr.mxu0 %v5272
    %6530 = vmatpush2.msra.mxu0 %v5271
    %6531 = vmatprep.subr.mxu0 %v5263
    %6532 = vmatpush2.msra.mxu0 %v5262
    %6533 = vmatprep.subr.mxu0 %v5254
    %6534 = vmatpush2.msra.mxu0 %v5253
    %6535 = vmatprep.subr.mxu0 %v5245
    %6536 = vmatpush2.msra.mxu0 %v5244
    %6537 = vmatprep.subr.mxu0 %v5236
    %6538 = vmatpush2.msra.mxu0 %v5235
    %6539 = vmatprep.subr.mxu0 %v5227
    %6540 = vmatpush2.msra.mxu0 %v5226
    %6541 = vmatprep.subr.mxu0 %v5218
    %6542 = vmatpush2.msra.mxu0 %v5217
    %6543 = vmatprep.subr.mxu0 %v5209
    %6544 = vmatpush2.msra.mxu0 %v5208
    %6545 = vmatprep.subr.mxu0 %v5200
    %6546 = vmatpush2.msra.mxu0 %v5199
    %6547 = vmatprep.subr.mxu0 %v5191
    %6548 = vmatpush2.msra.mxu0 %v5190
    %6549 = vmatprep.subr.mxu0 %v5182
    %6550 = vmatpush2.msra.mxu0 %v5181
    %6551 = vmatprep.subr.mxu0 %v5173
    %6552 = vmatpush2.msra.mxu0 %v5172
    %6553 = vmatprep.subr.mxu0 %v5164
    %6554 = vmatpush2.msra.mxu0 %v5163
    %6555 = vmatprep.subr.mxu0 %v5155
    %6556 = vmatpush2.msra.mxu0 %v5154
    %6557 = vmatprep.mubr.f32.mxu0 %v5001
    %6558 = vmatmul.mubr.f32.gmra.mxu0 %v5000
    %v6559 = vpop.f32.mrf.mxu0
    %v6560 = vadd.f32 %v6175, %v6559
    %v6561 = vpop.f32.mrf.mxu0
    %v6562 = vadd.f32 %v6179, %v6561
    %6563 = vdwg.mxu0
    %6564 = vmatprep.subr.mxu0 %v5434
    %6565 = vmatpush1.msra.mxu0 %v5433
    %6566 = vmatprep.subr.mxu0 %v5425
    %6567 = vmatpush1.msra.mxu0 %v5424
    %6568 = vmatprep.subr.mxu0 %v5416
    %6569 = vmatpush1.msra.mxu0 %v5415
    %6570 = vmatprep.subr.mxu0 %v5407
    %6571 = vmatpush1.msra.mxu0 %v5406
    %6572 = vmatprep.subr.mxu0 %v5398
    %6573 = vmatpush1.msra.mxu0 %v5397
    %6574 = vmatprep.subr.mxu0 %v5389
    %6575 = vmatpush1.msra.mxu0 %v5388
    %6576 = vmatprep.subr.mxu0 %v5380
    %6577 = vmatpush1.msra.mxu0 %v5379
    %6578 = vmatprep.subr.mxu0 %v5371
    %6579 = vmatpush1.msra.mxu0 %v5370
    %6580 = vmatprep.subr.mxu0 %v5362
    %6581 = vmatpush1.msra.mxu0 %v5361
    %6582 = vmatprep.subr.mxu0 %v5353
    %6583 = vmatpush1.msra.mxu0 %v5352
    %6584 = vmatprep.subr.mxu0 %v5344
    %6585 = vmatpush1.msra.mxu0 %v5343
    %6586 = vmatprep.subr.mxu0 %v5335
    %6587 = vmatpush1.msra.mxu0 %v5334
    %6588 = vmatprep.subr.mxu0 %v5326
    %6589 = vmatpush1.msra.mxu0 %v5325
    %6590 = vmatprep.subr.mxu0 %v5317
    %6591 = vmatpush1.msra.mxu0 %v5316
    %6592 = vmatprep.subr.mxu0 %v5308
    %6593 = vmatpush1.msra.mxu0 %v5307
    %6594 = vmatprep.subr.mxu0 %v5299
    %6595 = vmatpush1.msra.mxu0 %v5298
    %6596 = vmatprep.subr.mxu0 %v5578
    %6597 = vmatpush2.msra.mxu0 %v5577
    %6598 = vmatprep.subr.mxu0 %v5569
    %6599 = vmatpush2.msra.mxu0 %v5568
    %6600 = vmatprep.subr.mxu0 %v5560
    %6601 = vmatpush2.msra.mxu0 %v5559
    %6602 = vmatprep.subr.mxu0 %v5551
    %6603 = vmatpush2.msra.mxu0 %v5550
    %6604 = vmatprep.subr.mxu0 %v5542
    %6605 = vmatpush2.msra.mxu0 %v5541
    %6606 = vmatprep.subr.mxu0 %v5533
    %6607 = vmatpush2.msra.mxu0 %v5532
    %6608 = vmatprep.subr.mxu0 %v5524
    %6609 = vmatpush2.msra.mxu0 %v5523
    %6610 = vmatprep.subr.mxu0 %v5515
    %6611 = vmatpush2.msra.mxu0 %v5514
    %6612 = vmatprep.subr.mxu0 %v5506
    %6613 = vmatpush2.msra.mxu0 %v5505
    %6614 = vmatprep.subr.mxu0 %v5497
    %6615 = vmatpush2.msra.mxu0 %v5496
    %6616 = vmatprep.subr.mxu0 %v5488
    %6617 = vmatpush2.msra.mxu0 %v5487
    %6618 = vmatprep.subr.mxu0 %v5479
    %6619 = vmatpush2.msra.mxu0 %v5478
    %6620 = vmatprep.subr.mxu0 %v5470
    %6621 = vmatpush2.msra.mxu0 %v5469
    %6622 = vmatprep.subr.mxu0 %v5461
    %6623 = vmatpush2.msra.mxu0 %v5460
    %6624 = vmatprep.subr.mxu0 %v5452
    %6625 = vmatpush2.msra.mxu0 %v5451
    %6626 = vmatprep.subr.mxu0 %v5443
    %6627 = vmatpush2.msra.mxu0 %v5442
    %6628 = vmatprep.mubr.f32.mxu0 %v5003
    %6629 = vmatmul.mubr.f32.gmra.mxu0 %v5002
    %v6630 = vpop.f32.mrf.mxu0
    %v6631 = vadd.f32 %v6560, %v6630
    %v6632 = vpop.f32.mrf.mxu0
    %v6633 = vadd.f32 %v6562, %v6632
    %6634 = vdwg.mxu0
    %6635 = vmatprep.subr.mxu0 %v5722
    %6636 = vmatpush1.msra.mxu0 %v5721
    %6637 = vmatprep.subr.mxu0 %v5713
    %6638 = vmatpush1.msra.mxu0 %v5712
    %6639 = vmatprep.subr.mxu0 %v5704
    %6640 = vmatpush1.msra.mxu0 %v5703
    %6641 = vmatprep.subr.mxu0 %v5695
    %6642 = vmatpush1.msra.mxu0 %v5694
    %6643 = vmatprep.subr.mxu0 %v5686
    %6644 = vmatpush1.msra.mxu0 %v5685
    %6645 = vmatprep.subr.mxu0 %v5677
    %6646 = vmatpush1.msra.mxu0 %v5676
    %6647 = vmatprep.subr.mxu0 %v5668
    %6648 = vmatpush1.msra.mxu0 %v5667
    %6649 = vmatprep.subr.mxu0 %v5659
    %6650 = vmatpush1.msra.mxu0 %v5658
    %6651 = vmatprep.subr.mxu0 %v5650
    %6652 = vmatpush1.msra.mxu0 %v5649
    %6653 = vmatprep.subr.mxu0 %v5641
    %6654 = vmatpush1.msra.mxu0 %v5640
    %6655 = vmatprep.subr.mxu0 %v5632
    %6656 = vmatpush1.msra.mxu0 %v5631
    %6657 = vmatprep.subr.mxu0 %v5623
    %6658 = vmatpush1.msra.mxu0 %v5622
    %6659 = vmatprep.subr.mxu0 %v5614
    %6660 = vmatpush1.msra.mxu0 %v5613
    %6661 = vmatprep.subr.mxu0 %v5605
    %6662 = vmatpush1.msra.mxu0 %v5604
    %6663 = vmatprep.subr.mxu0 %v5596
    %6664 = vmatpush1.msra.mxu0 %v5595
    %6665 = vmatprep.subr.mxu0 %v5587
    %6666 = vmatpush1.msra.mxu0 %v5586
    %6667 = vmatprep.subr.mxu0 %v5866
    %6668 = vmatpush2.msra.mxu0 %v5865
    %6669 = vmatprep.subr.mxu0 %v5857
    %6670 = vmatpush2.msra.mxu0 %v5856
    %6671 = vmatprep.subr.mxu0 %v5848
    %6672 = vmatpush2.msra.mxu0 %v5847
    %6673 = vmatprep.subr.mxu0 %v5839
    %6674 = vmatpush2.msra.mxu0 %v5838
    %6675 = vmatprep.subr.mxu0 %v5830
    %6676 = vmatpush2.msra.mxu0 %v5829
    %6677 = vmatprep.subr.mxu0 %v5821
    %6678 = vmatpush2.msra.mxu0 %v5820
    %6679 = vmatprep.subr.mxu0 %v5812
    %6680 = vmatpush2.msra.mxu0 %v5811
    %6681 = vmatprep.subr.mxu0 %v5803
    %6682 = vmatpush2.msra.mxu0 %v5802
    %6683 = vmatprep.subr.mxu0 %v5794
    %6684 = vmatpush2.msra.mxu0 %v5793
    %6685 = vmatprep.subr.mxu0 %v5785
    %6686 = vmatpush2.msra.mxu0 %v5784
    %6687 = vmatprep.subr.mxu0 %v5776
    %6688 = vmatpush2.msra.mxu0 %v5775
    %6689 = vmatprep.subr.mxu0 %v5767
    %6690 = vmatpush2.msra.mxu0 %v5766
    %6691 = vmatprep.subr.mxu0 %v5758
    %6692 = vmatpush2.msra.mxu0 %v5757
    %6693 = vmatprep.subr.mxu0 %v5749
    %6694 = vmatpush2.msra.mxu0 %v5748
    %6695 = vmatprep.subr.mxu0 %v5740
    %6696 = vmatpush2.msra.mxu0 %v5739
    %6697 = vmatprep.subr.mxu0 %v5731
    %6698 = vmatpush2.msra.mxu0 %v5730
    %6699 = vmatprep.mubr.f32.mxu0 %v5005
    %6700 = vmatmul.mubr.f32.gmra.mxu0 %v5004
    %v6701 = vpop.f32.mrf.mxu0
    %v6702 = vadd.f32 %v6631, %v6701
    %v6703 = vpop.f32.mrf.mxu0
    %v6704 = vadd.f32 %v6633, %v6703
    %6705 = vdwg.mxu0
    %6706 = vmatprep.subr.mxu0 %v6010
    %6707 = vmatpush1.msra.mxu0 %v6009
    %6708 = vmatprep.subr.mxu0 %v6001
    %6709 = vmatpush1.msra.mxu0 %v6000
    %6710 = vmatprep.subr.mxu0 %v5992
    %6711 = vmatpush1.msra.mxu0 %v5991
    %6712 = vmatprep.subr.mxu0 %v5983
    %6713 = vmatpush1.msra.mxu0 %v5982
    %6714 = vmatprep.subr.mxu0 %v5974
    %6715 = vmatpush1.msra.mxu0 %v5973
    %6716 = vmatprep.subr.mxu0 %v5965
    %6717 = vmatpush1.msra.mxu0 %v5964
    %6718 = vmatprep.subr.mxu0 %v5956
    %6719 = vmatpush1.msra.mxu0 %v5955
    %6720 = vmatprep.subr.mxu0 %v5947
    %6721 = vmatpush1.msra.mxu0 %v5946
    %6722 = vmatprep.subr.mxu0 %v5938
    %6723 = vmatpush1.msra.mxu0 %v5937
    %6724 = vmatprep.subr.mxu0 %v5929
    %6725 = vmatpush1.msra.mxu0 %v5928
    %6726 = vmatprep.subr.mxu0 %v5920
    %6727 = vmatpush1.msra.mxu0 %v5919
    %6728 = vmatprep.subr.mxu0 %v5911
    %6729 = vmatpush1.msra.mxu0 %v5910
    %6730 = vmatprep.subr.mxu0 %v5902
    %6731 = vmatpush1.msra.mxu0 %v5901
    %6732 = vmatprep.subr.mxu0 %v5893
    %6733 = vmatpush1.msra.mxu0 %v5892
    %6734 = vmatprep.subr.mxu0 %v5884
    %6735 = vmatpush1.msra.mxu0 %v5883
    %6736 = vmatprep.subr.mxu0 %v5875
    %6737 = vmatpush1.msra.mxu0 %v5874
    %6738 = vmatprep.subr.mxu0 %v6154
    %6739 = vmatpush2.msra.mxu0 %v6153
    %6740 = vmatprep.subr.mxu0 %v6145
    %6741 = vmatpush2.msra.mxu0 %v6144
    %6742 = vmatprep.subr.mxu0 %v6136
    %6743 = vmatpush2.msra.mxu0 %v6135
    %6744 = vmatprep.subr.mxu0 %v6127
    %6745 = vmatpush2.msra.mxu0 %v6126
    %6746 = vmatprep.subr.mxu0 %v6118
    %6747 = vmatpush2.msra.mxu0 %v6117
    %6748 = vmatprep.subr.mxu0 %v6109
    %6749 = vmatpush2.msra.mxu0 %v6108
    %6750 = vmatprep.subr.mxu0 %v6100
    %6751 = vmatpush2.msra.mxu0 %v6099
    %6752 = vmatprep.subr.mxu0 %v6091
    %6753 = vmatpush2.msra.mxu0 %v6090
    %6754 = vmatprep.subr.mxu0 %v6082
    %6755 = vmatpush2.msra.mxu0 %v6081
    %6756 = vmatprep.subr.mxu0 %v6073
    %6757 = vmatpush2.msra.mxu0 %v6072
    %6758 = vmatprep.subr.mxu0 %v6064
    %6759 = vmatpush2.msra.mxu0 %v6063
    %6760 = vmatprep.subr.mxu0 %v6055
    %6761 = vmatpush2.msra.mxu0 %v6054
    %6762 = vmatprep.subr.mxu0 %v6046
    %6763 = vmatpush2.msra.mxu0 %v6045
    %6764 = vmatprep.subr.mxu0 %v6037
    %6765 = vmatpush2.msra.mxu0 %v6036
    %6766 = vmatprep.subr.mxu0 %v6028
    %6767 = vmatpush2.msra.mxu0 %v6027
    %6768 = vmatprep.subr.mxu0 %v6019
    %6769 = vmatpush2.msra.mxu0 %v6018
    %6770 = vmatprep.mubr.f32.mxu0 %v5007
    %6771 = vmatmul.mubr.f32.gmra.mxu0 %v5006
    %v6772 = vpop.f32.mrf.mxu0
    %v6773 = vadd.f32 %v6702, %v6772
    %v6774 = vpop.f32.mrf.mxu0
    %v6775 = vadd.f32 %v6704, %v6774
    %6776 = vdwg.mxu0
    %6777 = vmatprep.subr.mxu0 %v5148
    %6778 = vmatpush1.msra.mxu0 %v5147
    %6779 = vmatprep.subr.mxu0 %v5139
    %6780 = vmatpush1.msra.mxu0 %v5138
    %6781 = vmatprep.subr.mxu0 %v5130
    %6782 = vmatpush1.msra.mxu0 %v5129
    %6783 = vmatprep.subr.mxu0 %v5121
    %6784 = vmatpush1.msra.mxu0 %v5120
    %6785 = vmatprep.subr.mxu0 %v5112
    %6786 = vmatpush1.msra.mxu0 %v5111
    %6787 = vmatprep.subr.mxu0 %v5103
    %6788 = vmatpush1.msra.mxu0 %v5102
    %6789 = vmatprep.subr.mxu0 %v5094
    %6790 = vmatpush1.msra.mxu0 %v5093
    %6791 = vmatprep.subr.mxu0 %v5085
    %6792 = vmatpush1.msra.mxu0 %v5084
    %6793 = vmatprep.subr.mxu0 %v5076
    %6794 = vmatpush1.msra.mxu0 %v5075
    %6795 = vmatprep.subr.mxu0 %v5067
    %6796 = vmatpush1.msra.mxu0 %v5066
    %6797 = vmatprep.subr.mxu0 %v5058
    %6798 = vmatpush1.msra.mxu0 %v5057
    %6799 = vmatprep.subr.mxu0 %v5049
    %6800 = vmatpush1.msra.mxu0 %v5048
    %6801 = vmatprep.subr.mxu0 %v5040
    %6802 = vmatpush1.msra.mxu0 %v5039
    %6803 = vmatprep.subr.mxu0 %v5031
    %6804 = vmatpush1.msra.mxu0 %v5030
    %6805 = vmatprep.subr.mxu0 %v5022
    %6806 = vmatpush1.msra.mxu0 %v5021
    %6807 = vmatprep.subr.mxu0 %v5013
    %6808 = vmatpush1.msra.mxu0 %v5012
    %6809 = vmatprep.subr.mxu0 %v5292
    %6810 = vmatpush2.msra.mxu0 %v5291
    %6811 = vmatprep.subr.mxu0 %v5283
    %6812 = vmatpush2.msra.mxu0 %v5282
    %6813 = vmatprep.subr.mxu0 %v5274
    %6814 = vmatpush2.msra.mxu0 %v5273
    %6815 = vmatprep.subr.mxu0 %v5265
    %6816 = vmatpush2.msra.mxu0 %v5264
    %6817 = vmatprep.subr.mxu0 %v5256
    %6818 = vmatpush2.msra.mxu0 %v5255
    %6819 = vmatprep.subr.mxu0 %v5247
    %6820 = vmatpush2.msra.mxu0 %v5246
    %6821 = vmatprep.subr.mxu0 %v5238
    %6822 = vmatpush2.msra.mxu0 %v5237
    %6823 = vmatprep.subr.mxu0 %v5229
    %6824 = vmatpush2.msra.mxu0 %v5228
    %6825 = vmatprep.subr.mxu0 %v5220
    %6826 = vmatpush2.msra.mxu0 %v5219
    %6827 = vmatprep.subr.mxu0 %v5211
    %6828 = vmatpush2.msra.mxu0 %v5210
    %6829 = vmatprep.subr.mxu0 %v5202
    %6830 = vmatpush2.msra.mxu0 %v5201
    %6831 = vmatprep.subr.mxu0 %v5193
    %6832 = vmatpush2.msra.mxu0 %v5192
    %6833 = vmatprep.subr.mxu0 %v5184
    %6834 = vmatpush2.msra.mxu0 %v5183
    %6835 = vmatprep.subr.mxu0 %v5175
    %6836 = vmatpush2.msra.mxu0 %v5174
    %6837 = vmatprep.subr.mxu0 %v5166
    %6838 = vmatpush2.msra.mxu0 %v5165
    %6839 = vmatprep.subr.mxu0 %v5157
    %6840 = vmatpush2.msra.mxu0 %v5156
    %6841 = vmatprep.mubr.f32.mxu0 %v5001
    %6842 = vmatmul.mubr.f32.gmra.mxu0 %v5000
    %v6843 = vpop.f32.mrf.mxu0
    %v6844 = vadd.f32 %v6183, %v6843
    %v6845 = vpop.f32.mrf.mxu0
    %v6846 = vadd.f32 %v6187, %v6845
    %6847 = vdwg.mxu0
    %6848 = vmatprep.subr.mxu0 %v5436
    %6849 = vmatpush1.msra.mxu0 %v5435
    %6850 = vmatprep.subr.mxu0 %v5427
    %6851 = vmatpush1.msra.mxu0 %v5426
    %6852 = vmatprep.subr.mxu0 %v5418
    %6853 = vmatpush1.msra.mxu0 %v5417
    %6854 = vmatprep.subr.mxu0 %v5409
    %6855 = vmatpush1.msra.mxu0 %v5408
    %6856 = vmatprep.subr.mxu0 %v5400
    %6857 = vmatpush1.msra.mxu0 %v5399
    %6858 = vmatprep.subr.mxu0 %v5391
    %6859 = vmatpush1.msra.mxu0 %v5390
    %6860 = vmatprep.subr.mxu0 %v5382
    %6861 = vmatpush1.msra.mxu0 %v5381
    %6862 = vmatprep.subr.mxu0 %v5373
    %6863 = vmatpush1.msra.mxu0 %v5372
    %6864 = vmatprep.subr.mxu0 %v5364
    %6865 = vmatpush1.msra.mxu0 %v5363
    %6866 = vmatprep.subr.mxu0 %v5355
    %6867 = vmatpush1.msra.mxu0 %v5354
    %6868 = vmatprep.subr.mxu0 %v5346
    %6869 = vmatpush1.msra.mxu0 %v5345
    %6870 = vmatprep.subr.mxu0 %v5337
    %6871 = vmatpush1.msra.mxu0 %v5336
    %6872 = vmatprep.subr.mxu0 %v5328
    %6873 = vmatpush1.msra.mxu0 %v5327
    %6874 = vmatprep.subr.mxu0 %v5319
    %6875 = vmatpush1.msra.mxu0 %v5318
    %6876 = vmatprep.subr.mxu0 %v5310
    %6877 = vmatpush1.msra.mxu0 %v5309
    %6878 = vmatprep.subr.mxu0 %v5301
    %6879 = vmatpush1.msra.mxu0 %v5300
    %6880 = vmatprep.subr.mxu0 %v5580
    %6881 = vmatpush2.msra.mxu0 %v5579
    %6882 = vmatprep.subr.mxu0 %v5571
    %6883 = vmatpush2.msra.mxu0 %v5570
    %6884 = vmatprep.subr.mxu0 %v5562
    %6885 = vmatpush2.msra.mxu0 %v5561
    %6886 = vmatprep.subr.mxu0 %v5553
    %6887 = vmatpush2.msra.mxu0 %v5552
    %6888 = vmatprep.subr.mxu0 %v5544
    %6889 = vmatpush2.msra.mxu0 %v5543
    %6890 = vmatprep.subr.mxu0 %v5535
    %6891 = vmatpush2.msra.mxu0 %v5534
    %6892 = vmatprep.subr.mxu0 %v5526
    %6893 = vmatpush2.msra.mxu0 %v5525
    %6894 = vmatprep.subr.mxu0 %v5517
    %6895 = vmatpush2.msra.mxu0 %v5516
    %6896 = vmatprep.subr.mxu0 %v5508
    %6897 = vmatpush2.msra.mxu0 %v5507
    %6898 = vmatprep.subr.mxu0 %v5499
    %6899 = vmatpush2.msra.mxu0 %v5498
    %6900 = vmatprep.subr.mxu0 %v5490
    %6901 = vmatpush2.msra.mxu0 %v5489
    %6902 = vmatprep.subr.mxu0 %v5481
    %6903 = vmatpush2.msra.mxu0 %v5480
    %6904 = vmatprep.subr.mxu0 %v5472
    %6905 = vmatpush2.msra.mxu0 %v5471
    %6906 = vmatprep.subr.mxu0 %v5463
    %6907 = vmatpush2.msra.mxu0 %v5462
    %6908 = vmatprep.subr.mxu0 %v5454
    %6909 = vmatpush2.msra.mxu0 %v5453
    %6910 = vmatprep.subr.mxu0 %v5445
    %6911 = vmatpush2.msra.mxu0 %v5444
    %6912 = vmatprep.mubr.f32.mxu0 %v5003
    %6913 = vmatmul.mubr.f32.gmra.mxu0 %v5002
    %v6914 = vpop.f32.mrf.mxu0
    %v6915 = vadd.f32 %v6844, %v6914
    %v6916 = vpop.f32.mrf.mxu0
    %v6917 = vadd.f32 %v6846, %v6916
    %6918 = vdwg.mxu0
    %6919 = vmatprep.subr.mxu0 %v5724
    %6920 = vmatpush1.msra.mxu0 %v5723
    %6921 = vmatprep.subr.mxu0 %v5715
    %6922 = vmatpush1.msra.mxu0 %v5714
    %6923 = vmatprep.subr.mxu0 %v5706
    %6924 = vmatpush1.msra.mxu0 %v5705
    %6925 = vmatprep.subr.mxu0 %v5697
    %6926 = vmatpush1.msra.mxu0 %v5696
    %6927 = vmatprep.subr.mxu0 %v5688
    %6928 = vmatpush1.msra.mxu0 %v5687
    %6929 = vmatprep.subr.mxu0 %v5679
    %6930 = vmatpush1.msra.mxu0 %v5678
    %6931 = vmatprep.subr.mxu0 %v5670
    %6932 = vmatpush1.msra.mxu0 %v5669
    %6933 = vmatprep.subr.mxu0 %v5661
    %6934 = vmatpush1.msra.mxu0 %v5660
    %6935 = vmatprep.subr.mxu0 %v5652
    %6936 = vmatpush1.msra.mxu0 %v5651
    %6937 = vmatprep.subr.mxu0 %v5643
    %6938 = vmatpush1.msra.mxu0 %v5642
    %6939 = vmatprep.subr.mxu0 %v5634
    %6940 = vmatpush1.msra.mxu0 %v5633
    %6941 = vmatprep.subr.mxu0 %v5625
    %6942 = vmatpush1.msra.mxu0 %v5624
    %6943 = vmatprep.subr.mxu0 %v5616
    %6944 = vmatpush1.msra.mxu0 %v5615
    %6945 = vmatprep.subr.mxu0 %v5607
    %6946 = vmatpush1.msra.mxu0 %v5606
    %6947 = vmatprep.subr.mxu0 %v5598
    %6948 = vmatpush1.msra.mxu0 %v5597
    %6949 = vmatprep.subr.mxu0 %v5589
    %6950 = vmatpush1.msra.mxu0 %v5588
    %6951 = vmatprep.subr.mxu0 %v5868
    %6952 = vmatpush2.msra.mxu0 %v5867
    %6953 = vmatprep.subr.mxu0 %v5859
    %6954 = vmatpush2.msra.mxu0 %v5858
    %6955 = vmatprep.subr.mxu0 %v5850
    %6956 = vmatpush2.msra.mxu0 %v5849
    %6957 = vmatprep.subr.mxu0 %v5841
    %6958 = vmatpush2.msra.mxu0 %v5840
    %6959 = vmatprep.subr.mxu0 %v5832
    %6960 = vmatpush2.msra.mxu0 %v5831
    %6961 = vmatprep.subr.mxu0 %v5823
    %6962 = vmatpush2.msra.mxu0 %v5822
    %6963 = vmatprep.subr.mxu0 %v5814
    %6964 = vmatpush2.msra.mxu0 %v5813
    %6965 = vmatprep.subr.mxu0 %v5805
    %6966 = vmatpush2.msra.mxu0 %v5804
    %6967 = vmatprep.subr.mxu0 %v5796
    %6968 = vmatpush2.msra.mxu0 %v5795
    %6969 = vmatprep.subr.mxu0 %v5787
    %6970 = vmatpush2.msra.mxu0 %v5786
    %6971 = vmatprep.subr.mxu0 %v5778
    %6972 = vmatpush2.msra.mxu0 %v5777
    %6973 = vmatprep.subr.mxu0 %v5769
    %6974 = vmatpush2.msra.mxu0 %v5768
    %6975 = vmatprep.subr.mxu0 %v5760
    %6976 = vmatpush2.msra.mxu0 %v5759
    %6977 = vmatprep.subr.mxu0 %v5751
    %6978 = vmatpush2.msra.mxu0 %v5750
    %6979 = vmatprep.subr.mxu0 %v5742
    %6980 = vmatpush2.msra.mxu0 %v5741
    %6981 = vmatprep.subr.mxu0 %v5733
    %6982 = vmatpush2.msra.mxu0 %v5732
    %6983 = vmatprep.mubr.f32.mxu0 %v5005
    %6984 = vmatmul.mubr.f32.gmra.mxu0 %v5004
    %v6985 = vpop.f32.mrf.mxu0
    %v6986 = vadd.f32 %v6915, %v6985
    %v6987 = vpop.f32.mrf.mxu0
    %v6988 = vadd.f32 %v6917, %v6987
    %6989 = vdwg.mxu0
    %6990 = vmatprep.subr.mxu0 %v6012
    %6991 = vmatpush1.msra.mxu0 %v6011
    %6992 = vmatprep.subr.mxu0 %v6003
    %6993 = vmatpush1.msra.mxu0 %v6002
    %6994 = vmatprep.subr.mxu0 %v5994
    %6995 = vmatpush1.msra.mxu0 %v5993
    %6996 = vmatprep.subr.mxu0 %v5985
    %6997 = vmatpush1.msra.mxu0 %v5984
    %6998 = vmatprep.subr.mxu0 %v5976
    %6999 = vmatpush1.msra.mxu0 %v5975
    %7000 = vmatprep.subr.mxu0 %v5967
    %7001 = vmatpush1.msra.mxu0 %v5966
    %7002 = vmatprep.subr.mxu0 %v5958
    %7003 = vmatpush1.msra.mxu0 %v5957
    %7004 = vmatprep.subr.mxu0 %v5949
    %7005 = vmatpush1.msra.mxu0 %v5948
    %7006 = vmatprep.subr.mxu0 %v5940
    %7007 = vmatpush1.msra.mxu0 %v5939
    %7008 = vmatprep.subr.mxu0 %v5931
    %7009 = vmatpush1.msra.mxu0 %v5930
    %7010 = vmatprep.subr.mxu0 %v5922
    %7011 = vmatpush1.msra.mxu0 %v5921
    %7012 = vmatprep.subr.mxu0 %v5913
    %7013 = vmatpush1.msra.mxu0 %v5912
    %7014 = vmatprep.subr.mxu0 %v5904
    %7015 = vmatpush1.msra.mxu0 %v5903
    %7016 = vmatprep.subr.mxu0 %v5895
    %7017 = vmatpush1.msra.mxu0 %v5894
    %7018 = vmatprep.subr.mxu0 %v5886
    %7019 = vmatpush1.msra.mxu0 %v5885
    %7020 = vmatprep.subr.mxu0 %v5877
    %7021 = vmatpush1.msra.mxu0 %v5876
    %7022 = vmatprep.subr.mxu0 %v6156
    %7023 = vmatpush2.msra.mxu0 %v6155
    %7024 = vmatprep.subr.mxu0 %v6147
    %7025 = vmatpush2.msra.mxu0 %v6146
    %7026 = vmatprep.subr.mxu0 %v6138
    %7027 = vmatpush2.msra.mxu0 %v6137
    %7028 = vmatprep.subr.mxu0 %v6129
    %7029 = vmatpush2.msra.mxu0 %v6128
    %7030 = vmatprep.subr.mxu0 %v6120
    %7031 = vmatpush2.msra.mxu0 %v6119
    %7032 = vmatprep.subr.mxu0 %v6111
    %7033 = vmatpush2.msra.mxu0 %v6110
    %7034 = vmatprep.subr.mxu0 %v6102
    %7035 = vmatpush2.msra.mxu0 %v6101
    %7036 = vmatprep.subr.mxu0 %v6093
    %7037 = vmatpush2.msra.mxu0 %v6092
    %7038 = vmatprep.subr.mxu0 %v6084
    %7039 = vmatpush2.msra.mxu0 %v6083
    %7040 = vmatprep.subr.mxu0 %v6075
    %7041 = vmatpush2.msra.mxu0 %v6074
    %7042 = vmatprep.subr.mxu0 %v6066
    %7043 = vmatpush2.msra.mxu0 %v6065
    %7044 = vmatprep.subr.mxu0 %v6057
    %7045 = vmatpush2.msra.mxu0 %v6056
    %7046 = vmatprep.subr.mxu0 %v6048
    %7047 = vmatpush2.msra.mxu0 %v6047
    %7048 = vmatprep.subr.mxu0 %v6039
    %7049 = vmatpush2.msra.mxu0 %v6038
    %7050 = vmatprep.subr.mxu0 %v6030
    %7051 = vmatpush2.msra.mxu0 %v6029
    %7052 = vmatprep.subr.mxu0 %v6021
    %7053 = vmatpush2.msra.mxu0 %v6020
    %7054 = vmatprep.mubr.f32.mxu0 %v5007
    %7055 = vmatmul.mubr.f32.gmra.mxu0 %v5006
    %v7056 = vpop.f32.mrf.mxu0
    %v7057 = vadd.f32 %v6986, %v7056
    %v7058 = vpop.f32.mrf.mxu0
    %v7059 = vadd.f32 %v6988, %v7058
    %7060 = vdwg.mxu0
    %7061 = vmatprep.subr.mxu0 %v5150
    %7062 = vmatpush1.msra.mxu0 %v5149
    %7063 = vmatprep.subr.mxu0 %v5141
    %7064 = vmatpush1.msra.mxu0 %v5140
    %7065 = vmatprep.subr.mxu0 %v5132
    %7066 = vmatpush1.msra.mxu0 %v5131
    %7067 = vmatprep.subr.mxu0 %v5123
    %7068 = vmatpush1.msra.mxu0 %v5122
    %7069 = vmatprep.subr.mxu0 %v5114
    %7070 = vmatpush1.msra.mxu0 %v5113
    %7071 = vmatprep.subr.mxu0 %v5105
    %7072 = vmatpush1.msra.mxu0 %v5104
    %7073 = vmatprep.subr.mxu0 %v5096
    %7074 = vmatpush1.msra.mxu0 %v5095
    %7075 = vmatprep.subr.mxu0 %v5087
    %7076 = vmatpush1.msra.mxu0 %v5086
    %7077 = vmatprep.subr.mxu0 %v5078
    %7078 = vmatpush1.msra.mxu0 %v5077
    %7079 = vmatprep.subr.mxu0 %v5069
    %7080 = vmatpush1.msra.mxu0 %v5068
    %7081 = vmatprep.subr.mxu0 %v5060
    %7082 = vmatpush1.msra.mxu0 %v5059
    %7083 = vmatprep.subr.mxu0 %v5051
    %7084 = vmatpush1.msra.mxu0 %v5050
    %7085 = vmatprep.subr.mxu0 %v5042
    %7086 = vmatpush1.msra.mxu0 %v5041
    %7087 = vmatprep.subr.mxu0 %v5033
    %7088 = vmatpush1.msra.mxu0 %v5032
    %7089 = vmatprep.subr.mxu0 %v5024
    %7090 = vmatpush1.msra.mxu0 %v5023
    %7091 = vmatprep.subr.mxu0 %v5015
    %7092 = vmatpush1.msra.mxu0 %v5014
    %7093 = vmatprep.subr.mxu0 %v5294
    %7094 = vmatpush2.msra.mxu0 %v5293
    %7095 = vmatprep.subr.mxu0 %v5285
    %7096 = vmatpush2.msra.mxu0 %v5284
    %7097 = vmatprep.subr.mxu0 %v5276
    %7098 = vmatpush2.msra.mxu0 %v5275
    %7099 = vmatprep.subr.mxu0 %v5267
    %7100 = vmatpush2.msra.mxu0 %v5266
    %7101 = vmatprep.subr.mxu0 %v5258
    %7102 = vmatpush2.msra.mxu0 %v5257
    %7103 = vmatprep.subr.mxu0 %v5249
    %7104 = vmatpush2.msra.mxu0 %v5248
    %7105 = vmatprep.subr.mxu0 %v5240
    %7106 = vmatpush2.msra.mxu0 %v5239
    %7107 = vmatprep.subr.mxu0 %v5231
    %7108 = vmatpush2.msra.mxu0 %v5230
    %7109 = vmatprep.subr.mxu0 %v5222
    %7110 = vmatpush2.msra.mxu0 %v5221
    %7111 = vmatprep.subr.mxu0 %v5213
    %7112 = vmatpush2.msra.mxu0 %v5212
    %7113 = vmatprep.subr.mxu0 %v5204
    %7114 = vmatpush2.msra.mxu0 %v5203
    %7115 = vmatprep.subr.mxu0 %v5195
    %7116 = vmatpush2.msra.mxu0 %v5194
    %7117 = vmatprep.subr.mxu0 %v5186
    %7118 = vmatpush2.msra.mxu0 %v5185
    %7119 = vmatprep.subr.mxu0 %v5177
    %7120 = vmatpush2.msra.mxu0 %v5176
    %7121 = vmatprep.subr.mxu0 %v5168
    %7122 = vmatpush2.msra.mxu0 %v5167
    %7123 = vmatprep.subr.mxu0 %v5159
    %7124 = vmatpush2.msra.mxu0 %v5158
    %7125 = vmatprep.mubr.f32.mxu0 %v5001
    %7126 = vmatmul.mubr.f32.gmra.mxu0 %v5000
    %v7127 = vpop.f32.mrf.mxu0
    %v7128 = vadd.f32 %v6191, %v7127
    %v7129 = vpop.f32.mrf.mxu0
    %v7130 = vadd.f32 %v6195, %v7129
    %7131 = vdwg.mxu0
    %7132 = vmatprep.subr.mxu0 %v5438
    %7133 = vmatpush1.msra.mxu0 %v5437
    %7134 = vmatprep.subr.mxu0 %v5429
    %7135 = vmatpush1.msra.mxu0 %v5428
    %7136 = vmatprep.subr.mxu0 %v5420
    %7137 = vmatpush1.msra.mxu0 %v5419
    %7138 = vmatprep.subr.mxu0 %v5411
    %7139 = vmatpush1.msra.mxu0 %v5410
    %7140 = vmatprep.subr.mxu0 %v5402
    %7141 = vmatpush1.msra.mxu0 %v5401
    %7142 = vmatprep.subr.mxu0 %v5393
    %7143 = vmatpush1.msra.mxu0 %v5392
    %7144 = vmatprep.subr.mxu0 %v5384
    %7145 = vmatpush1.msra.mxu0 %v5383
    %7146 = vmatprep.subr.mxu0 %v5375
    %7147 = vmatpush1.msra.mxu0 %v5374
    %7148 = vmatprep.subr.mxu0 %v5366
    %7149 = vmatpush1.msra.mxu0 %v5365
    %7150 = vmatprep.subr.mxu0 %v5357
    %7151 = vmatpush1.msra.mxu0 %v5356
    %7152 = vmatprep.subr.mxu0 %v5348
    %7153 = vmatpush1.msra.mxu0 %v5347
    %7154 = vmatprep.subr.mxu0 %v5339
    %7155 = vmatpush1.msra.mxu0 %v5338
    %7156 = vmatprep.subr.mxu0 %v5330
    %7157 = vmatpush1.msra.mxu0 %v5329
    %7158 = vmatprep.subr.mxu0 %v5321
    %7159 = vmatpush1.msra.mxu0 %v5320
    %7160 = vmatprep.subr.mxu0 %v5312
    %7161 = vmatpush1.msra.mxu0 %v5311
    %7162 = vmatprep.subr.mxu0 %v5303
    %7163 = vmatpush1.msra.mxu0 %v5302
    %7164 = vmatprep.subr.mxu0 %v5582
    %7165 = vmatpush2.msra.mxu0 %v5581
    %7166 = vmatprep.subr.mxu0 %v5573
    %7167 = vmatpush2.msra.mxu0 %v5572
    %7168 = vmatprep.subr.mxu0 %v5564
    %7169 = vmatpush2.msra.mxu0 %v5563
    %7170 = vmatprep.subr.mxu0 %v5555
    %7171 = vmatpush2.msra.mxu0 %v5554
    %7172 = vmatprep.subr.mxu0 %v5546
    %7173 = vmatpush2.msra.mxu0 %v5545
    %7174 = vmatprep.subr.mxu0 %v5537
    %7175 = vmatpush2.msra.mxu0 %v5536
    %7176 = vmatprep.subr.mxu0 %v5528
    %7177 = vmatpush2.msra.mxu0 %v5527
    %7178 = vmatprep.subr.mxu0 %v5519
    %7179 = vmatpush2.msra.mxu0 %v5518
    %7180 = vmatprep.subr.mxu0 %v5510
    %7181 = vmatpush2.msra.mxu0 %v5509
    %7182 = vmatprep.subr.mxu0 %v5501
    %7183 = vmatpush2.msra.mxu0 %v5500
    %7184 = vmatprep.subr.mxu0 %v5492
    %7185 = vmatpush2.msra.mxu0 %v5491
    %7186 = vmatprep.subr.mxu0 %v5483
    %7187 = vmatpush2.msra.mxu0 %v5482
    %7188 = vmatprep.subr.mxu0 %v5474
    %7189 = vmatpush2.msra.mxu0 %v5473
    %7190 = vmatprep.subr.mxu0 %v5465
    %7191 = vmatpush2.msra.mxu0 %v5464
    %7192 = vmatprep.subr.mxu0 %v5456
    %7193 = vmatpush2.msra.mxu0 %v5455
    %7194 = vmatprep.subr.mxu0 %v5447
    %7195 = vmatpush2.msra.mxu0 %v5446
    %7196 = vmatprep.mubr.f32.mxu0 %v5003
    %7197 = vmatmul.mubr.f32.gmra.mxu0 %v5002
    %v7198 = vpop.f32.mrf.mxu0
    %v7199 = vadd.f32 %v7128, %v7198
    %v7200 = vpop.f32.mrf.mxu0
    %v7201 = vadd.f32 %v7130, %v7200
    %7202 = vdwg.mxu0
    %7203 = vmatprep.subr.mxu0 %v5726
    %7204 = vmatpush1.msra.mxu0 %v5725
    %7205 = vmatprep.subr.mxu0 %v5717
    %7206 = vmatpush1.msra.mxu0 %v5716
    %7207 = vmatprep.subr.mxu0 %v5708
    %7208 = vmatpush1.msra.mxu0 %v5707
    %7209 = vmatprep.subr.mxu0 %v5699
    %7210 = vmatpush1.msra.mxu0 %v5698
    %7211 = vmatprep.subr.mxu0 %v5690
    %7212 = vmatpush1.msra.mxu0 %v5689
    %7213 = vmatprep.subr.mxu0 %v5681
    %7214 = vmatpush1.msra.mxu0 %v5680
    %7215 = vmatprep.subr.mxu0 %v5672
    %7216 = vmatpush1.msra.mxu0 %v5671
    %7217 = vmatprep.subr.mxu0 %v5663
    %7218 = vmatpush1.msra.mxu0 %v5662
    %7219 = vmatprep.subr.mxu0 %v5654
    %7220 = vmatpush1.msra.mxu0 %v5653
    %7221 = vmatprep.subr.mxu0 %v5645
    %7222 = vmatpush1.msra.mxu0 %v5644
    %7223 = vmatprep.subr.mxu0 %v5636
    %7224 = vmatpush1.msra.mxu0 %v5635
    %7225 = vmatprep.subr.mxu0 %v5627
    %7226 = vmatpush1.msra.mxu0 %v5626
    %7227 = vmatprep.subr.mxu0 %v5618
    %7228 = vmatpush1.msra.mxu0 %v5617
    %7229 = vmatprep.subr.mxu0 %v5609
    %7230 = vmatpush1.msra.mxu0 %v5608
    %7231 = vmatprep.subr.mxu0 %v5600
    %7232 = vmatpush1.msra.mxu0 %v5599
    %7233 = vmatprep.subr.mxu0 %v5591
    %7234 = vmatpush1.msra.mxu0 %v5590
    %7235 = vmatprep.subr.mxu0 %v5870
    %7236 = vmatpush2.msra.mxu0 %v5869
    %7237 = vmatprep.subr.mxu0 %v5861
    %7238 = vmatpush2.msra.mxu0 %v5860
    %7239 = vmatprep.subr.mxu0 %v5852
    %7240 = vmatpush2.msra.mxu0 %v5851
    %7241 = vmatprep.subr.mxu0 %v5843
    %7242 = vmatpush2.msra.mxu0 %v5842
    %7243 = vmatprep.subr.mxu0 %v5834
    %7244 = vmatpush2.msra.mxu0 %v5833
    %7245 = vmatprep.subr.mxu0 %v5825
    %7246 = vmatpush2.msra.mxu0 %v5824
    %7247 = vmatprep.subr.mxu0 %v5816
    %7248 = vmatpush2.msra.mxu0 %v5815
    %7249 = vmatprep.subr.mxu0 %v5807
    %7250 = vmatpush2.msra.mxu0 %v5806
    %7251 = vmatprep.subr.mxu0 %v5798
    %7252 = vmatpush2.msra.mxu0 %v5797
    %7253 = vmatprep.subr.mxu0 %v5789
    %7254 = vmatpush2.msra.mxu0 %v5788
    %7255 = vmatprep.subr.mxu0 %v5780
    %7256 = vmatpush2.msra.mxu0 %v5779
    %7257 = vmatprep.subr.mxu0 %v5771
    %7258 = vmatpush2.msra.mxu0 %v5770
    %7259 = vmatprep.subr.mxu0 %v5762
    %7260 = vmatpush2.msra.mxu0 %v5761
    %7261 = vmatprep.subr.mxu0 %v5753
    %7262 = vmatpush2.msra.mxu0 %v5752
    %7263 = vmatprep.subr.mxu0 %v5744
    %7264 = vmatpush2.msra.mxu0 %v5743
    %7265 = vmatprep.subr.mxu0 %v5735
    %7266 = vmatpush2.msra.mxu0 %v5734
    %7267 = vmatprep.mubr.f32.mxu0 %v5005
    %7268 = vmatmul.mubr.f32.gmra.mxu0 %v5004
    %v7269 = vpop.f32.mrf.mxu0
    %v7270 = vadd.f32 %v7199, %v7269
    %v7271 = vpop.f32.mrf.mxu0
    %v7272 = vadd.f32 %v7201, %v7271
    %7273 = vdwg.mxu0
    %7274 = vmatprep.subr.mxu0 %v6014
    %7275 = vmatpush1.msra.mxu0 %v6013
    %7276 = vmatprep.subr.mxu0 %v6005
    %7277 = vmatpush1.msra.mxu0 %v6004
    %7278 = vmatprep.subr.mxu0 %v5996
    %7279 = vmatpush1.msra.mxu0 %v5995
    %7280 = vmatprep.subr.mxu0 %v5987
    %7281 = vmatpush1.msra.mxu0 %v5986
    %7282 = vmatprep.subr.mxu0 %v5978
    %7283 = vmatpush1.msra.mxu0 %v5977
    %7284 = vmatprep.subr.mxu0 %v5969
    %7285 = vmatpush1.msra.mxu0 %v5968
    %7286 = vmatprep.subr.mxu0 %v5960
    %7287 = vmatpush1.msra.mxu0 %v5959
    %7288 = vmatprep.subr.mxu0 %v5951
    %7289 = vmatpush1.msra.mxu0 %v5950
    %7290 = vmatprep.subr.mxu0 %v5942
    %7291 = vmatpush1.msra.mxu0 %v5941
    %7292 = vmatprep.subr.mxu0 %v5933
    %7293 = vmatpush1.msra.mxu0 %v5932
    %7294 = vmatprep.subr.mxu0 %v5924
    %7295 = vmatpush1.msra.mxu0 %v5923
    %7296 = vmatprep.subr.mxu0 %v5915
    %7297 = vmatpush1.msra.mxu0 %v5914
    %7298 = vmatprep.subr.mxu0 %v5906
    %7299 = vmatpush1.msra.mxu0 %v5905
    %7300 = vmatprep.subr.mxu0 %v5897
    %7301 = vmatpush1.msra.mxu0 %v5896
    %7302 = vmatprep.subr.mxu0 %v5888
    %7303 = vmatpush1.msra.mxu0 %v5887
    %7304 = vmatprep.subr.mxu0 %v5879
    %7305 = vmatpush1.msra.mxu0 %v5878
    %7306 = vmatprep.subr.mxu0 %v6158
    %7307 = vmatpush2.msra.mxu0 %v6157
    %7308 = vmatprep.subr.mxu0 %v6149
    %7309 = vmatpush2.msra.mxu0 %v6148
    %7310 = vmatprep.subr.mxu0 %v6140
    %7311 = vmatpush2.msra.mxu0 %v6139
    %7312 = vmatprep.subr.mxu0 %v6131
    %7313 = vmatpush2.msra.mxu0 %v6130
    %7314 = vmatprep.subr.mxu0 %v6122
    %7315 = vmatpush2.msra.mxu0 %v6121
    %7316 = vmatprep.subr.mxu0 %v6113
    %7317 = vmatpush2.msra.mxu0 %v6112
    %7318 = vmatprep.subr.mxu0 %v6104
    %7319 = vmatpush2.msra.mxu0 %v6103
    %7320 = vmatprep.subr.mxu0 %v6095
    %7321 = vmatpush2.msra.mxu0 %v6094
    %7322 = vmatprep.subr.mxu0 %v6086
    %7323 = vmatpush2.msra.mxu0 %v6085
    %7324 = vmatprep.subr.mxu0 %v6077
    %7325 = vmatpush2.msra.mxu0 %v6076
    %7326 = vmatprep.subr.mxu0 %v6068
    %7327 = vmatpush2.msra.mxu0 %v6067
    %7328 = vmatprep.subr.mxu0 %v6059
    %7329 = vmatpush2.msra.mxu0 %v6058
    %7330 = vmatprep.subr.mxu0 %v6050
    %7331 = vmatpush2.msra.mxu0 %v6049
    %7332 = vmatprep.subr.mxu0 %v6041
    %7333 = vmatpush2.msra.mxu0 %v6040
    %7334 = vmatprep.subr.mxu0 %v6032
    %7335 = vmatpush2.msra.mxu0 %v6031
    %7336 = vmatprep.subr.mxu0 %v6023
    %7337 = vmatpush2.msra.mxu0 %v6022
    %7338 = vmatprep.mubr.f32.mxu0 %v5007
    %7339 = vmatmul.mubr.f32.gmra.mxu0 %v5006
    %v7340 = vpop.f32.mrf.mxu0
    %v7341 = vadd.f32 %v7270, %v7340
    %v7342 = vpop.f32.mrf.mxu0
    %v7343 = vadd.f32 %v7272, %v7342
    %7344 = vdwg.mxu0
    %7345 = vmatprep.subr.mxu0 0.0
    %7346 = vmatpush1.msra.mxu0 %v5151
    %7347 = vmatprep.subr.mxu0 0.0
    %7348 = vmatpush1.msra.mxu0 %v5142
    %7349 = vmatprep.subr.mxu0 0.0
    %7350 = vmatpush1.msra.mxu0 %v5133
    %7351 = vmatprep.subr.mxu0 0.0
    %7352 = vmatpush1.msra.mxu0 %v5124
    %7353 = vmatprep.subr.mxu0 0.0
    %7354 = vmatpush1.msra.mxu0 %v5115
    %7355 = vmatprep.subr.mxu0 0.0
    %7356 = vmatpush1.msra.mxu0 %v5106
    %7357 = vmatprep.subr.mxu0 0.0
    %7358 = vmatpush1.msra.mxu0 %v5097
    %7359 = vmatprep.subr.mxu0 0.0
    %7360 = vmatpush1.msra.mxu0 %v5088
    %7361 = vmatprep.subr.mxu0 0.0
    %7362 = vmatpush1.msra.mxu0 %v5079
    %7363 = vmatprep.subr.mxu0 0.0
    %7364 = vmatpush1.msra.mxu0 %v5070
    %7365 = vmatprep.subr.mxu0 0.0
    %7366 = vmatpush1.msra.mxu0 %v5061
    %7367 = vmatprep.subr.mxu0 0.0
    %7368 = vmatpush1.msra.mxu0 %v5052
    %7369 = vmatprep.subr.mxu0 0.0
    %7370 = vmatpush1.msra.mxu0 %v5043
    %7371 = vmatprep.subr.mxu0 0.0
    %7372 = vmatpush1.msra.mxu0 %v5034
    %7373 = vmatprep.subr.mxu0 0.0
    %7374 = vmatpush1.msra.mxu0 %v5025
    %7375 = vmatprep.subr.mxu0 0.0
    %7376 = vmatpush1.msra.mxu0 %v5016
    %7377 = vmatprep.subr.mxu0 0.0
    %7378 = vmatpush2.msra.mxu0 %v5295
    %7379 = vmatprep.subr.mxu0 0.0
    %7380 = vmatpush2.msra.mxu0 %v5286
    %7381 = vmatprep.subr.mxu0 0.0
    %7382 = vmatpush2.msra.mxu0 %v5277
    %7383 = vmatprep.subr.mxu0 0.0
    %7384 = vmatpush2.msra.mxu0 %v5268
    %7385 = vmatprep.subr.mxu0 0.0
    %7386 = vmatpush2.msra.mxu0 %v5259
    %7387 = vmatprep.subr.mxu0 0.0
    %7388 = vmatpush2.msra.mxu0 %v5250
    %7389 = vmatprep.subr.mxu0 0.0
    %7390 = vmatpush2.msra.mxu0 %v5241
    %7391 = vmatprep.subr.mxu0 0.0
    %7392 = vmatpush2.msra.mxu0 %v5232
    %7393 = vmatprep.subr.mxu0 0.0
    %7394 = vmatpush2.msra.mxu0 %v5223
    %7395 = vmatprep.subr.mxu0 0.0
    %7396 = vmatpush2.msra.mxu0 %v5214
    %7397 = vmatprep.subr.mxu0 0.0
    %7398 = vmatpush2.msra.mxu0 %v5205
    %7399 = vmatprep.subr.mxu0 0.0
    %7400 = vmatpush2.msra.mxu0 %v5196
    %7401 = vmatprep.subr.mxu0 0.0
    %7402 = vmatpush2.msra.mxu0 %v5187
    %7403 = vmatprep.subr.mxu0 0.0
    %7404 = vmatpush2.msra.mxu0 %v5178
    %7405 = vmatprep.subr.mxu0 0.0
    %7406 = vmatpush2.msra.mxu0 %v5169
    %7407 = vmatprep.subr.mxu0 0.0
    %7408 = vmatpush2.msra.mxu0 %v5160
    %7409 = vmatprep.mubr.f32.mxu0 %v5001
    %7410 = vmatmul.mubr.f32.gmra.mxu0 %v5000
    %v7411 = vpop.f32.mrf.mxu0
    %v7412 = vadd.f32 %v6199, %v7411
    %v7413 = vpop.f32.mrf.mxu0
    %7414 = vdwg.mxu0
    %7415 = vmatprep.subr.mxu0 0.0
    %7416 = vmatpush1.msra.mxu0 %v5439
    %7417 = vmatprep.subr.mxu0 0.0
    %7418 = vmatpush1.msra.mxu0 %v5430
    %7419 = vmatprep.subr.mxu0 0.0
    %7420 = vmatpush1.msra.mxu0 %v5421
    %7421 = vmatprep.subr.mxu0 0.0
    %7422 = vmatpush1.msra.mxu0 %v5412
    %7423 = vmatprep.subr.mxu0 0.0
    %7424 = vmatpush1.msra.mxu0 %v5403
    %7425 = vmatprep.subr.mxu0 0.0
    %7426 = vmatpush1.msra.mxu0 %v5394
    %7427 = vmatprep.subr.mxu0 0.0
    %7428 = vmatpush1.msra.mxu0 %v5385
    %7429 = vmatprep.subr.mxu0 0.0
    %7430 = vmatpush1.msra.mxu0 %v5376
    %7431 = vmatprep.subr.mxu0 0.0
    %7432 = vmatpush1.msra.mxu0 %v5367
    %7433 = vmatprep.subr.mxu0 0.0
    %7434 = vmatpush1.msra.mxu0 %v5358
    %7435 = vmatprep.subr.mxu0 0.0
    %7436 = vmatpush1.msra.mxu0 %v5349
    %7437 = vmatprep.subr.mxu0 0.0
    %7438 = vmatpush1.msra.mxu0 %v5340
    %7439 = vmatprep.subr.mxu0 0.0
    %7440 = vmatpush1.msra.mxu0 %v5331
    %7441 = vmatprep.subr.mxu0 0.0
    %7442 = vmatpush1.msra.mxu0 %v5322
    %7443 = vmatprep.subr.mxu0 0.0
    %7444 = vmatpush1.msra.mxu0 %v5313
    %7445 = vmatprep.subr.mxu0 0.0
    %7446 = vmatpush1.msra.mxu0 %v5304
    %7447 = vmatprep.subr.mxu0 0.0
    %7448 = vmatpush2.msra.mxu0 %v5583
    %7449 = vmatprep.subr.mxu0 0.0
    %7450 = vmatpush2.msra.mxu0 %v5574
    %7451 = vmatprep.subr.mxu0 0.0
    %7452 = vmatpush2.msra.mxu0 %v5565
    %7453 = vmatprep.subr.mxu0 0.0
    %7454 = vmatpush2.msra.mxu0 %v5556
    %7455 = vmatprep.subr.mxu0 0.0
    %7456 = vmatpush2.msra.mxu0 %v5547
    %7457 = vmatprep.subr.mxu0 0.0
    %7458 = vmatpush2.msra.mxu0 %v5538
    %7459 = vmatprep.subr.mxu0 0.0
    %7460 = vmatpush2.msra.mxu0 %v5529
    %7461 = vmatprep.subr.mxu0 0.0
    %7462 = vmatpush2.msra.mxu0 %v5520
    %7463 = vmatprep.subr.mxu0 0.0
    %7464 = vmatpush2.msra.mxu0 %v5511
    %7465 = vmatprep.subr.mxu0 0.0
    %7466 = vmatpush2.msra.mxu0 %v5502
    %7467 = vmatprep.subr.mxu0 0.0
    %7468 = vmatpush2.msra.mxu0 %v5493
    %7469 = vmatprep.subr.mxu0 0.0
    %7470 = vmatpush2.msra.mxu0 %v5484
    %7471 = vmatprep.subr.mxu0 0.0
    %7472 = vmatpush2.msra.mxu0 %v5475
    %7473 = vmatprep.subr.mxu0 0.0
    %7474 = vmatpush2.msra.mxu0 %v5466
    %7475 = vmatprep.subr.mxu0 0.0
    %7476 = vmatpush2.msra.mxu0 %v5457
    %7477 = vmatprep.subr.mxu0 0.0
    %7478 = vmatpush2.msra.mxu0 %v5448
    %7479 = vmatprep.mubr.f32.mxu0 %v5003
    %7480 = vmatmul.mubr.f32.gmra.mxu0 %v5002
    %v7481 = vpop.f32.mrf.mxu0
    %v7482 = vadd.f32 %v7412, %v7481
    %v7483 = vpop.f32.mrf.mxu0
    %7484 = vdwg.mxu0
    %7485 = vmatprep.subr.mxu0 0.0
    %7486 = vmatpush1.msra.mxu0 %v5727
    %7487 = vmatprep.subr.mxu0 0.0
    %7488 = vmatpush1.msra.mxu0 %v5718
    %7489 = vmatprep.subr.mxu0 0.0
    %7490 = vmatpush1.msra.mxu0 %v5709
    %7491 = vmatprep.subr.mxu0 0.0
    %7492 = vmatpush1.msra.mxu0 %v5700
    %7493 = vmatprep.subr.mxu0 0.0
    %7494 = vmatpush1.msra.mxu0 %v5691
    %7495 = vmatprep.subr.mxu0 0.0
    %7496 = vmatpush1.msra.mxu0 %v5682
    %7497 = vmatprep.subr.mxu0 0.0
    %7498 = vmatpush1.msra.mxu0 %v5673
    %7499 = vmatprep.subr.mxu0 0.0
    %7500 = vmatpush1.msra.mxu0 %v5664
    %7501 = vmatprep.subr.mxu0 0.0
    %7502 = vmatpush1.msra.mxu0 %v5655
    %7503 = vmatprep.subr.mxu0 0.0
    %7504 = vmatpush1.msra.mxu0 %v5646
    %7505 = vmatprep.subr.mxu0 0.0
    %7506 = vmatpush1.msra.mxu0 %v5637
    %7507 = vmatprep.subr.mxu0 0.0
    %7508 = vmatpush1.msra.mxu0 %v5628
    %7509 = vmatprep.subr.mxu0 0.0
    %7510 = vmatpush1.msra.mxu0 %v5619
    %7511 = vmatprep.subr.mxu0 0.0
    %7512 = vmatpush1.msra.mxu0 %v5610
    %7513 = vmatprep.subr.mxu0 0.0
    %7514 = vmatpush1.msra.mxu0 %v5601
    %7515 = vmatprep.subr.mxu0 0.0
    %7516 = vmatpush1.msra.mxu0 %v5592
    %7517 = vmatprep.subr.mxu0 0.0
    %7518 = vmatpush2.msra.mxu0 %v5871
    %7519 = vmatprep.subr.mxu0 0.0
    %7520 = vmatpush2.msra.mxu0 %v5862
    %7521 = vmatprep.subr.mxu0 0.0
    %7522 = vmatpush2.msra.mxu0 %v5853
    %7523 = vmatprep.subr.mxu0 0.0
    %7524 = vmatpush2.msra.mxu0 %v5844
    %7525 = vmatprep.subr.mxu0 0.0
    %7526 = vmatpush2.msra.mxu0 %v5835
    %7527 = vmatprep.subr.mxu0 0.0
    %7528 = vmatpush2.msra.mxu0 %v5826
    %7529 = vmatprep.subr.mxu0 0.0
    %7530 = vmatpush2.msra.mxu0 %v5817
    %7531 = vmatprep.subr.mxu0 0.0
    %7532 = vmatpush2.msra.mxu0 %v5808
    %7533 = vmatprep.subr.mxu0 0.0
    %7534 = vmatpush2.msra.mxu0 %v5799
    %7535 = vmatprep.subr.mxu0 0.0
    %7536 = vmatpush2.msra.mxu0 %v5790
    %7537 = vmatprep.subr.mxu0 0.0
    %7538 = vmatpush2.msra.mxu0 %v5781
    %7539 = vmatprep.subr.mxu0 0.0
    %7540 = vmatpush2.msra.mxu0 %v5772
    %7541 = vmatprep.subr.mxu0 0.0
    %7542 = vmatpush2.msra.mxu0 %v5763
    %7543 = vmatprep.subr.mxu0 0.0
    %7544 = vmatpush2.msra.mxu0 %v5754
    %7545 = vmatprep.subr.mxu0 0.0
    %7546 = vmatpush2.msra.mxu0 %v5745
    %7547 = vmatprep.subr.mxu0 0.0
    %7548 = vmatpush2.msra.mxu0 %v5736
    %7549 = vmatprep.mubr.f32.mxu0 %v5005
    %7550 = vmatmul.mubr.f32.gmra.mxu0 %v5004
    %v7551 = vpop.f32.mrf.mxu0
    %v7552 = vadd.f32 %v7482, %v7551
    %v7553 = vpop.f32.mrf.mxu0
    %7554 = vdwg.mxu0
    %7555 = vmatprep.subr.mxu0 0.0
    %7556 = vmatpush1.msra.mxu0 %v6015
    %7557 = vmatprep.subr.mxu0 0.0
    %7558 = vmatpush1.msra.mxu0 %v6006
    %7559 = vmatprep.subr.mxu0 0.0
    %7560 = vmatpush1.msra.mxu0 %v5997
    %7561 = vmatprep.subr.mxu0 0.0
    %7562 = vmatpush1.msra.mxu0 %v5988
    %7563 = vmatprep.subr.mxu0 0.0
    %7564 = vmatpush1.msra.mxu0 %v5979
    %7565 = vmatprep.subr.mxu0 0.0
    %7566 = vmatpush1.msra.mxu0 %v5970
    %7567 = vmatprep.subr.mxu0 0.0
    %7568 = vmatpush1.msra.mxu0 %v5961
    %7569 = vmatprep.subr.mxu0 0.0
    %7570 = vmatpush1.msra.mxu0 %v5952
    %7571 = vmatprep.subr.mxu0 0.0
    %7572 = vmatpush1.msra.mxu0 %v5943
    %7573 = vmatprep.subr.mxu0 0.0
    %7574 = vmatpush1.msra.mxu0 %v5934
    %7575 = vmatprep.subr.mxu0 0.0
    %7576 = vmatpush1.msra.mxu0 %v5925
    %7577 = vmatprep.subr.mxu0 0.0
    %7578 = vmatpush1.msra.mxu0 %v5916
    %7579 = vmatprep.subr.mxu0 0.0
    %7580 = vmatpush1.msra.mxu0 %v5907
    %7581 = vmatprep.subr.mxu0 0.0
    %7582 = vmatpush1.msra.mxu0 %v5898
    %7583 = vmatprep.subr.mxu0 0.0
    %7584 = vmatpush1.msra.mxu0 %v5889
    %7585 = vmatprep.subr.mxu0 0.0
    %7586 = vmatpush1.msra.mxu0 %v5880
    %7587 = vmatprep.subr.mxu0 0.0
    %7588 = vmatpush2.msra.mxu0 %v6159
    %7589 = vmatprep.subr.mxu0 0.0
    %7590 = vmatpush2.msra.mxu0 %v6150
    %7591 = vmatprep.subr.mxu0 0.0
    %7592 = vmatpush2.msra.mxu0 %v6141
    %7593 = vmatprep.subr.mxu0 0.0
    %7594 = vmatpush2.msra.mxu0 %v6132
    %7595 = vmatprep.subr.mxu0 0.0
    %7596 = vmatpush2.msra.mxu0 %v6123
    %7597 = vmatprep.subr.mxu0 0.0
    %7598 = vmatpush2.msra.mxu0 %v6114
    %7599 = vmatprep.subr.mxu0 0.0
    %7600 = vmatpush2.msra.mxu0 %v6105
    %7601 = vmatprep.subr.mxu0 0.0
    %7602 = vmatpush2.msra.mxu0 %v6096
    %7603 = vmatprep.subr.mxu0 0.0
    %7604 = vmatpush2.msra.mxu0 %v6087
    %7605 = vmatprep.subr.mxu0 0.0
    %7606 = vmatpush2.msra.mxu0 %v6078
    %7607 = vmatprep.subr.mxu0 0.0
    %7608 = vmatpush2.msra.mxu0 %v6069
    %7609 = vmatprep.subr.mxu0 0.0
    %7610 = vmatpush2.msra.mxu0 %v6060
    %7611 = vmatprep.subr.mxu0 0.0
    %7612 = vmatpush2.msra.mxu0 %v6051
    %7613 = vmatprep.subr.mxu0 0.0
    %7614 = vmatpush2.msra.mxu0 %v6042
    %7615 = vmatprep.subr.mxu0 0.0
    %7616 = vmatpush2.msra.mxu0 %v6033
    %7617 = vmatprep.subr.mxu0 0.0
    %7618 = vmatpush2.msra.mxu0 %v6024
    %7619 = vmatprep.mubr.f32.mxu0 %v5007
    %7620 = vmatmul.mubr.f32.gmra.mxu0 %v5006
    %v7621 = vpop.f32.mrf.mxu0
    %v7622 = vadd.f32 %v7552, %v7621
    %v7623 = vpop.f32.mrf.mxu0
    %7624 = vdwg.mxu0
    %v7625 = vmax.f32 %v6489, 0.0
    %v7626 = vmax.f32 %v6491, 0.0
    %v7627 = vmax.f32 %v6773, 0.0
    %v7628 = vmax.f32 %v6775, 0.0
    %v7629 = vmax.f32 %v7057, 0.0
    %v7630 = vmax.f32 %v7059, 0.0
    %v7631 = vmax.f32 %v7341, 0.0
    %v7632 = vmax.f32 %v7343, 0.0
    %v7633 = vld [vmem:[#allocation17] sm:$0xff]
    %v7634 = vld [vmem:[#allocation17 + $0x8] sm:$0xff]
    %v7635 = vld [vmem:[#allocation17 + $0x10] sm:$0xff]
    %v7636 = vld [vmem:[#allocation17 + $0x18] sm:$0xff]
    %v7637 = vld [vmem:[#allocation17 + $0x20] sm:$0xff]
    %v7638 = vld [vmem:[#allocation17 + $0x28] sm:$0xff]
    %v7639 = vld [vmem:[#allocation17 + $0x30] sm:$0xff]
    %v7640 = vld [vmem:[#allocation17 + $0x38] sm:$0xff]
    %v7641 = vld [vmem:[#allocation17 + $0x40] sm:$0xff]
    %v7642 = vld [vmem:[#allocation17 + $0x48] sm:$0xff]
    %v7643 = vld [vmem:[#allocation17 + $0x50] sm:$0xff]
    %v7644 = vld [vmem:[#allocation17 + $0x58] sm:$0xff]
    %v7645 = vld [vmem:[#allocation17 + $0x60] sm:$0xff]
    %v7646 = vld [vmem:[#allocation17 + $0x68] sm:$0xff]
    %v7647 = vld [vmem:[#allocation17 + $0x70] sm:$0xff]
    %v7648 = vld [vmem:[#allocation17 + $0x78] sm:$0xff]
    %v7649 = vld [vmem:[#allocation17 + $0x80] sm:$0xff]
    %v7650 = vld [vmem:[#allocation17 + $0x88] sm:$0xff]
    %v7651 = vld [vmem:[#allocation17 + $0x90] sm:$0xff]
    %v7652 = vld [vmem:[#allocation17 + $0x98] sm:$0xff]
    %v7653 = vld [vmem:[#allocation17 + $0xa0] sm:$0xff]
    %v7654 = vld [vmem:[#allocation17 + $0xa8] sm:$0xff]
    %v7655 = vld [vmem:[#allocation17 + $0xb0] sm:$0xff]
    %v7656 = vld [vmem:[#allocation17 + $0xb8] sm:$0xff]
    %v7657 = vld [vmem:[#allocation17 + $0xc0] sm:$0xff]
    %v7658 = vld [vmem:[#allocation17 + $0xc8] sm:$0xff]
    %v7659 = vld [vmem:[#allocation17 + $0xd0] sm:$0xff]
    %v7660 = vld [vmem:[#allocation17 + $0xd8] sm:$0xff]
    %v7661 = vld [vmem:[#allocation17 + $0xe0] sm:$0xff]
    %v7662 = vld [vmem:[#allocation17 + $0xe8] sm:$0xff]
    %v7663 = vld [vmem:[#allocation17 + $0xf0] sm:$0xff]
    %v7664 = vld [vmem:[#allocation17 + $0xf8] sm:$0xff]
    %v7665 = vld [vmem:[#allocation17 + $0x100] sm:$0xff]
    %v7666 = vld [vmem:[#allocation17 + $0x108] sm:$0xff]
    %v7667 = vld [vmem:[#allocation17 + $0x110] sm:$0xff]
    %v7668 = vld [vmem:[#allocation17 + $0x118] sm:$0xff]
    %v7669 = vld [vmem:[#allocation17 + $0x120] sm:$0xff]
    %v7670 = vld [vmem:[#allocation17 + $0x128] sm:$0xff]
    %v7671 = vld [vmem:[#allocation17 + $0x130] sm:$0xff]
    %v7672 = vld [vmem:[#allocation17 + $0x138] sm:$0xff]
    %v7673 = vld [vmem:[#allocation17 + $0x140] sm:$0xff]
    %v7674 = vld [vmem:[#allocation17 + $0x148] sm:$0xff]
    %v7675 = vld [vmem:[#allocation17 + $0x150] sm:$0xff]
    %v7676 = vld [vmem:[#allocation17 + $0x158] sm:$0xff]
    %v7677 = vld [vmem:[#allocation17 + $0x160] sm:$0xff]
    %v7678 = vld [vmem:[#allocation17 + $0x168] sm:$0xff]
    %v7679 = vld [vmem:[#allocation17 + $0x170] sm:$0xff]
    %v7680 = vld [vmem:[#allocation17 + $0x178] sm:$0xff]
    %v7681 = vld [vmem:[#allocation17 + $0x180] sm:$0xff]
    %v7682 = vld [vmem:[#allocation17 + $0x188] sm:$0xff]
    %v7683 = vld [vmem:[#allocation17 + $0x190] sm:$0xff]
    %v7684 = vld [vmem:[#allocation17 + $0x198] sm:$0xff]
    %v7685 = vld [vmem:[#allocation17 + $0x1a0] sm:$0xff]
    %v7686 = vld [vmem:[#allocation17 + $0x1a8] sm:$0xff]
    %v7687 = vld [vmem:[#allocation17 + $0x1b0] sm:$0xff]
    %v7688 = vld [vmem:[#allocation17 + $0x1b8] sm:$0xff]
    %v7689 = vld [vmem:[#allocation17 + $0x1c0] sm:$0xff]
    %v7690 = vld [vmem:[#allocation17 + $0x1c8] sm:$0xff]
    %v7691 = vld [vmem:[#allocation17 + $0x1d0] sm:$0xff]
    %v7692 = vld [vmem:[#allocation17 + $0x1d8] sm:$0xff]
    %v7693 = vld [vmem:[#allocation17 + $0x1e0] sm:$0xff]
    %v7694 = vld [vmem:[#allocation17 + $0x1e8] sm:$0xff]
    %v7695 = vld [vmem:[#allocation17 + $0x1f0] sm:$0xff]
    %v7696 = vld [vmem:[#allocation17 + $0x1f8] sm:$0xff]
    %v7697 = vld [vmem:[#allocation17 + $0x200] sm:$0xff]
    %v7698 = vld [vmem:[#allocation17 + $0x208] sm:$0xff]
    %v7699 = vld [vmem:[#allocation17 + $0x210] sm:$0xff]
    %v7700 = vld [vmem:[#allocation17 + $0x218] sm:$0xff]
    %v7701 = vld [vmem:[#allocation17 + $0x220] sm:$0xff]
    %v7702 = vld [vmem:[#allocation17 + $0x228] sm:$0xff]
    %v7703 = vld [vmem:[#allocation17 + $0x230] sm:$0xff]
    %v7704 = vld [vmem:[#allocation17 + $0x238] sm:$0xff]
    %v7705 = vld [vmem:[#allocation17 + $0x240] sm:$0xff]
    %v7706 = vld [vmem:[#allocation17 + $0x248] sm:$0xff]
    %v7707 = vld [vmem:[#allocation17 + $0x250] sm:$0xff]
    %v7708 = vld [vmem:[#allocation17 + $0x258] sm:$0xff]
    %v7709 = vld [vmem:[#allocation17 + $0x260] sm:$0xff]
    %v7710 = vld [vmem:[#allocation17 + $0x268] sm:$0xff]
    %v7711 = vld [vmem:[#allocation17 + $0x270] sm:$0xff]
    %v7712 = vld [vmem:[#allocation17 + $0x278] sm:$0xff]
    %v7713 = vld [vmem:[#allocation17 + $0x280] sm:$0xff]
    %v7714 = vld [vmem:[#allocation17 + $0x288] sm:$0xff]
    %v7715 = vld [vmem:[#allocation17 + $0x290] sm:$0xff]
    %v7716 = vld [vmem:[#allocation17 + $0x298] sm:$0xff]
    %v7717 = vld [vmem:[#allocation17 + $0x2a0] sm:$0xff]
    %v7718 = vld [vmem:[#allocation17 + $0x2a8] sm:$0xff]
    %v7719 = vld [vmem:[#allocation17 + $0x2b0] sm:$0xff]
    %v7720 = vld [vmem:[#allocation17 + $0x2b8] sm:$0xff]
    %v7721 = vld [vmem:[#allocation17 + $0x2c0] sm:$0xff]
    %v7722 = vld [vmem:[#allocation17 + $0x2c8] sm:$0xff]
    %v7723 = vld [vmem:[#allocation17 + $0x2d0] sm:$0xff]
    %v7724 = vld [vmem:[#allocation17 + $0x2d8] sm:$0xff]
    %v7725 = vld [vmem:[#allocation17 + $0x2e0] sm:$0xff]
    %v7726 = vld [vmem:[#allocation17 + $0x2e8] sm:$0xff]
    %v7727 = vld [vmem:[#allocation17 + $0x2f0] sm:$0xff]
    %v7728 = vld [vmem:[#allocation17 + $0x2f8] sm:$0xff]
    %v7729 = vld [vmem:[#allocation17 + $0x300] sm:$0xff]
    %v7730 = vld [vmem:[#allocation17 + $0x308] sm:$0xff]
    %v7731 = vld [vmem:[#allocation17 + $0x310] sm:$0xff]
    %v7732 = vld [vmem:[#allocation17 + $0x318] sm:$0xff]
    %v7733 = vld [vmem:[#allocation17 + $0x320] sm:$0xff]
    %v7734 = vld [vmem:[#allocation17 + $0x328] sm:$0xff]
    %v7735 = vld [vmem:[#allocation17 + $0x330] sm:$0xff]
    %v7736 = vld [vmem:[#allocation17 + $0x338] sm:$0xff]
    %v7737 = vld [vmem:[#allocation17 + $0x340] sm:$0xff]
    %v7738 = vld [vmem:[#allocation17 + $0x348] sm:$0xff]
    %v7739 = vld [vmem:[#allocation17 + $0x350] sm:$0xff]
    %v7740 = vld [vmem:[#allocation17 + $0x358] sm:$0xff]
    %v7741 = vld [vmem:[#allocation17 + $0x360] sm:$0xff]
    %v7742 = vld [vmem:[#allocation17 + $0x368] sm:$0xff]
    %v7743 = vld [vmem:[#allocation17 + $0x370] sm:$0xff]
    %v7744 = vld [vmem:[#allocation17 + $0x378] sm:$0xff]
    %v7745 = vld [vmem:[#allocation17 + $0x380] sm:$0xff]
    %v7746 = vld [vmem:[#allocation17 + $0x388] sm:$0xff]
    %v7747 = vld [vmem:[#allocation17 + $0x390] sm:$0xff]
    %v7748 = vld [vmem:[#allocation17 + $0x398] sm:$0xff]
    %v7749 = vld [vmem:[#allocation17 + $0x3a0] sm:$0xff]
    %v7750 = vld [vmem:[#allocation17 + $0x3a8] sm:$0xff]
    %v7751 = vld [vmem:[#allocation17 + $0x3b0] sm:$0xff]
    %v7752 = vld [vmem:[#allocation17 + $0x3b8] sm:$0xff]
    %v7753 = vld [vmem:[#allocation17 + $0x3c0] sm:$0xff]
    %v7754 = vld [vmem:[#allocation17 + $0x3c8] sm:$0xff]
    %v7755 = vld [vmem:[#allocation17 + $0x3d0] sm:$0xff]
    %v7756 = vld [vmem:[#allocation17 + $0x3d8] sm:$0xff]
    %v7757 = vld [vmem:[#allocation17 + $0x3e0] sm:$0xff]
    %v7758 = vld [vmem:[#allocation17 + $0x3e8] sm:$0xff]
    %v7759 = vld [vmem:[#allocation17 + $0x3f0] sm:$0xff]
    %v7760 = vld [vmem:[#allocation17 + $0x3f8] sm:$0xff]
    %v7761 = vld [vmem:[#allocation19] sm:$0x1]
    %v7763 = vlaneseq
    %v7764 = vshrl.u32 %v7763, 7
    %v7765 = vsub.s32 0, %v7764
    %v7766 = vrot.slane %v7761, %v7765
    %7768 = vmatprep.subr.mxu0 0.0
    %7769 = vmatpush1.msra.mxu0 %v7648
    %7770 = vmatprep.subr.mxu0 0.0
    %7771 = vmatpush1.msra.mxu0 %v7647
    %7772 = vmatprep.subr.mxu0 0.0
    %7773 = vmatpush1.msra.mxu0 %v7646
    %7774 = vmatprep.subr.mxu0 0.0
    %7775 = vmatpush1.msra.mxu0 %v7645
    %7776 = vmatprep.subr.mxu0 0.0
    %7777 = vmatpush1.msra.mxu0 %v7644
    %7778 = vmatprep.subr.mxu0 0.0
    %7779 = vmatpush1.msra.mxu0 %v7643
    %7780 = vmatprep.subr.mxu0 0.0
    %7781 = vmatpush1.msra.mxu0 %v7642
    %7782 = vmatprep.subr.mxu0 0.0
    %7783 = vmatpush1.msra.mxu0 %v7641
    %7784 = vmatprep.subr.mxu0 0.0
    %7785 = vmatpush1.msra.mxu0 %v7640
    %7786 = vmatprep.subr.mxu0 0.0
    %7787 = vmatpush1.msra.mxu0 %v7639
    %7788 = vmatprep.subr.mxu0 0.0
    %7789 = vmatpush1.msra.mxu0 %v7638
    %7790 = vmatprep.subr.mxu0 0.0
    %7791 = vmatpush1.msra.mxu0 %v7637
    %7792 = vmatprep.subr.mxu0 0.0
    %7793 = vmatpush1.msra.mxu0 %v7636
    %7794 = vmatprep.subr.mxu0 0.0
    %7795 = vmatpush1.msra.mxu0 %v7635
    %7796 = vmatprep.subr.mxu0 0.0
    %7797 = vmatpush1.msra.mxu0 %v7634
    %7798 = vmatprep.subr.mxu0 0.0
    %7799 = vmatpush1.msra.mxu0 %v7633
    %7800 = vmatprep.subr.mxu0 0.0
    %7801 = vmatpush2.msra.mxu0 %v7664
    %7802 = vmatprep.subr.mxu0 0.0
    %7803 = vmatpush2.msra.mxu0 %v7663
    %7804 = vmatprep.subr.mxu0 0.0
    %7805 = vmatpush2.msra.mxu0 %v7662
    %7806 = vmatprep.subr.mxu0 0.0
    %7807 = vmatpush2.msra.mxu0 %v7661
    %7808 = vmatprep.subr.mxu0 0.0
    %7809 = vmatpush2.msra.mxu0 %v7660
    %7810 = vmatprep.subr.mxu0 0.0
    %7811 = vmatpush2.msra.mxu0 %v7659
    %7812 = vmatprep.subr.mxu0 0.0
    %7813 = vmatpush2.msra.mxu0 %v7658
    %7814 = vmatprep.subr.mxu0 0.0
    %7815 = vmatpush2.msra.mxu0 %v7657
    %7816 = vmatprep.subr.mxu0 0.0
    %7817 = vmatpush2.msra.mxu0 %v7656
    %7818 = vmatprep.subr.mxu0 0.0
    %7819 = vmatpush2.msra.mxu0 %v7655
    %7820 = vmatprep.subr.mxu0 0.0
    %7821 = vmatpush2.msra.mxu0 %v7654
    %7822 = vmatprep.subr.mxu0 0.0
    %7823 = vmatpush2.msra.mxu0 %v7653
    %7824 = vmatprep.subr.mxu0 0.0
    %7825 = vmatpush2.msra.mxu0 %v7652
    %7826 = vmatprep.subr.mxu0 0.0
    %7827 = vmatpush2.msra.mxu0 %v7651
    %7828 = vmatprep.subr.mxu0 0.0
    %7829 = vmatpush2.msra.mxu0 %v7650
    %7830 = vmatprep.subr.mxu0 0.0
    %7831 = vmatpush2.msra.mxu0 %v7649
    %7832 = vmatprep.mubr.f32.mxu0 %v7626
    %7833 = vmatmul.mubr.f32.gmra.mxu0 %v7625
    %v7834 = vpop.f32.mrf.mxu0
    %v7835 = vadd.f32 %v7766, %v7834
    %v7836 = vpop.f32.mrf.mxu0
    %7837 = vdwg.mxu0
    %7838 = vmatprep.subr.mxu0 0.0
    %7839 = vmatpush1.msra.mxu0 %v7680
    %7840 = vmatprep.subr.mxu0 0.0
    %7841 = vmatpush1.msra.mxu0 %v7679
    %7842 = vmatprep.subr.mxu0 0.0
    %7843 = vmatpush1.msra.mxu0 %v7678
    %7844 = vmatprep.subr.mxu0 0.0
    %7845 = vmatpush1.msra.mxu0 %v7677
    %7846 = vmatprep.subr.mxu0 0.0
    %7847 = vmatpush1.msra.mxu0 %v7676
    %7848 = vmatprep.subr.mxu0 0.0
    %7849 = vmatpush1.msra.mxu0 %v7675
    %7850 = vmatprep.subr.mxu0 0.0
    %7851 = vmatpush1.msra.mxu0 %v7674
    %7852 = vmatprep.subr.mxu0 0.0
    %7853 = vmatpush1.msra.mxu0 %v7673
    %7854 = vmatprep.subr.mxu0 0.0
    %7855 = vmatpush1.msra.mxu0 %v7672
    %7856 = vmatprep.subr.mxu0 0.0
    %7857 = vmatpush1.msra.mxu0 %v7671
    %7858 = vmatprep.subr.mxu0 0.0
    %7859 = vmatpush1.msra.mxu0 %v7670
    %7860 = vmatprep.subr.mxu0 0.0
    %7861 = vmatpush1.msra.mxu0 %v7669
    %7862 = vmatprep.subr.mxu0 0.0
    %7863 = vmatpush1.msra.mxu0 %v7668
    %7864 = vmatprep.subr.mxu0 0.0
    %7865 = vmatpush1.msra.mxu0 %v7667
    %7866 = vmatprep.subr.mxu0 0.0
    %7867 = vmatpush1.msra.mxu0 %v7666
    %7868 = vmatprep.subr.mxu0 0.0
    %7869 = vmatpush1.msra.mxu0 %v7665
    %7870 = vmatprep.subr.mxu0 0.0
    %7871 = vmatpush2.msra.mxu0 %v7696
    %7872 = vmatprep.subr.mxu0 0.0
    %7873 = vmatpush2.msra.mxu0 %v7695
    %7874 = vmatprep.subr.mxu0 0.0
    %7875 = vmatpush2.msra.mxu0 %v7694
    %7876 = vmatprep.subr.mxu0 0.0
    %7877 = vmatpush2.msra.mxu0 %v7693
    %7878 = vmatprep.subr.mxu0 0.0
    %7879 = vmatpush2.msra.mxu0 %v7692
    %7880 = vmatprep.subr.mxu0 0.0
    %7881 = vmatpush2.msra.mxu0 %v7691
    %7882 = vmatprep.subr.mxu0 0.0
    %7883 = vmatpush2.msra.mxu0 %v7690
    %7884 = vmatprep.subr.mxu0 0.0
    %7885 = vmatpush2.msra.mxu0 %v7689
    %7886 = vmatprep.subr.mxu0 0.0
    %7887 = vmatpush2.msra.mxu0 %v7688
    %7888 = vmatprep.subr.mxu0 0.0
    %7889 = vmatpush2.msra.mxu0 %v7687
    %7890 = vmatprep.subr.mxu0 0.0
    %7891 = vmatpush2.msra.mxu0 %v7686
    %7892 = vmatprep.subr.mxu0 0.0
    %7893 = vmatpush2.msra.mxu0 %v7685
    %7894 = vmatprep.subr.mxu0 0.0
    %7895 = vmatpush2.msra.mxu0 %v7684
    %7896 = vmatprep.subr.mxu0 0.0
    %7897 = vmatpush2.msra.mxu0 %v7683
    %7898 = vmatprep.subr.mxu0 0.0
    %7899 = vmatpush2.msra.mxu0 %v7682
    %7900 = vmatprep.subr.mxu0 0.0
    %7901 = vmatpush2.msra.mxu0 %v7681
    %7902 = vmatprep.mubr.f32.mxu0 %v7628
    %7903 = vmatmul.mubr.f32.gmra.mxu0 %v7627
    %v7904 = vpop.f32.mrf.mxu0
    %v7905 = vadd.f32 %v7835, %v7904
    %v7906 = vpop.f32.mrf.mxu0
    %7907 = vdwg.mxu0
    %7908 = vmatprep.subr.mxu0 0.0
    %7909 = vmatpush1.msra.mxu0 %v7712
    %7910 = vmatprep.subr.mxu0 0.0
    %7911 = vmatpush1.msra.mxu0 %v7711
    %7912 = vmatprep.subr.mxu0 0.0
    %7913 = vmatpush1.msra.mxu0 %v7710
    %7914 = vmatprep.subr.mxu0 0.0
    %7915 = vmatpush1.msra.mxu0 %v7709
    %7916 = vmatprep.subr.mxu0 0.0
    %7917 = vmatpush1.msra.mxu0 %v7708
    %7918 = vmatprep.subr.mxu0 0.0
    %7919 = vmatpush1.msra.mxu0 %v7707
    %7920 = vmatprep.subr.mxu0 0.0
    %7921 = vmatpush1.msra.mxu0 %v7706
    %7922 = vmatprep.subr.mxu0 0.0
    %7923 = vmatpush1.msra.mxu0 %v7705
    %7924 = vmatprep.subr.mxu0 0.0
    %7925 = vmatpush1.msra.mxu0 %v7704
    %7926 = vmatprep.subr.mxu0 0.0
    %7927 = vmatpush1.msra.mxu0 %v7703
    %7928 = vmatprep.subr.mxu0 0.0
    %7929 = vmatpush1.msra.mxu0 %v7702
    %7930 = vmatprep.subr.mxu0 0.0
    %7931 = vmatpush1.msra.mxu0 %v7701
    %7932 = vmatprep.subr.mxu0 0.0
    %7933 = vmatpush1.msra.mxu0 %v7700
    %7934 = vmatprep.subr.mxu0 0.0
    %7935 = vmatpush1.msra.mxu0 %v7699
    %7936 = vmatprep.subr.mxu0 0.0
    %7937 = vmatpush1.msra.mxu0 %v7698
    %7938 = vmatprep.subr.mxu0 0.0
    %7939 = vmatpush1.msra.mxu0 %v7697
    %7940 = vmatprep.subr.mxu0 0.0
    %7941 = vmatpush2.msra.mxu0 %v7728
    %7942 = vmatprep.subr.mxu0 0.0
    %7943 = vmatpush2.msra.mxu0 %v7727
    %7944 = vmatprep.subr.mxu0 0.0
    %7945 = vmatpush2.msra.mxu0 %v7726
    %7946 = vmatprep.subr.mxu0 0.0
    %7947 = vmatpush2.msra.mxu0 %v7725
    %7948 = vmatprep.subr.mxu0 0.0
    %7949 = vmatpush2.msra.mxu0 %v7724
    %7950 = vmatprep.subr.mxu0 0.0
    %7951 = vmatpush2.msra.mxu0 %v7723
    %7952 = vmatprep.subr.mxu0 0.0
    %7953 = vmatpush2.msra.mxu0 %v7722
    %7954 = vmatprep.subr.mxu0 0.0
    %7955 = vmatpush2.msra.mxu0 %v7721
    %7956 = vmatprep.subr.mxu0 0.0
    %7957 = vmatpush2.msra.mxu0 %v7720
    %7958 = vmatprep.subr.mxu0 0.0
    %7959 = vmatpush2.msra.mxu0 %v7719
    %7960 = vmatprep.subr.mxu0 0.0
    %7961 = vmatpush2.msra.mxu0 %v7718
    %7962 = vmatprep.subr.mxu0 0.0
    %7963 = vmatpush2.msra.mxu0 %v7717
    %7964 = vmatprep.subr.mxu0 0.0
    %7965 = vmatpush2.msra.mxu0 %v7716
    %7966 = vmatprep.subr.mxu0 0.0
    %7967 = vmatpush2.msra.mxu0 %v7715
    %7968 = vmatprep.subr.mxu0 0.0
    %7969 = vmatpush2.msra.mxu0 %v7714
    %7970 = vmatprep.subr.mxu0 0.0
    %7971 = vmatpush2.msra.mxu0 %v7713
    %7972 = vmatprep.mubr.f32.mxu0 %v7630
    %7973 = vmatmul.mubr.f32.gmra.mxu0 %v7629
    %v7974 = vpop.f32.mrf.mxu0
    %v7975 = vadd.f32 %v7905, %v7974
    %v7976 = vpop.f32.mrf.mxu0
    %7977 = vdwg.mxu0
    %7978 = vmatprep.subr.mxu0 0.0
    %7979 = vmatpush1.msra.mxu0 %v7744
    %7980 = vmatprep.subr.mxu0 0.0
    %7981 = vmatpush1.msra.mxu0 %v7743
    %7982 = vmatprep.subr.mxu0 0.0
    %7983 = vmatpush1.msra.mxu0 %v7742
    %7984 = vmatprep.subr.mxu0 0.0
    %7985 = vmatpush1.msra.mxu0 %v7741
    %7986 = vmatprep.subr.mxu0 0.0
    %7987 = vmatpush1.msra.mxu0 %v7740
    %7988 = vmatprep.subr.mxu0 0.0
    %7989 = vmatpush1.msra.mxu0 %v7739
    %7990 = vmatprep.subr.mxu0 0.0
    %7991 = vmatpush1.msra.mxu0 %v7738
    %7992 = vmatprep.subr.mxu0 0.0
    %7993 = vmatpush1.msra.mxu0 %v7737
    %7994 = vmatprep.subr.mxu0 0.0
    %7995 = vmatpush1.msra.mxu0 %v7736
    %7996 = vmatprep.subr.mxu0 0.0
    %7997 = vmatpush1.msra.mxu0 %v7735
    %7998 = vmatprep.subr.mxu0 0.0
    %7999 = vmatpush1.msra.mxu0 %v7734
    %8000 = vmatprep.subr.mxu0 0.0
    %8001 = vmatpush1.msra.mxu0 %v7733
    %8002 = vmatprep.subr.mxu0 0.0
    %8003 = vmatpush1.msra.mxu0 %v7732
    %8004 = vmatprep.subr.mxu0 0.0
    %8005 = vmatpush1.msra.mxu0 %v7731
    %8006 = vmatprep.subr.mxu0 0.0
    %8007 = vmatpush1.msra.mxu0 %v7730
    %8008 = vmatprep.subr.mxu0 0.0
    %8009 = vmatpush1.msra.mxu0 %v7729
    %8010 = vmatprep.subr.mxu0 0.0
    %8011 = vmatpush2.msra.mxu0 %v7760
    %8012 = vmatprep.subr.mxu0 0.0
    %8013 = vmatpush2.msra.mxu0 %v7759
    %8014 = vmatprep.subr.mxu0 0.0
    %8015 = vmatpush2.msra.mxu0 %v7758
    %8016 = vmatprep.subr.mxu0 0.0
    %8017 = vmatpush2.msra.mxu0 %v7757
    %8018 = vmatprep.subr.mxu0 0.0
    %8019 = vmatpush2.msra.mxu0 %v7756
    %8020 = vmatprep.subr.mxu0 0.0
    %8021 = vmatpush2.msra.mxu0 %v7755
    %8022 = vmatprep.subr.mxu0 0.0
    %8023 = vmatpush2.msra.mxu0 %v7754
    %8024 = vmatprep.subr.mxu0 0.0
    %8025 = vmatpush2.msra.mxu0 %v7753
    %8026 = vmatprep.subr.mxu0 0.0
    %8027 = vmatpush2.msra.mxu0 %v7752
    %8028 = vmatprep.subr.mxu0 0.0
    %8029 = vmatpush2.msra.mxu0 %v7751
    %8030 = vmatprep.subr.mxu0 0.0
    %8031 = vmatpush2.msra.mxu0 %v7750
    %8032 = vmatprep.subr.mxu0 0.0
    %8033 = vmatpush2.msra.mxu0 %v7749
    %8034 = vmatprep.subr.mxu0 0.0
    %8035 = vmatpush2.msra.mxu0 %v7748
    %8036 = vmatprep.subr.mxu0 0.0
    %8037 = vmatpush2.msra.mxu0 %v7747
    %8038 = vmatprep.subr.mxu0 0.0
    %8039 = vmatpush2.msra.mxu0 %v7746
    %8040 = vmatprep.subr.mxu0 0.0
    %8041 = vmatpush2.msra.mxu0 %v7745
    %8042 = vmatprep.mubr.f32.mxu0 %v7632
    %8043 = vmatmul.mubr.f32.gmra.mxu0 %v7631
    %v8044 = vpop.f32.mrf.mxu0
    %v8045 = vadd.f32 %v7975, %v8044
    %v8046 = vpop.f32.mrf.mxu0
    %8047 = vdwg.mxu0
    %v8048 = vlaneseq
    %v8049 = vand.u32 %v8048, 127
    %vm8050 = vcmp.eq.s32.totalorder %v8049, 8
    %8052 = vset.pattern.permute.xlu0 0
    %8053 = vperm.xlu0 %8052, %v7622
    %v8054 = vpop.permute.xlu0 %8053
    %v8056 = vsel %vm8050, %v8054, %v8045
    %8057 = vst [vmem:[#allocation20] sm:$0xff] %v8056
    // Predicated region
    $region90: #{_loco_mlp_jit.1} parent=1 // pred_check
      _
    $region91: #{_loco_mlp_jit.1} parent=1 // pred_check_branch
      %8059 = sbr.rel (0) target = $region93
    $region92: #{_loco_mlp_jit.1} parent=1 // pred_region
      %s8061 = ssub.s32 128, 128
      %8062 = vsyncadd [#allocation4], %s8061
      %s8064 = sshll.u32 [#allocation20], 4
      %s8065 = int_to_ptr.vmem [resolvable:$true] %s8064
      %8067 = dma.vmem_to_hbm [thread:$0]  %s8065, 128, %s11, [#allocation4]
    $region93: #{_loco_mlp_jit.1} parent=1 // pred_fallthru
      _
    // Predicated region
    $region94: #{_loco_mlp_jit.1} parent=1 // pred_check
      _
    $region95: #{_loco_mlp_jit.1} parent=1 // pred_check_branch
      %8069 = sbr.rel (0) target = $region97
    $region96: #{_loco_mlp_jit.1} parent=1 // pred_region
      %8070 = dma.done [#allocation4], 128
    $region97: #{_loco_mlp_jit.1} parent=1 // pred_fallthru
      _
    %8071 = vsyncpa [#allocation3], 1
    %8072 = vsyncpa [#allocation6], 1
    %8073 = vsyncpa [#allocation9], 1
    %8074 = vsyncpa [#allocation12], 1
    %8075 = vsyncpa [#allocation15], 1
    %8076 = vsyncpa [#allocation18], 1
    %8077 = vsyncpa [#allocation4], 1

</llo_original>
